<compile_context>
chip_gen: v7x
topology: tpu7x:2x2x1
jax: 0.10.0
libtpu: 0.0.40
codegen_flags: <defaults>
</compile_context>

<pallas_src>
import jax
import jax.numpy as jnp
from jax.experimental import pallas as pl
from jax.experimental.pallas import tpu as pltpu


# ------------- fused kernel: reduce + fused qkv + chunked attention + proj -------------
def _make_kernel(num_heads, n_chunks):
    def kernel(x_ref, wr_ref, wqkv_ref, wp_ref, bp_ref, o_ref):
        x = x_ref[0]                                     # (N, dim) token slab
        N, dim = x.shape
        C = wr_ref.shape[1]
        hd = C // num_heads
        chunk = N // n_chunks

        # token-wise reduction: (N, dim) @ (dim, C) -> (N, C)
        xr = jnp.dot(x, wr_ref[...], preferred_element_type=jnp.float32)
        # fused q/k/v projection: one wide MXU matmul, (N, C) @ (C, 3C) -> (N, 3C)
        # (scale already folded into the q columns of the packed weight)
        qkv = jnp.dot(xr, wqkv_ref[...], preferred_element_type=jnp.float32)

        acc = jnp.zeros((N, dim), jnp.float32)           # lane-dense on dim
        for h in range(num_heads):                       # static head loop (H small)
            q = qkv[:, h * hd:(h + 1) * hd].reshape(n_chunks, chunk, hd)
            k = qkv[:, C + h * hd:C + (h + 1) * hd].reshape(n_chunks, chunk, hd)
            v = qkv[:, 2 * C + h * hd:2 * C + (h + 1) * hd].reshape(n_chunks, chunk, hd)
            # block-diagonal scores, all 4 chunks batched: (n_chunks, chunk, chunk)
            s = jnp.einsum("bqe,bke->bqk", q, k, preferred_element_type=jnp.float32)
            s = s - jnp.max(s, axis=-1, keepdims=True)
            e = jnp.exp(s)
            p = e * pl.reciprocal(jnp.sum(e, axis=-1, keepdims=True), approx=False)
            oh = jnp.einsum("bqk,bke->bqe", p, v,
                            preferred_element_type=jnp.float32)   # (n_chunks, chunk, hd)
            # fold output projection per head: stays lane-dense on dim, no head concat
            acc = acc + jnp.dot(oh.reshape(N, hd), wp_ref[h],
                                preferred_element_type=jnp.float32)
        o_ref[0] = (acc + bp_ref[...]).astype(o_ref.dtype)
    return kernel


# ------------- one-time parameter packing (outside the per-forward wrapper) ------------
def prepare_kernel_params(params, num_heads, dim):
    C = dim // 2
    H = num_heads
    hd = C // H
    scale = float((dim // H) ** -0.5)        # PyTorch quirk: head_dim from PRE-reduce dim

    def to2d(w):                              # (H, C, hd) head-major -> (C, H*hd) = (C, C)
        return jnp.transpose(w, (1, 0, 2)).reshape(C, C)

    w_qkv = jnp.concatenate(
        [to2d(params["w_q"]) * scale, to2d(params["w_k"]), to2d(params["w_v"])], axis=1)
    return {
        "w_reduce": params["w_reduce"],              # (dim, C)     = reduce.weight.T
        "w_qkv": w_qkv,                              # (C, 3C)      = qkv.weight.T (q scaled)
        "w_proj": params["w_proj"],                  # (H, hd, dim) = proj.weight.T head-major
        "b_proj": params["b_proj"].reshape(1, dim),  # (1, dim)
    }


# ------------- wrapper ------------------------------------------------------------------
def eff_attention(x, kp, num_heads):
    B, N, dim = x.shape
    C = dim // 2
    H = num_heads
    hd = C // H
    n_chunks = 4
    assert N % n_chunks == 0, "ragged last chunk not handled"   # TODO(synk)

    return pl.pallas_call(
        _make_kernel(H, n_chunks),
        out_shape=jax.ShapeDtypeStruct((B, N, dim), jnp.float32),
        grid=(B,),
        in_specs=[
            pl.BlockSpec((1, N, dim), lambda b: (b, 0, 0)),      # x token slab
            pl.BlockSpec((dim, C), lambda b: (0, 0)),            # w_reduce
            pl.BlockSpec((C, 3 * C), lambda b: (0, 0)),          # packed w_qkv
            pl.BlockSpec((H, hd, dim), lambda b: (0, 0, 0)),     # per-head w_proj
            pl.BlockSpec((1, dim), lambda b: (0, 0)),            # b_proj
        ],
        out_specs=pl.BlockSpec((1, N, dim), lambda b: (b, 0, 0)),
        compiler_params=pltpu.CompilerParams(
            dimension_semantics=("parallel",)),    # v7x: consider pltpu.CORE_PARALLEL here
    )(x.astype(jnp.float32), kp["w_reduce"], kp["w_qkv"], kp["w_proj"], kp["b_proj"])


# ------------- pure-JAX reference (mirrors the PyTorch forward) -------------------------
def reference(x, params, num_heads):
    B, N, dim = x.shape
    H = num_heads
    C = dim // 2
    scale = float((dim // H) ** -0.5)
    hp = jax.lax.Precision.HIGHEST
    xr = jnp.einsum("bnd,dc->bnc", x, params["w_reduce"], precision=hp)     # reduce
    q = jnp.einsum("bnc,hce->bhne", xr, params["w_q"], precision=hp)        # qkv per head
    k = jnp.einsum("bnc,hce->bhne", xr, params["w_k"], precision=hp)
    v = jnp.einsum("bnc,hce->bhne", xr, params["w_v"], precision=hp)
    chunk = N // 4                                                          # == ceil(N//4)
    outs = []
    for i in range(4):                                                      # 4 token chunks
        sl = slice(i * chunk, (i + 1) * chunk)
        attn = jnp.einsum("bhqe,bhke->bhqk", q[:, :, sl], k[:, :, sl],
                          precision=hp) * scale
        attn = jax.nn.softmax(attn, axis=-1)
        o = jnp.einsum("bhqk,bhke->bhqe", attn, v[:, :, sl], precision=hp)
        outs.append(jnp.transpose(o, (0, 2, 1, 3)))                         # (B, chunk, H, hd)
    y = jnp.concatenate(outs, axis=1).reshape(B, N, C)                      # head-major feats
    wp = params["w_proj"].reshape(C, dim)
    return jnp.einsum("bnc,cd->bnd", y, wp, precision=hp) + params["b_proj"][None, None, :]


if __name__ == "__main__":
    B, N, dim, num_heads = 2, 64, 64, 8
    C = dim // 2
    hd = C // num_heads

    key = jax.random.PRNGKey(0)
    kx, k1, k2, k3, k4, k5, k6 = jax.random.split(key, 7)
    params = {
        "w_reduce": 0.1 * jax.random.normal(k1, (dim, C), jnp.float32),
        "w_q":      0.1 * jax.random.normal(k2, (num_heads, C, hd), jnp.float32),
        "w_k":      0.1 * jax.random.normal(k3, (num_heads, C, hd), jnp.float32),
        "w_v":      0.1 * jax.random.normal(k4, (num_heads, C, hd), jnp.float32),
        "w_proj":   0.1 * jax.random.normal(k5, (num_heads, hd, dim), jnp.float32),
        "b_proj":   0.1 * jax.random.normal(k6, (dim,), jnp.float32),
    }
    x = jax.random.normal(kx, (B, N, dim), jnp.float32)

    kparams = prepare_kernel_params(params, num_heads, dim)   # one-time packing / scale fold

    z = jax.block_until_ready(eff_attention(x, kparams, num_heads))
    z_ref = jax.block_until_ready(reference(x, params, num_heads))

    assert z.shape == (B, N, dim)
    assert jnp.allclose(z, z_ref, atol=1e-4, rtol=1e-4), "mismatch vs reference"
    print("KERNEL_OK")
</pallas_src>

<mosaic_0001>
module attributes {stable_mosaic.version = 11 : i64} {
  func.func @kernel(%arg0: i32, %arg1: memref<1x64x64xf32, #tpu.memory_space<vmem>>, %arg2: memref<64x32xf32, #tpu.memory_space<vmem>>, %arg3: memref<32x96xf32, #tpu.memory_space<vmem>>, %arg4: memref<8x4x64xf32, #tpu.memory_space<vmem>>, %arg5: memref<1x64xf32, #tpu.memory_space<vmem>>, %arg6: memref<1x64x64xf32, #tpu.memory_space<vmem>>) attributes {dimension_semantics = [#tpu.dimension_semantics<parallel>], iteration_bounds = array<i64: 2>, scalar_prefetch = 0 : i64, scratch_operands = 0 : i64, tpu.core_type = #tpu.core_type<tc>, window_params = [{transform_indices = @transform_0, window_bounds = array<i64: 1, 64, 64>}, {pipeline_mode = #tpu.pipeline_mode<synchronous>, transform_indices = @transform_1, window_bounds = array<i64: 64, 32>}, {pipeline_mode = #tpu.pipeline_mode<synchronous>, transform_indices = @transform_2, window_bounds = array<i64: 32, 96>}, {pipeline_mode = #tpu.pipeline_mode<synchronous>, transform_indices = @transform_3, window_bounds = array<i64: 8, 4, 64>}, {pipeline_mode = #tpu.pipeline_mode<synchronous>, transform_indices = @transform_4, window_bounds = array<i64: 1, 64>}, {transform_indices = @transform_5, window_bounds = array<i64: 1, 64, 64>}]} {
    %c0 = arith.constant 0 : index
    %c0_0 = arith.constant 0 : index
    %c0_1 = arith.constant 0 : index
    %0 = vector.load %arg1[%c0, %c0_0, %c0_1] : memref<1x64x64xf32, #tpu.memory_space<vmem>>, vector<1x64x64xf32>
    %1 = vector.shape_cast %0 : vector<1x64x64xf32> to vector<64x64xf32>
    %c0_2 = arith.constant 0 : index
    %c0_3 = arith.constant 0 : index
    %2 = vector.load %arg2[%c0_2, %c0_3] : memref<64x32xf32, #tpu.memory_space<vmem>>, vector<64x32xf32>
    %cst = arith.constant dense<0.000000e+00> : vector<64x32xf32>
    %3 = tpu.matmul %1, %2, %cst {dimension_numbers = #tpu.dot_dimension_numbers<[1], [0], [0], [1], [0, 0, 1, 1], [], []>} : vector<64x64xf32>, vector<64x32xf32>, vector<64x32xf32> -> vector<64x32xf32>
    %c0_4 = arith.constant 0 : index
    %c0_5 = arith.constant 0 : index
    %4 = vector.load %arg3[%c0_4, %c0_5] : memref<32x96xf32, #tpu.memory_space<vmem>>, vector<32x96xf32>
    %cst_6 = arith.constant dense<0.000000e+00> : vector<64x96xf32>
    %5 = tpu.matmul %3, %4, %cst_6 {dimension_numbers = #tpu.dot_dimension_numbers<[1], [0], [0], [1], [0, 0, 1, 1], [], []>} : vector<64x32xf32>, vector<32x96xf32>, vector<64x96xf32> -> vector<64x96xf32>
    %cst_7 = arith.constant 0.000000e+00 : f32
    %6 = vector.broadcast %cst_7 : f32 to vector<64x64xf32>
    %7 = vector.extract_strided_slice %5 {offsets = [0, 0], sizes = [64, 4], strides = [1, 1]} : vector<64x96xf32> to vector<64x4xf32>
    %8 = vector.shape_cast %7 : vector<64x4xf32> to vector<4x16x4xf32>
    %9 = vector.extract_strided_slice %5 {offsets = [0, 32], sizes = [64, 4], strides = [1, 1]} : vector<64x96xf32> to vector<64x4xf32>
    %10 = vector.shape_cast %9 : vector<64x4xf32> to vector<4x16x4xf32>
    %11 = vector.extract_strided_slice %5 {offsets = [0, 64], sizes = [64, 4], strides = [1, 1]} : vector<64x96xf32> to vector<64x4xf32>
    %12 = vector.shape_cast %11 : vector<64x4xf32> to vector<4x16x4xf32>
    "tpu.trace_start"() <{level = 10 : i32, message = "bqe,bke->bqk"}> : () -> ()
    %cst_8 = arith.constant dense<0.000000e+00> : vector<4x16x16xf32>
    %13 = tpu.matmul %8, %10, %cst_8 {dimension_numbers = #tpu.dot_dimension_numbers<[2], [2], [1], [1], [0, 0, 0, 1, 1, 1], [0], [0]>} : vector<4x16x4xf32>, vector<4x16x4xf32>, vector<4x16x16xf32> -> vector<4x16x16xf32>
    "tpu.trace_stop"() : () -> ()
    %cst_9 = arith.constant dense<0xFF800000> : vector<4x16xf32>
    %14 = vector.multi_reduction <maximumf>, %13, %cst_9 [2] : vector<4x16x16xf32> to vector<4x16xf32>
    %15 = vector.shape_cast %14 : vector<4x16xf32> to vector<4x16x1xf32>
    %16 = vector.broadcast %15 : vector<4x16x1xf32> to vector<4x16x16xf32>
    %17 = arith.subf %13, %16 : vector<4x16x16xf32>
    %18 = math.exp %17 : vector<4x16x16xf32>
    %cst_10 = arith.constant dense<0.000000e+00> : vector<4x16xf32>
    %19 = vector.multi_reduction <add>, %18, %cst_10 [2] : vector<4x16x16xf32> to vector<4x16xf32>
    %20 = vector.shape_cast %19 : vector<4x16xf32> to vector<4x16x1xf32>
    %21 = tpu.reciprocal %20 : vector<4x16x1xf32> -> vector<4x16x1xf32>
    %22 = vector.broadcast %21 : vector<4x16x1xf32> to vector<4x16x16xf32>
    %23 = arith.mulf %18, %22 : vector<4x16x16xf32>
    "tpu.trace_start"() <{level = 10 : i32, message = "bqk,bke->bqe"}> : () -> ()
    %cst_11 = arith.constant dense<0.000000e+00> : vector<4x16x4xf32>
    %24 = tpu.matmul %23, %12, %cst_11 {dimension_numbers = #tpu.dot_dimension_numbers<[2], [1], [1], [2], [0, 0, 0, 1, 1, 2], [0], [0]>} : vector<4x16x16xf32>, vector<4x16x4xf32>, vector<4x16x4xf32> -> vector<4x16x4xf32>
    "tpu.trace_stop"() : () -> ()
    %25 = vector.shape_cast %24 : vector<4x16x4xf32> to vector<64x4xf32>
    %c0_12 = arith.constant 0 : index
    %c0_13 = arith.constant 0 : index
    %c0_14 = arith.constant 0 : index
    %26 = vector.load %arg4[%c0_12, %c0_13, %c0_14] : memref<8x4x64xf32, #tpu.memory_space<vmem>>, vector<1x4x64xf32>
    %27 = vector.shape_cast %26 : vector<1x4x64xf32> to vector<4x64xf32>
    %cst_15 = arith.constant dense<0.000000e+00> : vector<64x64xf32>
    %28 = tpu.matmul %25, %27, %cst_15 {dimension_numbers = #tpu.dot_dimension_numbers<[1], [0], [0], [1], [0, 0, 1, 1], [], []>} : vector<64x4xf32>, vector<4x64xf32>, vector<64x64xf32> -> vector<64x64xf32>
    %29 = arith.addf %6, %28 : vector<64x64xf32>
    %30 = vector.extract_strided_slice %5 {offsets = [0, 4], sizes = [64, 4], strides = [1, 1]} : vector<64x96xf32> to vector<64x4xf32>
    %31 = vector.shape_cast %30 : vector<64x4xf32> to vector<4x16x4xf32>
    %32 = vector.extract_strided_slice %5 {offsets = [0, 36], sizes = [64, 4], strides = [1, 1]} : vector<64x96xf32> to vector<64x4xf32>
    %33 = vector.shape_cast %32 : vector<64x4xf32> to vector<4x16x4xf32>
    %34 = vector.extract_strided_slice %5 {offsets = [0, 68], sizes = [64, 4], strides = [1, 1]} : vector<64x96xf32> to vector<64x4xf32>
    %35 = vector.shape_cast %34 : vector<64x4xf32> to vector<4x16x4xf32>
    "tpu.trace_start"() <{level = 10 : i32, message = "bqe,bke->bqk"}> : () -> ()
    %cst_16 = arith.constant dense<0.000000e+00> : vector<4x16x16xf32>
    %36 = tpu.matmul %31, %33, %cst_16 {dimension_numbers = #tpu.dot_dimension_numbers<[2], [2], [1], [1], [0, 0, 0, 1, 1, 1], [0], [0]>} : vector<4x16x4xf32>, vector<4x16x4xf32>, vector<4x16x16xf32> -> vector<4x16x16xf32>
    "tpu.trace_stop"() : () -> ()
    %cst_17 = arith.constant dense<0xFF800000> : vector<4x16xf32>
    %37 = vector.multi_reduction <maximumf>, %36, %cst_17 [2] : vector<4x16x16xf32> to vector<4x16xf32>
    %38 = vector.shape_cast %37 : vector<4x16xf32> to vector<4x16x1xf32>
    %39 = vector.broadcast %38 : vector<4x16x1xf32> to vector<4x16x16xf32>
    %40 = arith.subf %36, %39 : vector<4x16x16xf32>
    %41 = math.exp %40 : vector<4x16x16xf32>
    %cst_18 = arith.constant dense<0.000000e+00> : vector<4x16xf32>
    %42 = vector.multi_reduction <add>, %41, %cst_18 [2] : vector<4x16x16xf32> to vector<4x16xf32>
    %43 = vector.shape_cast %42 : vector<4x16xf32> to vector<4x16x1xf32>
    %44 = tpu.reciprocal %43 : vector<4x16x1xf32> -> vector<4x16x1xf32>
    %45 = vector.broadcast %44 : vector<4x16x1xf32> to vector<4x16x16xf32>
    %46 = arith.mulf %41, %45 : vector<4x16x16xf32>
    "tpu.trace_start"() <{level = 10 : i32, message = "bqk,bke->bqe"}> : () -> ()
    %cst_19 = arith.constant dense<0.000000e+00> : vector<4x16x4xf32>
    %47 = tpu.matmul %46, %35, %cst_19 {dimension_numbers = #tpu.dot_dimension_numbers<[2], [1], [1], [2], [0, 0, 0, 1, 1, 2], [0], [0]>} : vector<4x16x16xf32>, vector<4x16x4xf32>, vector<4x16x4xf32> -> vector<4x16x4xf32>
    "tpu.trace_stop"() : () -> ()
    %48 = vector.shape_cast %47 : vector<4x16x4xf32> to vector<64x4xf32>
    %c1 = arith.constant 1 : index
    %c0_20 = arith.constant 0 : index
    %c0_21 = arith.constant 0 : index
    %49 = vector.load %arg4[%c1, %c0_20, %c0_21] : memref<8x4x64xf32, #tpu.memory_space<vmem>>, vector<1x4x64xf32>
    %50 = vector.shape_cast %49 : vector<1x4x64xf32> to vector<4x64xf32>
    %cst_22 = arith.constant dense<0.000000e+00> : vector<64x64xf32>
    %51 = tpu.matmul %48, %50, %cst_22 {dimension_numbers = #tpu.dot_dimension_numbers<[1], [0], [0], [1], [0, 0, 1, 1], [], []>} : vector<64x4xf32>, vector<4x64xf32>, vector<64x64xf32> -> vector<64x64xf32>
    %52 = arith.addf %29, %51 : vector<64x64xf32>
    %53 = vector.extract_strided_slice %5 {offsets = [0, 8], sizes = [64, 4], strides = [1, 1]} : vector<64x96xf32> to vector<64x4xf32>
    %54 = vector.shape_cast %53 : vector<64x4xf32> to vector<4x16x4xf32>
    %55 = vector.extract_strided_slice %5 {offsets = [0, 40], sizes = [64, 4], strides = [1, 1]} : vector<64x96xf32> to vector<64x4xf32>
    %56 = vector.shape_cast %55 : vector<64x4xf32> to vector<4x16x4xf32>
    %57 = vector.extract_strided_slice %5 {offsets = [0, 72], sizes = [64, 4], strides = [1, 1]} : vector<64x96xf32> to vector<64x4xf32>
    %58 = vector.shape_cast %57 : vector<64x4xf32> to vector<4x16x4xf32>
    "tpu.trace_start"() <{level = 10 : i32, message = "bqe,bke->bqk"}> : () -> ()
    %cst_23 = arith.constant dense<0.000000e+00> : vector<4x16x16xf32>
    %59 = tpu.matmul %54, %56, %cst_23 {dimension_numbers = #tpu.dot_dimension_numbers<[2], [2], [1], [1], [0, 0, 0, 1, 1, 1], [0], [0]>} : vector<4x16x4xf32>, vector<4x16x4xf32>, vector<4x16x16xf32> -> vector<4x16x16xf32>
    "tpu.trace_stop"() : () -> ()
    %cst_24 = arith.constant dense<0xFF800000> : vector<4x16xf32>
    %60 = vector.multi_reduction <maximumf>, %59, %cst_24 [2] : vector<4x16x16xf32> to vector<4x16xf32>
    %61 = vector.shape_cast %60 : vector<4x16xf32> to vector<4x16x1xf32>
    %62 = vector.broadcast %61 : vector<4x16x1xf32> to vector<4x16x16xf32>
    %63 = arith.subf %59, %62 : vector<4x16x16xf32>
    %64 = math.exp %63 : vector<4x16x16xf32>
    %cst_25 = arith.constant dense<0.000000e+00> : vector<4x16xf32>
    %65 = vector.multi_reduction <add>, %64, %cst_25 [2] : vector<4x16x16xf32> to vector<4x16xf32>
    %66 = vector.shape_cast %65 : vector<4x16xf32> to vector<4x16x1xf32>
    %67 = tpu.reciprocal %66 : vector<4x16x1xf32> -> vector<4x16x1xf32>
    %68 = vector.broadcast %67 : vector<4x16x1xf32> to vector<4x16x16xf32>
    %69 = arith.mulf %64, %68 : vector<4x16x16xf32>
    "tpu.trace_start"() <{level = 10 : i32, message = "bqk,bke->bqe"}> : () -> ()
    %cst_26 = arith.constant dense<0.000000e+00> : vector<4x16x4xf32>
    %70 = tpu.matmul %69, %58, %cst_26 {dimension_numbers = #tpu.dot_dimension_numbers<[2], [1], [1], [2], [0, 0, 0, 1, 1, 2], [0], [0]>} : vector<4x16x16xf32>, vector<4x16x4xf32>, vector<4x16x4xf32> -> vector<4x16x4xf32>
    "tpu.trace_stop"() : () -> ()
    %71 = vector.shape_cast %70 : vector<4x16x4xf32> to vector<64x4xf32>
    %c2 = arith.constant 2 : index
    %c0_27 = arith.constant 0 : index
    %c0_28 = arith.constant 0 : index
    %72 = vector.load %arg4[%c2, %c0_27, %c0_28] : memref<8x4x64xf32, #tpu.memory_space<vmem>>, vector<1x4x64xf32>
    %73 = vector.shape_cast %72 : vector<1x4x64xf32> to vector<4x64xf32>
    %cst_29 = arith.constant dense<0.000000e+00> : vector<64x64xf32>
    %74 = tpu.matmul %71, %73, %cst_29 {dimension_numbers = #tpu.dot_dimension_numbers<[1], [0], [0], [1], [0, 0, 1, 1], [], []>} : vector<64x4xf32>, vector<4x64xf32>, vector<64x64xf32> -> vector<64x64xf32>
    %75 = arith.addf %52, %74 : vector<64x64xf32>
    %76 = vector.extract_strided_slice %5 {offsets = [0, 12], sizes = [64, 4], strides = [1, 1]} : vector<64x96xf32> to vector<64x4xf32>
    %77 = vector.shape_cast %76 : vector<64x4xf32> to vector<4x16x4xf32>
    %78 = vector.extract_strided_slice %5 {offsets = [0, 44], sizes = [64, 4], strides = [1, 1]} : vector<64x96xf32> to vector<64x4xf32>
    %79 = vector.shape_cast %78 : vector<64x4xf32> to vector<4x16x4xf32>
    %80 = vector.extract_strided_slice %5 {offsets = [0, 76], sizes = [64, 4], strides = [1, 1]} : vector<64x96xf32> to vector<64x4xf32>
    %81 = vector.shape_cast %80 : vector<64x4xf32> to vector<4x16x4xf32>
    "tpu.trace_start"() <{level = 10 : i32, message = "bqe,bke->bqk"}> : () -> ()
    %cst_30 = arith.constant dense<0.000000e+00> : vector<4x16x16xf32>
    %82 = tpu.matmul %77, %79, %cst_30 {dimension_numbers = #tpu.dot_dimension_numbers<[2], [2], [1], [1], [0, 0, 0, 1, 1, 1], [0], [0]>} : vector<4x16x4xf32>, vector<4x16x4xf32>, vector<4x16x16xf32> -> vector<4x16x16xf32>
    "tpu.trace_stop"() : () -> ()
    %cst_31 = arith.constant dense<0xFF800000> : vector<4x16xf32>
    %83 = vector.multi_reduction <maximumf>, %82, %cst_31 [2] : vector<4x16x16xf32> to vector<4x16xf32>
    %84 = vector.shape_cast %83 : vector<4x16xf32> to vector<4x16x1xf32>
    %85 = vector.broadcast %84 : vector<4x16x1xf32> to vector<4x16x16xf32>
    %86 = arith.subf %82, %85 : vector<4x16x16xf32>
    %87 = math.exp %86 : vector<4x16x16xf32>
    %cst_32 = arith.constant dense<0.000000e+00> : vector<4x16xf32>
    %88 = vector.multi_reduction <add>, %87, %cst_32 [2] : vector<4x16x16xf32> to vector<4x16xf32>
    %89 = vector.shape_cast %88 : vector<4x16xf32> to vector<4x16x1xf32>
    %90 = tpu.reciprocal %89 : vector<4x16x1xf32> -> vector<4x16x1xf32>
    %91 = vector.broadcast %90 : vector<4x16x1xf32> to vector<4x16x16xf32>
    %92 = arith.mulf %87, %91 : vector<4x16x16xf32>
    "tpu.trace_start"() <{level = 10 : i32, message = "bqk,bke->bqe"}> : () -> ()
    %cst_33 = arith.constant dense<0.000000e+00> : vector<4x16x4xf32>
    %93 = tpu.matmul %92, %81, %cst_33 {dimension_numbers = #tpu.dot_dimension_numbers<[2], [1], [1], [2], [0, 0, 0, 1, 1, 2], [0], [0]>} : vector<4x16x16xf32>, vector<4x16x4xf32>, vector<4x16x4xf32> -> vector<4x16x4xf32>
    "tpu.trace_stop"() : () -> ()
    %94 = vector.shape_cast %93 : vector<4x16x4xf32> to vector<64x4xf32>
    %c3 = arith.constant 3 : index
    %c0_34 = arith.constant 0 : index
    %c0_35 = arith.constant 0 : index
    %95 = vector.load %arg4[%c3, %c0_34, %c0_35] : memref<8x4x64xf32, #tpu.memory_space<vmem>>, vector<1x4x64xf32>
    %96 = vector.shape_cast %95 : vector<1x4x64xf32> to vector<4x64xf32>
    %cst_36 = arith.constant dense<0.000000e+00> : vector<64x64xf32>
    %97 = tpu.matmul %94, %96, %cst_36 {dimension_numbers = #tpu.dot_dimension_numbers<[1], [0], [0], [1], [0, 0, 1, 1], [], []>} : vector<64x4xf32>, vector<4x64xf32>, vector<64x64xf32> -> vector<64x64xf32>
    %98 = arith.addf %75, %97 : vector<64x64xf32>
    %99 = vector.extract_strided_slice %5 {offsets = [0, 16], sizes = [64, 4], strides = [1, 1]} : vector<64x96xf32> to vector<64x4xf32>
    %100 = vector.shape_cast %99 : vector<64x4xf32> to vector<4x16x4xf32>
    %101 = vector.extract_strided_slice %5 {offsets = [0, 48], sizes = [64, 4], strides = [1, 1]} : vector<64x96xf32> to vector<64x4xf32>
    %102 = vector.shape_cast %101 : vector<64x4xf32> to vector<4x16x4xf32>
    %103 = vector.extract_strided_slice %5 {offsets = [0, 80], sizes = [64, 4], strides = [1, 1]} : vector<64x96xf32> to vector<64x4xf32>
    %104 = vector.shape_cast %103 : vector<64x4xf32> to vector<4x16x4xf32>
    "tpu.trace_start"() <{level = 10 : i32, message = "bqe,bke->bqk"}> : () -> ()
    %cst_37 = arith.constant dense<0.000000e+00> : vector<4x16x16xf32>
    %105 = tpu.matmul %100, %102, %cst_37 {dimension_numbers = #tpu.dot_dimension_numbers<[2], [2], [1], [1], [0, 0, 0, 1, 1, 1], [0], [0]>} : vector<4x16x4xf32>, vector<4x16x4xf32>, vector<4x16x16xf32> -> vector<4x16x16xf32>
    "tpu.trace_stop"() : () -> ()
    %cst_38 = arith.constant dense<0xFF800000> : vector<4x16xf32>
    %106 = vector.multi_reduction <maximumf>, %105, %cst_38 [2] : vector<4x16x16xf32> to vector<4x16xf32>
    %107 = vector.shape_cast %106 : vector<4x16xf32> to vector<4x16x1xf32>
    %108 = vector.broadcast %107 : vector<4x16x1xf32> to vector<4x16x16xf32>
    %109 = arith.subf %105, %108 : vector<4x16x16xf32>
    %110 = math.exp %109 : vector<4x16x16xf32>
    %cst_39 = arith.constant dense<0.000000e+00> : vector<4x16xf32>
    %111 = vector.multi_reduction <add>, %110, %cst_39 [2] : vector<4x16x16xf32> to vector<4x16xf32>
    %112 = vector.shape_cast %111 : vector<4x16xf32> to vector<4x16x1xf32>
    %113 = tpu.reciprocal %112 : vector<4x16x1xf32> -> vector<4x16x1xf32>
    %114 = vector.broadcast %113 : vector<4x16x1xf32> to vector<4x16x16xf32>
    %115 = arith.mulf %110, %114 : vector<4x16x16xf32>
    "tpu.trace_start"() <{level = 10 : i32, message = "bqk,bke->bqe"}> : () -> ()
    %cst_40 = arith.constant dense<0.000000e+00> : vector<4x16x4xf32>
    %116 = tpu.matmul %115, %104, %cst_40 {dimension_numbers = #tpu.dot_dimension_numbers<[2], [1], [1], [2], [0, 0, 0, 1, 1, 2], [0], [0]>} : vector<4x16x16xf32>, vector<4x16x4xf32>, vector<4x16x4xf32> -> vector<4x16x4xf32>
    "tpu.trace_stop"() : () -> ()
    %117 = vector.shape_cast %116 : vector<4x16x4xf32> to vector<64x4xf32>
    %c4 = arith.constant 4 : index
    %c0_41 = arith.constant 0 : index
    %c0_42 = arith.constant 0 : index
    %118 = vector.load %arg4[%c4, %c0_41, %c0_42] : memref<8x4x64xf32, #tpu.memory_space<vmem>>, vector<1x4x64xf32>
    %119 = vector.shape_cast %118 : vector<1x4x64xf32> to vector<4x64xf32>
    %cst_43 = arith.constant dense<0.000000e+00> : vector<64x64xf32>
    %120 = tpu.matmul %117, %119, %cst_43 {dimension_numbers = #tpu.dot_dimension_numbers<[1], [0], [0], [1], [0, 0, 1, 1], [], []>} : vector<64x4xf32>, vector<4x64xf32>, vector<64x64xf32> -> vector<64x64xf32>
    %121 = arith.addf %98, %120 : vector<64x64xf32>
    %122 = vector.extract_strided_slice %5 {offsets = [0, 20], sizes = [64, 4], strides = [1, 1]} : vector<64x96xf32> to vector<64x4xf32>
    %123 = vector.shape_cast %122 : vector<64x4xf32> to vector<4x16x4xf32>
    %124 = vector.extract_strided_slice %5 {offsets = [0, 52], sizes = [64, 4], strides = [1, 1]} : vector<64x96xf32> to vector<64x4xf32>
    %125 = vector.shape_cast %124 : vector<64x4xf32> to vector<4x16x4xf32>
    %126 = vector.extract_strided_slice %5 {offsets = [0, 84], sizes = [64, 4], strides = [1, 1]} : vector<64x96xf32> to vector<64x4xf32>
    %127 = vector.shape_cast %126 : vector<64x4xf32> to vector<4x16x4xf32>
    "tpu.trace_start"() <{level = 10 : i32, message = "bqe,bke->bqk"}> : () -> ()
    %cst_44 = arith.constant dense<0.000000e+00> : vector<4x16x16xf32>
    %128 = tpu.matmul %123, %125, %cst_44 {dimension_numbers = #tpu.dot_dimension_numbers<[2], [2], [1], [1], [0, 0, 0, 1, 1, 1], [0], [0]>} : vector<4x16x4xf32>, vector<4x16x4xf32>, vector<4x16x16xf32> -> vector<4x16x16xf32>
    "tpu.trace_stop"() : () -> ()
    %cst_45 = arith.constant dense<0xFF800000> : vector<4x16xf32>
    %129 = vector.multi_reduction <maximumf>, %128, %cst_45 [2] : vector<4x16x16xf32> to vector<4x16xf32>
    %130 = vector.shape_cast %129 : vector<4x16xf32> to vector<4x16x1xf32>
    %131 = vector.broadcast %130 : vector<4x16x1xf32> to vector<4x16x16xf32>
    %132 = arith.subf %128, %131 : vector<4x16x16xf32>
    %133 = math.exp %132 : vector<4x16x16xf32>
    %cst_46 = arith.constant dense<0.000000e+00> : vector<4x16xf32>
    %134 = vector.multi_reduction <add>, %133, %cst_46 [2] : vector<4x16x16xf32> to vector<4x16xf32>
    %135 = vector.shape_cast %134 : vector<4x16xf32> to vector<4x16x1xf32>
    %136 = tpu.reciprocal %135 : vector<4x16x1xf32> -> vector<4x16x1xf32>
    %137 = vector.broadcast %136 : vector<4x16x1xf32> to vector<4x16x16xf32>
    %138 = arith.mulf %133, %137 : vector<4x16x16xf32>
    "tpu.trace_start"() <{level = 10 : i32, message = "bqk,bke->bqe"}> : () -> ()
    %cst_47 = arith.constant dense<0.000000e+00> : vector<4x16x4xf32>
    %139 = tpu.matmul %138, %127, %cst_47 {dimension_numbers = #tpu.dot_dimension_numbers<[2], [1], [1], [2], [0, 0, 0, 1, 1, 2], [0], [0]>} : vector<4x16x16xf32>, vector<4x16x4xf32>, vector<4x16x4xf32> -> vector<4x16x4xf32>
    "tpu.trace_stop"() : () -> ()
    %140 = vector.shape_cast %139 : vector<4x16x4xf32> to vector<64x4xf32>
    %c5 = arith.constant 5 : index
    %c0_48 = arith.constant 0 : index
    %c0_49 = arith.constant 0 : index
    %141 = vector.load %arg4[%c5, %c0_48, %c0_49] : memref<8x4x64xf32, #tpu.memory_space<vmem>>, vector<1x4x64xf32>
    %142 = vector.shape_cast %141 : vector<1x4x64xf32> to vector<4x64xf32>
    %cst_50 = arith.constant dense<0.000000e+00> : vector<64x64xf32>
    %143 = tpu.matmul %140, %142, %cst_50 {dimension_numbers = #tpu.dot_dimension_numbers<[1], [0], [0], [1], [0, 0, 1, 1], [], []>} : vector<64x4xf32>, vector<4x64xf32>, vector<64x64xf32> -> vector<64x64xf32>
    %144 = arith.addf %121, %143 : vector<64x64xf32>
    %145 = vector.extract_strided_slice %5 {offsets = [0, 24], sizes = [64, 4], strides = [1, 1]} : vector<64x96xf32> to vector<64x4xf32>
    %146 = vector.shape_cast %145 : vector<64x4xf32> to vector<4x16x4xf32>
    %147 = vector.extract_strided_slice %5 {offsets = [0, 56], sizes = [64, 4], strides = [1, 1]} : vector<64x96xf32> to vector<64x4xf32>
    %148 = vector.shape_cast %147 : vector<64x4xf32> to vector<4x16x4xf32>
    %149 = vector.extract_strided_slice %5 {offsets = [0, 88], sizes = [64, 4], strides = [1, 1]} : vector<64x96xf32> to vector<64x4xf32>
    %150 = vector.shape_cast %149 : vector<64x4xf32> to vector<4x16x4xf32>
    "tpu.trace_start"() <{level = 10 : i32, message = "bqe,bke->bqk"}> : () -> ()
    %cst_51 = arith.constant dense<0.000000e+00> : vector<4x16x16xf32>
    %151 = tpu.matmul %146, %148, %cst_51 {dimension_numbers = #tpu.dot_dimension_numbers<[2], [2], [1], [1], [0, 0, 0, 1, 1, 1], [0], [0]>} : vector<4x16x4xf32>, vector<4x16x4xf32>, vector<4x16x16xf32> -> vector<4x16x16xf32>
    "tpu.trace_stop"() : () -> ()
    %cst_52 = arith.constant dense<0xFF800000> : vector<4x16xf32>
    %152 = vector.multi_reduction <maximumf>, %151, %cst_52 [2] : vector<4x16x16xf32> to vector<4x16xf32>
    %153 = vector.shape_cast %152 : vector<4x16xf32> to vector<4x16x1xf32>
    %154 = vector.broadcast %153 : vector<4x16x1xf32> to vector<4x16x16xf32>
    %155 = arith.subf %151, %154 : vector<4x16x16xf32>
    %156 = math.exp %155 : vector<4x16x16xf32>
    %cst_53 = arith.constant dense<0.000000e+00> : vector<4x16xf32>
    %157 = vector.multi_reduction <add>, %156, %cst_53 [2] : vector<4x16x16xf32> to vector<4x16xf32>
    %158 = vector.shape_cast %157 : vector<4x16xf32> to vector<4x16x1xf32>
    %159 = tpu.reciprocal %158 : vector<4x16x1xf32> -> vector<4x16x1xf32>
    %160 = vector.broadcast %159 : vector<4x16x1xf32> to vector<4x16x16xf32>
    %161 = arith.mulf %156, %160 : vector<4x16x16xf32>
    "tpu.trace_start"() <{level = 10 : i32, message = "bqk,bke->bqe"}> : () -> ()
    %cst_54 = arith.constant dense<0.000000e+00> : vector<4x16x4xf32>
    %162 = tpu.matmul %161, %150, %cst_54 {dimension_numbers = #tpu.dot_dimension_numbers<[2], [1], [1], [2], [0, 0, 0, 1, 1, 2], [0], [0]>} : vector<4x16x16xf32>, vector<4x16x4xf32>, vector<4x16x4xf32> -> vector<4x16x4xf32>
    "tpu.trace_stop"() : () -> ()
    %163 = vector.shape_cast %162 : vector<4x16x4xf32> to vector<64x4xf32>
    %c6 = arith.constant 6 : index
    %c0_55 = arith.constant 0 : index
    %c0_56 = arith.constant 0 : index
    %164 = vector.load %arg4[%c6, %c0_55, %c0_56] : memref<8x4x64xf32, #tpu.memory_space<vmem>>, vector<1x4x64xf32>
    %165 = vector.shape_cast %164 : vector<1x4x64xf32> to vector<4x64xf32>
    %cst_57 = arith.constant dense<0.000000e+00> : vector<64x64xf32>
    %166 = tpu.matmul %163, %165, %cst_57 {dimension_numbers = #tpu.dot_dimension_numbers<[1], [0], [0], [1], [0, 0, 1, 1], [], []>} : vector<64x4xf32>, vector<4x64xf32>, vector<64x64xf32> -> vector<64x64xf32>
    %167 = arith.addf %144, %166 : vector<64x64xf32>
    %168 = vector.extract_strided_slice %5 {offsets = [0, 28], sizes = [64, 4], strides = [1, 1]} : vector<64x96xf32> to vector<64x4xf32>
    %169 = vector.shape_cast %168 : vector<64x4xf32> to vector<4x16x4xf32>
    %170 = vector.extract_strided_slice %5 {offsets = [0, 60], sizes = [64, 4], strides = [1, 1]} : vector<64x96xf32> to vector<64x4xf32>
    %171 = vector.shape_cast %170 : vector<64x4xf32> to vector<4x16x4xf32>
    %172 = vector.extract_strided_slice %5 {offsets = [0, 92], sizes = [64, 4], strides = [1, 1]} : vector<64x96xf32> to vector<64x4xf32>
    %173 = vector.shape_cast %172 : vector<64x4xf32> to vector<4x16x4xf32>
    "tpu.trace_start"() <{level = 10 : i32, message = "bqe,bke->bqk"}> : () -> ()
    %cst_58 = arith.constant dense<0.000000e+00> : vector<4x16x16xf32>
    %174 = tpu.matmul %169, %171, %cst_58 {dimension_numbers = #tpu.dot_dimension_numbers<[2], [2], [1], [1], [0, 0, 0, 1, 1, 1], [0], [0]>} : vector<4x16x4xf32>, vector<4x16x4xf32>, vector<4x16x16xf32> -> vector<4x16x16xf32>
    "tpu.trace_stop"() : () -> ()
    %cst_59 = arith.constant dense<0xFF800000> : vector<4x16xf32>
    %175 = vector.multi_reduction <maximumf>, %174, %cst_59 [2] : vector<4x16x16xf32> to vector<4x16xf32>
    %176 = vector.shape_cast %175 : vector<4x16xf32> to vector<4x16x1xf32>
    %177 = vector.broadcast %176 : vector<4x16x1xf32> to vector<4x16x16xf32>
    %178 = arith.subf %174, %177 : vector<4x16x16xf32>
    %179 = math.exp %178 : vector<4x16x16xf32>
    %cst_60 = arith.constant dense<0.000000e+00> : vector<4x16xf32>
    %180 = vector.multi_reduction <add>, %179, %cst_60 [2] : vector<4x16x16xf32> to vector<4x16xf32>
    %181 = vector.shape_cast %180 : vector<4x16xf32> to vector<4x16x1xf32>
    %182 = tpu.reciprocal %181 : vector<4x16x1xf32> -> vector<4x16x1xf32>
    %183 = vector.broadcast %182 : vector<4x16x1xf32> to vector<4x16x16xf32>
    %184 = arith.mulf %179, %183 : vector<4x16x16xf32>
    "tpu.trace_start"() <{level = 10 : i32, message = "bqk,bke->bqe"}> : () -> ()
    %cst_61 = arith.constant dense<0.000000e+00> : vector<4x16x4xf32>
    %185 = tpu.matmul %184, %173, %cst_61 {dimension_numbers = #tpu.dot_dimension_numbers<[2], [1], [1], [2], [0, 0, 0, 1, 1, 2], [0], [0]>} : vector<4x16x16xf32>, vector<4x16x4xf32>, vector<4x16x4xf32> -> vector<4x16x4xf32>
    "tpu.trace_stop"() : () -> ()
    %186 = vector.shape_cast %185 : vector<4x16x4xf32> to vector<64x4xf32>
    %c7 = arith.constant 7 : index
    %c0_62 = arith.constant 0 : index
    %c0_63 = arith.constant 0 : index
    %187 = vector.load %arg4[%c7, %c0_62, %c0_63] : memref<8x4x64xf32, #tpu.memory_space<vmem>>, vector<1x4x64xf32>
    %188 = vector.shape_cast %187 : vector<1x4x64xf32> to vector<4x64xf32>
    %cst_64 = arith.constant dense<0.000000e+00> : vector<64x64xf32>
    %189 = tpu.matmul %186, %188, %cst_64 {dimension_numbers = #tpu.dot_dimension_numbers<[1], [0], [0], [1], [0, 0, 1, 1], [], []>} : vector<64x4xf32>, vector<4x64xf32>, vector<64x64xf32> -> vector<64x64xf32>
    %190 = arith.addf %167, %189 : vector<64x64xf32>
    %c0_65 = arith.constant 0 : index
    %c0_66 = arith.constant 0 : index
    %191 = vector.load %arg5[%c0_65, %c0_66] : memref<1x64xf32, #tpu.memory_space<vmem>>, vector<1x64xf32>
    %192 = vector.broadcast %191 : vector<1x64xf32> to vector<64x64xf32>
    %193 = arith.addf %190, %192 : vector<64x64xf32>
    %c0_67 = arith.constant 0 : index
    %c0_68 = arith.constant 0 : index
    %c0_69 = arith.constant 0 : index
    %194 = vector.load %arg6[%c0_67, %c0_68, %c0_69] : memref<1x64x64xf32, #tpu.memory_space<vmem>>, vector<1x64x64xf32>
    %195 = vector.shape_cast %194 : vector<1x64x64xf32> to vector<64x64xf32>
    %196 = vector.shape_cast %193 : vector<64x64xf32> to vector<1x64x64xf32>
    tpu.vector_store %arg6[%c0_67, %c0_68, %c0_69], %196 {strides = array<i32>} : memref<1x64x64xf32, #tpu.memory_space<vmem>>, vector<1x64x64xf32>,
    return
  }
  func.func @transform_0(%arg0: i32) -> (i32, i32, i32) {
    %c0_i32 = arith.constant 0 : i32
    %c0_i32_0 = arith.constant 0 : i32
    %c0_i32_1 = arith.constant 0 : i32
    return %arg0, %c0_i32, %c0_i32_0 : i32, i32, i32
  }
  func.func @transform_1(%arg0: i32) -> (i32, i32) {
    %c0_i32 = arith.constant 0 : i32
    %c0_i32_0 = arith.constant 0 : i32
    %c0_i32_1 = arith.constant 0 : i32
    return %c0_i32, %c0_i32_0 : i32, i32
  }
  func.func @transform_2(%arg0: i32) -> (i32, i32) {
    %c0_i32 = arith.constant 0 : i32
    %c0_i32_0 = arith.constant 0 : i32
    %c0_i32_1 = arith.constant 0 : i32
    return %c0_i32, %c0_i32_0 : i32, i32
  }
  func.func @transform_3(%arg0: i32) -> (i32, i32, i32) {
    %c0_i32 = arith.constant 0 : i32
    %c0_i32_0 = arith.constant 0 : i32
    %c0_i32_1 = arith.constant 0 : i32
    %c0_i32_2 = arith.constant 0 : i32
    return %c0_i32, %c0_i32_0, %c0_i32_1 : i32, i32, i32
  }
  func.func @transform_4(%arg0: i32) -> (i32, i32) {
    %c0_i32 = arith.constant 0 : i32
    %c0_i32_0 = arith.constant 0 : i32
    %c0_i32_1 = arith.constant 0 : i32
    return %c0_i32, %c0_i32_0 : i32, i32
  }
  func.func @transform_5(%arg0: i32) -> (i32, i32, i32) {
    %c0_i32 = arith.constant 0 : i32
    %c0_i32_0 = arith.constant 0 : i32
    %c0_i32_1 = arith.constant 0 : i32
    return %arg0, %c0_i32, %c0_i32_0 : i32, i32, i32
  }
}

</mosaic_0001>

<llo_original>
// kernel: tpu_custom_call.1
$region0: #{tpu_custom_call.1}
  #allocation0 [shape = 'u32[]', space=smem, size = 0x4, offset = 0x4, fixed_abs, tag = 'smem constant byte address 0x4 - core index']
  #allocation1 [shape = 'u32[144,128]{1,0:T(1,128)}', space=vmem, size = 0x12000, scoped, tag = 'internal scratch']
  %s0 = inlined_call_operand.hbm [shape: f32[2,64,64], index: 0, kind: input, shape index: {}]
  %s1 = inlined_call_operand.vmem [shape: f32[64,32], index: 1, kind: input, shape index: {}]
  %s2 = inlined_call_operand.vmem [shape: f32[32,96], index: 2, kind: input, shape index: {}]
  %s3 = inlined_call_operand.vmem [shape: f32[8,4,64], index: 3, kind: input, shape index: {}]
  %s4 = inlined_call_operand.vmem [shape: f32[1,64], index: 4, kind: input, shape index: {}]
  %s5 = inlined_call_operand.hbm [shape: f32[2,64,64], index: 5, kind: output, shape index: {}]
  %s6 = sld [smem:[#allocation0]]
  $region57: #{tpu_custom_call.1} parent=0
    _
  %s8 = ssub.s32 1, %s6
  %s9 = scalar_select 0, %s8, %s6
  $region1: #{tpu_custom_call.1} parent=0
    #allocation2 [shape = 'u8[65536]{0}', space=vmem, size = 0x10000, scoped, tag = 'input window, operand 0']
    #allocation3 [shape = 's32[2]{0}', space=sflag, size = 0x8, scoped, tag = 'scoped memory for tpu_custom_call.1']
    #allocation4 [shape = 's32[2]{0}', space=sflag, size = 0x8, scoped, tag = 'scoped memory for tpu_custom_call.1']
    #allocation5 [shape = 'u8[65536]{0}', space=vmem, size = 0x10000, scoped, tag = 'output window, operand 0']
    %10 = vsyncpa [#allocation3], 0
    %s11 = scalar_lea.sflag [#allocation3], 1
    %12 = vsyncpa %s11, 0
    %13 = vsyncpa [#allocation4], 0
    %s14 = scalar_lea.sflag [#allocation4], 1
    %15 = vsyncpa %s14, 0
    loop: start=0, step=1, limit=4
    $region2: #{tpu_custom_call.1} parent=1 // loop_pre_header
      _
    $region3: #{tpu_custom_call.1} parent=1 // loop_header
      %s17 = sphi 0, %s21
      %p18 = scmp.ge.s32.totalorder %s17, 4
      %s27 = sphi 0, %s29
      %s30 = sphi 0, %s27
      %s31 = sphi 0, %s30
      %s47 = sphi 0, %s31
      %s51 = sphi 0, %s51
      %s53 = sphi 0, %s51
      %s54 = sphi 0, %s53
      %s68 = sphi 0, %s54
      %s72 = sphi 0, %s72
      %s74 = sphi 0, %s72
      %s75 = sphi 0, %s74
      %s89 = sphi 0, %s75
      %s93 = sphi 0, %s93
      %s95 = sphi 0, %s93
      %s96 = sphi 0, %s95
      %s110 = sphi 0, %s96
      %s114 = sphi 0, %s114
      %s116 = sphi 0, %s114
      %s117 = sphi 0, %s116
      %s131 = sphi 0, %s117
      %s137 = sphi 0, %s139
      %s140 = sphi 0, %s137
      %s141 = sphi 0, %s140
      %s157 = sphi 0, %s141
    $region4: #{tpu_custom_call.1} parent=1 // loop_header_branch
      %20 = sbr.rel (%p18) target = $region8
    $region5: #{tpu_custom_call.1} parent=1 // loop_body
      %s22 = ssub.s32 %s17, 1
      %s23 = ssub.s32 %s17, 2
      %s24 = sadd.s32 %s17, 1
      %s25 = ssub.s32 %s17, %s24
      %p26 = scmp.eq.s32.totalorder %s25, 0
      %s28 = sadd.s32 %s27, 1
      %s29 = scalar_select %p26, %s27, %s28
      %p32 = pneg %p26
      %p33 = scmp.eq.s32.totalorder %s17, 1
      %p34 = por %p32, %p33
      %p35 = scmp.ne.s32.totalorder %s27, %s30
      %p36 = scmp.eq.s32.totalorder %s17, 0
      %p37 = por %p35, %p36
      %p38 = scmp.ne.s32.totalorder %s27, %s30
      %p39 = scmp.eq.s32.totalorder %s22, 1
      %p40 = por %p38, %p39
      %p41 = scmp.ne.s32.totalorder %s30, %s31
      %p42 = scmp.eq.s32.totalorder %s22, 0
      %p43 = por %p41, %p42
      %p44 = scmp.ne.s32.totalorder %s30, %s31
      %p45 = scmp.eq.s32.totalorder %s23, 1
      %p46 = por %p44, %p45
      %p48 = scmp.ne.s32.totalorder %s31, %s47
      %p49 = scmp.eq.s32.totalorder %s23, 0
      %p50 = por %p48, %p49
      %s52 = sadd.s32 %s51, 1
      %p55 = scmp.eq.s32.totalorder %s17, 1
      %p56 = scmp.ne.s32.totalorder %s51, %s53
      %p57 = scmp.eq.s32.totalorder %s17, 0
      %p58 = por %p56, %p57
      %p59 = scmp.ne.s32.totalorder %s51, %s53
      %p60 = scmp.eq.s32.totalorder %s22, 1
      %p61 = por %p59, %p60
      %p62 = scmp.ne.s32.totalorder %s53, %s54
      %p63 = scmp.eq.s32.totalorder %s22, 0
      %p64 = por %p62, %p63
      %p65 = scmp.ne.s32.totalorder %s53, %s54
      %p66 = scmp.eq.s32.totalorder %s23, 1
      %p67 = por %p65, %p66
      %p69 = scmp.ne.s32.totalorder %s54, %s68
      %p70 = scmp.eq.s32.totalorder %s23, 0
      %p71 = por %p69, %p70
      %s73 = sadd.s32 %s72, 1
      %p76 = scmp.eq.s32.totalorder %s17, 1
      %p77 = scmp.ne.s32.totalorder %s72, %s74
      %p78 = scmp.eq.s32.totalorder %s17, 0
      %p79 = por %p77, %p78
      %p80 = scmp.ne.s32.totalorder %s72, %s74
      %p81 = scmp.eq.s32.totalorder %s22, 1
      %p82 = por %p80, %p81
      %p83 = scmp.ne.s32.totalorder %s74, %s75
      %p84 = scmp.eq.s32.totalorder %s22, 0
      %p85 = por %p83, %p84
      %p86 = scmp.ne.s32.totalorder %s74, %s75
      %p87 = scmp.eq.s32.totalorder %s23, 1
      %p88 = por %p86, %p87
      %p90 = scmp.ne.s32.totalorder %s75, %s89
      %p91 = scmp.eq.s32.totalorder %s23, 0
      %p92 = por %p90, %p91
      %s94 = sadd.s32 %s93, 1
      %p97 = scmp.eq.s32.totalorder %s17, 1
      %p98 = scmp.ne.s32.totalorder %s93, %s95
      %p99 = scmp.eq.s32.totalorder %s17, 0
      %p100 = por %p98, %p99
      %p101 = scmp.ne.s32.totalorder %s93, %s95
      %p102 = scmp.eq.s32.totalorder %s22, 1
      %p103 = por %p101, %p102
      %p104 = scmp.ne.s32.totalorder %s95, %s96
      %p105 = scmp.eq.s32.totalorder %s22, 0
      %p106 = por %p104, %p105
      %p107 = scmp.ne.s32.totalorder %s95, %s96
      %p108 = scmp.eq.s32.totalorder %s23, 1
      %p109 = por %p107, %p108
      %p111 = scmp.ne.s32.totalorder %s96, %s110
      %p112 = scmp.eq.s32.totalorder %s23, 0
      %p113 = por %p111, %p112
      %s115 = sadd.s32 %s114, 1
      %p118 = scmp.eq.s32.totalorder %s17, 1
      %p119 = scmp.ne.s32.totalorder %s114, %s116
      %p120 = scmp.eq.s32.totalorder %s17, 0
      %p121 = por %p119, %p120
      %p122 = scmp.ne.s32.totalorder %s114, %s116
      %p123 = scmp.eq.s32.totalorder %s22, 1
      %p124 = por %p122, %p123
      %p125 = scmp.ne.s32.totalorder %s116, %s117
      %p126 = scmp.eq.s32.totalorder %s22, 0
      %p127 = por %p125, %p126
      %p128 = scmp.ne.s32.totalorder %s116, %s117
      %p129 = scmp.eq.s32.totalorder %s23, 1
      %p130 = por %p128, %p129
      %p132 = scmp.ne.s32.totalorder %s117, %s131
      %p133 = scmp.eq.s32.totalorder %s23, 0
      %p134 = por %p132, %p133
      %s135 = ssub.s32 %s17, %s24
      %p136 = scmp.eq.s32.totalorder %s135, 0
      %s138 = sadd.s32 %s137, 1
      %s139 = scalar_select %p136, %s137, %s138
      %p142 = pneg %p136
      %p143 = scmp.eq.s32.totalorder %s17, 1
      %p144 = por %p142, %p143
      %p145 = scmp.ne.s32.totalorder %s137, %s140
      %p146 = scmp.eq.s32.totalorder %s17, 0
      %p147 = por %p145, %p146
      %p148 = scmp.ne.s32.totalorder %s137, %s140
      %p149 = scmp.eq.s32.totalorder %s22, 1
      %p150 = por %p148, %p149
      %p151 = scmp.ne.s32.totalorder %s140, %s141
      %p152 = scmp.eq.s32.totalorder %s22, 0
      %p153 = por %p151, %p152
      %p154 = scmp.ne.s32.totalorder %s140, %s141
      %p155 = scmp.eq.s32.totalorder %s23, 1
      %p156 = por %p154, %p155
      %p158 = scmp.ne.s32.totalorder %s141, %s157
      %p159 = scmp.eq.s32.totalorder %s23, 0
      %p160 = por %p158, %p159
      %p161 = scmp.le.s32.totalorder 1, %s17
      %p162 = scmp.lt.s32.totalorder %s17, 3
      %p163 = pnand %p161, %p162
      %p164 = pneg %p163
      // Predicated region
      $region9: #{tpu_custom_call.1} parent=5 // pred_check
        _
      $region10: #{tpu_custom_call.1} parent=5 // pred_check_branch
        %166 = sbr.rel (%p163) target = $region12
      $region11: #{tpu_custom_call.1} parent=5 // pred_region
        %s167 = ssub.s32 %s17, 1
        // Predicated region
        $region13: #{tpu_custom_call.1} parent=11 // pred_check
          %p168 = pneg %p64
        $region14: #{tpu_custom_call.1} parent=11 // pred_check_branch
          %170 = sbr.rel (%p168) target = $region16
        $region15: #{tpu_custom_call.1} parent=11 // pred_region
          _
        $region16: #{tpu_custom_call.1} parent=11 // pred_fallthru
          _
        // Predicated region
        $region17: #{tpu_custom_call.1} parent=11 // pred_check
          %p171 = pneg %p85
        $region18: #{tpu_custom_call.1} parent=11 // pred_check_branch
          %173 = sbr.rel (%p171) target = $region20
        $region19: #{tpu_custom_call.1} parent=11 // pred_region
          _
        $region20: #{tpu_custom_call.1} parent=11 // pred_fallthru
          _
        // Predicated region
        $region21: #{tpu_custom_call.1} parent=11 // pred_check
          %p174 = pneg %p106
        $region22: #{tpu_custom_call.1} parent=11 // pred_check_branch
          %176 = sbr.rel (%p174) target = $region24
        $region23: #{tpu_custom_call.1} parent=11 // pred_region
          _
        $region24: #{tpu_custom_call.1} parent=11 // pred_fallthru
          _
        // Predicated region
        $region25: #{tpu_custom_call.1} parent=11 // pred_check
          %p177 = pneg %p127
        $region26: #{tpu_custom_call.1} parent=11 // pred_check_branch
          %179 = sbr.rel (%p177) target = $region28
        $region27: #{tpu_custom_call.1} parent=11 // pred_region
          _
        $region28: #{tpu_custom_call.1} parent=11 // pred_fallthru
          _
      $region12: #{tpu_custom_call.1} parent=5 // pred_fallthru
        _
      %p180 = scmp.lt.s32.totalorder %s17, 2
      // Predicated region
      $region29: #{tpu_custom_call.1} parent=5 // pred_check
        %p181 = pneg %p180
      $region30: #{tpu_custom_call.1} parent=5 // pred_check_branch
        %183 = sbr.rel (%p181) target = $region32
      $region31: #{tpu_custom_call.1} parent=5 // pred_region
        // Predicated region
        $region33: #{tpu_custom_call.1} parent=31 // pred_check
          %p184 = pneg %p37
        $region34: #{tpu_custom_call.1} parent=31 // pred_check_branch
          %186 = sbr.rel (%p184) target = $region36
        $region35: #{tpu_custom_call.1} parent=31 // pred_region
          %s187 = sand.u32 %s27, 1
          %s188 = scalar_lea.sflag [#allocation3], %s187
          %s189 = sand.u32 %s27, 1
          %s190 = smul.addr %s189, 64
          %s191 = scalar_lea.vmem [#allocation2], %s190
          %s193 = ssub.s32 1024, 1024
          %194 = vsyncadd %s188, %s193
          %s195 = smul.addr %s17, 8
          %s196 = smul.addr %s195, 128
          %s197 = scalar_lea.hbm %s0, %s196
          %s198 = sshll.u32 %s191, 4
          %s199 = int_to_ptr.vmem [resolvable:$true] %s198
          %204 = dma.hbm_to_vmem [thread:$0]  %s197, 1024, %s199, %s188, 128, 128, 8
        $region36: #{tpu_custom_call.1} parent=31 // pred_fallthru
          _
      $region32: #{tpu_custom_call.1} parent=5 // pred_fallthru
        _
      %p205 = scmp.le.s32.totalorder 1, %s17
      %p206 = scmp.lt.s32.totalorder %s17, 3
      %p207 = pnand %p205, %p206
      %p208 = pneg %p207
      // Predicated region
      $region37: #{tpu_custom_call.1} parent=5 // pred_check
        _
      $region38: #{tpu_custom_call.1} parent=5 // pred_check_branch
        %210 = sbr.rel (%p207) target = $region40
      $region39: #{tpu_custom_call.1} parent=5 // pred_region
        %s211 = ssub.s32 %s17, 1
        %s212 = sand.u32 %s30, 1
        %s213 = scalar_lea.sflag [#allocation3], %s212
        %s214 = sand.u32 %s30, 1
        %s215 = smul.addr %s214, 64
        %s216 = scalar_lea.vmem [#allocation2], %s215
        // Predicated region
        $region41: #{tpu_custom_call.1} parent=39 // pred_check
          %p217 = pneg %p43
        $region42: #{tpu_custom_call.1} parent=39 // pred_check_branch
          %219 = sbr.rel (%p217) target = $region44
        $region43: #{tpu_custom_call.1} parent=39 // pred_region
          %220 = dma.done %s213, 1024
        $region44: #{tpu_custom_call.1} parent=39 // pred_fallthru
          _
        %s221 = sand.u32 %s30, 1
        %s222 = scalar_lea.sflag [#allocation3], %s221
        %s223 = sand.u32 %s30, 1
        %s224 = smul.addr %s223, 64
        %s225 = scalar_lea.vmem [#allocation2], %s224
        %p226 = pneg %p43
        %p227 = pneg %p40
        %p228 = pneg %p64
        %p229 = pneg %p61
        %p230 = pneg %p85
        %p231 = pneg %p82
        %p232 = pneg %p106
        %p233 = pneg %p103
        %p234 = pneg %p127
        %p235 = pneg %p124
        %p236 = pneg %p153
        %p237 = pneg %p150
        %s238 = sand.u32 %s140, 1
        %s239 = scalar_lea.sflag [#allocation4], %s238
        %s240 = sand.u32 %s140, 1
        %s241 = smul.addr %s240, 64
        %s242 = scalar_lea.vmem [#allocation5], %s241
        %v243 = vld [vmem:[%s216] sm:$0xff]
        %v244 = vld [vmem:[%s216 + $0x8] sm:$0xff]
        %v245 = vld [vmem:[%s216 + $0x10] sm:$0xff]
        %v246 = vld [vmem:[%s216 + $0x18] sm:$0xff]
        %v247 = vld [vmem:[%s216 + $0x20] sm:$0xff]
        %v248 = vld [vmem:[%s216 + $0x28] sm:$0xff]
        %v249 = vld [vmem:[%s216 + $0x30] sm:$0xff]
        %v250 = vld [vmem:[%s216 + $0x38] sm:$0xff]
        %v251 = vld [vmem:[%s1] sm:$0xff]
        %v252 = vld [vmem:[%s1 + $0x8] sm:$0xff]
        %v253 = vld [vmem:[%s1 + $0x10] sm:$0xff]
        %v254 = vld [vmem:[%s1 + $0x18] sm:$0xff]
        %v255 = vld [vmem:[%s1 + $0x20] sm:$0xff]
        %v256 = vld [vmem:[%s1 + $0x28] sm:$0xff]
        %v257 = vld [vmem:[%s1 + $0x30] sm:$0xff]
        %v258 = vld [vmem:[%s1 + $0x38] sm:$0xff]
        %vm259 = vcmask 523264
        %v261 = vsel %vm259, %v243, 0
        %v264 = vsel %vm259, %v244, 0
        %v267 = vsel %vm259, %v245, 0
        %v270 = vsel %vm259, %v246, 0
        %v273 = vsel %vm259, %v247, 0
        %v276 = vsel %vm259, %v248, 0
        %v279 = vsel %vm259, %v249, 0
        %v282 = vsel %vm259, %v250, 0
        %284 = vmatprep.subr.mxu0 0.0
        %285 = vmatpush1.msra.mxu0 %v251
        %286 = vmatprep.subr.mxu0 0.0
        %287 = vmatpush1.msra.mxu0 %v252
        %288 = vmatprep.subr.mxu0 0.0
        %289 = vmatpush1.msra.mxu0 %v253
        %290 = vmatprep.subr.mxu0 0.0
        %291 = vmatpush1.msra.mxu0 %v254
        %292 = vmatprep.subr.mxu0 0.0
        %293 = vmatpush1.msra.mxu0 %v255
        %294 = vmatprep.subr.mxu0 0.0
        %295 = vmatpush1.msra.mxu0 %v256
        %296 = vmatprep.subr.mxu0 0.0
        %297 = vmatpush1.msra.mxu0 %v257
        %298 = vmatprep.subr.mxu0 0.0
        %299 = vmatpush1.msra.mxu0 %v258
        %300 = vmatprep.subr.mxu0 0.0
        %301 = vmatpush1.msra.mxu0 0.0
        %302 = vmatprep.subr.mxu0 0.0
        %303 = vmatpush1.msra.mxu0 0.0
        %304 = vmatprep.subr.mxu0 0.0
        %305 = vmatpush1.msra.mxu0 0.0
        %306 = vmatprep.subr.mxu0 0.0
        %307 = vmatpush1.msra.mxu0 0.0
        %308 = vmatprep.subr.mxu0 0.0
        %309 = vmatpush1.msra.mxu0 0.0
        %310 = vmatprep.subr.mxu0 0.0
        %311 = vmatpush1.msra.mxu0 0.0
        %312 = vmatprep.subr.mxu0 0.0
        %313 = vmatpush1.msra.mxu0 0.0
        %314 = vmatprep.subr.mxu0 0.0
        %315 = vmatpush1.msra.mxu0 0.0
        %316 = vmatprep.subr.mxu0 0.0
        %317 = vmatpush1.msra.mxu0 0.0
        %318 = vmatprep.subr.mxu0 0.0
        %319 = vmatpush1.msra.mxu0 0.0
        %320 = vmatprep.subr.mxu0 0.0
        %321 = vmatpush1.msra.mxu0 0.0
        %322 = vmatprep.subr.mxu0 0.0
        %323 = vmatpush1.msra.mxu0 0.0
        %324 = vmatprep.subr.mxu0 0.0
        %325 = vmatpush1.msra.mxu0 0.0
        %326 = vmatprep.subr.mxu0 0.0
        %327 = vmatpush1.msra.mxu0 0.0
        %328 = vmatprep.subr.mxu0 0.0
        %329 = vmatpush1.msra.mxu0 0.0
        %330 = vmatprep.subr.mxu0 0.0
        %331 = vmatpush1.msra.mxu0 0.0
        %332 = vmatprep.subr.mxu0 0.0
        %333 = vmatpush1.msra.mxu0 0.0
        %334 = vmatprep.subr.mxu0 0.0
        %335 = vmatpush1.msra.mxu0 0.0
        %336 = vmatprep.subr.mxu0 0.0
        %337 = vmatpush1.msra.mxu0 0.0
        %338 = vmatprep.subr.mxu0 0.0
        %339 = vmatpush1.msra.mxu0 0.0
        %340 = vmatprep.subr.mxu0 0.0
        %341 = vmatpush1.msra.mxu0 0.0
        %342 = vmatprep.subr.mxu0 0.0
        %343 = vmatpush1.msra.mxu0 0.0
        %344 = vmatprep.subr.mxu0 0.0
        %345 = vmatpush1.msra.mxu0 0.0
        %346 = vmatprep.subr.mxu0 0.0
        %347 = vmatpush1.msra.mxu0 0.0
        %348 = vmatprep.mubr.f32.mxu0 0.0
        %349 = vmatmul.mubr.f32.gmra.mrb[0].mxu0 %v261
        %v350 = vpop.f32.mrb[0].mxu0
        %v351 = vadd.f32 0.0, %v350
        %v352 = vpop.f32.mrb[0].mxu0
        %353 = vmatprep.mubr.f32.mxu0 0.0
        %354 = vmatmul.mubr.f32.gmra.mrb[0].mxu0 %v264
        %v355 = vpop.f32.mrb[0].mxu0
        %v356 = vadd.f32 0.0, %v355
        %v357 = vpop.f32.mrb[0].mxu0
        %358 = vmatprep.mubr.f32.mxu0 0.0
        %359 = vmatmul.mubr.f32.gmra.mrb[0].mxu0 %v267
        %v360 = vpop.f32.mrb[0].mxu0
        %v361 = vadd.f32 0.0, %v360
        %v362 = vpop.f32.mrb[0].mxu0
        %363 = vmatprep.mubr.f32.mxu0 0.0
        %364 = vmatmul.mubr.f32.gmra.mrb[0].mxu0 %v270
        %v365 = vpop.f32.mrb[0].mxu0
        %v366 = vadd.f32 0.0, %v365
        %v367 = vpop.f32.mrb[0].mxu0
        %368 = vmatprep.mubr.f32.mxu0 0.0
        %369 = vmatmul.mubr.f32.gmra.mrb[0].mxu0 %v273
        %v370 = vpop.f32.mrb[0].mxu0
        %v371 = vadd.f32 0.0, %v370
        %v372 = vpop.f32.mrb[0].mxu0
        %373 = vmatprep.mubr.f32.mxu0 0.0
        %374 = vmatmul.mubr.f32.gmra.mrb[0].mxu0 %v276
        %v375 = vpop.f32.mrb[0].mxu0
        %v376 = vadd.f32 0.0, %v375
        %v377 = vpop.f32.mrb[0].mxu0
        %378 = vmatprep.mubr.f32.mxu0 0.0
        %379 = vmatmul.mubr.f32.gmra.mrb[0].mxu0 %v279
        %v380 = vpop.f32.mrb[0].mxu0
        %v381 = vadd.f32 0.0, %v380
        %v382 = vpop.f32.mrb[0].mxu0
        %383 = vmatprep.mubr.f32.mxu0 0.0
        %384 = vmatmul.mubr.f32.gmra.mrb[0].mxu0 %v282
        %v385 = vpop.f32.mrb[0].mxu0
        %v386 = vadd.f32 0.0, %v385
        %v387 = vpop.f32.mrb[0].mxu0
        %388 = vdwg.mxu0
        %v389 = vld [vmem:[%s2] sm:$0xff]
        %v390 = vld [vmem:[%s2 + $0x8] sm:$0xff]
        %v391 = vld [vmem:[%s2 + $0x10] sm:$0xff]
        %v392 = vld [vmem:[%s2 + $0x18] sm:$0xff]
        %vm393 = vcmask 261120
        %v395 = vsel %vm393, %v351, 0
        %v398 = vsel %vm393, %v356, 0
        %v401 = vsel %vm393, %v361, 0
        %v404 = vsel %vm393, %v366, 0
        %v407 = vsel %vm393, %v371, 0
        %v410 = vsel %vm393, %v376, 0
        %v413 = vsel %vm393, %v381, 0
        %v416 = vsel %vm393, %v386, 0
        %418 = vmatprep.subr.mxu0 0.0
        %419 = vmatpush1.msra.mxu0 %v389
        %420 = vmatprep.subr.mxu0 0.0
        %421 = vmatpush1.msra.mxu0 %v390
        %422 = vmatprep.subr.mxu0 0.0
        %423 = vmatpush1.msra.mxu0 %v391
        %424 = vmatprep.subr.mxu0 0.0
        %425 = vmatpush1.msra.mxu0 %v392
        %426 = vmatprep.subr.mxu0 0.0
        %427 = vmatpush1.msra.mxu0 0.0
        %428 = vmatprep.subr.mxu0 0.0
        %429 = vmatpush1.msra.mxu0 0.0
        %430 = vmatprep.subr.mxu0 0.0
        %431 = vmatpush1.msra.mxu0 0.0
        %432 = vmatprep.subr.mxu0 0.0
        %433 = vmatpush1.msra.mxu0 0.0
        %434 = vmatprep.subr.mxu0 0.0
        %435 = vmatpush1.msra.mxu0 0.0
        %436 = vmatprep.subr.mxu0 0.0
        %437 = vmatpush1.msra.mxu0 0.0
        %438 = vmatprep.subr.mxu0 0.0
        %439 = vmatpush1.msra.mxu0 0.0
        %440 = vmatprep.subr.mxu0 0.0
        %441 = vmatpush1.msra.mxu0 0.0
        %442 = vmatprep.subr.mxu0 0.0
        %443 = vmatpush1.msra.mxu0 0.0
        %444 = vmatprep.subr.mxu0 0.0
        %445 = vmatpush1.msra.mxu0 0.0
        %446 = vmatprep.subr.mxu0 0.0
        %447 = vmatpush1.msra.mxu0 0.0
        %448 = vmatprep.subr.mxu0 0.0
        %449 = vmatpush1.msra.mxu0 0.0
        %450 = vmatprep.subr.mxu0 0.0
        %451 = vmatpush1.msra.mxu0 0.0
        %452 = vmatprep.subr.mxu0 0.0
        %453 = vmatpush1.msra.mxu0 0.0
        %454 = vmatprep.subr.mxu0 0.0
        %455 = vmatpush1.msra.mxu0 0.0
        %456 = vmatprep.subr.mxu0 0.0
        %457 = vmatpush1.msra.mxu0 0.0
        %458 = vmatprep.subr.mxu0 0.0
        %459 = vmatpush1.msra.mxu0 0.0
        %460 = vmatprep.subr.mxu0 0.0
        %461 = vmatpush1.msra.mxu0 0.0
        %462 = vmatprep.subr.mxu0 0.0
        %463 = vmatpush1.msra.mxu0 0.0
        %464 = vmatprep.subr.mxu0 0.0
        %465 = vmatpush1.msra.mxu0 0.0
        %466 = vmatprep.subr.mxu0 0.0
        %467 = vmatpush1.msra.mxu0 0.0
        %468 = vmatprep.subr.mxu0 0.0
        %469 = vmatpush1.msra.mxu0 0.0
        %470 = vmatprep.subr.mxu0 0.0
        %471 = vmatpush1.msra.mxu0 0.0
        %472 = vmatprep.subr.mxu0 0.0
        %473 = vmatpush1.msra.mxu0 0.0
        %474 = vmatprep.subr.mxu0 0.0
        %475 = vmatpush1.msra.mxu0 0.0
        %476 = vmatprep.subr.mxu0 0.0
        %477 = vmatpush1.msra.mxu0 0.0
        %478 = vmatprep.subr.mxu0 0.0
        %479 = vmatpush1.msra.mxu0 0.0
        %480 = vmatprep.subr.mxu0 0.0
        %481 = vmatpush1.msra.mxu0 0.0
        %482 = vmatprep.mubr.f32.mxu0 0.0
        %483 = vmatmul.mubr.f32.gmra.mrb[0].mxu0 %v395
        %v484 = vpop.f32.mrb[0].mxu0
        %v485 = vadd.f32 0.0, %v484
        %v486 = vpop.f32.mrb[0].mxu0
        %487 = vmatprep.mubr.f32.mxu0 0.0
        %488 = vmatmul.mubr.f32.gmra.mrb[0].mxu0 %v398
        %v489 = vpop.f32.mrb[0].mxu0
        %v490 = vadd.f32 0.0, %v489
        %v491 = vpop.f32.mrb[0].mxu0
        %492 = vmatprep.mubr.f32.mxu0 0.0
        %493 = vmatmul.mubr.f32.gmra.mrb[0].mxu0 %v401
        %v494 = vpop.f32.mrb[0].mxu0
        %v495 = vadd.f32 0.0, %v494
        %v496 = vpop.f32.mrb[0].mxu0
        %497 = vmatprep.mubr.f32.mxu0 0.0
        %498 = vmatmul.mubr.f32.gmra.mrb[0].mxu0 %v404
        %v499 = vpop.f32.mrb[0].mxu0
        %v500 = vadd.f32 0.0, %v499
        %v501 = vpop.f32.mrb[0].mxu0
        %502 = vmatprep.mubr.f32.mxu0 0.0
        %503 = vmatmul.mubr.f32.gmra.mrb[0].mxu0 %v407
        %v504 = vpop.f32.mrb[0].mxu0
        %v505 = vadd.f32 0.0, %v504
        %v506 = vpop.f32.mrb[0].mxu0
        %507 = vmatprep.mubr.f32.mxu0 0.0
        %508 = vmatmul.mubr.f32.gmra.mrb[0].mxu0 %v410
        %v509 = vpop.f32.mrb[0].mxu0
        %v510 = vadd.f32 0.0, %v509
        %v511 = vpop.f32.mrb[0].mxu0
        %512 = vmatprep.mubr.f32.mxu0 0.0
        %513 = vmatmul.mubr.f32.gmra.mrb[0].mxu0 %v413
        %v514 = vpop.f32.mrb[0].mxu0
        %v515 = vadd.f32 0.0, %v514
        %v516 = vpop.f32.mrb[0].mxu0
        %517 = vmatprep.mubr.f32.mxu0 0.0
        %518 = vmatmul.mubr.f32.gmra.mrb[0].mxu0 %v416
        %v519 = vpop.f32.mrb[0].mxu0
        %v520 = vadd.f32 0.0, %v519
        %v521 = vpop.f32.mrb[0].mxu0
        %522 = vdwg.mxu0
        %525 = vrot.lane.b32.xlu0 %v485, 96
        %v526 = vpop.permute.xlu0 %525
        %527 = vrot.lane.b32.xlu0 %v490, 96
        %v528 = vpop.permute.xlu0 %527
        %vm529 = vcmask 31744
        %v530 = vsel %vm529, %v485, 0
        %v532 = vsel %vm529, %v490, 0
        %v534 = vsel %vm529, %v526, 0
        %v536 = vsel %vm529, %v528, 0
        %538 = vmatprep.subr.mxu0 0.0
        %539 = vmatpush1.xpose.msra.mxu0 %v534
        %540 = vmatprep.subr.mxu0 0.0
        %541 = vmatpush1.xpose.msra.mxu0 %v536
        %542 = vmatprep.subr.mxu0 0.0
        %543 = vmatpush1.xpose.msra.mxu0 0.0
        %544 = vmatprep.subr.mxu0 0.0
        %545 = vmatpush1.xpose.msra.mxu0 0.0
        %546 = vmatprep.subr.mxu0 0.0
        %547 = vmatpush1.xpose.msra.mxu0 0.0
        %548 = vmatprep.subr.mxu0 0.0
        %549 = vmatpush1.xpose.msra.mxu0 0.0
        %550 = vmatprep.subr.mxu0 0.0
        %551 = vmatpush1.xpose.msra.mxu0 0.0
        %552 = vmatprep.subr.mxu0 0.0
        %553 = vmatpush1.xpose.msra.mxu0 0.0
        %554 = vmatprep.subr.mxu0 0.0
        %555 = vmatpush1.xpose.msra.mxu0 0.0
        %556 = vmatprep.subr.mxu0 0.0
        %557 = vmatpush1.xpose.msra.mxu0 0.0
        %558 = vmatprep.subr.mxu0 0.0
        %559 = vmatpush1.xpose.msra.mxu0 0.0
        %560 = vmatprep.subr.mxu0 0.0
        %561 = vmatpush1.xpose.msra.mxu0 0.0
        %562 = vmatprep.subr.mxu0 0.0
        %563 = vmatpush1.xpose.msra.mxu0 0.0
        %564 = vmatprep.subr.mxu0 0.0
        %565 = vmatpush1.xpose.msra.mxu0 0.0
        %566 = vmatprep.subr.mxu0 0.0
        %567 = vmatpush1.xpose.msra.mxu0 0.0
        %568 = vmatprep.subr.mxu0 0.0
        %569 = vmatpush1.xpose.msra.mxu0 0.0
        %570 = vmatprep.subr.mxu0 0.0
        %571 = vmatpush1.xpose.msra.mxu0 0.0
        %572 = vmatprep.subr.mxu0 0.0
        %573 = vmatpush1.xpose.msra.mxu0 0.0
        %574 = vmatprep.subr.mxu0 0.0
        %575 = vmatpush1.xpose.msra.mxu0 0.0
        %576 = vmatprep.subr.mxu0 0.0
        %577 = vmatpush1.xpose.msra.mxu0 0.0
        %578 = vmatprep.subr.mxu0 0.0
        %579 = vmatpush1.xpose.msra.mxu0 0.0
        %580 = vmatprep.subr.mxu0 0.0
        %581 = vmatpush1.xpose.msra.mxu0 0.0
        %582 = vmatprep.subr.mxu0 0.0
        %583 = vmatpush1.xpose.msra.mxu0 0.0
        %584 = vmatprep.subr.mxu0 0.0
        %585 = vmatpush1.xpose.msra.mxu0 0.0
        %586 = vmatprep.subr.mxu0 0.0
        %587 = vmatpush1.xpose.msra.mxu0 0.0
        %588 = vmatprep.subr.mxu0 0.0
        %589 = vmatpush1.xpose.msra.mxu0 0.0
        %590 = vmatprep.subr.mxu0 0.0
        %591 = vmatpush1.xpose.msra.mxu0 0.0
        %592 = vmatprep.subr.mxu0 0.0
        %593 = vmatpush1.xpose.msra.mxu0 0.0
        %594 = vmatprep.subr.mxu0 0.0
        %595 = vmatpush1.xpose.msra.mxu0 0.0
        %596 = vmatprep.subr.mxu0 0.0
        %597 = vmatpush1.xpose.msra.mxu0 0.0
        %598 = vmatprep.subr.mxu0 0.0
        %599 = vmatpush1.xpose.msra.mxu0 0.0
        %600 = vmatprep.subr.mxu0 0.0
        %601 = vmatpush1.xpose.msra.mxu0 0.0
        %602 = vmatprep.mubr.f32.mxu0 0.0
        %603 = vmatmul.mubr.f32.gmra.mrb[0].mxu0 %v530
        %v604 = vpop.f32.mrb[0].mxu0
        %v605 = vadd.f32 0.0, %v604
        %v606 = vpop.f32.mrb[0].mxu0
        %607 = vmatprep.mubr.f32.mxu0 0.0
        %608 = vmatmul.mubr.f32.gmra.mrb[0].mxu0 %v532
        %v609 = vpop.f32.mrb[0].mxu0
        %v610 = vadd.f32 0.0, %v609
        %v611 = vpop.f32.mrb[0].mxu0
        %612 = vdwg.mxu0
        %615 = vrot.lane.b32.xlu0 %v495, 96
        %v616 = vpop.permute.xlu0 %615
        %617 = vrot.lane.b32.xlu0 %v500, 96
        %v618 = vpop.permute.xlu0 %617
        %v619 = vsel %vm529, %v495, 0
        %v621 = vsel %vm529, %v500, 0
        %v623 = vsel %vm529, %v616, 0
        %v625 = vsel %vm529, %v618, 0
        %627 = vmatprep.subr.mxu0 0.0
        %628 = vmatpush1.xpose.msra.mxu0 %v623
        %629 = vmatprep.subr.mxu0 0.0
        %630 = vmatpush1.xpose.msra.mxu0 %v625
        %631 = vmatprep.subr.mxu0 0.0
        %632 = vmatpush1.xpose.msra.mxu0 0.0
        %633 = vmatprep.subr.mxu0 0.0
        %634 = vmatpush1.xpose.msra.mxu0 0.0
        %635 = vmatprep.subr.mxu0 0.0
        %636 = vmatpush1.xpose.msra.mxu0 0.0
        %637 = vmatprep.subr.mxu0 0.0
        %638 = vmatpush1.xpose.msra.mxu0 0.0
        %639 = vmatprep.subr.mxu0 0.0
        %640 = vmatpush1.xpose.msra.mxu0 0.0
        %641 = vmatprep.subr.mxu0 0.0
        %642 = vmatpush1.xpose.msra.mxu0 0.0
        %643 = vmatprep.subr.mxu0 0.0
        %644 = vmatpush1.xpose.msra.mxu0 0.0
        %645 = vmatprep.subr.mxu0 0.0
        %646 = vmatpush1.xpose.msra.mxu0 0.0
        %647 = vmatprep.subr.mxu0 0.0
        %648 = vmatpush1.xpose.msra.mxu0 0.0
        %649 = vmatprep.subr.mxu0 0.0
        %650 = vmatpush1.xpose.msra.mxu0 0.0
        %651 = vmatprep.subr.mxu0 0.0
        %652 = vmatpush1.xpose.msra.mxu0 0.0
        %653 = vmatprep.subr.mxu0 0.0
        %654 = vmatpush1.xpose.msra.mxu0 0.0
        %655 = vmatprep.subr.mxu0 0.0
        %656 = vmatpush1.xpose.msra.mxu0 0.0
        %657 = vmatprep.subr.mxu0 0.0
        %658 = vmatpush1.xpose.msra.mxu0 0.0
        %659 = vmatprep.subr.mxu0 0.0
        %660 = vmatpush1.xpose.msra.mxu0 0.0
        %661 = vmatprep.subr.mxu0 0.0
        %662 = vmatpush1.xpose.msra.mxu0 0.0
        %663 = vmatprep.subr.mxu0 0.0
        %664 = vmatpush1.xpose.msra.mxu0 0.0
        %665 = vmatprep.subr.mxu0 0.0
        %666 = vmatpush1.xpose.msra.mxu0 0.0
        %667 = vmatprep.subr.mxu0 0.0
        %668 = vmatpush1.xpose.msra.mxu0 0.0
        %669 = vmatprep.subr.mxu0 0.0
        %670 = vmatpush1.xpose.msra.mxu0 0.0
        %671 = vmatprep.subr.mxu0 0.0
        %672 = vmatpush1.xpose.msra.mxu0 0.0
        %673 = vmatprep.subr.mxu0 0.0
        %674 = vmatpush1.xpose.msra.mxu0 0.0
        %675 = vmatprep.subr.mxu0 0.0
        %676 = vmatpush1.xpose.msra.mxu0 0.0
        %677 = vmatprep.subr.mxu0 0.0
        %678 = vmatpush1.xpose.msra.mxu0 0.0
        %679 = vmatprep.subr.mxu0 0.0
        %680 = vmatpush1.xpose.msra.mxu0 0.0
        %681 = vmatprep.subr.mxu0 0.0
        %682 = vmatpush1.xpose.msra.mxu0 0.0
        %683 = vmatprep.subr.mxu0 0.0
        %684 = vmatpush1.xpose.msra.mxu0 0.0
        %685 = vmatprep.subr.mxu0 0.0
        %686 = vmatpush1.xpose.msra.mxu0 0.0
        %687 = vmatprep.subr.mxu0 0.0
        %688 = vmatpush1.xpose.msra.mxu0 0.0
        %689 = vmatprep.subr.mxu0 0.0
        %690 = vmatpush1.xpose.msra.mxu0 0.0
        %691 = vmatprep.mubr.f32.mxu0 0.0
        %692 = vmatmul.mubr.f32.gmra.mrb[0].mxu0 %v619
        %v693 = vpop.f32.mrb[0].mxu0
        %v694 = vadd.f32 0.0, %v693
        %v695 = vpop.f32.mrb[0].mxu0
        %696 = vmatprep.mubr.f32.mxu0 0.0
        %697 = vmatmul.mubr.f32.gmra.mrb[0].mxu0 %v621
        %v698 = vpop.f32.mrb[0].mxu0
        %v699 = vadd.f32 0.0, %v698
        %v700 = vpop.f32.mrb[0].mxu0
        %701 = vdwg.mxu0
        %704 = vrot.lane.b32.xlu0 %v505, 96
        %v705 = vpop.permute.xlu0 %704
        %706 = vrot.lane.b32.xlu0 %v510, 96
        %v707 = vpop.permute.xlu0 %706
        %v708 = vsel %vm529, %v505, 0
        %v710 = vsel %vm529, %v510, 0
        %v712 = vsel %vm529, %v705, 0
        %v714 = vsel %vm529, %v707, 0
        %716 = vmatprep.subr.mxu0 0.0
        %717 = vmatpush1.xpose.msra.mxu0 %v712
        %718 = vmatprep.subr.mxu0 0.0
        %719 = vmatpush1.xpose.msra.mxu0 %v714
        %720 = vmatprep.subr.mxu0 0.0
        %721 = vmatpush1.xpose.msra.mxu0 0.0
        %722 = vmatprep.subr.mxu0 0.0
        %723 = vmatpush1.xpose.msra.mxu0 0.0
        %724 = vmatprep.subr.mxu0 0.0
        %725 = vmatpush1.xpose.msra.mxu0 0.0
        %726 = vmatprep.subr.mxu0 0.0
        %727 = vmatpush1.xpose.msra.mxu0 0.0
        %728 = vmatprep.subr.mxu0 0.0
        %729 = vmatpush1.xpose.msra.mxu0 0.0
        %730 = vmatprep.subr.mxu0 0.0
        %731 = vmatpush1.xpose.msra.mxu0 0.0
        %732 = vmatprep.subr.mxu0 0.0
        %733 = vmatpush1.xpose.msra.mxu0 0.0
        %734 = vmatprep.subr.mxu0 0.0
        %735 = vmatpush1.xpose.msra.mxu0 0.0
        %736 = vmatprep.subr.mxu0 0.0
        %737 = vmatpush1.xpose.msra.mxu0 0.0
        %738 = vmatprep.subr.mxu0 0.0
        %739 = vmatpush1.xpose.msra.mxu0 0.0
        %740 = vmatprep.subr.mxu0 0.0
        %741 = vmatpush1.xpose.msra.mxu0 0.0
        %742 = vmatprep.subr.mxu0 0.0
        %743 = vmatpush1.xpose.msra.mxu0 0.0
        %744 = vmatprep.subr.mxu0 0.0
        %745 = vmatpush1.xpose.msra.mxu0 0.0
        %746 = vmatprep.subr.mxu0 0.0
        %747 = vmatpush1.xpose.msra.mxu0 0.0
        %748 = vmatprep.subr.mxu0 0.0
        %749 = vmatpush1.xpose.msra.mxu0 0.0
        %750 = vmatprep.subr.mxu0 0.0
        %751 = vmatpush1.xpose.msra.mxu0 0.0
        %752 = vmatprep.subr.mxu0 0.0
        %753 = vmatpush1.xpose.msra.mxu0 0.0
        %754 = vmatprep.subr.mxu0 0.0
        %755 = vmatpush1.xpose.msra.mxu0 0.0
        %756 = vmatprep.subr.mxu0 0.0
        %757 = vmatpush1.xpose.msra.mxu0 0.0
        %758 = vmatprep.subr.mxu0 0.0
        %759 = vmatpush1.xpose.msra.mxu0 0.0
        %760 = vmatprep.subr.mxu0 0.0
        %761 = vmatpush1.xpose.msra.mxu0 0.0
        %762 = vmatprep.subr.mxu0 0.0
        %763 = vmatpush1.xpose.msra.mxu0 0.0
        %764 = vmatprep.subr.mxu0 0.0
        %765 = vmatpush1.xpose.msra.mxu0 0.0
        %766 = vmatprep.subr.mxu0 0.0
        %767 = vmatpush1.xpose.msra.mxu0 0.0
        %768 = vmatprep.subr.mxu0 0.0
        %769 = vmatpush1.xpose.msra.mxu0 0.0
        %770 = vmatprep.subr.mxu0 0.0
        %771 = vmatpush1.xpose.msra.mxu0 0.0
        %772 = vmatprep.subr.mxu0 0.0
        %773 = vmatpush1.xpose.msra.mxu0 0.0
        %774 = vmatprep.subr.mxu0 0.0
        %775 = vmatpush1.xpose.msra.mxu0 0.0
        %776 = vmatprep.subr.mxu0 0.0
        %777 = vmatpush1.xpose.msra.mxu0 0.0
        %778 = vmatprep.subr.mxu0 0.0
        %779 = vmatpush1.xpose.msra.mxu0 0.0
        %780 = vmatprep.mubr.f32.mxu0 0.0
        %781 = vmatmul.mubr.f32.gmra.mrb[0].mxu0 %v708
        %v782 = vpop.f32.mrb[0].mxu0
        %v783 = vadd.f32 0.0, %v782
        %v784 = vpop.f32.mrb[0].mxu0
        %785 = vmatprep.mubr.f32.mxu0 0.0
        %786 = vmatmul.mubr.f32.gmra.mrb[0].mxu0 %v710
        %v787 = vpop.f32.mrb[0].mxu0
        %v788 = vadd.f32 0.0, %v787
        %v789 = vpop.f32.mrb[0].mxu0
        %790 = vdwg.mxu0
        %793 = vrot.lane.b32.xlu0 %v515, 96
        %v794 = vpop.permute.xlu0 %793
        %795 = vrot.lane.b32.xlu0 %v520, 96
        %v796 = vpop.permute.xlu0 %795
        %v797 = vsel %vm529, %v515, 0
        %v799 = vsel %vm529, %v520, 0
        %v801 = vsel %vm529, %v794, 0
        %v803 = vsel %vm529, %v796, 0
        %805 = vmatprep.subr.mxu0 0.0
        %806 = vmatpush1.xpose.msra.mxu0 %v801
        %807 = vmatprep.subr.mxu0 0.0
        %808 = vmatpush1.xpose.msra.mxu0 %v803
        %809 = vmatprep.subr.mxu0 0.0
        %810 = vmatpush1.xpose.msra.mxu0 0.0
        %811 = vmatprep.subr.mxu0 0.0
        %812 = vmatpush1.xpose.msra.mxu0 0.0
        %813 = vmatprep.subr.mxu0 0.0
        %814 = vmatpush1.xpose.msra.mxu0 0.0
        %815 = vmatprep.subr.mxu0 0.0
        %816 = vmatpush1.xpose.msra.mxu0 0.0
        %817 = vmatprep.subr.mxu0 0.0
        %818 = vmatpush1.xpose.msra.mxu0 0.0
        %819 = vmatprep.subr.mxu0 0.0
        %820 = vmatpush1.xpose.msra.mxu0 0.0
        %821 = vmatprep.subr.mxu0 0.0
        %822 = vmatpush1.xpose.msra.mxu0 0.0
        %823 = vmatprep.subr.mxu0 0.0
        %824 = vmatpush1.xpose.msra.mxu0 0.0
        %825 = vmatprep.subr.mxu0 0.0
        %826 = vmatpush1.xpose.msra.mxu0 0.0
        %827 = vmatprep.subr.mxu0 0.0
        %828 = vmatpush1.xpose.msra.mxu0 0.0
        %829 = vmatprep.subr.mxu0 0.0
        %830 = vmatpush1.xpose.msra.mxu0 0.0
        %831 = vmatprep.subr.mxu0 0.0
        %832 = vmatpush1.xpose.msra.mxu0 0.0
        %833 = vmatprep.subr.mxu0 0.0
        %834 = vmatpush1.xpose.msra.mxu0 0.0
        %835 = vmatprep.subr.mxu0 0.0
        %836 = vmatpush1.xpose.msra.mxu0 0.0
        %837 = vmatprep.subr.mxu0 0.0
        %838 = vmatpush1.xpose.msra.mxu0 0.0
        %839 = vmatprep.subr.mxu0 0.0
        %840 = vmatpush1.xpose.msra.mxu0 0.0
        %841 = vmatprep.subr.mxu0 0.0
        %842 = vmatpush1.xpose.msra.mxu0 0.0
        %843 = vmatprep.subr.mxu0 0.0
        %844 = vmatpush1.xpose.msra.mxu0 0.0
        %845 = vmatprep.subr.mxu0 0.0
        %846 = vmatpush1.xpose.msra.mxu0 0.0
        %847 = vmatprep.subr.mxu0 0.0
        %848 = vmatpush1.xpose.msra.mxu0 0.0
        %849 = vmatprep.subr.mxu0 0.0
        %850 = vmatpush1.xpose.msra.mxu0 0.0
        %851 = vmatprep.subr.mxu0 0.0
        %852 = vmatpush1.xpose.msra.mxu0 0.0
        %853 = vmatprep.subr.mxu0 0.0
        %854 = vmatpush1.xpose.msra.mxu0 0.0
        %855 = vmatprep.subr.mxu0 0.0
        %856 = vmatpush1.xpose.msra.mxu0 0.0
        %857 = vmatprep.subr.mxu0 0.0
        %858 = vmatpush1.xpose.msra.mxu0 0.0
        %859 = vmatprep.subr.mxu0 0.0
        %860 = vmatpush1.xpose.msra.mxu0 0.0
        %861 = vmatprep.subr.mxu0 0.0
        %862 = vmatpush1.xpose.msra.mxu0 0.0
        %863 = vmatprep.subr.mxu0 0.0
        %864 = vmatpush1.xpose.msra.mxu0 0.0
        %865 = vmatprep.subr.mxu0 0.0
        %866 = vmatpush1.xpose.msra.mxu0 0.0
        %867 = vmatprep.subr.mxu0 0.0
        %868 = vmatpush1.xpose.msra.mxu0 0.0
        %869 = vmatprep.mubr.f32.mxu0 0.0
        %870 = vmatmul.mubr.f32.gmra.mrb[0].mxu0 %v797
        %v871 = vpop.f32.mrb[0].mxu0
        %v872 = vadd.f32 0.0, %v871
        %v873 = vpop.f32.mrb[0].mxu0
        %874 = vmatprep.mubr.f32.mxu0 0.0
        %875 = vmatmul.mubr.f32.gmra.mrb[0].mxu0 %v799
        %v876 = vpop.f32.mrb[0].mxu0
        %v877 = vadd.f32 0.0, %v876
        %v878 = vpop.f32.mrb[0].mxu0
        %879 = vdwg.mxu0
        %vm880 = vcmask 130048
        %v881 = vsel %vm880, %v605, -inf
        %882 = vmax.xlane.f32.xlu0 %v881
        %v883 = vpop.xlane.xlu0 %882
        %v884 = vsel %vm880, %v610, -inf
        %885 = vmax.xlane.f32.xlu0 %v884
        %v886 = vpop.xlane.xlu0 %885
        %v887 = vsel %vm880, %v694, -inf
        %888 = vmax.xlane.f32.xlu0 %v887
        %v889 = vpop.xlane.xlu0 %888
        %v890 = vsel %vm880, %v699, -inf
        %891 = vmax.xlane.f32.xlu0 %v890
        %v892 = vpop.xlane.xlu0 %891
        %v893 = vsel %vm880, %v783, -inf
        %894 = vmax.xlane.f32.xlu0 %v893
        %v895 = vpop.xlane.xlu0 %894
        %v896 = vsel %vm880, %v788, -inf
        %897 = vmax.xlane.f32.xlu0 %v896
        %v898 = vpop.xlane.xlu0 %897
        %v899 = vsel %vm880, %v872, -inf
        %900 = vmax.xlane.f32.xlu0 %v899
        %v901 = vpop.xlane.xlu0 %900
        %v902 = vsel %vm880, %v877, -inf
        %903 = vmax.xlane.f32.xlu0 %v902
        %v904 = vpop.xlane.xlu0 %903
        %v905 = vsub.f32 %v605, %v883
        %v906 = vsub.f32 %v610, %v886
        %v907 = vsub.f32 %v694, %v889
        %v908 = vsub.f32 %v699, %v892
        %v909 = vsub.f32 %v783, %v895
        %v910 = vsub.f32 %v788, %v898
        %v911 = vsub.f32 %v872, %v901
        %v912 = vsub.f32 %v877, %v904
        %v913 = vmul.f32 %v905, 1.442695
        %v914 = vpow.pop %v913
        %v915 = vmul.f32 %v906, 1.442695
        %v916 = vpow.pop %v915
        %v917 = vmul.f32 %v907, 1.442695
        %v918 = vpow.pop %v917
        %v919 = vmul.f32 %v908, 1.442695
        %v920 = vpow.pop %v919
        %v921 = vmul.f32 %v909, 1.442695
        %v922 = vpow.pop %v921
        %v923 = vmul.f32 %v910, 1.442695
        %v924 = vpow.pop %v923
        %v925 = vmul.f32 %v911, 1.442695
        %v926 = vpow.pop %v925
        %v927 = vmul.f32 %v912, 1.442695
        %v928 = vpow.pop %v927
        %v929 = vsel %vm880, %v914, 0.0
        %930 = vadd.xlane.f32.xlu0 %v929
        %v931 = vpop.xlane.xlu0 %930
        %v932 = vsel %vm880, %v916, 0.0
        %933 = vadd.xlane.f32.xlu0 %v932
        %v934 = vpop.xlane.xlu0 %933
        %v935 = vsel %vm880, %v918, 0.0
        %936 = vadd.xlane.f32.xlu0 %v935
        %v937 = vpop.xlane.xlu0 %936
        %v938 = vsel %vm880, %v920, 0.0
        %939 = vadd.xlane.f32.xlu0 %v938
        %v940 = vpop.xlane.xlu0 %939
        %v941 = vsel %vm880, %v922, 0.0
        %942 = vadd.xlane.f32.xlu0 %v941
        %v943 = vpop.xlane.xlu0 %942
        %v944 = vsel %vm880, %v924, 0.0
        %945 = vadd.xlane.f32.xlu0 %v944
        %v946 = vpop.xlane.xlu0 %945
        %v947 = vsel %vm880, %v926, 0.0
        %948 = vadd.xlane.f32.xlu0 %v947
        %v949 = vpop.xlane.xlu0 %948
        %v950 = vsel %vm880, %v928, 0.0
        %951 = vadd.xlane.f32.xlu0 %v950
        %v952 = vpop.xlane.xlu0 %951
        %v953 = vrcp.pop %v931
        %v954 = vrcp.pop %v934
        %v955 = vrcp.pop %v937
        %v956 = vrcp.pop %v940
        %v957 = vrcp.pop %v943
        %v958 = vrcp.pop %v946
        %v959 = vrcp.pop %v949
        %v960 = vrcp.pop %v952
        %v961 = vmul.f32 %v914, %v953
        %v962 = vmul.f32 %v916, %v954
        %v963 = vmul.f32 %v918, %v955
        %v964 = vmul.f32 %v920, %v956
        %v965 = vmul.f32 %v922, %v957
        %v966 = vmul.f32 %v924, %v958
        %v967 = vmul.f32 %v926, %v959
        %v968 = vmul.f32 %v928, %v960
        %969 = vrot.lane.b32.xlu0 %v485, 64
        %v970 = vpop.permute.xlu0 %969
        %971 = vrot.lane.b32.xlu0 %v490, 64
        %v972 = vpop.permute.xlu0 %971
        %v976 = vsel %vm880, %v961, 0
        %v979 = vsel %vm880, %v962, 0
        %981 = vmatprep.subr.mxu0 0.0
        %982 = vmatpush1.msra.mxu0 %v970
        %983 = vmatprep.subr.mxu0 0.0
        %984 = vmatpush1.msra.mxu0 %v972
        %985 = vmatprep.subr.mxu0 0.0
        %986 = vmatpush1.msra.mxu0 0.0
        %987 = vmatprep.subr.mxu0 0.0
        %988 = vmatpush1.msra.mxu0 0.0
        %989 = vmatprep.subr.mxu0 0.0
        %990 = vmatpush1.msra.mxu0 0.0
        %991 = vmatprep.subr.mxu0 0.0
        %992 = vmatpush1.msra.mxu0 0.0
        %993 = vmatprep.subr.mxu0 0.0
        %994 = vmatpush1.msra.mxu0 0.0
        %995 = vmatprep.subr.mxu0 0.0
        %996 = vmatpush1.msra.mxu0 0.0
        %997 = vmatprep.subr.mxu0 0.0
        %998 = vmatpush1.msra.mxu0 0.0
        %999 = vmatprep.subr.mxu0 0.0
        %1000 = vmatpush1.msra.mxu0 0.0
        %1001 = vmatprep.subr.mxu0 0.0
        %1002 = vmatpush1.msra.mxu0 0.0
        %1003 = vmatprep.subr.mxu0 0.0
        %1004 = vmatpush1.msra.mxu0 0.0
        %1005 = vmatprep.subr.mxu0 0.0
        %1006 = vmatpush1.msra.mxu0 0.0
        %1007 = vmatprep.subr.mxu0 0.0
        %1008 = vmatpush1.msra.mxu0 0.0
        %1009 = vmatprep.subr.mxu0 0.0
        %1010 = vmatpush1.msra.mxu0 0.0
        %1011 = vmatprep.subr.mxu0 0.0
        %1012 = vmatpush1.msra.mxu0 0.0
        %1013 = vmatprep.subr.mxu0 0.0
        %1014 = vmatpush1.msra.mxu0 0.0
        %1015 = vmatprep.subr.mxu0 0.0
        %1016 = vmatpush1.msra.mxu0 0.0
        %1017 = vmatprep.subr.mxu0 0.0
        %1018 = vmatpush1.msra.mxu0 0.0
        %1019 = vmatprep.subr.mxu0 0.0
        %1020 = vmatpush1.msra.mxu0 0.0
        %1021 = vmatprep.subr.mxu0 0.0
        %1022 = vmatpush1.msra.mxu0 0.0
        %1023 = vmatprep.subr.mxu0 0.0
        %1024 = vmatpush1.msra.mxu0 0.0
        %1025 = vmatprep.subr.mxu0 0.0
        %1026 = vmatpush1.msra.mxu0 0.0
        %1027 = vmatprep.subr.mxu0 0.0
        %1028 = vmatpush1.msra.mxu0 0.0
        %1029 = vmatprep.subr.mxu0 0.0
        %1030 = vmatpush1.msra.mxu0 0.0
        %1031 = vmatprep.subr.mxu0 0.0
        %1032 = vmatpush1.msra.mxu0 0.0
        %1033 = vmatprep.subr.mxu0 0.0
        %1034 = vmatpush1.msra.mxu0 0.0
        %1035 = vmatprep.subr.mxu0 0.0
        %1036 = vmatpush1.msra.mxu0 0.0
        %1037 = vmatprep.subr.mxu0 0.0
        %1038 = vmatpush1.msra.mxu0 0.0
        %1039 = vmatprep.subr.mxu0 0.0
        %1040 = vmatpush1.msra.mxu0 0.0
        %1041 = vmatprep.subr.mxu0 0.0
        %1042 = vmatpush1.msra.mxu0 0.0
        %1043 = vmatprep.subr.mxu0 0.0
        %1044 = vmatpush1.msra.mxu0 0.0
        %1045 = vmatprep.mubr.f32.mxu0 0.0
        %1046 = vmatmul.mubr.f32.gmra.mrb[0].mxu0 %v976
        %v1047 = vpop.f32.mrb[0].mxu0
        %v1048 = vadd.f32 0.0, %v1047
        %v1049 = vpop.f32.mrb[0].mxu0
        %1050 = vmatprep.mubr.f32.mxu0 0.0
        %1051 = vmatmul.mubr.f32.gmra.mrb[0].mxu0 %v979
        %v1052 = vpop.f32.mrb[0].mxu0
        %v1053 = vadd.f32 0.0, %v1052
        %v1054 = vpop.f32.mrb[0].mxu0
        %1055 = vdwg.mxu0
        %1056 = vrot.lane.b32.xlu0 %v495, 64
        %v1057 = vpop.permute.xlu0 %1056
        %1058 = vrot.lane.b32.xlu0 %v500, 64
        %v1059 = vpop.permute.xlu0 %1058
        %v1063 = vsel %vm880, %v963, 0
        %v1066 = vsel %vm880, %v964, 0
        %1068 = vmatprep.subr.mxu0 0.0
        %1069 = vmatpush1.msra.mxu0 %v1057
        %1070 = vmatprep.subr.mxu0 0.0
        %1071 = vmatpush1.msra.mxu0 %v1059
        %1072 = vmatprep.subr.mxu0 0.0
        %1073 = vmatpush1.msra.mxu0 0.0
        %1074 = vmatprep.subr.mxu0 0.0
        %1075 = vmatpush1.msra.mxu0 0.0
        %1076 = vmatprep.subr.mxu0 0.0
        %1077 = vmatpush1.msra.mxu0 0.0
        %1078 = vmatprep.subr.mxu0 0.0
        %1079 = vmatpush1.msra.mxu0 0.0
        %1080 = vmatprep.subr.mxu0 0.0
        %1081 = vmatpush1.msra.mxu0 0.0
        %1082 = vmatprep.subr.mxu0 0.0
        %1083 = vmatpush1.msra.mxu0 0.0
        %1084 = vmatprep.subr.mxu0 0.0
        %1085 = vmatpush1.msra.mxu0 0.0
        %1086 = vmatprep.subr.mxu0 0.0
        %1087 = vmatpush1.msra.mxu0 0.0
        %1088 = vmatprep.subr.mxu0 0.0
        %1089 = vmatpush1.msra.mxu0 0.0
        %1090 = vmatprep.subr.mxu0 0.0
        %1091 = vmatpush1.msra.mxu0 0.0
        %1092 = vmatprep.subr.mxu0 0.0
        %1093 = vmatpush1.msra.mxu0 0.0
        %1094 = vmatprep.subr.mxu0 0.0
        %1095 = vmatpush1.msra.mxu0 0.0
        %1096 = vmatprep.subr.mxu0 0.0
        %1097 = vmatpush1.msra.mxu0 0.0
        %1098 = vmatprep.subr.mxu0 0.0
        %1099 = vmatpush1.msra.mxu0 0.0
        %1100 = vmatprep.subr.mxu0 0.0
        %1101 = vmatpush1.msra.mxu0 0.0
        %1102 = vmatprep.subr.mxu0 0.0
        %1103 = vmatpush1.msra.mxu0 0.0
        %1104 = vmatprep.subr.mxu0 0.0
        %1105 = vmatpush1.msra.mxu0 0.0
        %1106 = vmatprep.subr.mxu0 0.0
        %1107 = vmatpush1.msra.mxu0 0.0
        %1108 = vmatprep.subr.mxu0 0.0
        %1109 = vmatpush1.msra.mxu0 0.0
        %1110 = vmatprep.subr.mxu0 0.0
        %1111 = vmatpush1.msra.mxu0 0.0
        %1112 = vmatprep.subr.mxu0 0.0
        %1113 = vmatpush1.msra.mxu0 0.0
        %1114 = vmatprep.subr.mxu0 0.0
        %1115 = vmatpush1.msra.mxu0 0.0
        %1116 = vmatprep.subr.mxu0 0.0
        %1117 = vmatpush1.msra.mxu0 0.0
        %1118 = vmatprep.subr.mxu0 0.0
        %1119 = vmatpush1.msra.mxu0 0.0
        %1120 = vmatprep.subr.mxu0 0.0
        %1121 = vmatpush1.msra.mxu0 0.0
        %1122 = vmatprep.subr.mxu0 0.0
        %1123 = vmatpush1.msra.mxu0 0.0
        %1124 = vmatprep.subr.mxu0 0.0
        %1125 = vmatpush1.msra.mxu0 0.0
        %1126 = vmatprep.subr.mxu0 0.0
        %1127 = vmatpush1.msra.mxu0 0.0
        %1128 = vmatprep.subr.mxu0 0.0
        %1129 = vmatpush1.msra.mxu0 0.0
        %1130 = vmatprep.subr.mxu0 0.0
        %1131 = vmatpush1.msra.mxu0 0.0
        %1132 = vmatprep.mubr.f32.mxu0 0.0
        %1133 = vmatmul.mubr.f32.gmra.mrb[0].mxu0 %v1063
        %v1134 = vpop.f32.mrb[0].mxu0
        %v1135 = vadd.f32 0.0, %v1134
        %v1136 = vpop.f32.mrb[0].mxu0
        %1137 = vmatprep.mubr.f32.mxu0 0.0
        %1138 = vmatmul.mubr.f32.gmra.mrb[0].mxu0 %v1066
        %v1139 = vpop.f32.mrb[0].mxu0
        %v1140 = vadd.f32 0.0, %v1139
        %v1141 = vpop.f32.mrb[0].mxu0
        %1142 = vdwg.mxu0
        %1143 = vrot.lane.b32.xlu0 %v505, 64
        %v1144 = vpop.permute.xlu0 %1143
        %1145 = vrot.lane.b32.xlu0 %v510, 64
        %v1146 = vpop.permute.xlu0 %1145
        %v1150 = vsel %vm880, %v965, 0
        %v1153 = vsel %vm880, %v966, 0
        %1155 = vmatprep.subr.mxu0 0.0
        %1156 = vmatpush1.msra.mxu0 %v1144
        %1157 = vmatprep.subr.mxu0 0.0
        %1158 = vmatpush1.msra.mxu0 %v1146
        %1159 = vmatprep.subr.mxu0 0.0
        %1160 = vmatpush1.msra.mxu0 0.0
        %1161 = vmatprep.subr.mxu0 0.0
        %1162 = vmatpush1.msra.mxu0 0.0
        %1163 = vmatprep.subr.mxu0 0.0
        %1164 = vmatpush1.msra.mxu0 0.0
        %1165 = vmatprep.subr.mxu0 0.0
        %1166 = vmatpush1.msra.mxu0 0.0
        %1167 = vmatprep.subr.mxu0 0.0
        %1168 = vmatpush1.msra.mxu0 0.0
        %1169 = vmatprep.subr.mxu0 0.0
        %1170 = vmatpush1.msra.mxu0 0.0
        %1171 = vmatprep.subr.mxu0 0.0
        %1172 = vmatpush1.msra.mxu0 0.0
        %1173 = vmatprep.subr.mxu0 0.0
        %1174 = vmatpush1.msra.mxu0 0.0
        %1175 = vmatprep.subr.mxu0 0.0
        %1176 = vmatpush1.msra.mxu0 0.0
        %1177 = vmatprep.subr.mxu0 0.0
        %1178 = vmatpush1.msra.mxu0 0.0
        %1179 = vmatprep.subr.mxu0 0.0
        %1180 = vmatpush1.msra.mxu0 0.0
        %1181 = vmatprep.subr.mxu0 0.0
        %1182 = vmatpush1.msra.mxu0 0.0
        %1183 = vmatprep.subr.mxu0 0.0
        %1184 = vmatpush1.msra.mxu0 0.0
        %1185 = vmatprep.subr.mxu0 0.0
        %1186 = vmatpush1.msra.mxu0 0.0
        %1187 = vmatprep.subr.mxu0 0.0
        %1188 = vmatpush1.msra.mxu0 0.0
        %1189 = vmatprep.subr.mxu0 0.0
        %1190 = vmatpush1.msra.mxu0 0.0
        %1191 = vmatprep.subr.mxu0 0.0
        %1192 = vmatpush1.msra.mxu0 0.0
        %1193 = vmatprep.subr.mxu0 0.0
        %1194 = vmatpush1.msra.mxu0 0.0
        %1195 = vmatprep.subr.mxu0 0.0
        %1196 = vmatpush1.msra.mxu0 0.0
        %1197 = vmatprep.subr.mxu0 0.0
        %1198 = vmatpush1.msra.mxu0 0.0
        %1199 = vmatprep.subr.mxu0 0.0
        %1200 = vmatpush1.msra.mxu0 0.0
        %1201 = vmatprep.subr.mxu0 0.0
        %1202 = vmatpush1.msra.mxu0 0.0
        %1203 = vmatprep.subr.mxu0 0.0
        %1204 = vmatpush1.msra.mxu0 0.0
        %1205 = vmatprep.subr.mxu0 0.0
        %1206 = vmatpush1.msra.mxu0 0.0
        %1207 = vmatprep.subr.mxu0 0.0
        %1208 = vmatpush1.msra.mxu0 0.0
        %1209 = vmatprep.subr.mxu0 0.0
        %1210 = vmatpush1.msra.mxu0 0.0
        %1211 = vmatprep.subr.mxu0 0.0
        %1212 = vmatpush1.msra.mxu0 0.0
        %1213 = vmatprep.subr.mxu0 0.0
        %1214 = vmatpush1.msra.mxu0 0.0
        %1215 = vmatprep.subr.mxu0 0.0
        %1216 = vmatpush1.msra.mxu0 0.0
        %1217 = vmatprep.subr.mxu0 0.0
        %1218 = vmatpush1.msra.mxu0 0.0
        %1219 = vmatprep.mubr.f32.mxu0 0.0
        %1220 = vmatmul.mubr.f32.gmra.mrb[0].mxu0 %v1150
        %v1221 = vpop.f32.mrb[0].mxu0
        %v1222 = vadd.f32 0.0, %v1221
        %v1223 = vpop.f32.mrb[0].mxu0
        %1224 = vmatprep.mubr.f32.mxu0 0.0
        %1225 = vmatmul.mubr.f32.gmra.mrb[0].mxu0 %v1153
        %v1226 = vpop.f32.mrb[0].mxu0
        %v1227 = vadd.f32 0.0, %v1226
        %v1228 = vpop.f32.mrb[0].mxu0
        %1229 = vdwg.mxu0
        %1230 = vrot.lane.b32.xlu0 %v515, 64
        %v1231 = vpop.permute.xlu0 %1230
        %1232 = vrot.lane.b32.xlu0 %v520, 64
        %v1233 = vpop.permute.xlu0 %1232
        %v1237 = vsel %vm880, %v967, 0
        %v1240 = vsel %vm880, %v968, 0
        %1242 = vmatprep.subr.mxu0 0.0
        %1243 = vmatpush1.msra.mxu0 %v1231
        %1244 = vmatprep.subr.mxu0 0.0
        %1245 = vmatpush1.msra.mxu0 %v1233
        %1246 = vmatprep.subr.mxu0 0.0
        %1247 = vmatpush1.msra.mxu0 0.0
        %1248 = vmatprep.subr.mxu0 0.0
        %1249 = vmatpush1.msra.mxu0 0.0
        %1250 = vmatprep.subr.mxu0 0.0
        %1251 = vmatpush1.msra.mxu0 0.0
        %1252 = vmatprep.subr.mxu0 0.0
        %1253 = vmatpush1.msra.mxu0 0.0
        %1254 = vmatprep.subr.mxu0 0.0
        %1255 = vmatpush1.msra.mxu0 0.0
        %1256 = vmatprep.subr.mxu0 0.0
        %1257 = vmatpush1.msra.mxu0 0.0
        %1258 = vmatprep.subr.mxu0 0.0
        %1259 = vmatpush1.msra.mxu0 0.0
        %1260 = vmatprep.subr.mxu0 0.0
        %1261 = vmatpush1.msra.mxu0 0.0
        %1262 = vmatprep.subr.mxu0 0.0
        %1263 = vmatpush1.msra.mxu0 0.0
        %1264 = vmatprep.subr.mxu0 0.0
        %1265 = vmatpush1.msra.mxu0 0.0
        %1266 = vmatprep.subr.mxu0 0.0
        %1267 = vmatpush1.msra.mxu0 0.0
        %1268 = vmatprep.subr.mxu0 0.0
        %1269 = vmatpush1.msra.mxu0 0.0
        %1270 = vmatprep.subr.mxu0 0.0
        %1271 = vmatpush1.msra.mxu0 0.0
        %1272 = vmatprep.subr.mxu0 0.0
        %1273 = vmatpush1.msra.mxu0 0.0
        %1274 = vmatprep.subr.mxu0 0.0
        %1275 = vmatpush1.msra.mxu0 0.0
        %1276 = vmatprep.subr.mxu0 0.0
        %1277 = vmatpush1.msra.mxu0 0.0
        %1278 = vmatprep.subr.mxu0 0.0
        %1279 = vmatpush1.msra.mxu0 0.0
        %1280 = vmatprep.subr.mxu0 0.0
        %1281 = vmatpush1.msra.mxu0 0.0
        %1282 = vmatprep.subr.mxu0 0.0
        %1283 = vmatpush1.msra.mxu0 0.0
        %1284 = vmatprep.subr.mxu0 0.0
        %1285 = vmatpush1.msra.mxu0 0.0
        %1286 = vmatprep.subr.mxu0 0.0
        %1287 = vmatpush1.msra.mxu0 0.0
        %1288 = vmatprep.subr.mxu0 0.0
        %1289 = vmatpush1.msra.mxu0 0.0
        %1290 = vmatprep.subr.mxu0 0.0
        %1291 = vmatpush1.msra.mxu0 0.0
        %1292 = vmatprep.subr.mxu0 0.0
        %1293 = vmatpush1.msra.mxu0 0.0
        %1294 = vmatprep.subr.mxu0 0.0
        %1295 = vmatpush1.msra.mxu0 0.0
        %1296 = vmatprep.subr.mxu0 0.0
        %1297 = vmatpush1.msra.mxu0 0.0
        %1298 = vmatprep.subr.mxu0 0.0
        %1299 = vmatpush1.msra.mxu0 0.0
        %1300 = vmatprep.subr.mxu0 0.0
        %1301 = vmatpush1.msra.mxu0 0.0
        %1302 = vmatprep.subr.mxu0 0.0
        %1303 = vmatpush1.msra.mxu0 0.0
        %1304 = vmatprep.subr.mxu0 0.0
        %1305 = vmatpush1.msra.mxu0 0.0
        %1306 = vmatprep.mubr.f32.mxu0 0.0
        %1307 = vmatmul.mubr.f32.gmra.mrb[0].mxu0 %v1237
        %v1308 = vpop.f32.mrb[0].mxu0
        %v1309 = vadd.f32 0.0, %v1308
        %v1310 = vpop.f32.mrb[0].mxu0
        %1311 = vmatprep.mubr.f32.mxu0 0.0
        %1312 = vmatmul.mubr.f32.gmra.mrb[0].mxu0 %v1240
        %v1313 = vpop.f32.mrb[0].mxu0
        %v1314 = vadd.f32 0.0, %v1313
        %v1315 = vpop.f32.mrb[0].mxu0
        %1316 = vdwg.mxu0
        %v1317 = vld [vmem:[%s3] sm:$0xf]
        %1318 = vrot.lane.b32.xlu0 %v485, 124
        %v1319 = vpop.permute.xlu0 %1318
        %1320 = vrot.lane.b32.xlu0 %v490, 124
        %v1321 = vpop.permute.xlu0 %1320
        %1322 = vrot.lane.b32.xlu0 %v485, 92
        %v1323 = vpop.permute.xlu0 %1322
        %1324 = vrot.lane.b32.xlu0 %v490, 92
        %v1325 = vpop.permute.xlu0 %1324
        %v1326 = vsel %vm529, %v1319, 0
        %v1328 = vsel %vm529, %v1321, 0
        %v1330 = vsel %vm529, %v1323, 0
        %v1332 = vsel %vm529, %v1325, 0
        %1334 = vmatprep.subr.mxu0 0.0
        %1335 = vmatpush1.xpose.msra.mxu0 %v1330
        %1336 = vmatprep.subr.mxu0 0.0
        %1337 = vmatpush1.xpose.msra.mxu0 %v1332
        %1338 = vmatprep.subr.mxu0 0.0
        %1339 = vmatpush1.xpose.msra.mxu0 0.0
        %1340 = vmatprep.subr.mxu0 0.0
        %1341 = vmatpush1.xpose.msra.mxu0 0.0
        %1342 = vmatprep.subr.mxu0 0.0
        %1343 = vmatpush1.xpose.msra.mxu0 0.0
        %1344 = vmatprep.subr.mxu0 0.0
        %1345 = vmatpush1.xpose.msra.mxu0 0.0
        %1346 = vmatprep.subr.mxu0 0.0
        %1347 = vmatpush1.xpose.msra.mxu0 0.0
        %1348 = vmatprep.subr.mxu0 0.0
        %1349 = vmatpush1.xpose.msra.mxu0 0.0
        %1350 = vmatprep.subr.mxu0 0.0
        %1351 = vmatpush1.xpose.msra.mxu0 0.0
        %1352 = vmatprep.subr.mxu0 0.0
        %1353 = vmatpush1.xpose.msra.mxu0 0.0
        %1354 = vmatprep.subr.mxu0 0.0
        %1355 = vmatpush1.xpose.msra.mxu0 0.0
        %1356 = vmatprep.subr.mxu0 0.0
        %1357 = vmatpush1.xpose.msra.mxu0 0.0
        %1358 = vmatprep.subr.mxu0 0.0
        %1359 = vmatpush1.xpose.msra.mxu0 0.0
        %1360 = vmatprep.subr.mxu0 0.0
        %1361 = vmatpush1.xpose.msra.mxu0 0.0
        %1362 = vmatprep.subr.mxu0 0.0
        %1363 = vmatpush1.xpose.msra.mxu0 0.0
        %1364 = vmatprep.subr.mxu0 0.0
        %1365 = vmatpush1.xpose.msra.mxu0 0.0
        %1366 = vmatprep.subr.mxu0 0.0
        %1367 = vmatpush1.xpose.msra.mxu0 0.0
        %1368 = vmatprep.subr.mxu0 0.0
        %1369 = vmatpush1.xpose.msra.mxu0 0.0
        %1370 = vmatprep.subr.mxu0 0.0
        %1371 = vmatpush1.xpose.msra.mxu0 0.0
        %1372 = vmatprep.subr.mxu0 0.0
        %1373 = vmatpush1.xpose.msra.mxu0 0.0
        %1374 = vmatprep.subr.mxu0 0.0
        %1375 = vmatpush1.xpose.msra.mxu0 0.0
        %1376 = vmatprep.subr.mxu0 0.0
        %1377 = vmatpush1.xpose.msra.mxu0 0.0
        %1378 = vmatprep.subr.mxu0 0.0
        %1379 = vmatpush1.xpose.msra.mxu0 0.0
        %1380 = vmatprep.subr.mxu0 0.0
        %1381 = vmatpush1.xpose.msra.mxu0 0.0
        %1382 = vmatprep.subr.mxu0 0.0
        %1383 = vmatpush1.xpose.msra.mxu0 0.0
        %1384 = vmatprep.subr.mxu0 0.0
        %1385 = vmatpush1.xpose.msra.mxu0 0.0
        %1386 = vmatprep.subr.mxu0 0.0
        %1387 = vmatpush1.xpose.msra.mxu0 0.0
        %1388 = vmatprep.subr.mxu0 0.0
        %1389 = vmatpush1.xpose.msra.mxu0 0.0
        %1390 = vmatprep.subr.mxu0 0.0
        %1391 = vmatpush1.xpose.msra.mxu0 0.0
        %1392 = vmatprep.subr.mxu0 0.0
        %1393 = vmatpush1.xpose.msra.mxu0 0.0
        %1394 = vmatprep.subr.mxu0 0.0
        %1395 = vmatpush1.xpose.msra.mxu0 0.0
        %1396 = vmatprep.subr.mxu0 0.0
        %1397 = vmatpush1.xpose.msra.mxu0 0.0
        %1398 = vmatprep.mubr.f32.mxu0 0.0
        %1399 = vmatmul.mubr.f32.gmra.mrb[0].mxu0 %v1326
        %v1400 = vpop.f32.mrb[0].mxu0
        %v1401 = vadd.f32 0.0, %v1400
        %v1402 = vpop.f32.mrb[0].mxu0
        %1403 = vmatprep.mubr.f32.mxu0 0.0
        %1404 = vmatmul.mubr.f32.gmra.mrb[0].mxu0 %v1328
        %v1405 = vpop.f32.mrb[0].mxu0
        %v1406 = vadd.f32 0.0, %v1405
        %v1407 = vpop.f32.mrb[0].mxu0
        %1408 = vdwg.mxu0
        %1409 = vrot.lane.b32.xlu0 %v495, 124
        %v1410 = vpop.permute.xlu0 %1409
        %1411 = vrot.lane.b32.xlu0 %v500, 124
        %v1412 = vpop.permute.xlu0 %1411
        %1413 = vrot.lane.b32.xlu0 %v495, 92
        %v1414 = vpop.permute.xlu0 %1413
        %1415 = vrot.lane.b32.xlu0 %v500, 92
        %v1416 = vpop.permute.xlu0 %1415
        %v1417 = vsel %vm529, %v1410, 0
        %v1419 = vsel %vm529, %v1412, 0
        %v1421 = vsel %vm529, %v1414, 0
        %v1423 = vsel %vm529, %v1416, 0
        %1425 = vmatprep.subr.mxu0 0.0
        %1426 = vmatpush1.xpose.msra.mxu0 %v1421
        %1427 = vmatprep.subr.mxu0 0.0
        %1428 = vmatpush1.xpose.msra.mxu0 %v1423
        %1429 = vmatprep.subr.mxu0 0.0
        %1430 = vmatpush1.xpose.msra.mxu0 0.0
        %1431 = vmatprep.subr.mxu0 0.0
        %1432 = vmatpush1.xpose.msra.mxu0 0.0
        %1433 = vmatprep.subr.mxu0 0.0
        %1434 = vmatpush1.xpose.msra.mxu0 0.0
        %1435 = vmatprep.subr.mxu0 0.0
        %1436 = vmatpush1.xpose.msra.mxu0 0.0
        %1437 = vmatprep.subr.mxu0 0.0
        %1438 = vmatpush1.xpose.msra.mxu0 0.0
        %1439 = vmatprep.subr.mxu0 0.0
        %1440 = vmatpush1.xpose.msra.mxu0 0.0
        %1441 = vmatprep.subr.mxu0 0.0
        %1442 = vmatpush1.xpose.msra.mxu0 0.0
        %1443 = vmatprep.subr.mxu0 0.0
        %1444 = vmatpush1.xpose.msra.mxu0 0.0
        %1445 = vmatprep.subr.mxu0 0.0
        %1446 = vmatpush1.xpose.msra.mxu0 0.0
        %1447 = vmatprep.subr.mxu0 0.0
        %1448 = vmatpush1.xpose.msra.mxu0 0.0
        %1449 = vmatprep.subr.mxu0 0.0
        %1450 = vmatpush1.xpose.msra.mxu0 0.0
        %1451 = vmatprep.subr.mxu0 0.0
        %1452 = vmatpush1.xpose.msra.mxu0 0.0
        %1453 = vmatprep.subr.mxu0 0.0
        %1454 = vmatpush1.xpose.msra.mxu0 0.0
        %1455 = vmatprep.subr.mxu0 0.0
        %1456 = vmatpush1.xpose.msra.mxu0 0.0
        %1457 = vmatprep.subr.mxu0 0.0
        %1458 = vmatpush1.xpose.msra.mxu0 0.0
        %1459 = vmatprep.subr.mxu0 0.0
        %1460 = vmatpush1.xpose.msra.mxu0 0.0
        %1461 = vmatprep.subr.mxu0 0.0
        %1462 = vmatpush1.xpose.msra.mxu0 0.0
        %1463 = vmatprep.subr.mxu0 0.0
        %1464 = vmatpush1.xpose.msra.mxu0 0.0
        %1465 = vmatprep.subr.mxu0 0.0
        %1466 = vmatpush1.xpose.msra.mxu0 0.0
        %1467 = vmatprep.subr.mxu0 0.0
        %1468 = vmatpush1.xpose.msra.mxu0 0.0
        %1469 = vmatprep.subr.mxu0 0.0
        %1470 = vmatpush1.xpose.msra.mxu0 0.0
        %1471 = vmatprep.subr.mxu0 0.0
        %1472 = vmatpush1.xpose.msra.mxu0 0.0
        %1473 = vmatprep.subr.mxu0 0.0
        %1474 = vmatpush1.xpose.msra.mxu0 0.0
        %1475 = vmatprep.subr.mxu0 0.0
        %1476 = vmatpush1.xpose.msra.mxu0 0.0
        %1477 = vmatprep.subr.mxu0 0.0
        %1478 = vmatpush1.xpose.msra.mxu0 0.0
        %1479 = vmatprep.subr.mxu0 0.0
        %1480 = vmatpush1.xpose.msra.mxu0 0.0
        %1481 = vmatprep.subr.mxu0 0.0
        %1482 = vmatpush1.xpose.msra.mxu0 0.0
        %1483 = vmatprep.subr.mxu0 0.0
        %1484 = vmatpush1.xpose.msra.mxu0 0.0
        %1485 = vmatprep.subr.mxu0 0.0
        %1486 = vmatpush1.xpose.msra.mxu0 0.0
        %1487 = vmatprep.subr.mxu0 0.0
        %1488 = vmatpush1.xpose.msra.mxu0 0.0
        %1489 = vmatprep.mubr.f32.mxu0 0.0
        %1490 = vmatmul.mubr.f32.gmra.mrb[0].mxu0 %v1417
        %v1491 = vpop.f32.mrb[0].mxu0
        %v1492 = vadd.f32 0.0, %v1491
        %v1493 = vpop.f32.mrb[0].mxu0
        %1494 = vmatprep.mubr.f32.mxu0 0.0
        %1495 = vmatmul.mubr.f32.gmra.mrb[0].mxu0 %v1419
        %v1496 = vpop.f32.mrb[0].mxu0
        %v1497 = vadd.f32 0.0, %v1496
        %v1498 = vpop.f32.mrb[0].mxu0
        %1499 = vdwg.mxu0
        %1500 = vrot.lane.b32.xlu0 %v505, 124
        %v1501 = vpop.permute.xlu0 %1500
        %1502 = vrot.lane.b32.xlu0 %v510, 124
        %v1503 = vpop.permute.xlu0 %1502
        %1504 = vrot.lane.b32.xlu0 %v505, 92
        %v1505 = vpop.permute.xlu0 %1504
        %1506 = vrot.lane.b32.xlu0 %v510, 92
        %v1507 = vpop.permute.xlu0 %1506
        %v1508 = vsel %vm529, %v1501, 0
        %v1510 = vsel %vm529, %v1503, 0
        %v1512 = vsel %vm529, %v1505, 0
        %v1514 = vsel %vm529, %v1507, 0
        %1516 = vmatprep.subr.mxu0 0.0
        %1517 = vmatpush1.xpose.msra.mxu0 %v1512
        %1518 = vmatprep.subr.mxu0 0.0
        %1519 = vmatpush1.xpose.msra.mxu0 %v1514
        %1520 = vmatprep.subr.mxu0 0.0
        %1521 = vmatpush1.xpose.msra.mxu0 0.0
        %1522 = vmatprep.subr.mxu0 0.0
        %1523 = vmatpush1.xpose.msra.mxu0 0.0
        %1524 = vmatprep.subr.mxu0 0.0
        %1525 = vmatpush1.xpose.msra.mxu0 0.0
        %1526 = vmatprep.subr.mxu0 0.0
        %1527 = vmatpush1.xpose.msra.mxu0 0.0
        %1528 = vmatprep.subr.mxu0 0.0
        %1529 = vmatpush1.xpose.msra.mxu0 0.0
        %1530 = vmatprep.subr.mxu0 0.0
        %1531 = vmatpush1.xpose.msra.mxu0 0.0
        %1532 = vmatprep.subr.mxu0 0.0
        %1533 = vmatpush1.xpose.msra.mxu0 0.0
        %1534 = vmatprep.subr.mxu0 0.0
        %1535 = vmatpush1.xpose.msra.mxu0 0.0
        %1536 = vmatprep.subr.mxu0 0.0
        %1537 = vmatpush1.xpose.msra.mxu0 0.0
        %1538 = vmatprep.subr.mxu0 0.0
        %1539 = vmatpush1.xpose.msra.mxu0 0.0
        %1540 = vmatprep.subr.mxu0 0.0
        %1541 = vmatpush1.xpose.msra.mxu0 0.0
        %1542 = vmatprep.subr.mxu0 0.0
        %1543 = vmatpush1.xpose.msra.mxu0 0.0
        %1544 = vmatprep.subr.mxu0 0.0
        %1545 = vmatpush1.xpose.msra.mxu0 0.0
        %1546 = vmatprep.subr.mxu0 0.0
        %1547 = vmatpush1.xpose.msra.mxu0 0.0
        %1548 = vmatprep.subr.mxu0 0.0
        %1549 = vmatpush1.xpose.msra.mxu0 0.0
        %1550 = vmatprep.subr.mxu0 0.0
        %1551 = vmatpush1.xpose.msra.mxu0 0.0
        %1552 = vmatprep.subr.mxu0 0.0
        %1553 = vmatpush1.xpose.msra.mxu0 0.0
        %1554 = vmatprep.subr.mxu0 0.0
        %1555 = vmatpush1.xpose.msra.mxu0 0.0
        %1556 = vmatprep.subr.mxu0 0.0
        %1557 = vmatpush1.xpose.msra.mxu0 0.0
        %1558 = vmatprep.subr.mxu0 0.0
        %1559 = vmatpush1.xpose.msra.mxu0 0.0
        %1560 = vmatprep.subr.mxu0 0.0
        %1561 = vmatpush1.xpose.msra.mxu0 0.0
        %1562 = vmatprep.subr.mxu0 0.0
        %1563 = vmatpush1.xpose.msra.mxu0 0.0
        %1564 = vmatprep.subr.mxu0 0.0
        %1565 = vmatpush1.xpose.msra.mxu0 0.0
        %1566 = vmatprep.subr.mxu0 0.0
        %1567 = vmatpush1.xpose.msra.mxu0 0.0
        %1568 = vmatprep.subr.mxu0 0.0
        %1569 = vmatpush1.xpose.msra.mxu0 0.0
        %1570 = vmatprep.subr.mxu0 0.0
        %1571 = vmatpush1.xpose.msra.mxu0 0.0
        %1572 = vmatprep.subr.mxu0 0.0
        %1573 = vmatpush1.xpose.msra.mxu0 0.0
        %1574 = vmatprep.subr.mxu0 0.0
        %1575 = vmatpush1.xpose.msra.mxu0 0.0
        %1576 = vmatprep.subr.mxu0 0.0
        %1577 = vmatpush1.xpose.msra.mxu0 0.0
        %1578 = vmatprep.subr.mxu0 0.0
        %1579 = vmatpush1.xpose.msra.mxu0 0.0
        %1580 = vmatprep.mubr.f32.mxu0 0.0
        %1581 = vmatmul.mubr.f32.gmra.mrb[0].mxu0 %v1508
        %v1582 = vpop.f32.mrb[0].mxu0
        %v1583 = vadd.f32 0.0, %v1582
        %v1584 = vpop.f32.mrb[0].mxu0
        %1585 = vmatprep.mubr.f32.mxu0 0.0
        %1586 = vmatmul.mubr.f32.gmra.mrb[0].mxu0 %v1510
        %v1587 = vpop.f32.mrb[0].mxu0
        %v1588 = vadd.f32 0.0, %v1587
        %v1589 = vpop.f32.mrb[0].mxu0
        %1590 = vdwg.mxu0
        %1591 = vrot.lane.b32.xlu0 %v515, 124
        %v1592 = vpop.permute.xlu0 %1591
        %1593 = vrot.lane.b32.xlu0 %v520, 124
        %v1594 = vpop.permute.xlu0 %1593
        %1595 = vrot.lane.b32.xlu0 %v515, 92
        %v1596 = vpop.permute.xlu0 %1595
        %1597 = vrot.lane.b32.xlu0 %v520, 92
        %v1598 = vpop.permute.xlu0 %1597
        %v1599 = vsel %vm529, %v1592, 0
        %v1601 = vsel %vm529, %v1594, 0
        %v1603 = vsel %vm529, %v1596, 0
        %v1605 = vsel %vm529, %v1598, 0
        %1607 = vmatprep.subr.mxu0 0.0
        %1608 = vmatpush1.xpose.msra.mxu0 %v1603
        %1609 = vmatprep.subr.mxu0 0.0
        %1610 = vmatpush1.xpose.msra.mxu0 %v1605
        %1611 = vmatprep.subr.mxu0 0.0
        %1612 = vmatpush1.xpose.msra.mxu0 0.0
        %1613 = vmatprep.subr.mxu0 0.0
        %1614 = vmatpush1.xpose.msra.mxu0 0.0
        %1615 = vmatprep.subr.mxu0 0.0
        %1616 = vmatpush1.xpose.msra.mxu0 0.0
        %1617 = vmatprep.subr.mxu0 0.0
        %1618 = vmatpush1.xpose.msra.mxu0 0.0
        %1619 = vmatprep.subr.mxu0 0.0
        %1620 = vmatpush1.xpose.msra.mxu0 0.0
        %1621 = vmatprep.subr.mxu0 0.0
        %1622 = vmatpush1.xpose.msra.mxu0 0.0
        %1623 = vmatprep.subr.mxu0 0.0
        %1624 = vmatpush1.xpose.msra.mxu0 0.0
        %1625 = vmatprep.subr.mxu0 0.0
        %1626 = vmatpush1.xpose.msra.mxu0 0.0
        %1627 = vmatprep.subr.mxu0 0.0
        %1628 = vmatpush1.xpose.msra.mxu0 0.0
        %1629 = vmatprep.subr.mxu0 0.0
        %1630 = vmatpush1.xpose.msra.mxu0 0.0
        %1631 = vmatprep.subr.mxu0 0.0
        %1632 = vmatpush1.xpose.msra.mxu0 0.0
        %1633 = vmatprep.subr.mxu0 0.0
        %1634 = vmatpush1.xpose.msra.mxu0 0.0
        %1635 = vmatprep.subr.mxu0 0.0
        %1636 = vmatpush1.xpose.msra.mxu0 0.0
        %1637 = vmatprep.subr.mxu0 0.0
        %1638 = vmatpush1.xpose.msra.mxu0 0.0
        %1639 = vmatprep.subr.mxu0 0.0
        %1640 = vmatpush1.xpose.msra.mxu0 0.0
        %1641 = vmatprep.subr.mxu0 0.0
        %1642 = vmatpush1.xpose.msra.mxu0 0.0
        %1643 = vmatprep.subr.mxu0 0.0
        %1644 = vmatpush1.xpose.msra.mxu0 0.0
        %1645 = vmatprep.subr.mxu0 0.0
        %1646 = vmatpush1.xpose.msra.mxu0 0.0
        %1647 = vmatprep.subr.mxu0 0.0
        %1648 = vmatpush1.xpose.msra.mxu0 0.0
        %1649 = vmatprep.subr.mxu0 0.0
        %1650 = vmatpush1.xpose.msra.mxu0 0.0
        %1651 = vmatprep.subr.mxu0 0.0
        %1652 = vmatpush1.xpose.msra.mxu0 0.0
        %1653 = vmatprep.subr.mxu0 0.0
        %1654 = vmatpush1.xpose.msra.mxu0 0.0
        %1655 = vmatprep.subr.mxu0 0.0
        %1656 = vmatpush1.xpose.msra.mxu0 0.0
        %1657 = vmatprep.subr.mxu0 0.0
        %1658 = vmatpush1.xpose.msra.mxu0 0.0
        %1659 = vmatprep.subr.mxu0 0.0
        %1660 = vmatpush1.xpose.msra.mxu0 0.0
        %1661 = vmatprep.subr.mxu0 0.0
        %1662 = vmatpush1.xpose.msra.mxu0 0.0
        %1663 = vmatprep.subr.mxu0 0.0
        %1664 = vmatpush1.xpose.msra.mxu0 0.0
        %1665 = vmatprep.subr.mxu0 0.0
        %1666 = vmatpush1.xpose.msra.mxu0 0.0
        %1667 = vmatprep.subr.mxu0 0.0
        %1668 = vmatpush1.xpose.msra.mxu0 0.0
        %1669 = vmatprep.subr.mxu0 0.0
        %1670 = vmatpush1.xpose.msra.mxu0 0.0
        %1671 = vmatprep.mubr.f32.mxu0 0.0
        %1672 = vmatmul.mubr.f32.gmra.mrb[0].mxu0 %v1599
        %v1673 = vpop.f32.mrb[0].mxu0
        %v1674 = vadd.f32 0.0, %v1673
        %v1675 = vpop.f32.mrb[0].mxu0
        %1676 = vmatprep.mubr.f32.mxu0 0.0
        %1677 = vmatmul.mubr.f32.gmra.mrb[0].mxu0 %v1601
        %v1678 = vpop.f32.mrb[0].mxu0
        %v1679 = vadd.f32 0.0, %v1678
        %v1680 = vpop.f32.mrb[0].mxu0
        %1681 = vdwg.mxu0
        %v1682 = vsel %vm880, %v1401, -inf
        %1683 = vmax.xlane.f32.xlu0 %v1682
        %v1684 = vpop.xlane.xlu0 %1683
        %v1685 = vsel %vm880, %v1406, -inf
        %1686 = vmax.xlane.f32.xlu0 %v1685
        %v1687 = vpop.xlane.xlu0 %1686
        %v1688 = vsel %vm880, %v1492, -inf
        %1689 = vmax.xlane.f32.xlu0 %v1688
        %v1690 = vpop.xlane.xlu0 %1689
        %v1691 = vsel %vm880, %v1497, -inf
        %1692 = vmax.xlane.f32.xlu0 %v1691
        %v1693 = vpop.xlane.xlu0 %1692
        %v1694 = vsel %vm880, %v1583, -inf
        %1695 = vmax.xlane.f32.xlu0 %v1694
        %v1696 = vpop.xlane.xlu0 %1695
        %v1697 = vsel %vm880, %v1588, -inf
        %1698 = vmax.xlane.f32.xlu0 %v1697
        %v1699 = vpop.xlane.xlu0 %1698
        %v1700 = vsel %vm880, %v1674, -inf
        %1701 = vmax.xlane.f32.xlu0 %v1700
        %v1702 = vpop.xlane.xlu0 %1701
        %v1703 = vsel %vm880, %v1679, -inf
        %1704 = vmax.xlane.f32.xlu0 %v1703
        %v1705 = vpop.xlane.xlu0 %1704
        %v1706 = vsub.f32 %v1401, %v1684
        %v1707 = vsub.f32 %v1406, %v1687
        %v1708 = vsub.f32 %v1492, %v1690
        %v1709 = vsub.f32 %v1497, %v1693
        %v1710 = vsub.f32 %v1583, %v1696
        %v1711 = vsub.f32 %v1588, %v1699
        %v1712 = vsub.f32 %v1674, %v1702
        %v1713 = vsub.f32 %v1679, %v1705
        %v1714 = vmul.f32 %v1706, 1.442695
        %v1715 = vpow.pop %v1714
        %v1716 = vmul.f32 %v1707, 1.442695
        %v1717 = vpow.pop %v1716
        %v1718 = vmul.f32 %v1708, 1.442695
        %v1719 = vpow.pop %v1718
        %v1720 = vmul.f32 %v1709, 1.442695
        %v1721 = vpow.pop %v1720
        %v1722 = vmul.f32 %v1710, 1.442695
        %v1723 = vpow.pop %v1722
        %v1724 = vmul.f32 %v1711, 1.442695
        %v1725 = vpow.pop %v1724
        %v1726 = vmul.f32 %v1712, 1.442695
        %v1727 = vpow.pop %v1726
        %v1728 = vmul.f32 %v1713, 1.442695
        %v1729 = vpow.pop %v1728
        %v1730 = vsel %vm880, %v1715, 0.0
        %1731 = vadd.xlane.f32.xlu0 %v1730
        %v1732 = vpop.xlane.xlu0 %1731
        %v1733 = vsel %vm880, %v1717, 0.0
        %1734 = vadd.xlane.f32.xlu0 %v1733
        %v1735 = vpop.xlane.xlu0 %1734
        %v1736 = vsel %vm880, %v1719, 0.0
        %1737 = vadd.xlane.f32.xlu0 %v1736
        %v1738 = vpop.xlane.xlu0 %1737
        %v1739 = vsel %vm880, %v1721, 0.0
        %1740 = vadd.xlane.f32.xlu0 %v1739
        %v1741 = vpop.xlane.xlu0 %1740
        %v1742 = vsel %vm880, %v1723, 0.0
        %1743 = vadd.xlane.f32.xlu0 %v1742
        %v1744 = vpop.xlane.xlu0 %1743
        %v1745 = vsel %vm880, %v1725, 0.0
        %1746 = vadd.xlane.f32.xlu0 %v1745
        %v1747 = vpop.xlane.xlu0 %1746
        %v1748 = vsel %vm880, %v1727, 0.0
        %1749 = vadd.xlane.f32.xlu0 %v1748
        %v1750 = vpop.xlane.xlu0 %1749
        %v1751 = vsel %vm880, %v1729, 0.0
        %1752 = vadd.xlane.f32.xlu0 %v1751
        %v1753 = vpop.xlane.xlu0 %1752
        %v1754 = vrcp.pop %v1732
        %v1755 = vrcp.pop %v1735
        %v1756 = vrcp.pop %v1738
        %v1757 = vrcp.pop %v1741
        %v1758 = vrcp.pop %v1744
        %v1759 = vrcp.pop %v1747
        %v1760 = vrcp.pop %v1750
        %v1761 = vrcp.pop %v1753
        %v1762 = vmul.f32 %v1715, %v1754
        %v1763 = vmul.f32 %v1717, %v1755
        %v1764 = vmul.f32 %v1719, %v1756
        %v1765 = vmul.f32 %v1721, %v1757
        %v1766 = vmul.f32 %v1723, %v1758
        %v1767 = vmul.f32 %v1725, %v1759
        %v1768 = vmul.f32 %v1727, %v1760
        %v1769 = vmul.f32 %v1729, %v1761
        %1770 = vrot.lane.b32.xlu0 %v485, 60
        %v1771 = vpop.permute.xlu0 %1770
        %1772 = vrot.lane.b32.xlu0 %v490, 60
        %v1773 = vpop.permute.xlu0 %1772
        %v1777 = vsel %vm880, %v1762, 0
        %v1780 = vsel %vm880, %v1763, 0
        %1782 = vmatprep.subr.mxu0 0.0
        %1783 = vmatpush1.msra.mxu0 %v1771
        %1784 = vmatprep.subr.mxu0 0.0
        %1785 = vmatpush1.msra.mxu0 %v1773
        %1786 = vmatprep.subr.mxu0 0.0
        %1787 = vmatpush1.msra.mxu0 0.0
        %1788 = vmatprep.subr.mxu0 0.0
        %1789 = vmatpush1.msra.mxu0 0.0
        %1790 = vmatprep.subr.mxu0 0.0
        %1791 = vmatpush1.msra.mxu0 0.0
        %1792 = vmatprep.subr.mxu0 0.0
        %1793 = vmatpush1.msra.mxu0 0.0
        %1794 = vmatprep.subr.mxu0 0.0
        %1795 = vmatpush1.msra.mxu0 0.0
        %1796 = vmatprep.subr.mxu0 0.0
        %1797 = vmatpush1.msra.mxu0 0.0
        %1798 = vmatprep.subr.mxu0 0.0
        %1799 = vmatpush1.msra.mxu0 0.0
        %1800 = vmatprep.subr.mxu0 0.0
        %1801 = vmatpush1.msra.mxu0 0.0
        %1802 = vmatprep.subr.mxu0 0.0
        %1803 = vmatpush1.msra.mxu0 0.0
        %1804 = vmatprep.subr.mxu0 0.0
        %1805 = vmatpush1.msra.mxu0 0.0
        %1806 = vmatprep.subr.mxu0 0.0
        %1807 = vmatpush1.msra.mxu0 0.0
        %1808 = vmatprep.subr.mxu0 0.0
        %1809 = vmatpush1.msra.mxu0 0.0
        %1810 = vmatprep.subr.mxu0 0.0
        %1811 = vmatpush1.msra.mxu0 0.0
        %1812 = vmatprep.subr.mxu0 0.0
        %1813 = vmatpush1.msra.mxu0 0.0
        %1814 = vmatprep.subr.mxu0 0.0
        %1815 = vmatpush1.msra.mxu0 0.0
        %1816 = vmatprep.subr.mxu0 0.0
        %1817 = vmatpush1.msra.mxu0 0.0
        %1818 = vmatprep.subr.mxu0 0.0
        %1819 = vmatpush1.msra.mxu0 0.0
        %1820 = vmatprep.subr.mxu0 0.0
        %1821 = vmatpush1.msra.mxu0 0.0
        %1822 = vmatprep.subr.mxu0 0.0
        %1823 = vmatpush1.msra.mxu0 0.0
        %1824 = vmatprep.subr.mxu0 0.0
        %1825 = vmatpush1.msra.mxu0 0.0
        %1826 = vmatprep.subr.mxu0 0.0
        %1827 = vmatpush1.msra.mxu0 0.0
        %1828 = vmatprep.subr.mxu0 0.0
        %1829 = vmatpush1.msra.mxu0 0.0
        %1830 = vmatprep.subr.mxu0 0.0
        %1831 = vmatpush1.msra.mxu0 0.0
        %1832 = vmatprep.subr.mxu0 0.0
        %1833 = vmatpush1.msra.mxu0 0.0
        %1834 = vmatprep.subr.mxu0 0.0
        %1835 = vmatpush1.msra.mxu0 0.0
        %1836 = vmatprep.subr.mxu0 0.0
        %1837 = vmatpush1.msra.mxu0 0.0
        %1838 = vmatprep.subr.mxu0 0.0
        %1839 = vmatpush1.msra.mxu0 0.0
        %1840 = vmatprep.subr.mxu0 0.0
        %1841 = vmatpush1.msra.mxu0 0.0
        %1842 = vmatprep.subr.mxu0 0.0
        %1843 = vmatpush1.msra.mxu0 0.0
        %1844 = vmatprep.subr.mxu0 0.0
        %1845 = vmatpush1.msra.mxu0 0.0
        %1846 = vmatprep.mubr.f32.mxu0 0.0
        %1847 = vmatmul.mubr.f32.gmra.mrb[0].mxu0 %v1777
        %v1848 = vpop.f32.mrb[0].mxu0
        %v1849 = vadd.f32 0.0, %v1848
        %v1850 = vpop.f32.mrb[0].mxu0
        %1851 = vmatprep.mubr.f32.mxu0 0.0
        %1852 = vmatmul.mubr.f32.gmra.mrb[0].mxu0 %v1780
        %v1853 = vpop.f32.mrb[0].mxu0
        %v1854 = vadd.f32 0.0, %v1853
        %v1855 = vpop.f32.mrb[0].mxu0
        %1856 = vdwg.mxu0
        %1857 = vrot.lane.b32.xlu0 %v495, 60
        %v1858 = vpop.permute.xlu0 %1857
        %1859 = vrot.lane.b32.xlu0 %v500, 60
        %v1860 = vpop.permute.xlu0 %1859
        %v1864 = vsel %vm880, %v1764, 0
        %v1867 = vsel %vm880, %v1765, 0
        %1869 = vmatprep.subr.mxu0 0.0
        %1870 = vmatpush1.msra.mxu0 %v1858
        %1871 = vmatprep.subr.mxu0 0.0
        %1872 = vmatpush1.msra.mxu0 %v1860
        %1873 = vmatprep.subr.mxu0 0.0
        %1874 = vmatpush1.msra.mxu0 0.0
        %1875 = vmatprep.subr.mxu0 0.0
        %1876 = vmatpush1.msra.mxu0 0.0
        %1877 = vmatprep.subr.mxu0 0.0
        %1878 = vmatpush1.msra.mxu0 0.0
        %1879 = vmatprep.subr.mxu0 0.0
        %1880 = vmatpush1.msra.mxu0 0.0
        %1881 = vmatprep.subr.mxu0 0.0
        %1882 = vmatpush1.msra.mxu0 0.0
        %1883 = vmatprep.subr.mxu0 0.0
        %1884 = vmatpush1.msra.mxu0 0.0
        %1885 = vmatprep.subr.mxu0 0.0
        %1886 = vmatpush1.msra.mxu0 0.0
        %1887 = vmatprep.subr.mxu0 0.0
        %1888 = vmatpush1.msra.mxu0 0.0
        %1889 = vmatprep.subr.mxu0 0.0
        %1890 = vmatpush1.msra.mxu0 0.0
        %1891 = vmatprep.subr.mxu0 0.0
        %1892 = vmatpush1.msra.mxu0 0.0
        %1893 = vmatprep.subr.mxu0 0.0
        %1894 = vmatpush1.msra.mxu0 0.0
        %1895 = vmatprep.subr.mxu0 0.0
        %1896 = vmatpush1.msra.mxu0 0.0
        %1897 = vmatprep.subr.mxu0 0.0
        %1898 = vmatpush1.msra.mxu0 0.0
        %1899 = vmatprep.subr.mxu0 0.0
        %1900 = vmatpush1.msra.mxu0 0.0
        %1901 = vmatprep.subr.mxu0 0.0
        %1902 = vmatpush1.msra.mxu0 0.0
        %1903 = vmatprep.subr.mxu0 0.0
        %1904 = vmatpush1.msra.mxu0 0.0
        %1905 = vmatprep.subr.mxu0 0.0
        %1906 = vmatpush1.msra.mxu0 0.0
        %1907 = vmatprep.subr.mxu0 0.0
        %1908 = vmatpush1.msra.mxu0 0.0
        %1909 = vmatprep.subr.mxu0 0.0
        %1910 = vmatpush1.msra.mxu0 0.0
        %1911 = vmatprep.subr.mxu0 0.0
        %1912 = vmatpush1.msra.mxu0 0.0
        %1913 = vmatprep.subr.mxu0 0.0
        %1914 = vmatpush1.msra.mxu0 0.0
        %1915 = vmatprep.subr.mxu0 0.0
        %1916 = vmatpush1.msra.mxu0 0.0
        %1917 = vmatprep.subr.mxu0 0.0
        %1918 = vmatpush1.msra.mxu0 0.0
        %1919 = vmatprep.subr.mxu0 0.0
        %1920 = vmatpush1.msra.mxu0 0.0
        %1921 = vmatprep.subr.mxu0 0.0
        %1922 = vmatpush1.msra.mxu0 0.0
        %1923 = vmatprep.subr.mxu0 0.0
        %1924 = vmatpush1.msra.mxu0 0.0
        %1925 = vmatprep.subr.mxu0 0.0
        %1926 = vmatpush1.msra.mxu0 0.0
        %1927 = vmatprep.subr.mxu0 0.0
        %1928 = vmatpush1.msra.mxu0 0.0
        %1929 = vmatprep.subr.mxu0 0.0
        %1930 = vmatpush1.msra.mxu0 0.0
        %1931 = vmatprep.subr.mxu0 0.0
        %1932 = vmatpush1.msra.mxu0 0.0
        %1933 = vmatprep.mubr.f32.mxu0 0.0
        %1934 = vmatmul.mubr.f32.gmra.mrb[0].mxu0 %v1864
        %v1935 = vpop.f32.mrb[0].mxu0
        %v1936 = vadd.f32 0.0, %v1935
        %v1937 = vpop.f32.mrb[0].mxu0
        %1938 = vmatprep.mubr.f32.mxu0 0.0
        %1939 = vmatmul.mubr.f32.gmra.mrb[0].mxu0 %v1867
        %v1940 = vpop.f32.mrb[0].mxu0
        %v1941 = vadd.f32 0.0, %v1940
        %v1942 = vpop.f32.mrb[0].mxu0
        %1943 = vdwg.mxu0
        %1944 = vrot.lane.b32.xlu0 %v505, 60
        %v1945 = vpop.permute.xlu0 %1944
        %1946 = vrot.lane.b32.xlu0 %v510, 60
        %v1947 = vpop.permute.xlu0 %1946
        %v1951 = vsel %vm880, %v1766, 0
        %v1954 = vsel %vm880, %v1767, 0
        %1956 = vmatprep.subr.mxu0 0.0
        %1957 = vmatpush1.msra.mxu0 %v1945
        %1958 = vmatprep.subr.mxu0 0.0
        %1959 = vmatpush1.msra.mxu0 %v1947
        %1960 = vmatprep.subr.mxu0 0.0
        %1961 = vmatpush1.msra.mxu0 0.0
        %1962 = vmatprep.subr.mxu0 0.0
        %1963 = vmatpush1.msra.mxu0 0.0
        %1964 = vmatprep.subr.mxu0 0.0
        %1965 = vmatpush1.msra.mxu0 0.0
        %1966 = vmatprep.subr.mxu0 0.0
        %1967 = vmatpush1.msra.mxu0 0.0
        %1968 = vmatprep.subr.mxu0 0.0
        %1969 = vmatpush1.msra.mxu0 0.0
        %1970 = vmatprep.subr.mxu0 0.0
        %1971 = vmatpush1.msra.mxu0 0.0
        %1972 = vmatprep.subr.mxu0 0.0
        %1973 = vmatpush1.msra.mxu0 0.0
        %1974 = vmatprep.subr.mxu0 0.0
        %1975 = vmatpush1.msra.mxu0 0.0
        %1976 = vmatprep.subr.mxu0 0.0
        %1977 = vmatpush1.msra.mxu0 0.0
        %1978 = vmatprep.subr.mxu0 0.0
        %1979 = vmatpush1.msra.mxu0 0.0
        %1980 = vmatprep.subr.mxu0 0.0
        %1981 = vmatpush1.msra.mxu0 0.0
        %1982 = vmatprep.subr.mxu0 0.0
        %1983 = vmatpush1.msra.mxu0 0.0
        %1984 = vmatprep.subr.mxu0 0.0
        %1985 = vmatpush1.msra.mxu0 0.0
        %1986 = vmatprep.subr.mxu0 0.0
        %1987 = vmatpush1.msra.mxu0 0.0
        %1988 = vmatprep.subr.mxu0 0.0
        %1989 = vmatpush1.msra.mxu0 0.0
        %1990 = vmatprep.subr.mxu0 0.0
        %1991 = vmatpush1.msra.mxu0 0.0
        %1992 = vmatprep.subr.mxu0 0.0
        %1993 = vmatpush1.msra.mxu0 0.0
        %1994 = vmatprep.subr.mxu0 0.0
        %1995 = vmatpush1.msra.mxu0 0.0
        %1996 = vmatprep.subr.mxu0 0.0
        %1997 = vmatpush1.msra.mxu0 0.0
        %1998 = vmatprep.subr.mxu0 0.0
        %1999 = vmatpush1.msra.mxu0 0.0
        %2000 = vmatprep.subr.mxu0 0.0
        %2001 = vmatpush1.msra.mxu0 0.0
        %2002 = vmatprep.subr.mxu0 0.0
        %2003 = vmatpush1.msra.mxu0 0.0
        %2004 = vmatprep.subr.mxu0 0.0
        %2005 = vmatpush1.msra.mxu0 0.0
        %2006 = vmatprep.subr.mxu0 0.0
        %2007 = vmatpush1.msra.mxu0 0.0
        %2008 = vmatprep.subr.mxu0 0.0
        %2009 = vmatpush1.msra.mxu0 0.0
        %2010 = vmatprep.subr.mxu0 0.0
        %2011 = vmatpush1.msra.mxu0 0.0
        %2012 = vmatprep.subr.mxu0 0.0
        %2013 = vmatpush1.msra.mxu0 0.0
        %2014 = vmatprep.subr.mxu0 0.0
        %2015 = vmatpush1.msra.mxu0 0.0
        %2016 = vmatprep.subr.mxu0 0.0
        %2017 = vmatpush1.msra.mxu0 0.0
        %2018 = vmatprep.subr.mxu0 0.0
        %2019 = vmatpush1.msra.mxu0 0.0
        %2020 = vmatprep.mubr.f32.mxu0 0.0
        %2021 = vmatmul.mubr.f32.gmra.mrb[0].mxu0 %v1951
        %v2022 = vpop.f32.mrb[0].mxu0
        %v2023 = vadd.f32 0.0, %v2022
        %v2024 = vpop.f32.mrb[0].mxu0
        %2025 = vmatprep.mubr.f32.mxu0 0.0
        %2026 = vmatmul.mubr.f32.gmra.mrb[0].mxu0 %v1954
        %v2027 = vpop.f32.mrb[0].mxu0
        %v2028 = vadd.f32 0.0, %v2027
        %v2029 = vpop.f32.mrb[0].mxu0
        %2030 = vdwg.mxu0
        %2031 = vrot.lane.b32.xlu0 %v515, 60
        %v2032 = vpop.permute.xlu0 %2031
        %2033 = vrot.lane.b32.xlu0 %v520, 60
        %v2034 = vpop.permute.xlu0 %2033
        %v2038 = vsel %vm880, %v1768, 0
        %v2041 = vsel %vm880, %v1769, 0
        %2043 = vmatprep.subr.mxu0 0.0
        %2044 = vmatpush1.msra.mxu0 %v2032
        %2045 = vmatprep.subr.mxu0 0.0
        %2046 = vmatpush1.msra.mxu0 %v2034
        %2047 = vmatprep.subr.mxu0 0.0
        %2048 = vmatpush1.msra.mxu0 0.0
        %2049 = vmatprep.subr.mxu0 0.0
        %2050 = vmatpush1.msra.mxu0 0.0
        %2051 = vmatprep.subr.mxu0 0.0
        %2052 = vmatpush1.msra.mxu0 0.0
        %2053 = vmatprep.subr.mxu0 0.0
        %2054 = vmatpush1.msra.mxu0 0.0
        %2055 = vmatprep.subr.mxu0 0.0
        %2056 = vmatpush1.msra.mxu0 0.0
        %2057 = vmatprep.subr.mxu0 0.0
        %2058 = vmatpush1.msra.mxu0 0.0
        %2059 = vmatprep.subr.mxu0 0.0
        %2060 = vmatpush1.msra.mxu0 0.0
        %2061 = vmatprep.subr.mxu0 0.0
        %2062 = vmatpush1.msra.mxu0 0.0
        %2063 = vmatprep.subr.mxu0 0.0
        %2064 = vmatpush1.msra.mxu0 0.0
        %2065 = vmatprep.subr.mxu0 0.0
        %2066 = vmatpush1.msra.mxu0 0.0
        %2067 = vmatprep.subr.mxu0 0.0
        %2068 = vmatpush1.msra.mxu0 0.0
        %2069 = vmatprep.subr.mxu0 0.0
        %2070 = vmatpush1.msra.mxu0 0.0
        %2071 = vmatprep.subr.mxu0 0.0
        %2072 = vmatpush1.msra.mxu0 0.0
        %2073 = vmatprep.subr.mxu0 0.0
        %2074 = vmatpush1.msra.mxu0 0.0
        %2075 = vmatprep.subr.mxu0 0.0
        %2076 = vmatpush1.msra.mxu0 0.0
        %2077 = vmatprep.subr.mxu0 0.0
        %2078 = vmatpush1.msra.mxu0 0.0
        %2079 = vmatprep.subr.mxu0 0.0
        %2080 = vmatpush1.msra.mxu0 0.0
        %2081 = vmatprep.subr.mxu0 0.0
        %2082 = vmatpush1.msra.mxu0 0.0
        %2083 = vmatprep.subr.mxu0 0.0
        %2084 = vmatpush1.msra.mxu0 0.0
        %2085 = vmatprep.subr.mxu0 0.0
        %2086 = vmatpush1.msra.mxu0 0.0
        %2087 = vmatprep.subr.mxu0 0.0
        %2088 = vmatpush1.msra.mxu0 0.0
        %2089 = vmatprep.subr.mxu0 0.0
        %2090 = vmatpush1.msra.mxu0 0.0
        %2091 = vmatprep.subr.mxu0 0.0
        %2092 = vmatpush1.msra.mxu0 0.0
        %2093 = vmatprep.subr.mxu0 0.0
        %2094 = vmatpush1.msra.mxu0 0.0
        %2095 = vmatprep.subr.mxu0 0.0
        %2096 = vmatpush1.msra.mxu0 0.0
        %2097 = vmatprep.subr.mxu0 0.0
        %2098 = vmatpush1.msra.mxu0 0.0
        %2099 = vmatprep.subr.mxu0 0.0
        %2100 = vmatpush1.msra.mxu0 0.0
        %2101 = vmatprep.subr.mxu0 0.0
        %2102 = vmatpush1.msra.mxu0 0.0
        %2103 = vmatprep.subr.mxu0 0.0
        %2104 = vmatpush1.msra.mxu0 0.0
        %2105 = vmatprep.subr.mxu0 0.0
        %2106 = vmatpush1.msra.mxu0 0.0
        %2107 = vmatprep.mubr.f32.mxu0 0.0
        %2108 = vmatmul.mubr.f32.gmra.mrb[0].mxu0 %v2038
        %v2109 = vpop.f32.mrb[0].mxu0
        %v2110 = vadd.f32 0.0, %v2109
        %v2111 = vpop.f32.mrb[0].mxu0
        %2112 = vmatprep.mubr.f32.mxu0 0.0
        %2113 = vmatmul.mubr.f32.gmra.mrb[0].mxu0 %v2041
        %v2114 = vpop.f32.mrb[0].mxu0
        %v2115 = vadd.f32 0.0, %v2114
        %v2116 = vpop.f32.mrb[0].mxu0
        %2117 = vdwg.mxu0
        %s2118 = scalar_lea.vmem %s3, 4
        %v2119 = vld [vmem:[%s2118] sm:$0xf]
        %v2121 = vsel %vm529, %v1849, 0
        %v2124 = vsel %vm529, %v1854, 0
        %v2127 = vsel %vm529, %v1936, 0
        %v2130 = vsel %vm529, %v1941, 0
        %v2133 = vsel %vm529, %v2023, 0
        %v2136 = vsel %vm529, %v2028, 0
        %v2139 = vsel %vm529, %v2110, 0
        %v2142 = vsel %vm529, %v2115, 0
        %vm2144 = vcmask 1043456
        %v2146 = vsel %vm2144, %v2119, 0
        %2148 = vmatprep.subr.mxu0 0.0
        %2149 = vmatpush1.msra.mxu0 %v2146
        %2150 = vmatprep.subr.mxu0 0.0
        %2151 = vmatpush1.msra.mxu0 0.0
        %2152 = vmatprep.subr.mxu0 0.0
        %2153 = vmatpush1.msra.mxu0 0.0
        %2154 = vmatprep.subr.mxu0 0.0
        %2155 = vmatpush1.msra.mxu0 0.0
        %2156 = vmatprep.subr.mxu0 0.0
        %2157 = vmatpush1.msra.mxu0 0.0
        %2158 = vmatprep.subr.mxu0 0.0
        %2159 = vmatpush1.msra.mxu0 0.0
        %2160 = vmatprep.subr.mxu0 0.0
        %2161 = vmatpush1.msra.mxu0 0.0
        %2162 = vmatprep.subr.mxu0 0.0
        %2163 = vmatpush1.msra.mxu0 0.0
        %2164 = vmatprep.subr.mxu0 0.0
        %2165 = vmatpush1.msra.mxu0 0.0
        %2166 = vmatprep.subr.mxu0 0.0
        %2167 = vmatpush1.msra.mxu0 0.0
        %2168 = vmatprep.subr.mxu0 0.0
        %2169 = vmatpush1.msra.mxu0 0.0
        %2170 = vmatprep.subr.mxu0 0.0
        %2171 = vmatpush1.msra.mxu0 0.0
        %2172 = vmatprep.subr.mxu0 0.0
        %2173 = vmatpush1.msra.mxu0 0.0
        %2174 = vmatprep.subr.mxu0 0.0
        %2175 = vmatpush1.msra.mxu0 0.0
        %2176 = vmatprep.subr.mxu0 0.0
        %2177 = vmatpush1.msra.mxu0 0.0
        %2178 = vmatprep.subr.mxu0 0.0
        %2179 = vmatpush1.msra.mxu0 0.0
        %2180 = vmatprep.subr.mxu0 0.0
        %2181 = vmatpush1.msra.mxu0 0.0
        %2182 = vmatprep.subr.mxu0 0.0
        %2183 = vmatpush1.msra.mxu0 0.0
        %2184 = vmatprep.subr.mxu0 0.0
        %2185 = vmatpush1.msra.mxu0 0.0
        %2186 = vmatprep.subr.mxu0 0.0
        %2187 = vmatpush1.msra.mxu0 0.0
        %2188 = vmatprep.subr.mxu0 0.0
        %2189 = vmatpush1.msra.mxu0 0.0
        %2190 = vmatprep.subr.mxu0 0.0
        %2191 = vmatpush1.msra.mxu0 0.0
        %2192 = vmatprep.subr.mxu0 0.0
        %2193 = vmatpush1.msra.mxu0 0.0
        %2194 = vmatprep.subr.mxu0 0.0
        %2195 = vmatpush1.msra.mxu0 0.0
        %2196 = vmatprep.subr.mxu0 0.0
        %2197 = vmatpush1.msra.mxu0 0.0
        %2198 = vmatprep.subr.mxu0 0.0
        %2199 = vmatpush1.msra.mxu0 0.0
        %2200 = vmatprep.subr.mxu0 0.0
        %2201 = vmatpush1.msra.mxu0 0.0
        %2202 = vmatprep.subr.mxu0 0.0
        %2203 = vmatpush1.msra.mxu0 0.0
        %2204 = vmatprep.subr.mxu0 0.0
        %2205 = vmatpush1.msra.mxu0 0.0
        %2206 = vmatprep.subr.mxu0 0.0
        %2207 = vmatpush1.msra.mxu0 0.0
        %2208 = vmatprep.subr.mxu0 0.0
        %2209 = vmatpush1.msra.mxu0 0.0
        %2210 = vmatprep.subr.mxu0 0.0
        %2211 = vmatpush1.msra.mxu0 0.0
        %2212 = vmatprep.mubr.f32.mxu0 0.0
        %2213 = vmatmul.mubr.f32.gmra.mrb[0].mxu0 %v2121
        %v2214 = vpop.f32.mrb[0].mxu0
        %v2215 = vadd.f32 0.0, %v2214
        %v2216 = vpop.f32.mrb[0].mxu0
        %2217 = vmatprep.mubr.f32.mxu0 0.0
        %2218 = vmatmul.mubr.f32.gmra.mrb[0].mxu0 %v2124
        %v2219 = vpop.f32.mrb[0].mxu0
        %v2220 = vadd.f32 0.0, %v2219
        %v2221 = vpop.f32.mrb[0].mxu0
        %2222 = vmatprep.mubr.f32.mxu0 0.0
        %2223 = vmatmul.mubr.f32.gmra.mrb[0].mxu0 %v2127
        %v2224 = vpop.f32.mrb[0].mxu0
        %v2225 = vadd.f32 0.0, %v2224
        %v2226 = vpop.f32.mrb[0].mxu0
        %2227 = vmatprep.mubr.f32.mxu0 0.0
        %2228 = vmatmul.mubr.f32.gmra.mrb[0].mxu0 %v2130
        %v2229 = vpop.f32.mrb[0].mxu0
        %v2230 = vadd.f32 0.0, %v2229
        %v2231 = vpop.f32.mrb[0].mxu0
        %2232 = vmatprep.mubr.f32.mxu0 0.0
        %2233 = vmatmul.mubr.f32.gmra.mrb[0].mxu0 %v2133
        %v2234 = vpop.f32.mrb[0].mxu0
        %v2235 = vadd.f32 0.0, %v2234
        %v2236 = vpop.f32.mrb[0].mxu0
        %2237 = vmatprep.mubr.f32.mxu0 0.0
        %2238 = vmatmul.mubr.f32.gmra.mrb[0].mxu0 %v2136
        %v2239 = vpop.f32.mrb[0].mxu0
        %v2240 = vadd.f32 0.0, %v2239
        %v2241 = vpop.f32.mrb[0].mxu0
        %2242 = vmatprep.mubr.f32.mxu0 0.0
        %2243 = vmatmul.mubr.f32.gmra.mrb[0].mxu0 %v2139
        %v2244 = vpop.f32.mrb[0].mxu0
        %v2245 = vadd.f32 0.0, %v2244
        %v2246 = vpop.f32.mrb[0].mxu0
        %2247 = vmatprep.mubr.f32.mxu0 0.0
        %2248 = vmatmul.mubr.f32.gmra.mrb[0].mxu0 %v2142
        %v2249 = vpop.f32.mrb[0].mxu0
        %v2250 = vadd.f32 0.0, %v2249
        %v2251 = vpop.f32.mrb[0].mxu0
        %2252 = vdwg.mxu0
        %v2254 = vsel %vm529, %v1048, 0
        %v2257 = vsel %vm529, %v1053, 0
        %v2260 = vsel %vm529, %v1135, 0
        %v2263 = vsel %vm529, %v1140, 0
        %v2266 = vsel %vm529, %v1222, 0
        %v2269 = vsel %vm529, %v1227, 0
        %v2272 = vsel %vm529, %v1309, 0
        %v2275 = vsel %vm529, %v1314, 0
        %v2278 = vsel %vm2144, %v1317, 0
        %2280 = vmatprep.subr.mxu0 0.0
        %2281 = vmatpush1.msra.mxu0 %v2278
        %2282 = vmatprep.subr.mxu0 0.0
        %2283 = vmatpush1.msra.mxu0 0.0
        %2284 = vmatprep.subr.mxu0 0.0
        %2285 = vmatpush1.msra.mxu0 0.0
        %2286 = vmatprep.subr.mxu0 0.0
        %2287 = vmatpush1.msra.mxu0 0.0
        %2288 = vmatprep.subr.mxu0 0.0
        %2289 = vmatpush1.msra.mxu0 0.0
        %2290 = vmatprep.subr.mxu0 0.0
        %2291 = vmatpush1.msra.mxu0 0.0
        %2292 = vmatprep.subr.mxu0 0.0
        %2293 = vmatpush1.msra.mxu0 0.0
        %2294 = vmatprep.subr.mxu0 0.0
        %2295 = vmatpush1.msra.mxu0 0.0
        %2296 = vmatprep.subr.mxu0 0.0
        %2297 = vmatpush1.msra.mxu0 0.0
        %2298 = vmatprep.subr.mxu0 0.0
        %2299 = vmatpush1.msra.mxu0 0.0
        %2300 = vmatprep.subr.mxu0 0.0
        %2301 = vmatpush1.msra.mxu0 0.0
        %2302 = vmatprep.subr.mxu0 0.0
        %2303 = vmatpush1.msra.mxu0 0.0
        %2304 = vmatprep.subr.mxu0 0.0
        %2305 = vmatpush1.msra.mxu0 0.0
        %2306 = vmatprep.subr.mxu0 0.0
        %2307 = vmatpush1.msra.mxu0 0.0
        %2308 = vmatprep.subr.mxu0 0.0
        %2309 = vmatpush1.msra.mxu0 0.0
        %2310 = vmatprep.subr.mxu0 0.0
        %2311 = vmatpush1.msra.mxu0 0.0
        %2312 = vmatprep.subr.mxu0 0.0
        %2313 = vmatpush1.msra.mxu0 0.0
        %2314 = vmatprep.subr.mxu0 0.0
        %2315 = vmatpush1.msra.mxu0 0.0
        %2316 = vmatprep.subr.mxu0 0.0
        %2317 = vmatpush1.msra.mxu0 0.0
        %2318 = vmatprep.subr.mxu0 0.0
        %2319 = vmatpush1.msra.mxu0 0.0
        %2320 = vmatprep.subr.mxu0 0.0
        %2321 = vmatpush1.msra.mxu0 0.0
        %2322 = vmatprep.subr.mxu0 0.0
        %2323 = vmatpush1.msra.mxu0 0.0
        %2324 = vmatprep.subr.mxu0 0.0
        %2325 = vmatpush1.msra.mxu0 0.0
        %2326 = vmatprep.subr.mxu0 0.0
        %2327 = vmatpush1.msra.mxu0 0.0
        %2328 = vmatprep.subr.mxu0 0.0
        %2329 = vmatpush1.msra.mxu0 0.0
        %2330 = vmatprep.subr.mxu0 0.0
        %2331 = vmatpush1.msra.mxu0 0.0
        %2332 = vmatprep.subr.mxu0 0.0
        %2333 = vmatpush1.msra.mxu0 0.0
        %2334 = vmatprep.subr.mxu0 0.0
        %2335 = vmatpush1.msra.mxu0 0.0
        %2336 = vmatprep.subr.mxu0 0.0
        %2337 = vmatpush1.msra.mxu0 0.0
        %2338 = vmatprep.subr.mxu0 0.0
        %2339 = vmatpush1.msra.mxu0 0.0
        %2340 = vmatprep.subr.mxu0 0.0
        %2341 = vmatpush1.msra.mxu0 0.0
        %2342 = vmatprep.subr.mxu0 0.0
        %2343 = vmatpush1.msra.mxu0 0.0
        %2344 = vmatprep.mubr.f32.mxu0 0.0
        %2345 = vmatmul.mubr.f32.gmra.mrb[0].mxu0 %v2254
        %v2346 = vpop.f32.mrb[0].mxu0
        %v2347 = vadd.f32 %v2215, %v2346
        %v2348 = vpop.f32.mrb[0].mxu0
        %2349 = vmatprep.mubr.f32.mxu0 0.0
        %2350 = vmatmul.mubr.f32.gmra.mrb[0].mxu0 %v2257
        %v2351 = vpop.f32.mrb[0].mxu0
        %v2352 = vadd.f32 %v2220, %v2351
        %v2353 = vpop.f32.mrb[0].mxu0
        %2354 = vmatprep.mubr.f32.mxu0 0.0
        %2355 = vmatmul.mubr.f32.gmra.mrb[0].mxu0 %v2260
        %v2356 = vpop.f32.mrb[0].mxu0
        %v2357 = vadd.f32 %v2225, %v2356
        %v2358 = vpop.f32.mrb[0].mxu0
        %2359 = vmatprep.mubr.f32.mxu0 0.0
        %2360 = vmatmul.mubr.f32.gmra.mrb[0].mxu0 %v2263
        %v2361 = vpop.f32.mrb[0].mxu0
        %v2362 = vadd.f32 %v2230, %v2361
        %v2363 = vpop.f32.mrb[0].mxu0
        %2364 = vmatprep.mubr.f32.mxu0 0.0
        %2365 = vmatmul.mubr.f32.gmra.mrb[0].mxu0 %v2266
        %v2366 = vpop.f32.mrb[0].mxu0
        %v2367 = vadd.f32 %v2235, %v2366
        %v2368 = vpop.f32.mrb[0].mxu0
        %2369 = vmatprep.mubr.f32.mxu0 0.0
        %2370 = vmatmul.mubr.f32.gmra.mrb[0].mxu0 %v2269
        %v2371 = vpop.f32.mrb[0].mxu0
        %v2372 = vadd.f32 %v2240, %v2371
        %v2373 = vpop.f32.mrb[0].mxu0
        %2374 = vmatprep.mubr.f32.mxu0 0.0
        %2375 = vmatmul.mubr.f32.gmra.mrb[0].mxu0 %v2272
        %v2376 = vpop.f32.mrb[0].mxu0
        %v2377 = vadd.f32 %v2245, %v2376
        %v2378 = vpop.f32.mrb[0].mxu0
        %2379 = vmatprep.mubr.f32.mxu0 0.0
        %2380 = vmatmul.mubr.f32.gmra.mrb[0].mxu0 %v2275
        %v2381 = vpop.f32.mrb[0].mxu0
        %v2382 = vadd.f32 %v2250, %v2381
        %v2383 = vpop.f32.mrb[0].mxu0
        %2384 = vdwg.mxu0
        %2385 = vrot.lane.b32.xlu0 %v485, 120
        %v2386 = vpop.permute.xlu0 %2385
        %2387 = vrot.lane.b32.xlu0 %v490, 120
        %v2388 = vpop.permute.xlu0 %2387
        %2389 = vrot.lane.b32.xlu0 %v485, 88
        %v2390 = vpop.permute.xlu0 %2389
        %2391 = vrot.lane.b32.xlu0 %v490, 88
        %v2392 = vpop.permute.xlu0 %2391
        %v2393 = vsel %vm529, %v2386, 0
        %v2395 = vsel %vm529, %v2388, 0
        %v2397 = vsel %vm529, %v2390, 0
        %v2399 = vsel %vm529, %v2392, 0
        %2401 = vmatprep.subr.mxu0 0.0
        %2402 = vmatpush1.xpose.msra.mxu0 %v2397
        %2403 = vmatprep.subr.mxu0 0.0
        %2404 = vmatpush1.xpose.msra.mxu0 %v2399
        %2405 = vmatprep.subr.mxu0 0.0
        %2406 = vmatpush1.xpose.msra.mxu0 0.0
        %2407 = vmatprep.subr.mxu0 0.0
        %2408 = vmatpush1.xpose.msra.mxu0 0.0
        %2409 = vmatprep.subr.mxu0 0.0
        %2410 = vmatpush1.xpose.msra.mxu0 0.0
        %2411 = vmatprep.subr.mxu0 0.0
        %2412 = vmatpush1.xpose.msra.mxu0 0.0
        %2413 = vmatprep.subr.mxu0 0.0
        %2414 = vmatpush1.xpose.msra.mxu0 0.0
        %2415 = vmatprep.subr.mxu0 0.0
        %2416 = vmatpush1.xpose.msra.mxu0 0.0
        %2417 = vmatprep.subr.mxu0 0.0
        %2418 = vmatpush1.xpose.msra.mxu0 0.0
        %2419 = vmatprep.subr.mxu0 0.0
        %2420 = vmatpush1.xpose.msra.mxu0 0.0
        %2421 = vmatprep.subr.mxu0 0.0
        %2422 = vmatpush1.xpose.msra.mxu0 0.0
        %2423 = vmatprep.subr.mxu0 0.0
        %2424 = vmatpush1.xpose.msra.mxu0 0.0
        %2425 = vmatprep.subr.mxu0 0.0
        %2426 = vmatpush1.xpose.msra.mxu0 0.0
        %2427 = vmatprep.subr.mxu0 0.0
        %2428 = vmatpush1.xpose.msra.mxu0 0.0
        %2429 = vmatprep.subr.mxu0 0.0
        %2430 = vmatpush1.xpose.msra.mxu0 0.0
        %2431 = vmatprep.subr.mxu0 0.0
        %2432 = vmatpush1.xpose.msra.mxu0 0.0
        %2433 = vmatprep.subr.mxu0 0.0
        %2434 = vmatpush1.xpose.msra.mxu0 0.0
        %2435 = vmatprep.subr.mxu0 0.0
        %2436 = vmatpush1.xpose.msra.mxu0 0.0
        %2437 = vmatprep.subr.mxu0 0.0
        %2438 = vmatpush1.xpose.msra.mxu0 0.0
        %2439 = vmatprep.subr.mxu0 0.0
        %2440 = vmatpush1.xpose.msra.mxu0 0.0
        %2441 = vmatprep.subr.mxu0 0.0
        %2442 = vmatpush1.xpose.msra.mxu0 0.0
        %2443 = vmatprep.subr.mxu0 0.0
        %2444 = vmatpush1.xpose.msra.mxu0 0.0
        %2445 = vmatprep.subr.mxu0 0.0
        %2446 = vmatpush1.xpose.msra.mxu0 0.0
        %2447 = vmatprep.subr.mxu0 0.0
        %2448 = vmatpush1.xpose.msra.mxu0 0.0
        %2449 = vmatprep.subr.mxu0 0.0
        %2450 = vmatpush1.xpose.msra.mxu0 0.0
        %2451 = vmatprep.subr.mxu0 0.0
        %2452 = vmatpush1.xpose.msra.mxu0 0.0
        %2453 = vmatprep.subr.mxu0 0.0
        %2454 = vmatpush1.xpose.msra.mxu0 0.0
        %2455 = vmatprep.subr.mxu0 0.0
        %2456 = vmatpush1.xpose.msra.mxu0 0.0
        %2457 = vmatprep.subr.mxu0 0.0
        %2458 = vmatpush1.xpose.msra.mxu0 0.0
        %2459 = vmatprep.subr.mxu0 0.0
        %2460 = vmatpush1.xpose.msra.mxu0 0.0
        %2461 = vmatprep.subr.mxu0 0.0
        %2462 = vmatpush1.xpose.msra.mxu0 0.0
        %2463 = vmatprep.subr.mxu0 0.0
        %2464 = vmatpush1.xpose.msra.mxu0 0.0
        %2465 = vmatprep.mubr.f32.mxu0 0.0
        %2466 = vmatmul.mubr.f32.gmra.mrb[0].mxu0 %v2393
        %v2467 = vpop.f32.mrb[0].mxu0
        %v2468 = vadd.f32 0.0, %v2467
        %v2469 = vpop.f32.mrb[0].mxu0
        %2470 = vmatprep.mubr.f32.mxu0 0.0
        %2471 = vmatmul.mubr.f32.gmra.mrb[0].mxu0 %v2395
        %v2472 = vpop.f32.mrb[0].mxu0
        %v2473 = vadd.f32 0.0, %v2472
        %v2474 = vpop.f32.mrb[0].mxu0
        %2475 = vdwg.mxu0
        %2476 = vrot.lane.b32.xlu0 %v495, 120
        %v2477 = vpop.permute.xlu0 %2476
        %2478 = vrot.lane.b32.xlu0 %v500, 120
        %v2479 = vpop.permute.xlu0 %2478
        %2480 = vrot.lane.b32.xlu0 %v495, 88
        %v2481 = vpop.permute.xlu0 %2480
        %2482 = vrot.lane.b32.xlu0 %v500, 88
        %v2483 = vpop.permute.xlu0 %2482
        %v2484 = vsel %vm529, %v2477, 0
        %v2486 = vsel %vm529, %v2479, 0
        %v2488 = vsel %vm529, %v2481, 0
        %v2490 = vsel %vm529, %v2483, 0
        %2492 = vmatprep.subr.mxu0 0.0
        %2493 = vmatpush1.xpose.msra.mxu0 %v2488
        %2494 = vmatprep.subr.mxu0 0.0
        %2495 = vmatpush1.xpose.msra.mxu0 %v2490
        %2496 = vmatprep.subr.mxu0 0.0
        %2497 = vmatpush1.xpose.msra.mxu0 0.0
        %2498 = vmatprep.subr.mxu0 0.0
        %2499 = vmatpush1.xpose.msra.mxu0 0.0
        %2500 = vmatprep.subr.mxu0 0.0
        %2501 = vmatpush1.xpose.msra.mxu0 0.0
        %2502 = vmatprep.subr.mxu0 0.0
        %2503 = vmatpush1.xpose.msra.mxu0 0.0
        %2504 = vmatprep.subr.mxu0 0.0
        %2505 = vmatpush1.xpose.msra.mxu0 0.0
        %2506 = vmatprep.subr.mxu0 0.0
        %2507 = vmatpush1.xpose.msra.mxu0 0.0
        %2508 = vmatprep.subr.mxu0 0.0
        %2509 = vmatpush1.xpose.msra.mxu0 0.0
        %2510 = vmatprep.subr.mxu0 0.0
        %2511 = vmatpush1.xpose.msra.mxu0 0.0
        %2512 = vmatprep.subr.mxu0 0.0
        %2513 = vmatpush1.xpose.msra.mxu0 0.0
        %2514 = vmatprep.subr.mxu0 0.0
        %2515 = vmatpush1.xpose.msra.mxu0 0.0
        %2516 = vmatprep.subr.mxu0 0.0
        %2517 = vmatpush1.xpose.msra.mxu0 0.0
        %2518 = vmatprep.subr.mxu0 0.0
        %2519 = vmatpush1.xpose.msra.mxu0 0.0
        %2520 = vmatprep.subr.mxu0 0.0
        %2521 = vmatpush1.xpose.msra.mxu0 0.0
        %2522 = vmatprep.subr.mxu0 0.0
        %2523 = vmatpush1.xpose.msra.mxu0 0.0
        %2524 = vmatprep.subr.mxu0 0.0
        %2525 = vmatpush1.xpose.msra.mxu0 0.0
        %2526 = vmatprep.subr.mxu0 0.0
        %2527 = vmatpush1.xpose.msra.mxu0 0.0
        %2528 = vmatprep.subr.mxu0 0.0
        %2529 = vmatpush1.xpose.msra.mxu0 0.0
        %2530 = vmatprep.subr.mxu0 0.0
        %2531 = vmatpush1.xpose.msra.mxu0 0.0
        %2532 = vmatprep.subr.mxu0 0.0
        %2533 = vmatpush1.xpose.msra.mxu0 0.0
        %2534 = vmatprep.subr.mxu0 0.0
        %2535 = vmatpush1.xpose.msra.mxu0 0.0
        %2536 = vmatprep.subr.mxu0 0.0
        %2537 = vmatpush1.xpose.msra.mxu0 0.0
        %2538 = vmatprep.subr.mxu0 0.0
        %2539 = vmatpush1.xpose.msra.mxu0 0.0
        %2540 = vmatprep.subr.mxu0 0.0
        %2541 = vmatpush1.xpose.msra.mxu0 0.0
        %2542 = vmatprep.subr.mxu0 0.0
        %2543 = vmatpush1.xpose.msra.mxu0 0.0
        %2544 = vmatprep.subr.mxu0 0.0
        %2545 = vmatpush1.xpose.msra.mxu0 0.0
        %2546 = vmatprep.subr.mxu0 0.0
        %2547 = vmatpush1.xpose.msra.mxu0 0.0
        %2548 = vmatprep.subr.mxu0 0.0
        %2549 = vmatpush1.xpose.msra.mxu0 0.0
        %2550 = vmatprep.subr.mxu0 0.0
        %2551 = vmatpush1.xpose.msra.mxu0 0.0
        %2552 = vmatprep.subr.mxu0 0.0
        %2553 = vmatpush1.xpose.msra.mxu0 0.0
        %2554 = vmatprep.subr.mxu0 0.0
        %2555 = vmatpush1.xpose.msra.mxu0 0.0
        %2556 = vmatprep.mubr.f32.mxu0 0.0
        %2557 = vmatmul.mubr.f32.gmra.mrb[0].mxu0 %v2484
        %v2558 = vpop.f32.mrb[0].mxu0
        %v2559 = vadd.f32 0.0, %v2558
        %v2560 = vpop.f32.mrb[0].mxu0
        %2561 = vmatprep.mubr.f32.mxu0 0.0
        %2562 = vmatmul.mubr.f32.gmra.mrb[0].mxu0 %v2486
        %v2563 = vpop.f32.mrb[0].mxu0
        %v2564 = vadd.f32 0.0, %v2563
        %v2565 = vpop.f32.mrb[0].mxu0
        %2566 = vdwg.mxu0
        %2567 = vrot.lane.b32.xlu0 %v505, 120
        %v2568 = vpop.permute.xlu0 %2567
        %2569 = vrot.lane.b32.xlu0 %v510, 120
        %v2570 = vpop.permute.xlu0 %2569
        %2571 = vrot.lane.b32.xlu0 %v505, 88
        %v2572 = vpop.permute.xlu0 %2571
        %2573 = vrot.lane.b32.xlu0 %v510, 88
        %v2574 = vpop.permute.xlu0 %2573
        %v2575 = vsel %vm529, %v2568, 0
        %v2577 = vsel %vm529, %v2570, 0
        %v2579 = vsel %vm529, %v2572, 0
        %v2581 = vsel %vm529, %v2574, 0
        %2583 = vmatprep.subr.mxu0 0.0
        %2584 = vmatpush1.xpose.msra.mxu0 %v2579
        %2585 = vmatprep.subr.mxu0 0.0
        %2586 = vmatpush1.xpose.msra.mxu0 %v2581
        %2587 = vmatprep.subr.mxu0 0.0
        %2588 = vmatpush1.xpose.msra.mxu0 0.0
        %2589 = vmatprep.subr.mxu0 0.0
        %2590 = vmatpush1.xpose.msra.mxu0 0.0
        %2591 = vmatprep.subr.mxu0 0.0
        %2592 = vmatpush1.xpose.msra.mxu0 0.0
        %2593 = vmatprep.subr.mxu0 0.0
        %2594 = vmatpush1.xpose.msra.mxu0 0.0
        %2595 = vmatprep.subr.mxu0 0.0
        %2596 = vmatpush1.xpose.msra.mxu0 0.0
        %2597 = vmatprep.subr.mxu0 0.0
        %2598 = vmatpush1.xpose.msra.mxu0 0.0
        %2599 = vmatprep.subr.mxu0 0.0
        %2600 = vmatpush1.xpose.msra.mxu0 0.0
        %2601 = vmatprep.subr.mxu0 0.0
        %2602 = vmatpush1.xpose.msra.mxu0 0.0
        %2603 = vmatprep.subr.mxu0 0.0
        %2604 = vmatpush1.xpose.msra.mxu0 0.0
        %2605 = vmatprep.subr.mxu0 0.0
        %2606 = vmatpush1.xpose.msra.mxu0 0.0
        %2607 = vmatprep.subr.mxu0 0.0
        %2608 = vmatpush1.xpose.msra.mxu0 0.0
        %2609 = vmatprep.subr.mxu0 0.0
        %2610 = vmatpush1.xpose.msra.mxu0 0.0
        %2611 = vmatprep.subr.mxu0 0.0
        %2612 = vmatpush1.xpose.msra.mxu0 0.0
        %2613 = vmatprep.subr.mxu0 0.0
        %2614 = vmatpush1.xpose.msra.mxu0 0.0
        %2615 = vmatprep.subr.mxu0 0.0
        %2616 = vmatpush1.xpose.msra.mxu0 0.0
        %2617 = vmatprep.subr.mxu0 0.0
        %2618 = vmatpush1.xpose.msra.mxu0 0.0
        %2619 = vmatprep.subr.mxu0 0.0
        %2620 = vmatpush1.xpose.msra.mxu0 0.0
        %2621 = vmatprep.subr.mxu0 0.0
        %2622 = vmatpush1.xpose.msra.mxu0 0.0
        %2623 = vmatprep.subr.mxu0 0.0
        %2624 = vmatpush1.xpose.msra.mxu0 0.0
        %2625 = vmatprep.subr.mxu0 0.0
        %2626 = vmatpush1.xpose.msra.mxu0 0.0
        %2627 = vmatprep.subr.mxu0 0.0
        %2628 = vmatpush1.xpose.msra.mxu0 0.0
        %2629 = vmatprep.subr.mxu0 0.0
        %2630 = vmatpush1.xpose.msra.mxu0 0.0
        %2631 = vmatprep.subr.mxu0 0.0
        %2632 = vmatpush1.xpose.msra.mxu0 0.0
        %2633 = vmatprep.subr.mxu0 0.0
        %2634 = vmatpush1.xpose.msra.mxu0 0.0
        %2635 = vmatprep.subr.mxu0 0.0
        %2636 = vmatpush1.xpose.msra.mxu0 0.0
        %2637 = vmatprep.subr.mxu0 0.0
        %2638 = vmatpush1.xpose.msra.mxu0 0.0
        %2639 = vmatprep.subr.mxu0 0.0
        %2640 = vmatpush1.xpose.msra.mxu0 0.0
        %2641 = vmatprep.subr.mxu0 0.0
        %2642 = vmatpush1.xpose.msra.mxu0 0.0
        %2643 = vmatprep.subr.mxu0 0.0
        %2644 = vmatpush1.xpose.msra.mxu0 0.0
        %2645 = vmatprep.subr.mxu0 0.0
        %2646 = vmatpush1.xpose.msra.mxu0 0.0
        %2647 = vmatprep.mubr.f32.mxu0 0.0
        %2648 = vmatmul.mubr.f32.gmra.mrb[0].mxu0 %v2575
        %v2649 = vpop.f32.mrb[0].mxu0
        %v2650 = vadd.f32 0.0, %v2649
        %v2651 = vpop.f32.mrb[0].mxu0
        %2652 = vmatprep.mubr.f32.mxu0 0.0
        %2653 = vmatmul.mubr.f32.gmra.mrb[0].mxu0 %v2577
        %v2654 = vpop.f32.mrb[0].mxu0
        %v2655 = vadd.f32 0.0, %v2654
        %v2656 = vpop.f32.mrb[0].mxu0
        %2657 = vdwg.mxu0
        %2658 = vrot.lane.b32.xlu0 %v515, 120
        %v2659 = vpop.permute.xlu0 %2658
        %2660 = vrot.lane.b32.xlu0 %v520, 120
        %v2661 = vpop.permute.xlu0 %2660
        %2662 = vrot.lane.b32.xlu0 %v515, 88
        %v2663 = vpop.permute.xlu0 %2662
        %2664 = vrot.lane.b32.xlu0 %v520, 88
        %v2665 = vpop.permute.xlu0 %2664
        %v2666 = vsel %vm529, %v2659, 0
        %v2668 = vsel %vm529, %v2661, 0
        %v2670 = vsel %vm529, %v2663, 0
        %v2672 = vsel %vm529, %v2665, 0
        %2674 = vmatprep.subr.mxu0 0.0
        %2675 = vmatpush1.xpose.msra.mxu0 %v2670
        %2676 = vmatprep.subr.mxu0 0.0
        %2677 = vmatpush1.xpose.msra.mxu0 %v2672
        %2678 = vmatprep.subr.mxu0 0.0
        %2679 = vmatpush1.xpose.msra.mxu0 0.0
        %2680 = vmatprep.subr.mxu0 0.0
        %2681 = vmatpush1.xpose.msra.mxu0 0.0
        %2682 = vmatprep.subr.mxu0 0.0
        %2683 = vmatpush1.xpose.msra.mxu0 0.0
        %2684 = vmatprep.subr.mxu0 0.0
        %2685 = vmatpush1.xpose.msra.mxu0 0.0
        %2686 = vmatprep.subr.mxu0 0.0
        %2687 = vmatpush1.xpose.msra.mxu0 0.0
        %2688 = vmatprep.subr.mxu0 0.0
        %2689 = vmatpush1.xpose.msra.mxu0 0.0
        %2690 = vmatprep.subr.mxu0 0.0
        %2691 = vmatpush1.xpose.msra.mxu0 0.0
        %2692 = vmatprep.subr.mxu0 0.0
        %2693 = vmatpush1.xpose.msra.mxu0 0.0
        %2694 = vmatprep.subr.mxu0 0.0
        %2695 = vmatpush1.xpose.msra.mxu0 0.0
        %2696 = vmatprep.subr.mxu0 0.0
        %2697 = vmatpush1.xpose.msra.mxu0 0.0
        %2698 = vmatprep.subr.mxu0 0.0
        %2699 = vmatpush1.xpose.msra.mxu0 0.0
        %2700 = vmatprep.subr.mxu0 0.0
        %2701 = vmatpush1.xpose.msra.mxu0 0.0
        %2702 = vmatprep.subr.mxu0 0.0
        %2703 = vmatpush1.xpose.msra.mxu0 0.0
        %2704 = vmatprep.subr.mxu0 0.0
        %2705 = vmatpush1.xpose.msra.mxu0 0.0
        %2706 = vmatprep.subr.mxu0 0.0
        %2707 = vmatpush1.xpose.msra.mxu0 0.0
        %2708 = vmatprep.subr.mxu0 0.0
        %2709 = vmatpush1.xpose.msra.mxu0 0.0
        %2710 = vmatprep.subr.mxu0 0.0
        %2711 = vmatpush1.xpose.msra.mxu0 0.0
        %2712 = vmatprep.subr.mxu0 0.0
        %2713 = vmatpush1.xpose.msra.mxu0 0.0
        %2714 = vmatprep.subr.mxu0 0.0
        %2715 = vmatpush1.xpose.msra.mxu0 0.0
        %2716 = vmatprep.subr.mxu0 0.0
        %2717 = vmatpush1.xpose.msra.mxu0 0.0
        %2718 = vmatprep.subr.mxu0 0.0
        %2719 = vmatpush1.xpose.msra.mxu0 0.0
        %2720 = vmatprep.subr.mxu0 0.0
        %2721 = vmatpush1.xpose.msra.mxu0 0.0
        %2722 = vmatprep.subr.mxu0 0.0
        %2723 = vmatpush1.xpose.msra.mxu0 0.0
        %2724 = vmatprep.subr.mxu0 0.0
        %2725 = vmatpush1.xpose.msra.mxu0 0.0
        %2726 = vmatprep.subr.mxu0 0.0
        %2727 = vmatpush1.xpose.msra.mxu0 0.0
        %2728 = vmatprep.subr.mxu0 0.0
        %2729 = vmatpush1.xpose.msra.mxu0 0.0
        %2730 = vmatprep.subr.mxu0 0.0
        %2731 = vmatpush1.xpose.msra.mxu0 0.0
        %2732 = vmatprep.subr.mxu0 0.0
        %2733 = vmatpush1.xpose.msra.mxu0 0.0
        %2734 = vmatprep.subr.mxu0 0.0
        %2735 = vmatpush1.xpose.msra.mxu0 0.0
        %2736 = vmatprep.subr.mxu0 0.0
        %2737 = vmatpush1.xpose.msra.mxu0 0.0
        %2738 = vmatprep.mubr.f32.mxu0 0.0
        %2739 = vmatmul.mubr.f32.gmra.mrb[0].mxu0 %v2666
        %v2740 = vpop.f32.mrb[0].mxu0
        %v2741 = vadd.f32 0.0, %v2740
        %v2742 = vpop.f32.mrb[0].mxu0
        %2743 = vmatprep.mubr.f32.mxu0 0.0
        %2744 = vmatmul.mubr.f32.gmra.mrb[0].mxu0 %v2668
        %v2745 = vpop.f32.mrb[0].mxu0
        %v2746 = vadd.f32 0.0, %v2745
        %v2747 = vpop.f32.mrb[0].mxu0
        %2748 = vdwg.mxu0
        %v2749 = vsel %vm880, %v2468, -inf
        %2750 = vmax.xlane.f32.xlu0 %v2749
        %v2751 = vpop.xlane.xlu0 %2750
        %v2752 = vsel %vm880, %v2473, -inf
        %2753 = vmax.xlane.f32.xlu0 %v2752
        %v2754 = vpop.xlane.xlu0 %2753
        %v2755 = vsel %vm880, %v2559, -inf
        %2756 = vmax.xlane.f32.xlu0 %v2755
        %v2757 = vpop.xlane.xlu0 %2756
        %v2758 = vsel %vm880, %v2564, -inf
        %2759 = vmax.xlane.f32.xlu0 %v2758
        %v2760 = vpop.xlane.xlu0 %2759
        %v2761 = vsel %vm880, %v2650, -inf
        %2762 = vmax.xlane.f32.xlu0 %v2761
        %v2763 = vpop.xlane.xlu0 %2762
        %v2764 = vsel %vm880, %v2655, -inf
        %2765 = vmax.xlane.f32.xlu0 %v2764
        %v2766 = vpop.xlane.xlu0 %2765
        %v2767 = vsel %vm880, %v2741, -inf
        %2768 = vmax.xlane.f32.xlu0 %v2767
        %v2769 = vpop.xlane.xlu0 %2768
        %v2770 = vsel %vm880, %v2746, -inf
        %2771 = vmax.xlane.f32.xlu0 %v2770
        %v2772 = vpop.xlane.xlu0 %2771
        %v2773 = vsub.f32 %v2468, %v2751
        %v2774 = vsub.f32 %v2473, %v2754
        %v2775 = vsub.f32 %v2559, %v2757
        %v2776 = vsub.f32 %v2564, %v2760
        %v2777 = vsub.f32 %v2650, %v2763
        %v2778 = vsub.f32 %v2655, %v2766
        %v2779 = vsub.f32 %v2741, %v2769
        %v2780 = vsub.f32 %v2746, %v2772
        %v2781 = vmul.f32 %v2773, 1.442695
        %v2782 = vpow.pop %v2781
        %v2783 = vmul.f32 %v2774, 1.442695
        %v2784 = vpow.pop %v2783
        %v2785 = vmul.f32 %v2775, 1.442695
        %v2786 = vpow.pop %v2785
        %v2787 = vmul.f32 %v2776, 1.442695
        %v2788 = vpow.pop %v2787
        %v2789 = vmul.f32 %v2777, 1.442695
        %v2790 = vpow.pop %v2789
        %v2791 = vmul.f32 %v2778, 1.442695
        %v2792 = vpow.pop %v2791
        %v2793 = vmul.f32 %v2779, 1.442695
        %v2794 = vpow.pop %v2793
        %v2795 = vmul.f32 %v2780, 1.442695
        %v2796 = vpow.pop %v2795
        %v2797 = vsel %vm880, %v2782, 0.0
        %2798 = vadd.xlane.f32.xlu0 %v2797
        %v2799 = vpop.xlane.xlu0 %2798
        %v2800 = vsel %vm880, %v2784, 0.0
        %2801 = vadd.xlane.f32.xlu0 %v2800
        %v2802 = vpop.xlane.xlu0 %2801
        %v2803 = vsel %vm880, %v2786, 0.0
        %2804 = vadd.xlane.f32.xlu0 %v2803
        %v2805 = vpop.xlane.xlu0 %2804
        %v2806 = vsel %vm880, %v2788, 0.0
        %2807 = vadd.xlane.f32.xlu0 %v2806
        %v2808 = vpop.xlane.xlu0 %2807
        %v2809 = vsel %vm880, %v2790, 0.0
        %2810 = vadd.xlane.f32.xlu0 %v2809
        %v2811 = vpop.xlane.xlu0 %2810
        %v2812 = vsel %vm880, %v2792, 0.0
        %2813 = vadd.xlane.f32.xlu0 %v2812
        %v2814 = vpop.xlane.xlu0 %2813
        %v2815 = vsel %vm880, %v2794, 0.0
        %2816 = vadd.xlane.f32.xlu0 %v2815
        %v2817 = vpop.xlane.xlu0 %2816
        %v2818 = vsel %vm880, %v2796, 0.0
        %2819 = vadd.xlane.f32.xlu0 %v2818
        %v2820 = vpop.xlane.xlu0 %2819
        %v2821 = vrcp.pop %v2799
        %v2822 = vrcp.pop %v2802
        %v2823 = vrcp.pop %v2805
        %v2824 = vrcp.pop %v2808
        %v2825 = vrcp.pop %v2811
        %v2826 = vrcp.pop %v2814
        %v2827 = vrcp.pop %v2817
        %v2828 = vrcp.pop %v2820
        %v2829 = vmul.f32 %v2782, %v2821
        %v2830 = vmul.f32 %v2784, %v2822
        %v2831 = vmul.f32 %v2786, %v2823
        %v2832 = vmul.f32 %v2788, %v2824
        %v2833 = vmul.f32 %v2790, %v2825
        %v2834 = vmul.f32 %v2792, %v2826
        %v2835 = vmul.f32 %v2794, %v2827
        %v2836 = vmul.f32 %v2796, %v2828
        %2837 = vrot.lane.b32.xlu0 %v485, 56
        %v2838 = vpop.permute.xlu0 %2837
        %2839 = vrot.lane.b32.xlu0 %v490, 56
        %v2840 = vpop.permute.xlu0 %2839
        %v2844 = vsel %vm880, %v2829, 0
        %v2847 = vsel %vm880, %v2830, 0
        %2849 = vmatprep.subr.mxu0 0.0
        %2850 = vmatpush1.msra.mxu0 %v2838
        %2851 = vmatprep.subr.mxu0 0.0
        %2852 = vmatpush1.msra.mxu0 %v2840
        %2853 = vmatprep.subr.mxu0 0.0
        %2854 = vmatpush1.msra.mxu0 0.0
        %2855 = vmatprep.subr.mxu0 0.0
        %2856 = vmatpush1.msra.mxu0 0.0
        %2857 = vmatprep.subr.mxu0 0.0
        %2858 = vmatpush1.msra.mxu0 0.0
        %2859 = vmatprep.subr.mxu0 0.0
        %2860 = vmatpush1.msra.mxu0 0.0
        %2861 = vmatprep.subr.mxu0 0.0
        %2862 = vmatpush1.msra.mxu0 0.0
        %2863 = vmatprep.subr.mxu0 0.0
        %2864 = vmatpush1.msra.mxu0 0.0
        %2865 = vmatprep.subr.mxu0 0.0
        %2866 = vmatpush1.msra.mxu0 0.0
        %2867 = vmatprep.subr.mxu0 0.0
        %2868 = vmatpush1.msra.mxu0 0.0
        %2869 = vmatprep.subr.mxu0 0.0
        %2870 = vmatpush1.msra.mxu0 0.0
        %2871 = vmatprep.subr.mxu0 0.0
        %2872 = vmatpush1.msra.mxu0 0.0
        %2873 = vmatprep.subr.mxu0 0.0
        %2874 = vmatpush1.msra.mxu0 0.0
        %2875 = vmatprep.subr.mxu0 0.0
        %2876 = vmatpush1.msra.mxu0 0.0
        %2877 = vmatprep.subr.mxu0 0.0
        %2878 = vmatpush1.msra.mxu0 0.0
        %2879 = vmatprep.subr.mxu0 0.0
        %2880 = vmatpush1.msra.mxu0 0.0
        %2881 = vmatprep.subr.mxu0 0.0
        %2882 = vmatpush1.msra.mxu0 0.0
        %2883 = vmatprep.subr.mxu0 0.0
        %2884 = vmatpush1.msra.mxu0 0.0
        %2885 = vmatprep.subr.mxu0 0.0
        %2886 = vmatpush1.msra.mxu0 0.0
        %2887 = vmatprep.subr.mxu0 0.0
        %2888 = vmatpush1.msra.mxu0 0.0
        %2889 = vmatprep.subr.mxu0 0.0
        %2890 = vmatpush1.msra.mxu0 0.0
        %2891 = vmatprep.subr.mxu0 0.0
        %2892 = vmatpush1.msra.mxu0 0.0
        %2893 = vmatprep.subr.mxu0 0.0
        %2894 = vmatpush1.msra.mxu0 0.0
        %2895 = vmatprep.subr.mxu0 0.0
        %2896 = vmatpush1.msra.mxu0 0.0
        %2897 = vmatprep.subr.mxu0 0.0
        %2898 = vmatpush1.msra.mxu0 0.0
        %2899 = vmatprep.subr.mxu0 0.0
        %2900 = vmatpush1.msra.mxu0 0.0
        %2901 = vmatprep.subr.mxu0 0.0
        %2902 = vmatpush1.msra.mxu0 0.0
        %2903 = vmatprep.subr.mxu0 0.0
        %2904 = vmatpush1.msra.mxu0 0.0
        %2905 = vmatprep.subr.mxu0 0.0
        %2906 = vmatpush1.msra.mxu0 0.0
        %2907 = vmatprep.subr.mxu0 0.0
        %2908 = vmatpush1.msra.mxu0 0.0
        %2909 = vmatprep.subr.mxu0 0.0
        %2910 = vmatpush1.msra.mxu0 0.0
        %2911 = vmatprep.subr.mxu0 0.0
        %2912 = vmatpush1.msra.mxu0 0.0
        %2913 = vmatprep.mubr.f32.mxu0 0.0
        %2914 = vmatmul.mubr.f32.gmra.mrb[0].mxu0 %v2844
        %v2915 = vpop.f32.mrb[0].mxu0
        %v2916 = vadd.f32 0.0, %v2915
        %v2917 = vpop.f32.mrb[0].mxu0
        %2918 = vmatprep.mubr.f32.mxu0 0.0
        %2919 = vmatmul.mubr.f32.gmra.mrb[0].mxu0 %v2847
        %v2920 = vpop.f32.mrb[0].mxu0
        %v2921 = vadd.f32 0.0, %v2920
        %v2922 = vpop.f32.mrb[0].mxu0
        %2923 = vdwg.mxu0
        %2924 = vrot.lane.b32.xlu0 %v495, 56
        %v2925 = vpop.permute.xlu0 %2924
        %2926 = vrot.lane.b32.xlu0 %v500, 56
        %v2927 = vpop.permute.xlu0 %2926
        %v2931 = vsel %vm880, %v2831, 0
        %v2934 = vsel %vm880, %v2832, 0
        %2936 = vmatprep.subr.mxu0 0.0
        %2937 = vmatpush1.msra.mxu0 %v2925
        %2938 = vmatprep.subr.mxu0 0.0
        %2939 = vmatpush1.msra.mxu0 %v2927
        %2940 = vmatprep.subr.mxu0 0.0
        %2941 = vmatpush1.msra.mxu0 0.0
        %2942 = vmatprep.subr.mxu0 0.0
        %2943 = vmatpush1.msra.mxu0 0.0
        %2944 = vmatprep.subr.mxu0 0.0
        %2945 = vmatpush1.msra.mxu0 0.0
        %2946 = vmatprep.subr.mxu0 0.0
        %2947 = vmatpush1.msra.mxu0 0.0
        %2948 = vmatprep.subr.mxu0 0.0
        %2949 = vmatpush1.msra.mxu0 0.0
        %2950 = vmatprep.subr.mxu0 0.0
        %2951 = vmatpush1.msra.mxu0 0.0
        %2952 = vmatprep.subr.mxu0 0.0
        %2953 = vmatpush1.msra.mxu0 0.0
        %2954 = vmatprep.subr.mxu0 0.0
        %2955 = vmatpush1.msra.mxu0 0.0
        %2956 = vmatprep.subr.mxu0 0.0
        %2957 = vmatpush1.msra.mxu0 0.0
        %2958 = vmatprep.subr.mxu0 0.0
        %2959 = vmatpush1.msra.mxu0 0.0
        %2960 = vmatprep.subr.mxu0 0.0
        %2961 = vmatpush1.msra.mxu0 0.0
        %2962 = vmatprep.subr.mxu0 0.0
        %2963 = vmatpush1.msra.mxu0 0.0
        %2964 = vmatprep.subr.mxu0 0.0
        %2965 = vmatpush1.msra.mxu0 0.0
        %2966 = vmatprep.subr.mxu0 0.0
        %2967 = vmatpush1.msra.mxu0 0.0
        %2968 = vmatprep.subr.mxu0 0.0
        %2969 = vmatpush1.msra.mxu0 0.0
        %2970 = vmatprep.subr.mxu0 0.0
        %2971 = vmatpush1.msra.mxu0 0.0
        %2972 = vmatprep.subr.mxu0 0.0
        %2973 = vmatpush1.msra.mxu0 0.0
        %2974 = vmatprep.subr.mxu0 0.0
        %2975 = vmatpush1.msra.mxu0 0.0
        %2976 = vmatprep.subr.mxu0 0.0
        %2977 = vmatpush1.msra.mxu0 0.0
        %2978 = vmatprep.subr.mxu0 0.0
        %2979 = vmatpush1.msra.mxu0 0.0
        %2980 = vmatprep.subr.mxu0 0.0
        %2981 = vmatpush1.msra.mxu0 0.0
        %2982 = vmatprep.subr.mxu0 0.0
        %2983 = vmatpush1.msra.mxu0 0.0
        %2984 = vmatprep.subr.mxu0 0.0
        %2985 = vmatpush1.msra.mxu0 0.0
        %2986 = vmatprep.subr.mxu0 0.0
        %2987 = vmatpush1.msra.mxu0 0.0
        %2988 = vmatprep.subr.mxu0 0.0
        %2989 = vmatpush1.msra.mxu0 0.0
        %2990 = vmatprep.subr.mxu0 0.0
        %2991 = vmatpush1.msra.mxu0 0.0
        %2992 = vmatprep.subr.mxu0 0.0
        %2993 = vmatpush1.msra.mxu0 0.0
        %2994 = vmatprep.subr.mxu0 0.0
        %2995 = vmatpush1.msra.mxu0 0.0
        %2996 = vmatprep.subr.mxu0 0.0
        %2997 = vmatpush1.msra.mxu0 0.0
        %2998 = vmatprep.subr.mxu0 0.0
        %2999 = vmatpush1.msra.mxu0 0.0
        %3000 = vmatprep.mubr.f32.mxu0 0.0
        %3001 = vmatmul.mubr.f32.gmra.mrb[0].mxu0 %v2931
        %v3002 = vpop.f32.mrb[0].mxu0
        %v3003 = vadd.f32 0.0, %v3002
        %v3004 = vpop.f32.mrb[0].mxu0
        %3005 = vmatprep.mubr.f32.mxu0 0.0
        %3006 = vmatmul.mubr.f32.gmra.mrb[0].mxu0 %v2934
        %v3007 = vpop.f32.mrb[0].mxu0
        %v3008 = vadd.f32 0.0, %v3007
        %v3009 = vpop.f32.mrb[0].mxu0
        %3010 = vdwg.mxu0
        %3011 = vrot.lane.b32.xlu0 %v505, 56
        %v3012 = vpop.permute.xlu0 %3011
        %3013 = vrot.lane.b32.xlu0 %v510, 56
        %v3014 = vpop.permute.xlu0 %3013
        %v3018 = vsel %vm880, %v2833, 0
        %v3021 = vsel %vm880, %v2834, 0
        %3023 = vmatprep.subr.mxu0 0.0
        %3024 = vmatpush1.msra.mxu0 %v3012
        %3025 = vmatprep.subr.mxu0 0.0
        %3026 = vmatpush1.msra.mxu0 %v3014
        %3027 = vmatprep.subr.mxu0 0.0
        %3028 = vmatpush1.msra.mxu0 0.0
        %3029 = vmatprep.subr.mxu0 0.0
        %3030 = vmatpush1.msra.mxu0 0.0
        %3031 = vmatprep.subr.mxu0 0.0
        %3032 = vmatpush1.msra.mxu0 0.0
        %3033 = vmatprep.subr.mxu0 0.0
        %3034 = vmatpush1.msra.mxu0 0.0
        %3035 = vmatprep.subr.mxu0 0.0
        %3036 = vmatpush1.msra.mxu0 0.0
        %3037 = vmatprep.subr.mxu0 0.0
        %3038 = vmatpush1.msra.mxu0 0.0
        %3039 = vmatprep.subr.mxu0 0.0
        %3040 = vmatpush1.msra.mxu0 0.0
        %3041 = vmatprep.subr.mxu0 0.0
        %3042 = vmatpush1.msra.mxu0 0.0
        %3043 = vmatprep.subr.mxu0 0.0
        %3044 = vmatpush1.msra.mxu0 0.0
        %3045 = vmatprep.subr.mxu0 0.0
        %3046 = vmatpush1.msra.mxu0 0.0
        %3047 = vmatprep.subr.mxu0 0.0
        %3048 = vmatpush1.msra.mxu0 0.0
        %3049 = vmatprep.subr.mxu0 0.0
        %3050 = vmatpush1.msra.mxu0 0.0
        %3051 = vmatprep.subr.mxu0 0.0
        %3052 = vmatpush1.msra.mxu0 0.0
        %3053 = vmatprep.subr.mxu0 0.0
        %3054 = vmatpush1.msra.mxu0 0.0
        %3055 = vmatprep.subr.mxu0 0.0
        %3056 = vmatpush1.msra.mxu0 0.0
        %3057 = vmatprep.subr.mxu0 0.0
        %3058 = vmatpush1.msra.mxu0 0.0
        %3059 = vmatprep.subr.mxu0 0.0
        %3060 = vmatpush1.msra.mxu0 0.0
        %3061 = vmatprep.subr.mxu0 0.0
        %3062 = vmatpush1.msra.mxu0 0.0
        %3063 = vmatprep.subr.mxu0 0.0
        %3064 = vmatpush1.msra.mxu0 0.0
        %3065 = vmatprep.subr.mxu0 0.0
        %3066 = vmatpush1.msra.mxu0 0.0
        %3067 = vmatprep.subr.mxu0 0.0
        %3068 = vmatpush1.msra.mxu0 0.0
        %3069 = vmatprep.subr.mxu0 0.0
        %3070 = vmatpush1.msra.mxu0 0.0
        %3071 = vmatprep.subr.mxu0 0.0
        %3072 = vmatpush1.msra.mxu0 0.0
        %3073 = vmatprep.subr.mxu0 0.0
        %3074 = vmatpush1.msra.mxu0 0.0
        %3075 = vmatprep.subr.mxu0 0.0
        %3076 = vmatpush1.msra.mxu0 0.0
        %3077 = vmatprep.subr.mxu0 0.0
        %3078 = vmatpush1.msra.mxu0 0.0
        %3079 = vmatprep.subr.mxu0 0.0
        %3080 = vmatpush1.msra.mxu0 0.0
        %3081 = vmatprep.subr.mxu0 0.0
        %3082 = vmatpush1.msra.mxu0 0.0
        %3083 = vmatprep.subr.mxu0 0.0
        %3084 = vmatpush1.msra.mxu0 0.0
        %3085 = vmatprep.subr.mxu0 0.0
        %3086 = vmatpush1.msra.mxu0 0.0
        %3087 = vmatprep.mubr.f32.mxu0 0.0
        %3088 = vmatmul.mubr.f32.gmra.mrb[0].mxu0 %v3018
        %v3089 = vpop.f32.mrb[0].mxu0
        %v3090 = vadd.f32 0.0, %v3089
        %v3091 = vpop.f32.mrb[0].mxu0
        %3092 = vmatprep.mubr.f32.mxu0 0.0
        %3093 = vmatmul.mubr.f32.gmra.mrb[0].mxu0 %v3021
        %v3094 = vpop.f32.mrb[0].mxu0
        %v3095 = vadd.f32 0.0, %v3094
        %v3096 = vpop.f32.mrb[0].mxu0
        %3097 = vdwg.mxu0
        %3098 = vrot.lane.b32.xlu0 %v515, 56
        %v3099 = vpop.permute.xlu0 %3098
        %3100 = vrot.lane.b32.xlu0 %v520, 56
        %v3101 = vpop.permute.xlu0 %3100
        %v3105 = vsel %vm880, %v2835, 0
        %v3108 = vsel %vm880, %v2836, 0
        %3110 = vmatprep.subr.mxu0 0.0
        %3111 = vmatpush1.msra.mxu0 %v3099
        %3112 = vmatprep.subr.mxu0 0.0
        %3113 = vmatpush1.msra.mxu0 %v3101
        %3114 = vmatprep.subr.mxu0 0.0
        %3115 = vmatpush1.msra.mxu0 0.0
        %3116 = vmatprep.subr.mxu0 0.0
        %3117 = vmatpush1.msra.mxu0 0.0
        %3118 = vmatprep.subr.mxu0 0.0
        %3119 = vmatpush1.msra.mxu0 0.0
        %3120 = vmatprep.subr.mxu0 0.0
        %3121 = vmatpush1.msra.mxu0 0.0
        %3122 = vmatprep.subr.mxu0 0.0
        %3123 = vmatpush1.msra.mxu0 0.0
        %3124 = vmatprep.subr.mxu0 0.0
        %3125 = vmatpush1.msra.mxu0 0.0
        %3126 = vmatprep.subr.mxu0 0.0
        %3127 = vmatpush1.msra.mxu0 0.0
        %3128 = vmatprep.subr.mxu0 0.0
        %3129 = vmatpush1.msra.mxu0 0.0
        %3130 = vmatprep.subr.mxu0 0.0
        %3131 = vmatpush1.msra.mxu0 0.0
        %3132 = vmatprep.subr.mxu0 0.0
        %3133 = vmatpush1.msra.mxu0 0.0
        %3134 = vmatprep.subr.mxu0 0.0
        %3135 = vmatpush1.msra.mxu0 0.0
        %3136 = vmatprep.subr.mxu0 0.0
        %3137 = vmatpush1.msra.mxu0 0.0
        %3138 = vmatprep.subr.mxu0 0.0
        %3139 = vmatpush1.msra.mxu0 0.0
        %3140 = vmatprep.subr.mxu0 0.0
        %3141 = vmatpush1.msra.mxu0 0.0
        %3142 = vmatprep.subr.mxu0 0.0
        %3143 = vmatpush1.msra.mxu0 0.0
        %3144 = vmatprep.subr.mxu0 0.0
        %3145 = vmatpush1.msra.mxu0 0.0
        %3146 = vmatprep.subr.mxu0 0.0
        %3147 = vmatpush1.msra.mxu0 0.0
        %3148 = vmatprep.subr.mxu0 0.0
        %3149 = vmatpush1.msra.mxu0 0.0
        %3150 = vmatprep.subr.mxu0 0.0
        %3151 = vmatpush1.msra.mxu0 0.0
        %3152 = vmatprep.subr.mxu0 0.0
        %3153 = vmatpush1.msra.mxu0 0.0
        %3154 = vmatprep.subr.mxu0 0.0
        %3155 = vmatpush1.msra.mxu0 0.0
        %3156 = vmatprep.subr.mxu0 0.0
        %3157 = vmatpush1.msra.mxu0 0.0
        %3158 = vmatprep.subr.mxu0 0.0
        %3159 = vmatpush1.msra.mxu0 0.0
        %3160 = vmatprep.subr.mxu0 0.0
        %3161 = vmatpush1.msra.mxu0 0.0
        %3162 = vmatprep.subr.mxu0 0.0
        %3163 = vmatpush1.msra.mxu0 0.0
        %3164 = vmatprep.subr.mxu0 0.0
        %3165 = vmatpush1.msra.mxu0 0.0
        %3166 = vmatprep.subr.mxu0 0.0
        %3167 = vmatpush1.msra.mxu0 0.0
        %3168 = vmatprep.subr.mxu0 0.0
        %3169 = vmatpush1.msra.mxu0 0.0
        %3170 = vmatprep.subr.mxu0 0.0
        %3171 = vmatpush1.msra.mxu0 0.0
        %3172 = vmatprep.subr.mxu0 0.0
        %3173 = vmatpush1.msra.mxu0 0.0
        %3174 = vmatprep.mubr.f32.mxu0 0.0
        %3175 = vmatmul.mubr.f32.gmra.mrb[0].mxu0 %v3105
        %v3176 = vpop.f32.mrb[0].mxu0
        %v3177 = vadd.f32 0.0, %v3176
        %v3178 = vpop.f32.mrb[0].mxu0
        %3179 = vmatprep.mubr.f32.mxu0 0.0
        %3180 = vmatmul.mubr.f32.gmra.mrb[0].mxu0 %v3108
        %v3181 = vpop.f32.mrb[0].mxu0
        %v3182 = vadd.f32 0.0, %v3181
        %v3183 = vpop.f32.mrb[0].mxu0
        %3184 = vdwg.mxu0
        %s3185 = scalar_lea.vmem %s3, 8
        %v3186 = vld [vmem:[%s3185] sm:$0xf]
        %v3188 = vsel %vm529, %v2916, 0
        %v3191 = vsel %vm529, %v2921, 0
        %v3194 = vsel %vm529, %v3003, 0
        %v3197 = vsel %vm529, %v3008, 0
        %v3200 = vsel %vm529, %v3090, 0
        %v3203 = vsel %vm529, %v3095, 0
        %v3206 = vsel %vm529, %v3177, 0
        %v3209 = vsel %vm529, %v3182, 0
        %v3212 = vsel %vm2144, %v3186, 0
        %3214 = vmatprep.subr.mxu0 0.0
        %3215 = vmatpush1.msra.mxu0 %v3212
        %3216 = vmatprep.subr.mxu0 0.0
        %3217 = vmatpush1.msra.mxu0 0.0
        %3218 = vmatprep.subr.mxu0 0.0
        %3219 = vmatpush1.msra.mxu0 0.0
        %3220 = vmatprep.subr.mxu0 0.0
        %3221 = vmatpush1.msra.mxu0 0.0
        %3222 = vmatprep.subr.mxu0 0.0
        %3223 = vmatpush1.msra.mxu0 0.0
        %3224 = vmatprep.subr.mxu0 0.0
        %3225 = vmatpush1.msra.mxu0 0.0
        %3226 = vmatprep.subr.mxu0 0.0
        %3227 = vmatpush1.msra.mxu0 0.0
        %3228 = vmatprep.subr.mxu0 0.0
        %3229 = vmatpush1.msra.mxu0 0.0
        %3230 = vmatprep.subr.mxu0 0.0
        %3231 = vmatpush1.msra.mxu0 0.0
        %3232 = vmatprep.subr.mxu0 0.0
        %3233 = vmatpush1.msra.mxu0 0.0
        %3234 = vmatprep.subr.mxu0 0.0
        %3235 = vmatpush1.msra.mxu0 0.0
        %3236 = vmatprep.subr.mxu0 0.0
        %3237 = vmatpush1.msra.mxu0 0.0
        %3238 = vmatprep.subr.mxu0 0.0
        %3239 = vmatpush1.msra.mxu0 0.0
        %3240 = vmatprep.subr.mxu0 0.0
        %3241 = vmatpush1.msra.mxu0 0.0
        %3242 = vmatprep.subr.mxu0 0.0
        %3243 = vmatpush1.msra.mxu0 0.0
        %3244 = vmatprep.subr.mxu0 0.0
        %3245 = vmatpush1.msra.mxu0 0.0
        %3246 = vmatprep.subr.mxu0 0.0
        %3247 = vmatpush1.msra.mxu0 0.0
        %3248 = vmatprep.subr.mxu0 0.0
        %3249 = vmatpush1.msra.mxu0 0.0
        %3250 = vmatprep.subr.mxu0 0.0
        %3251 = vmatpush1.msra.mxu0 0.0
        %3252 = vmatprep.subr.mxu0 0.0
        %3253 = vmatpush1.msra.mxu0 0.0
        %3254 = vmatprep.subr.mxu0 0.0
        %3255 = vmatpush1.msra.mxu0 0.0
        %3256 = vmatprep.subr.mxu0 0.0
        %3257 = vmatpush1.msra.mxu0 0.0
        %3258 = vmatprep.subr.mxu0 0.0
        %3259 = vmatpush1.msra.mxu0 0.0
        %3260 = vmatprep.subr.mxu0 0.0
        %3261 = vmatpush1.msra.mxu0 0.0
        %3262 = vmatprep.subr.mxu0 0.0
        %3263 = vmatpush1.msra.mxu0 0.0
        %3264 = vmatprep.subr.mxu0 0.0
        %3265 = vmatpush1.msra.mxu0 0.0
        %3266 = vmatprep.subr.mxu0 0.0
        %3267 = vmatpush1.msra.mxu0 0.0
        %3268 = vmatprep.subr.mxu0 0.0
        %3269 = vmatpush1.msra.mxu0 0.0
        %3270 = vmatprep.subr.mxu0 0.0
        %3271 = vmatpush1.msra.mxu0 0.0
        %3272 = vmatprep.subr.mxu0 0.0
        %3273 = vmatpush1.msra.mxu0 0.0
        %3274 = vmatprep.subr.mxu0 0.0
        %3275 = vmatpush1.msra.mxu0 0.0
        %3276 = vmatprep.subr.mxu0 0.0
        %3277 = vmatpush1.msra.mxu0 0.0
        %3278 = vmatprep.mubr.f32.mxu0 0.0
        %3279 = vmatmul.mubr.f32.gmra.mrb[0].mxu0 %v3188
        %v3280 = vpop.f32.mrb[0].mxu0
        %v3281 = vadd.f32 0.0, %v3280
        %v3282 = vpop.f32.mrb[0].mxu0
        %3283 = vmatprep.mubr.f32.mxu0 0.0
        %3284 = vmatmul.mubr.f32.gmra.mrb[0].mxu0 %v3191
        %v3285 = vpop.f32.mrb[0].mxu0
        %v3286 = vadd.f32 0.0, %v3285
        %v3287 = vpop.f32.mrb[0].mxu0
        %3288 = vmatprep.mubr.f32.mxu0 0.0
        %3289 = vmatmul.mubr.f32.gmra.mrb[0].mxu0 %v3194
        %v3290 = vpop.f32.mrb[0].mxu0
        %v3291 = vadd.f32 0.0, %v3290
        %v3292 = vpop.f32.mrb[0].mxu0
        %3293 = vmatprep.mubr.f32.mxu0 0.0
        %3294 = vmatmul.mubr.f32.gmra.mrb[0].mxu0 %v3197
        %v3295 = vpop.f32.mrb[0].mxu0
        %v3296 = vadd.f32 0.0, %v3295
        %v3297 = vpop.f32.mrb[0].mxu0
        %3298 = vmatprep.mubr.f32.mxu0 0.0
        %3299 = vmatmul.mubr.f32.gmra.mrb[0].mxu0 %v3200
        %v3300 = vpop.f32.mrb[0].mxu0
        %v3301 = vadd.f32 0.0, %v3300
        %v3302 = vpop.f32.mrb[0].mxu0
        %3303 = vmatprep.mubr.f32.mxu0 0.0
        %3304 = vmatmul.mubr.f32.gmra.mrb[0].mxu0 %v3203
        %v3305 = vpop.f32.mrb[0].mxu0
        %v3306 = vadd.f32 0.0, %v3305
        %v3307 = vpop.f32.mrb[0].mxu0
        %3308 = vmatprep.mubr.f32.mxu0 0.0
        %3309 = vmatmul.mubr.f32.gmra.mrb[0].mxu0 %v3206
        %v3310 = vpop.f32.mrb[0].mxu0
        %v3311 = vadd.f32 0.0, %v3310
        %v3312 = vpop.f32.mrb[0].mxu0
        %3313 = vmatprep.mubr.f32.mxu0 0.0
        %3314 = vmatmul.mubr.f32.gmra.mrb[0].mxu0 %v3209
        %v3315 = vpop.f32.mrb[0].mxu0
        %v3316 = vadd.f32 0.0, %v3315
        %v3317 = vpop.f32.mrb[0].mxu0
        %3318 = vdwg.mxu0
        %v3319 = vadd.f32 %v2347, %v3281
        %v3320 = vadd.f32 %v2352, %v3286
        %v3321 = vadd.f32 %v2357, %v3291
        %v3322 = vadd.f32 %v2362, %v3296
        %v3323 = vadd.f32 %v2367, %v3301
        %v3324 = vadd.f32 %v2372, %v3306
        %v3325 = vadd.f32 %v2377, %v3311
        %v3326 = vadd.f32 %v2382, %v3316
        %3327 = vrot.lane.b32.xlu0 %v485, 116
        %v3328 = vpop.permute.xlu0 %3327
        %3329 = vrot.lane.b32.xlu0 %v490, 116
        %v3330 = vpop.permute.xlu0 %3329
        %3331 = vrot.lane.b32.xlu0 %v485, 84
        %v3332 = vpop.permute.xlu0 %3331
        %3333 = vrot.lane.b32.xlu0 %v490, 84
        %v3334 = vpop.permute.xlu0 %3333
        %v3335 = vsel %vm529, %v3328, 0
        %v3337 = vsel %vm529, %v3330, 0
        %v3339 = vsel %vm529, %v3332, 0
        %v3341 = vsel %vm529, %v3334, 0
        %3343 = vmatprep.subr.mxu0 0.0
        %3344 = vmatpush1.xpose.msra.mxu0 %v3339
        %3345 = vmatprep.subr.mxu0 0.0
        %3346 = vmatpush1.xpose.msra.mxu0 %v3341
        %3347 = vmatprep.subr.mxu0 0.0
        %3348 = vmatpush1.xpose.msra.mxu0 0.0
        %3349 = vmatprep.subr.mxu0 0.0
        %3350 = vmatpush1.xpose.msra.mxu0 0.0
        %3351 = vmatprep.subr.mxu0 0.0
        %3352 = vmatpush1.xpose.msra.mxu0 0.0
        %3353 = vmatprep.subr.mxu0 0.0
        %3354 = vmatpush1.xpose.msra.mxu0 0.0
        %3355 = vmatprep.subr.mxu0 0.0
        %3356 = vmatpush1.xpose.msra.mxu0 0.0
        %3357 = vmatprep.subr.mxu0 0.0
        %3358 = vmatpush1.xpose.msra.mxu0 0.0
        %3359 = vmatprep.subr.mxu0 0.0
        %3360 = vmatpush1.xpose.msra.mxu0 0.0
        %3361 = vmatprep.subr.mxu0 0.0
        %3362 = vmatpush1.xpose.msra.mxu0 0.0
        %3363 = vmatprep.subr.mxu0 0.0
        %3364 = vmatpush1.xpose.msra.mxu0 0.0
        %3365 = vmatprep.subr.mxu0 0.0
        %3366 = vmatpush1.xpose.msra.mxu0 0.0
        %3367 = vmatprep.subr.mxu0 0.0
        %3368 = vmatpush1.xpose.msra.mxu0 0.0
        %3369 = vmatprep.subr.mxu0 0.0
        %3370 = vmatpush1.xpose.msra.mxu0 0.0
        %3371 = vmatprep.subr.mxu0 0.0
        %3372 = vmatpush1.xpose.msra.mxu0 0.0
        %3373 = vmatprep.subr.mxu0 0.0
        %3374 = vmatpush1.xpose.msra.mxu0 0.0
        %3375 = vmatprep.subr.mxu0 0.0
        %3376 = vmatpush1.xpose.msra.mxu0 0.0
        %3377 = vmatprep.subr.mxu0 0.0
        %3378 = vmatpush1.xpose.msra.mxu0 0.0
        %3379 = vmatprep.subr.mxu0 0.0
        %3380 = vmatpush1.xpose.msra.mxu0 0.0
        %3381 = vmatprep.subr.mxu0 0.0
        %3382 = vmatpush1.xpose.msra.mxu0 0.0
        %3383 = vmatprep.subr.mxu0 0.0
        %3384 = vmatpush1.xpose.msra.mxu0 0.0
        %3385 = vmatprep.subr.mxu0 0.0
        %3386 = vmatpush1.xpose.msra.mxu0 0.0
        %3387 = vmatprep.subr.mxu0 0.0
        %3388 = vmatpush1.xpose.msra.mxu0 0.0
        %3389 = vmatprep.subr.mxu0 0.0
        %3390 = vmatpush1.xpose.msra.mxu0 0.0
        %3391 = vmatprep.subr.mxu0 0.0
        %3392 = vmatpush1.xpose.msra.mxu0 0.0
        %3393 = vmatprep.subr.mxu0 0.0
        %3394 = vmatpush1.xpose.msra.mxu0 0.0
        %3395 = vmatprep.subr.mxu0 0.0
        %3396 = vmatpush1.xpose.msra.mxu0 0.0
        %3397 = vmatprep.subr.mxu0 0.0
        %3398 = vmatpush1.xpose.msra.mxu0 0.0
        %3399 = vmatprep.subr.mxu0 0.0
        %3400 = vmatpush1.xpose.msra.mxu0 0.0
        %3401 = vmatprep.subr.mxu0 0.0
        %3402 = vmatpush1.xpose.msra.mxu0 0.0
        %3403 = vmatprep.subr.mxu0 0.0
        %3404 = vmatpush1.xpose.msra.mxu0 0.0
        %3405 = vmatprep.subr.mxu0 0.0
        %3406 = vmatpush1.xpose.msra.mxu0 0.0
        %3407 = vmatprep.mubr.f32.mxu0 0.0
        %3408 = vmatmul.mubr.f32.gmra.mrb[0].mxu0 %v3335
        %v3409 = vpop.f32.mrb[0].mxu0
        %v3410 = vadd.f32 0.0, %v3409
        %v3411 = vpop.f32.mrb[0].mxu0
        %3412 = vmatprep.mubr.f32.mxu0 0.0
        %3413 = vmatmul.mubr.f32.gmra.mrb[0].mxu0 %v3337
        %v3414 = vpop.f32.mrb[0].mxu0
        %v3415 = vadd.f32 0.0, %v3414
        %v3416 = vpop.f32.mrb[0].mxu0
        %3417 = vdwg.mxu0
        %3418 = vrot.lane.b32.xlu0 %v495, 116
        %v3419 = vpop.permute.xlu0 %3418
        %3420 = vrot.lane.b32.xlu0 %v500, 116
        %v3421 = vpop.permute.xlu0 %3420
        %3422 = vrot.lane.b32.xlu0 %v495, 84
        %v3423 = vpop.permute.xlu0 %3422
        %3424 = vrot.lane.b32.xlu0 %v500, 84
        %v3425 = vpop.permute.xlu0 %3424
        %v3426 = vsel %vm529, %v3419, 0
        %v3428 = vsel %vm529, %v3421, 0
        %v3430 = vsel %vm529, %v3423, 0
        %v3432 = vsel %vm529, %v3425, 0
        %3434 = vmatprep.subr.mxu0 0.0
        %3435 = vmatpush1.xpose.msra.mxu0 %v3430
        %3436 = vmatprep.subr.mxu0 0.0
        %3437 = vmatpush1.xpose.msra.mxu0 %v3432
        %3438 = vmatprep.subr.mxu0 0.0
        %3439 = vmatpush1.xpose.msra.mxu0 0.0
        %3440 = vmatprep.subr.mxu0 0.0
        %3441 = vmatpush1.xpose.msra.mxu0 0.0
        %3442 = vmatprep.subr.mxu0 0.0
        %3443 = vmatpush1.xpose.msra.mxu0 0.0
        %3444 = vmatprep.subr.mxu0 0.0
        %3445 = vmatpush1.xpose.msra.mxu0 0.0
        %3446 = vmatprep.subr.mxu0 0.0
        %3447 = vmatpush1.xpose.msra.mxu0 0.0
        %3448 = vmatprep.subr.mxu0 0.0
        %3449 = vmatpush1.xpose.msra.mxu0 0.0
        %3450 = vmatprep.subr.mxu0 0.0
        %3451 = vmatpush1.xpose.msra.mxu0 0.0
        %3452 = vmatprep.subr.mxu0 0.0
        %3453 = vmatpush1.xpose.msra.mxu0 0.0
        %3454 = vmatprep.subr.mxu0 0.0
        %3455 = vmatpush1.xpose.msra.mxu0 0.0
        %3456 = vmatprep.subr.mxu0 0.0
        %3457 = vmatpush1.xpose.msra.mxu0 0.0
        %3458 = vmatprep.subr.mxu0 0.0
        %3459 = vmatpush1.xpose.msra.mxu0 0.0
        %3460 = vmatprep.subr.mxu0 0.0
        %3461 = vmatpush1.xpose.msra.mxu0 0.0
        %3462 = vmatprep.subr.mxu0 0.0
        %3463 = vmatpush1.xpose.msra.mxu0 0.0
        %3464 = vmatprep.subr.mxu0 0.0
        %3465 = vmatpush1.xpose.msra.mxu0 0.0
        %3466 = vmatprep.subr.mxu0 0.0
        %3467 = vmatpush1.xpose.msra.mxu0 0.0
        %3468 = vmatprep.subr.mxu0 0.0
        %3469 = vmatpush1.xpose.msra.mxu0 0.0
        %3470 = vmatprep.subr.mxu0 0.0
        %3471 = vmatpush1.xpose.msra.mxu0 0.0
        %3472 = vmatprep.subr.mxu0 0.0
        %3473 = vmatpush1.xpose.msra.mxu0 0.0
        %3474 = vmatprep.subr.mxu0 0.0
        %3475 = vmatpush1.xpose.msra.mxu0 0.0
        %3476 = vmatprep.subr.mxu0 0.0
        %3477 = vmatpush1.xpose.msra.mxu0 0.0
        %3478 = vmatprep.subr.mxu0 0.0
        %3479 = vmatpush1.xpose.msra.mxu0 0.0
        %3480 = vmatprep.subr.mxu0 0.0
        %3481 = vmatpush1.xpose.msra.mxu0 0.0
        %3482 = vmatprep.subr.mxu0 0.0
        %3483 = vmatpush1.xpose.msra.mxu0 0.0
        %3484 = vmatprep.subr.mxu0 0.0
        %3485 = vmatpush1.xpose.msra.mxu0 0.0
        %3486 = vmatprep.subr.mxu0 0.0
        %3487 = vmatpush1.xpose.msra.mxu0 0.0
        %3488 = vmatprep.subr.mxu0 0.0
        %3489 = vmatpush1.xpose.msra.mxu0 0.0
        %3490 = vmatprep.subr.mxu0 0.0
        %3491 = vmatpush1.xpose.msra.mxu0 0.0
        %3492 = vmatprep.subr.mxu0 0.0
        %3493 = vmatpush1.xpose.msra.mxu0 0.0
        %3494 = vmatprep.subr.mxu0 0.0
        %3495 = vmatpush1.xpose.msra.mxu0 0.0
        %3496 = vmatprep.subr.mxu0 0.0
        %3497 = vmatpush1.xpose.msra.mxu0 0.0
        %3498 = vmatprep.mubr.f32.mxu0 0.0
        %3499 = vmatmul.mubr.f32.gmra.mrb[0].mxu0 %v3426
        %v3500 = vpop.f32.mrb[0].mxu0
        %v3501 = vadd.f32 0.0, %v3500
        %v3502 = vpop.f32.mrb[0].mxu0
        %3503 = vmatprep.mubr.f32.mxu0 0.0
        %3504 = vmatmul.mubr.f32.gmra.mrb[0].mxu0 %v3428
        %v3505 = vpop.f32.mrb[0].mxu0
        %v3506 = vadd.f32 0.0, %v3505
        %v3507 = vpop.f32.mrb[0].mxu0
        %3508 = vdwg.mxu0
        %3509 = vrot.lane.b32.xlu0 %v505, 116
        %v3510 = vpop.permute.xlu0 %3509
        %3511 = vrot.lane.b32.xlu0 %v510, 116
        %v3512 = vpop.permute.xlu0 %3511
        %3513 = vrot.lane.b32.xlu0 %v505, 84
        %v3514 = vpop.permute.xlu0 %3513
        %3515 = vrot.lane.b32.xlu0 %v510, 84
        %v3516 = vpop.permute.xlu0 %3515
        %v3517 = vsel %vm529, %v3510, 0
        %v3519 = vsel %vm529, %v3512, 0
        %v3521 = vsel %vm529, %v3514, 0
        %v3523 = vsel %vm529, %v3516, 0
        %3525 = vmatprep.subr.mxu0 0.0
        %3526 = vmatpush1.xpose.msra.mxu0 %v3521
        %3527 = vmatprep.subr.mxu0 0.0
        %3528 = vmatpush1.xpose.msra.mxu0 %v3523
        %3529 = vmatprep.subr.mxu0 0.0
        %3530 = vmatpush1.xpose.msra.mxu0 0.0
        %3531 = vmatprep.subr.mxu0 0.0
        %3532 = vmatpush1.xpose.msra.mxu0 0.0
        %3533 = vmatprep.subr.mxu0 0.0
        %3534 = vmatpush1.xpose.msra.mxu0 0.0
        %3535 = vmatprep.subr.mxu0 0.0
        %3536 = vmatpush1.xpose.msra.mxu0 0.0
        %3537 = vmatprep.subr.mxu0 0.0
        %3538 = vmatpush1.xpose.msra.mxu0 0.0
        %3539 = vmatprep.subr.mxu0 0.0
        %3540 = vmatpush1.xpose.msra.mxu0 0.0
        %3541 = vmatprep.subr.mxu0 0.0
        %3542 = vmatpush1.xpose.msra.mxu0 0.0
        %3543 = vmatprep.subr.mxu0 0.0
        %3544 = vmatpush1.xpose.msra.mxu0 0.0
        %3545 = vmatprep.subr.mxu0 0.0
        %3546 = vmatpush1.xpose.msra.mxu0 0.0
        %3547 = vmatprep.subr.mxu0 0.0
        %3548 = vmatpush1.xpose.msra.mxu0 0.0
        %3549 = vmatprep.subr.mxu0 0.0
        %3550 = vmatpush1.xpose.msra.mxu0 0.0
        %3551 = vmatprep.subr.mxu0 0.0
        %3552 = vmatpush1.xpose.msra.mxu0 0.0
        %3553 = vmatprep.subr.mxu0 0.0
        %3554 = vmatpush1.xpose.msra.mxu0 0.0
        %3555 = vmatprep.subr.mxu0 0.0
        %3556 = vmatpush1.xpose.msra.mxu0 0.0
        %3557 = vmatprep.subr.mxu0 0.0
        %3558 = vmatpush1.xpose.msra.mxu0 0.0
        %3559 = vmatprep.subr.mxu0 0.0
        %3560 = vmatpush1.xpose.msra.mxu0 0.0
        %3561 = vmatprep.subr.mxu0 0.0
        %3562 = vmatpush1.xpose.msra.mxu0 0.0
        %3563 = vmatprep.subr.mxu0 0.0
        %3564 = vmatpush1.xpose.msra.mxu0 0.0
        %3565 = vmatprep.subr.mxu0 0.0
        %3566 = vmatpush1.xpose.msra.mxu0 0.0
        %3567 = vmatprep.subr.mxu0 0.0
        %3568 = vmatpush1.xpose.msra.mxu0 0.0
        %3569 = vmatprep.subr.mxu0 0.0
        %3570 = vmatpush1.xpose.msra.mxu0 0.0
        %3571 = vmatprep.subr.mxu0 0.0
        %3572 = vmatpush1.xpose.msra.mxu0 0.0
        %3573 = vmatprep.subr.mxu0 0.0
        %3574 = vmatpush1.xpose.msra.mxu0 0.0
        %3575 = vmatprep.subr.mxu0 0.0
        %3576 = vmatpush1.xpose.msra.mxu0 0.0
        %3577 = vmatprep.subr.mxu0 0.0
        %3578 = vmatpush1.xpose.msra.mxu0 0.0
        %3579 = vmatprep.subr.mxu0 0.0
        %3580 = vmatpush1.xpose.msra.mxu0 0.0
        %3581 = vmatprep.subr.mxu0 0.0
        %3582 = vmatpush1.xpose.msra.mxu0 0.0
        %3583 = vmatprep.subr.mxu0 0.0
        %3584 = vmatpush1.xpose.msra.mxu0 0.0
        %3585 = vmatprep.subr.mxu0 0.0
        %3586 = vmatpush1.xpose.msra.mxu0 0.0
        %3587 = vmatprep.subr.mxu0 0.0
        %3588 = vmatpush1.xpose.msra.mxu0 0.0
        %3589 = vmatprep.mubr.f32.mxu0 0.0
        %3590 = vmatmul.mubr.f32.gmra.mrb[0].mxu0 %v3517
        %v3591 = vpop.f32.mrb[0].mxu0
        %v3592 = vadd.f32 0.0, %v3591
        %v3593 = vpop.f32.mrb[0].mxu0
        %3594 = vmatprep.mubr.f32.mxu0 0.0
        %3595 = vmatmul.mubr.f32.gmra.mrb[0].mxu0 %v3519
        %v3596 = vpop.f32.mrb[0].mxu0
        %v3597 = vadd.f32 0.0, %v3596
        %v3598 = vpop.f32.mrb[0].mxu0
        %3599 = vdwg.mxu0
        %3600 = vrot.lane.b32.xlu0 %v515, 116
        %v3601 = vpop.permute.xlu0 %3600
        %3602 = vrot.lane.b32.xlu0 %v520, 116
        %v3603 = vpop.permute.xlu0 %3602
        %3604 = vrot.lane.b32.xlu0 %v515, 84
        %v3605 = vpop.permute.xlu0 %3604
        %3606 = vrot.lane.b32.xlu0 %v520, 84
        %v3607 = vpop.permute.xlu0 %3606
        %v3608 = vsel %vm529, %v3601, 0
        %v3610 = vsel %vm529, %v3603, 0
        %v3612 = vsel %vm529, %v3605, 0
        %v3614 = vsel %vm529, %v3607, 0
        %3616 = vmatprep.subr.mxu0 0.0
        %3617 = vmatpush1.xpose.msra.mxu0 %v3612
        %3618 = vmatprep.subr.mxu0 0.0
        %3619 = vmatpush1.xpose.msra.mxu0 %v3614
        %3620 = vmatprep.subr.mxu0 0.0
        %3621 = vmatpush1.xpose.msra.mxu0 0.0
        %3622 = vmatprep.subr.mxu0 0.0
        %3623 = vmatpush1.xpose.msra.mxu0 0.0
        %3624 = vmatprep.subr.mxu0 0.0
        %3625 = vmatpush1.xpose.msra.mxu0 0.0
        %3626 = vmatprep.subr.mxu0 0.0
        %3627 = vmatpush1.xpose.msra.mxu0 0.0
        %3628 = vmatprep.subr.mxu0 0.0
        %3629 = vmatpush1.xpose.msra.mxu0 0.0
        %3630 = vmatprep.subr.mxu0 0.0
        %3631 = vmatpush1.xpose.msra.mxu0 0.0
        %3632 = vmatprep.subr.mxu0 0.0
        %3633 = vmatpush1.xpose.msra.mxu0 0.0
        %3634 = vmatprep.subr.mxu0 0.0
        %3635 = vmatpush1.xpose.msra.mxu0 0.0
        %3636 = vmatprep.subr.mxu0 0.0
        %3637 = vmatpush1.xpose.msra.mxu0 0.0
        %3638 = vmatprep.subr.mxu0 0.0
        %3639 = vmatpush1.xpose.msra.mxu0 0.0
        %3640 = vmatprep.subr.mxu0 0.0
        %3641 = vmatpush1.xpose.msra.mxu0 0.0
        %3642 = vmatprep.subr.mxu0 0.0
        %3643 = vmatpush1.xpose.msra.mxu0 0.0
        %3644 = vmatprep.subr.mxu0 0.0
        %3645 = vmatpush1.xpose.msra.mxu0 0.0
        %3646 = vmatprep.subr.mxu0 0.0
        %3647 = vmatpush1.xpose.msra.mxu0 0.0
        %3648 = vmatprep.subr.mxu0 0.0
        %3649 = vmatpush1.xpose.msra.mxu0 0.0
        %3650 = vmatprep.subr.mxu0 0.0
        %3651 = vmatpush1.xpose.msra.mxu0 0.0
        %3652 = vmatprep.subr.mxu0 0.0
        %3653 = vmatpush1.xpose.msra.mxu0 0.0
        %3654 = vmatprep.subr.mxu0 0.0
        %3655 = vmatpush1.xpose.msra.mxu0 0.0
        %3656 = vmatprep.subr.mxu0 0.0
        %3657 = vmatpush1.xpose.msra.mxu0 0.0
        %3658 = vmatprep.subr.mxu0 0.0
        %3659 = vmatpush1.xpose.msra.mxu0 0.0
        %3660 = vmatprep.subr.mxu0 0.0
        %3661 = vmatpush1.xpose.msra.mxu0 0.0
        %3662 = vmatprep.subr.mxu0 0.0
        %3663 = vmatpush1.xpose.msra.mxu0 0.0
        %3664 = vmatprep.subr.mxu0 0.0
        %3665 = vmatpush1.xpose.msra.mxu0 0.0
        %3666 = vmatprep.subr.mxu0 0.0
        %3667 = vmatpush1.xpose.msra.mxu0 0.0
        %3668 = vmatprep.subr.mxu0 0.0
        %3669 = vmatpush1.xpose.msra.mxu0 0.0
        %3670 = vmatprep.subr.mxu0 0.0
        %3671 = vmatpush1.xpose.msra.mxu0 0.0
        %3672 = vmatprep.subr.mxu0 0.0
        %3673 = vmatpush1.xpose.msra.mxu0 0.0
        %3674 = vmatprep.subr.mxu0 0.0
        %3675 = vmatpush1.xpose.msra.mxu0 0.0
        %3676 = vmatprep.subr.mxu0 0.0
        %3677 = vmatpush1.xpose.msra.mxu0 0.0
        %3678 = vmatprep.subr.mxu0 0.0
        %3679 = vmatpush1.xpose.msra.mxu0 0.0
        %3680 = vmatprep.mubr.f32.mxu0 0.0
        %3681 = vmatmul.mubr.f32.gmra.mrb[0].mxu0 %v3608
        %v3682 = vpop.f32.mrb[0].mxu0
        %v3683 = vadd.f32 0.0, %v3682
        %v3684 = vpop.f32.mrb[0].mxu0
        %3685 = vmatprep.mubr.f32.mxu0 0.0
        %3686 = vmatmul.mubr.f32.gmra.mrb[0].mxu0 %v3610
        %v3687 = vpop.f32.mrb[0].mxu0
        %v3688 = vadd.f32 0.0, %v3687
        %v3689 = vpop.f32.mrb[0].mxu0
        %3690 = vdwg.mxu0
        %v3691 = vsel %vm880, %v3410, -inf
        %3692 = vmax.xlane.f32.xlu0 %v3691
        %v3693 = vpop.xlane.xlu0 %3692
        %v3694 = vsel %vm880, %v3415, -inf
        %3695 = vmax.xlane.f32.xlu0 %v3694
        %v3696 = vpop.xlane.xlu0 %3695
        %v3697 = vsel %vm880, %v3501, -inf
        %3698 = vmax.xlane.f32.xlu0 %v3697
        %v3699 = vpop.xlane.xlu0 %3698
        %v3700 = vsel %vm880, %v3506, -inf
        %3701 = vmax.xlane.f32.xlu0 %v3700
        %v3702 = vpop.xlane.xlu0 %3701
        %v3703 = vsel %vm880, %v3592, -inf
        %3704 = vmax.xlane.f32.xlu0 %v3703
        %v3705 = vpop.xlane.xlu0 %3704
        %v3706 = vsel %vm880, %v3597, -inf
        %3707 = vmax.xlane.f32.xlu0 %v3706
        %v3708 = vpop.xlane.xlu0 %3707
        %v3709 = vsel %vm880, %v3683, -inf
        %3710 = vmax.xlane.f32.xlu0 %v3709
        %v3711 = vpop.xlane.xlu0 %3710
        %v3712 = vsel %vm880, %v3688, -inf
        %3713 = vmax.xlane.f32.xlu0 %v3712
        %v3714 = vpop.xlane.xlu0 %3713
        %v3715 = vsub.f32 %v3410, %v3693
        %v3716 = vsub.f32 %v3415, %v3696
        %v3717 = vsub.f32 %v3501, %v3699
        %v3718 = vsub.f32 %v3506, %v3702
        %v3719 = vsub.f32 %v3592, %v3705
        %v3720 = vsub.f32 %v3597, %v3708
        %v3721 = vsub.f32 %v3683, %v3711
        %v3722 = vsub.f32 %v3688, %v3714
        %v3723 = vmul.f32 %v3715, 1.442695
        %v3724 = vpow.pop %v3723
        %v3725 = vmul.f32 %v3716, 1.442695
        %v3726 = vpow.pop %v3725
        %v3727 = vmul.f32 %v3717, 1.442695
        %v3728 = vpow.pop %v3727
        %v3729 = vmul.f32 %v3718, 1.442695
        %v3730 = vpow.pop %v3729
        %v3731 = vmul.f32 %v3719, 1.442695
        %v3732 = vpow.pop %v3731
        %v3733 = vmul.f32 %v3720, 1.442695
        %v3734 = vpow.pop %v3733
        %v3735 = vmul.f32 %v3721, 1.442695
        %v3736 = vpow.pop %v3735
        %v3737 = vmul.f32 %v3722, 1.442695
        %v3738 = vpow.pop %v3737
        %v3739 = vsel %vm880, %v3724, 0.0
        %3740 = vadd.xlane.f32.xlu0 %v3739
        %v3741 = vpop.xlane.xlu0 %3740
        %v3742 = vsel %vm880, %v3726, 0.0
        %3743 = vadd.xlane.f32.xlu0 %v3742
        %v3744 = vpop.xlane.xlu0 %3743
        %v3745 = vsel %vm880, %v3728, 0.0
        %3746 = vadd.xlane.f32.xlu0 %v3745
        %v3747 = vpop.xlane.xlu0 %3746
        %v3748 = vsel %vm880, %v3730, 0.0
        %3749 = vadd.xlane.f32.xlu0 %v3748
        %v3750 = vpop.xlane.xlu0 %3749
        %v3751 = vsel %vm880, %v3732, 0.0
        %3752 = vadd.xlane.f32.xlu0 %v3751
        %v3753 = vpop.xlane.xlu0 %3752
        %v3754 = vsel %vm880, %v3734, 0.0
        %3755 = vadd.xlane.f32.xlu0 %v3754
        %v3756 = vpop.xlane.xlu0 %3755
        %v3757 = vsel %vm880, %v3736, 0.0
        %3758 = vadd.xlane.f32.xlu0 %v3757
        %v3759 = vpop.xlane.xlu0 %3758
        %v3760 = vsel %vm880, %v3738, 0.0
        %3761 = vadd.xlane.f32.xlu0 %v3760
        %v3762 = vpop.xlane.xlu0 %3761
        %v3763 = vrcp.pop %v3741
        %v3764 = vrcp.pop %v3744
        %v3765 = vrcp.pop %v3747
        %v3766 = vrcp.pop %v3750
        %v3767 = vrcp.pop %v3753
        %v3768 = vrcp.pop %v3756
        %v3769 = vrcp.pop %v3759
        %v3770 = vrcp.pop %v3762
        %v3771 = vmul.f32 %v3724, %v3763
        %v3772 = vmul.f32 %v3726, %v3764
        %v3773 = vmul.f32 %v3728, %v3765
        %v3774 = vmul.f32 %v3730, %v3766
        %v3775 = vmul.f32 %v3732, %v3767
        %v3776 = vmul.f32 %v3734, %v3768
        %v3777 = vmul.f32 %v3736, %v3769
        %v3778 = vmul.f32 %v3738, %v3770
        %3779 = vrot.lane.b32.xlu0 %v485, 52
        %v3780 = vpop.permute.xlu0 %3779
        %3781 = vrot.lane.b32.xlu0 %v490, 52
        %v3782 = vpop.permute.xlu0 %3781
        %v3786 = vsel %vm880, %v3771, 0
        %v3789 = vsel %vm880, %v3772, 0
        %3791 = vmatprep.subr.mxu0 0.0
        %3792 = vmatpush1.msra.mxu0 %v3780
        %3793 = vmatprep.subr.mxu0 0.0
        %3794 = vmatpush1.msra.mxu0 %v3782
        %3795 = vmatprep.subr.mxu0 0.0
        %3796 = vmatpush1.msra.mxu0 0.0
        %3797 = vmatprep.subr.mxu0 0.0
        %3798 = vmatpush1.msra.mxu0 0.0
        %3799 = vmatprep.subr.mxu0 0.0
        %3800 = vmatpush1.msra.mxu0 0.0
        %3801 = vmatprep.subr.mxu0 0.0
        %3802 = vmatpush1.msra.mxu0 0.0
        %3803 = vmatprep.subr.mxu0 0.0
        %3804 = vmatpush1.msra.mxu0 0.0
        %3805 = vmatprep.subr.mxu0 0.0
        %3806 = vmatpush1.msra.mxu0 0.0
        %3807 = vmatprep.subr.mxu0 0.0
        %3808 = vmatpush1.msra.mxu0 0.0
        %3809 = vmatprep.subr.mxu0 0.0
        %3810 = vmatpush1.msra.mxu0 0.0
        %3811 = vmatprep.subr.mxu0 0.0
        %3812 = vmatpush1.msra.mxu0 0.0
        %3813 = vmatprep.subr.mxu0 0.0
        %3814 = vmatpush1.msra.mxu0 0.0
        %3815 = vmatprep.subr.mxu0 0.0
        %3816 = vmatpush1.msra.mxu0 0.0
        %3817 = vmatprep.subr.mxu0 0.0
        %3818 = vmatpush1.msra.mxu0 0.0
        %3819 = vmatprep.subr.mxu0 0.0
        %3820 = vmatpush1.msra.mxu0 0.0
        %3821 = vmatprep.subr.mxu0 0.0
        %3822 = vmatpush1.msra.mxu0 0.0
        %3823 = vmatprep.subr.mxu0 0.0
        %3824 = vmatpush1.msra.mxu0 0.0
        %3825 = vmatprep.subr.mxu0 0.0
        %3826 = vmatpush1.msra.mxu0 0.0
        %3827 = vmatprep.subr.mxu0 0.0
        %3828 = vmatpush1.msra.mxu0 0.0
        %3829 = vmatprep.subr.mxu0 0.0
        %3830 = vmatpush1.msra.mxu0 0.0
        %3831 = vmatprep.subr.mxu0 0.0
        %3832 = vmatpush1.msra.mxu0 0.0
        %3833 = vmatprep.subr.mxu0 0.0
        %3834 = vmatpush1.msra.mxu0 0.0
        %3835 = vmatprep.subr.mxu0 0.0
        %3836 = vmatpush1.msra.mxu0 0.0
        %3837 = vmatprep.subr.mxu0 0.0
        %3838 = vmatpush1.msra.mxu0 0.0
        %3839 = vmatprep.subr.mxu0 0.0
        %3840 = vmatpush1.msra.mxu0 0.0
        %3841 = vmatprep.subr.mxu0 0.0
        %3842 = vmatpush1.msra.mxu0 0.0
        %3843 = vmatprep.subr.mxu0 0.0
        %3844 = vmatpush1.msra.mxu0 0.0
        %3845 = vmatprep.subr.mxu0 0.0
        %3846 = vmatpush1.msra.mxu0 0.0
        %3847 = vmatprep.subr.mxu0 0.0
        %3848 = vmatpush1.msra.mxu0 0.0
        %3849 = vmatprep.subr.mxu0 0.0
        %3850 = vmatpush1.msra.mxu0 0.0
        %3851 = vmatprep.subr.mxu0 0.0
        %3852 = vmatpush1.msra.mxu0 0.0
        %3853 = vmatprep.subr.mxu0 0.0
        %3854 = vmatpush1.msra.mxu0 0.0
        %3855 = vmatprep.mubr.f32.mxu0 0.0
        %3856 = vmatmul.mubr.f32.gmra.mrb[0].mxu0 %v3786
        %v3857 = vpop.f32.mrb[0].mxu0
        %v3858 = vadd.f32 0.0, %v3857
        %v3859 = vpop.f32.mrb[0].mxu0
        %3860 = vmatprep.mubr.f32.mxu0 0.0
        %3861 = vmatmul.mubr.f32.gmra.mrb[0].mxu0 %v3789
        %v3862 = vpop.f32.mrb[0].mxu0
        %v3863 = vadd.f32 0.0, %v3862
        %v3864 = vpop.f32.mrb[0].mxu0
        %3865 = vdwg.mxu0
        %3866 = vrot.lane.b32.xlu0 %v495, 52
        %v3867 = vpop.permute.xlu0 %3866
        %3868 = vrot.lane.b32.xlu0 %v500, 52
        %v3869 = vpop.permute.xlu0 %3868
        %v3873 = vsel %vm880, %v3773, 0
        %v3876 = vsel %vm880, %v3774, 0
        %3878 = vmatprep.subr.mxu0 0.0
        %3879 = vmatpush1.msra.mxu0 %v3867
        %3880 = vmatprep.subr.mxu0 0.0
        %3881 = vmatpush1.msra.mxu0 %v3869
        %3882 = vmatprep.subr.mxu0 0.0
        %3883 = vmatpush1.msra.mxu0 0.0
        %3884 = vmatprep.subr.mxu0 0.0
        %3885 = vmatpush1.msra.mxu0 0.0
        %3886 = vmatprep.subr.mxu0 0.0
        %3887 = vmatpush1.msra.mxu0 0.0
        %3888 = vmatprep.subr.mxu0 0.0
        %3889 = vmatpush1.msra.mxu0 0.0
        %3890 = vmatprep.subr.mxu0 0.0
        %3891 = vmatpush1.msra.mxu0 0.0
        %3892 = vmatprep.subr.mxu0 0.0
        %3893 = vmatpush1.msra.mxu0 0.0
        %3894 = vmatprep.subr.mxu0 0.0
        %3895 = vmatpush1.msra.mxu0 0.0
        %3896 = vmatprep.subr.mxu0 0.0
        %3897 = vmatpush1.msra.mxu0 0.0
        %3898 = vmatprep.subr.mxu0 0.0
        %3899 = vmatpush1.msra.mxu0 0.0
        %3900 = vmatprep.subr.mxu0 0.0
        %3901 = vmatpush1.msra.mxu0 0.0
        %3902 = vmatprep.subr.mxu0 0.0
        %3903 = vmatpush1.msra.mxu0 0.0
        %3904 = vmatprep.subr.mxu0 0.0
        %3905 = vmatpush1.msra.mxu0 0.0
        %3906 = vmatprep.subr.mxu0 0.0
        %3907 = vmatpush1.msra.mxu0 0.0
        %3908 = vmatprep.subr.mxu0 0.0
        %3909 = vmatpush1.msra.mxu0 0.0
        %3910 = vmatprep.subr.mxu0 0.0
        %3911 = vmatpush1.msra.mxu0 0.0
        %3912 = vmatprep.subr.mxu0 0.0
        %3913 = vmatpush1.msra.mxu0 0.0
        %3914 = vmatprep.subr.mxu0 0.0
        %3915 = vmatpush1.msra.mxu0 0.0
        %3916 = vmatprep.subr.mxu0 0.0
        %3917 = vmatpush1.msra.mxu0 0.0
        %3918 = vmatprep.subr.mxu0 0.0
        %3919 = vmatpush1.msra.mxu0 0.0
        %3920 = vmatprep.subr.mxu0 0.0
        %3921 = vmatpush1.msra.mxu0 0.0
        %3922 = vmatprep.subr.mxu0 0.0
        %3923 = vmatpush1.msra.mxu0 0.0
        %3924 = vmatprep.subr.mxu0 0.0
        %3925 = vmatpush1.msra.mxu0 0.0
        %3926 = vmatprep.subr.mxu0 0.0
        %3927 = vmatpush1.msra.mxu0 0.0
        %3928 = vmatprep.subr.mxu0 0.0
        %3929 = vmatpush1.msra.mxu0 0.0
        %3930 = vmatprep.subr.mxu0 0.0
        %3931 = vmatpush1.msra.mxu0 0.0
        %3932 = vmatprep.subr.mxu0 0.0
        %3933 = vmatpush1.msra.mxu0 0.0
        %3934 = vmatprep.subr.mxu0 0.0
        %3935 = vmatpush1.msra.mxu0 0.0
        %3936 = vmatprep.subr.mxu0 0.0
        %3937 = vmatpush1.msra.mxu0 0.0
        %3938 = vmatprep.subr.mxu0 0.0
        %3939 = vmatpush1.msra.mxu0 0.0
        %3940 = vmatprep.subr.mxu0 0.0
        %3941 = vmatpush1.msra.mxu0 0.0
        %3942 = vmatprep.mubr.f32.mxu0 0.0
        %3943 = vmatmul.mubr.f32.gmra.mrb[0].mxu0 %v3873
        %v3944 = vpop.f32.mrb[0].mxu0
        %v3945 = vadd.f32 0.0, %v3944
        %v3946 = vpop.f32.mrb[0].mxu0
        %3947 = vmatprep.mubr.f32.mxu0 0.0
        %3948 = vmatmul.mubr.f32.gmra.mrb[0].mxu0 %v3876
        %v3949 = vpop.f32.mrb[0].mxu0
        %v3950 = vadd.f32 0.0, %v3949
        %v3951 = vpop.f32.mrb[0].mxu0
        %3952 = vdwg.mxu0
        %3953 = vrot.lane.b32.xlu0 %v505, 52
        %v3954 = vpop.permute.xlu0 %3953
        %3955 = vrot.lane.b32.xlu0 %v510, 52
        %v3956 = vpop.permute.xlu0 %3955
        %v3960 = vsel %vm880, %v3775, 0
        %v3963 = vsel %vm880, %v3776, 0
        %3965 = vmatprep.subr.mxu0 0.0
        %3966 = vmatpush1.msra.mxu0 %v3954
        %3967 = vmatprep.subr.mxu0 0.0
        %3968 = vmatpush1.msra.mxu0 %v3956
        %3969 = vmatprep.subr.mxu0 0.0
        %3970 = vmatpush1.msra.mxu0 0.0
        %3971 = vmatprep.subr.mxu0 0.0
        %3972 = vmatpush1.msra.mxu0 0.0
        %3973 = vmatprep.subr.mxu0 0.0
        %3974 = vmatpush1.msra.mxu0 0.0
        %3975 = vmatprep.subr.mxu0 0.0
        %3976 = vmatpush1.msra.mxu0 0.0
        %3977 = vmatprep.subr.mxu0 0.0
        %3978 = vmatpush1.msra.mxu0 0.0
        %3979 = vmatprep.subr.mxu0 0.0
        %3980 = vmatpush1.msra.mxu0 0.0
        %3981 = vmatprep.subr.mxu0 0.0
        %3982 = vmatpush1.msra.mxu0 0.0
        %3983 = vmatprep.subr.mxu0 0.0
        %3984 = vmatpush1.msra.mxu0 0.0
        %3985 = vmatprep.subr.mxu0 0.0
        %3986 = vmatpush1.msra.mxu0 0.0
        %3987 = vmatprep.subr.mxu0 0.0
        %3988 = vmatpush1.msra.mxu0 0.0
        %3989 = vmatprep.subr.mxu0 0.0
        %3990 = vmatpush1.msra.mxu0 0.0
        %3991 = vmatprep.subr.mxu0 0.0
        %3992 = vmatpush1.msra.mxu0 0.0
        %3993 = vmatprep.subr.mxu0 0.0
        %3994 = vmatpush1.msra.mxu0 0.0
        %3995 = vmatprep.subr.mxu0 0.0
        %3996 = vmatpush1.msra.mxu0 0.0
        %3997 = vmatprep.subr.mxu0 0.0
        %3998 = vmatpush1.msra.mxu0 0.0
        %3999 = vmatprep.subr.mxu0 0.0
        %4000 = vmatpush1.msra.mxu0 0.0
        %4001 = vmatprep.subr.mxu0 0.0
        %4002 = vmatpush1.msra.mxu0 0.0
        %4003 = vmatprep.subr.mxu0 0.0
        %4004 = vmatpush1.msra.mxu0 0.0
        %4005 = vmatprep.subr.mxu0 0.0
        %4006 = vmatpush1.msra.mxu0 0.0
        %4007 = vmatprep.subr.mxu0 0.0
        %4008 = vmatpush1.msra.mxu0 0.0
        %4009 = vmatprep.subr.mxu0 0.0
        %4010 = vmatpush1.msra.mxu0 0.0
        %4011 = vmatprep.subr.mxu0 0.0
        %4012 = vmatpush1.msra.mxu0 0.0
        %4013 = vmatprep.subr.mxu0 0.0
        %4014 = vmatpush1.msra.mxu0 0.0
        %4015 = vmatprep.subr.mxu0 0.0
        %4016 = vmatpush1.msra.mxu0 0.0
        %4017 = vmatprep.subr.mxu0 0.0
        %4018 = vmatpush1.msra.mxu0 0.0
        %4019 = vmatprep.subr.mxu0 0.0
        %4020 = vmatpush1.msra.mxu0 0.0
        %4021 = vmatprep.subr.mxu0 0.0
        %4022 = vmatpush1.msra.mxu0 0.0
        %4023 = vmatprep.subr.mxu0 0.0
        %4024 = vmatpush1.msra.mxu0 0.0
        %4025 = vmatprep.subr.mxu0 0.0
        %4026 = vmatpush1.msra.mxu0 0.0
        %4027 = vmatprep.subr.mxu0 0.0
        %4028 = vmatpush1.msra.mxu0 0.0
        %4029 = vmatprep.mubr.f32.mxu0 0.0
        %4030 = vmatmul.mubr.f32.gmra.mrb[0].mxu0 %v3960
        %v4031 = vpop.f32.mrb[0].mxu0
        %v4032 = vadd.f32 0.0, %v4031
        %v4033 = vpop.f32.mrb[0].mxu0
        %4034 = vmatprep.mubr.f32.mxu0 0.0
        %4035 = vmatmul.mubr.f32.gmra.mrb[0].mxu0 %v3963
        %v4036 = vpop.f32.mrb[0].mxu0
        %v4037 = vadd.f32 0.0, %v4036
        %v4038 = vpop.f32.mrb[0].mxu0
        %4039 = vdwg.mxu0
        %4040 = vrot.lane.b32.xlu0 %v515, 52
        %v4041 = vpop.permute.xlu0 %4040
        %4042 = vrot.lane.b32.xlu0 %v520, 52
        %v4043 = vpop.permute.xlu0 %4042
        %v4047 = vsel %vm880, %v3777, 0
        %v4050 = vsel %vm880, %v3778, 0
        %4052 = vmatprep.subr.mxu0 0.0
        %4053 = vmatpush1.msra.mxu0 %v4041
        %4054 = vmatprep.subr.mxu0 0.0
        %4055 = vmatpush1.msra.mxu0 %v4043
        %4056 = vmatprep.subr.mxu0 0.0
        %4057 = vmatpush1.msra.mxu0 0.0
        %4058 = vmatprep.subr.mxu0 0.0
        %4059 = vmatpush1.msra.mxu0 0.0
        %4060 = vmatprep.subr.mxu0 0.0
        %4061 = vmatpush1.msra.mxu0 0.0
        %4062 = vmatprep.subr.mxu0 0.0
        %4063 = vmatpush1.msra.mxu0 0.0
        %4064 = vmatprep.subr.mxu0 0.0
        %4065 = vmatpush1.msra.mxu0 0.0
        %4066 = vmatprep.subr.mxu0 0.0
        %4067 = vmatpush1.msra.mxu0 0.0
        %4068 = vmatprep.subr.mxu0 0.0
        %4069 = vmatpush1.msra.mxu0 0.0
        %4070 = vmatprep.subr.mxu0 0.0
        %4071 = vmatpush1.msra.mxu0 0.0
        %4072 = vmatprep.subr.mxu0 0.0
        %4073 = vmatpush1.msra.mxu0 0.0
        %4074 = vmatprep.subr.mxu0 0.0
        %4075 = vmatpush1.msra.mxu0 0.0
        %4076 = vmatprep.subr.mxu0 0.0
        %4077 = vmatpush1.msra.mxu0 0.0
        %4078 = vmatprep.subr.mxu0 0.0
        %4079 = vmatpush1.msra.mxu0 0.0
        %4080 = vmatprep.subr.mxu0 0.0
        %4081 = vmatpush1.msra.mxu0 0.0
        %4082 = vmatprep.subr.mxu0 0.0
        %4083 = vmatpush1.msra.mxu0 0.0
        %4084 = vmatprep.subr.mxu0 0.0
        %4085 = vmatpush1.msra.mxu0 0.0
        %4086 = vmatprep.subr.mxu0 0.0
        %4087 = vmatpush1.msra.mxu0 0.0
        %4088 = vmatprep.subr.mxu0 0.0
        %4089 = vmatpush1.msra.mxu0 0.0
        %4090 = vmatprep.subr.mxu0 0.0
        %4091 = vmatpush1.msra.mxu0 0.0
        %4092 = vmatprep.subr.mxu0 0.0
        %4093 = vmatpush1.msra.mxu0 0.0
        %4094 = vmatprep.subr.mxu0 0.0
        %4095 = vmatpush1.msra.mxu0 0.0
        %4096 = vmatprep.subr.mxu0 0.0
        %4097 = vmatpush1.msra.mxu0 0.0
        %4098 = vmatprep.subr.mxu0 0.0
        %4099 = vmatpush1.msra.mxu0 0.0
        %4100 = vmatprep.subr.mxu0 0.0
        %4101 = vmatpush1.msra.mxu0 0.0
        %4102 = vmatprep.subr.mxu0 0.0
        %4103 = vmatpush1.msra.mxu0 0.0
        %4104 = vmatprep.subr.mxu0 0.0
        %4105 = vmatpush1.msra.mxu0 0.0
        %4106 = vmatprep.subr.mxu0 0.0
        %4107 = vmatpush1.msra.mxu0 0.0
        %4108 = vmatprep.subr.mxu0 0.0
        %4109 = vmatpush1.msra.mxu0 0.0
        %4110 = vmatprep.subr.mxu0 0.0
        %4111 = vmatpush1.msra.mxu0 0.0
        %4112 = vmatprep.subr.mxu0 0.0
        %4113 = vmatpush1.msra.mxu0 0.0
        %4114 = vmatprep.subr.mxu0 0.0
        %4115 = vmatpush1.msra.mxu0 0.0
        %4116 = vmatprep.mubr.f32.mxu0 0.0
        %4117 = vmatmul.mubr.f32.gmra.mrb[0].mxu0 %v4047
        %v4118 = vpop.f32.mrb[0].mxu0
        %v4119 = vadd.f32 0.0, %v4118
        %v4120 = vpop.f32.mrb[0].mxu0
        %4121 = vmatprep.mubr.f32.mxu0 0.0
        %4122 = vmatmul.mubr.f32.gmra.mrb[0].mxu0 %v4050
        %v4123 = vpop.f32.mrb[0].mxu0
        %v4124 = vadd.f32 0.0, %v4123
        %v4125 = vpop.f32.mrb[0].mxu0
        %4126 = vdwg.mxu0
        %s4127 = scalar_lea.vmem %s3, 12
        %v4128 = vld [vmem:[%s4127] sm:$0xf]
        %v4130 = vsel %vm529, %v3858, 0
        %v4133 = vsel %vm529, %v3863, 0
        %v4136 = vsel %vm529, %v3945, 0
        %v4139 = vsel %vm529, %v3950, 0
        %v4142 = vsel %vm529, %v4032, 0
        %v4145 = vsel %vm529, %v4037, 0
        %v4148 = vsel %vm529, %v4119, 0
        %v4151 = vsel %vm529, %v4124, 0
        %v4154 = vsel %vm2144, %v4128, 0
        %4156 = vmatprep.subr.mxu0 0.0
        %4157 = vmatpush1.msra.mxu0 %v4154
        %4158 = vmatprep.subr.mxu0 0.0
        %4159 = vmatpush1.msra.mxu0 0.0
        %4160 = vmatprep.subr.mxu0 0.0
        %4161 = vmatpush1.msra.mxu0 0.0
        %4162 = vmatprep.subr.mxu0 0.0
        %4163 = vmatpush1.msra.mxu0 0.0
        %4164 = vmatprep.subr.mxu0 0.0
        %4165 = vmatpush1.msra.mxu0 0.0
        %4166 = vmatprep.subr.mxu0 0.0
        %4167 = vmatpush1.msra.mxu0 0.0
        %4168 = vmatprep.subr.mxu0 0.0
        %4169 = vmatpush1.msra.mxu0 0.0
        %4170 = vmatprep.subr.mxu0 0.0
        %4171 = vmatpush1.msra.mxu0 0.0
        %4172 = vmatprep.subr.mxu0 0.0
        %4173 = vmatpush1.msra.mxu0 0.0
        %4174 = vmatprep.subr.mxu0 0.0
        %4175 = vmatpush1.msra.mxu0 0.0
        %4176 = vmatprep.subr.mxu0 0.0
        %4177 = vmatpush1.msra.mxu0 0.0
        %4178 = vmatprep.subr.mxu0 0.0
        %4179 = vmatpush1.msra.mxu0 0.0
        %4180 = vmatprep.subr.mxu0 0.0
        %4181 = vmatpush1.msra.mxu0 0.0
        %4182 = vmatprep.subr.mxu0 0.0
        %4183 = vmatpush1.msra.mxu0 0.0
        %4184 = vmatprep.subr.mxu0 0.0
        %4185 = vmatpush1.msra.mxu0 0.0
        %4186 = vmatprep.subr.mxu0 0.0
        %4187 = vmatpush1.msra.mxu0 0.0
        %4188 = vmatprep.subr.mxu0 0.0
        %4189 = vmatpush1.msra.mxu0 0.0
        %4190 = vmatprep.subr.mxu0 0.0
        %4191 = vmatpush1.msra.mxu0 0.0
        %4192 = vmatprep.subr.mxu0 0.0
        %4193 = vmatpush1.msra.mxu0 0.0
        %4194 = vmatprep.subr.mxu0 0.0
        %4195 = vmatpush1.msra.mxu0 0.0
        %4196 = vmatprep.subr.mxu0 0.0
        %4197 = vmatpush1.msra.mxu0 0.0
        %4198 = vmatprep.subr.mxu0 0.0
        %4199 = vmatpush1.msra.mxu0 0.0
        %4200 = vmatprep.subr.mxu0 0.0
        %4201 = vmatpush1.msra.mxu0 0.0
        %4202 = vmatprep.subr.mxu0 0.0
        %4203 = vmatpush1.msra.mxu0 0.0
        %4204 = vmatprep.subr.mxu0 0.0
        %4205 = vmatpush1.msra.mxu0 0.0
        %4206 = vmatprep.subr.mxu0 0.0
        %4207 = vmatpush1.msra.mxu0 0.0
        %4208 = vmatprep.subr.mxu0 0.0
        %4209 = vmatpush1.msra.mxu0 0.0
        %4210 = vmatprep.subr.mxu0 0.0
        %4211 = vmatpush1.msra.mxu0 0.0
        %4212 = vmatprep.subr.mxu0 0.0
        %4213 = vmatpush1.msra.mxu0 0.0
        %4214 = vmatprep.subr.mxu0 0.0
        %4215 = vmatpush1.msra.mxu0 0.0
        %4216 = vmatprep.subr.mxu0 0.0
        %4217 = vmatpush1.msra.mxu0 0.0
        %4218 = vmatprep.subr.mxu0 0.0
        %4219 = vmatpush1.msra.mxu0 0.0
        %4220 = vmatprep.mubr.f32.mxu0 0.0
        %4221 = vmatmul.mubr.f32.gmra.mrb[0].mxu0 %v4130
        %v4222 = vpop.f32.mrb[0].mxu0
        %v4223 = vadd.f32 0.0, %v4222
        %v4224 = vpop.f32.mrb[0].mxu0
        %4225 = vmatprep.mubr.f32.mxu0 0.0
        %4226 = vmatmul.mubr.f32.gmra.mrb[0].mxu0 %v4133
        %v4227 = vpop.f32.mrb[0].mxu0
        %v4228 = vadd.f32 0.0, %v4227
        %v4229 = vpop.f32.mrb[0].mxu0
        %4230 = vmatprep.mubr.f32.mxu0 0.0
        %4231 = vmatmul.mubr.f32.gmra.mrb[0].mxu0 %v4136
        %v4232 = vpop.f32.mrb[0].mxu0
        %v4233 = vadd.f32 0.0, %v4232
        %v4234 = vpop.f32.mrb[0].mxu0
        %4235 = vmatprep.mubr.f32.mxu0 0.0
        %4236 = vmatmul.mubr.f32.gmra.mrb[0].mxu0 %v4139
        %v4237 = vpop.f32.mrb[0].mxu0
        %v4238 = vadd.f32 0.0, %v4237
        %v4239 = vpop.f32.mrb[0].mxu0
        %4240 = vmatprep.mubr.f32.mxu0 0.0
        %4241 = vmatmul.mubr.f32.gmra.mrb[0].mxu0 %v4142
        %v4242 = vpop.f32.mrb[0].mxu0
        %v4243 = vadd.f32 0.0, %v4242
        %v4244 = vpop.f32.mrb[0].mxu0
        %4245 = vmatprep.mubr.f32.mxu0 0.0
        %4246 = vmatmul.mubr.f32.gmra.mrb[0].mxu0 %v4145
        %v4247 = vpop.f32.mrb[0].mxu0
        %v4248 = vadd.f32 0.0, %v4247
        %v4249 = vpop.f32.mrb[0].mxu0
        %4250 = vmatprep.mubr.f32.mxu0 0.0
        %4251 = vmatmul.mubr.f32.gmra.mrb[0].mxu0 %v4148
        %v4252 = vpop.f32.mrb[0].mxu0
        %v4253 = vadd.f32 0.0, %v4252
        %v4254 = vpop.f32.mrb[0].mxu0
        %4255 = vmatprep.mubr.f32.mxu0 0.0
        %4256 = vmatmul.mubr.f32.gmra.mrb[0].mxu0 %v4151
        %v4257 = vpop.f32.mrb[0].mxu0
        %v4258 = vadd.f32 0.0, %v4257
        %v4259 = vpop.f32.mrb[0].mxu0
        %4260 = vdwg.mxu0
        %v4261 = vadd.f32 %v3319, %v4223
        %v4262 = vadd.f32 %v3320, %v4228
        %v4263 = vadd.f32 %v3321, %v4233
        %v4264 = vadd.f32 %v3322, %v4238
        %v4265 = vadd.f32 %v3323, %v4243
        %v4266 = vadd.f32 %v3324, %v4248
        %v4267 = vadd.f32 %v3325, %v4253
        %v4268 = vadd.f32 %v3326, %v4258
        %4269 = vrot.lane.b32.xlu0 %v485, 112
        %v4270 = vpop.permute.xlu0 %4269
        %4271 = vrot.lane.b32.xlu0 %v490, 112
        %v4272 = vpop.permute.xlu0 %4271
        %4273 = vrot.lane.b32.xlu0 %v485, 80
        %v4274 = vpop.permute.xlu0 %4273
        %4275 = vrot.lane.b32.xlu0 %v490, 80
        %v4276 = vpop.permute.xlu0 %4275
        %v4277 = vsel %vm529, %v4270, 0
        %v4279 = vsel %vm529, %v4272, 0
        %v4281 = vsel %vm529, %v4274, 0
        %v4283 = vsel %vm529, %v4276, 0
        %4285 = vmatprep.subr.mxu0 0.0
        %4286 = vmatpush1.xpose.msra.mxu0 %v4281
        %4287 = vmatprep.subr.mxu0 0.0
        %4288 = vmatpush1.xpose.msra.mxu0 %v4283
        %4289 = vmatprep.subr.mxu0 0.0
        %4290 = vmatpush1.xpose.msra.mxu0 0.0
        %4291 = vmatprep.subr.mxu0 0.0
        %4292 = vmatpush1.xpose.msra.mxu0 0.0
        %4293 = vmatprep.subr.mxu0 0.0
        %4294 = vmatpush1.xpose.msra.mxu0 0.0
        %4295 = vmatprep.subr.mxu0 0.0
        %4296 = vmatpush1.xpose.msra.mxu0 0.0
        %4297 = vmatprep.subr.mxu0 0.0
        %4298 = vmatpush1.xpose.msra.mxu0 0.0
        %4299 = vmatprep.subr.mxu0 0.0
        %4300 = vmatpush1.xpose.msra.mxu0 0.0
        %4301 = vmatprep.subr.mxu0 0.0
        %4302 = vmatpush1.xpose.msra.mxu0 0.0
        %4303 = vmatprep.subr.mxu0 0.0
        %4304 = vmatpush1.xpose.msra.mxu0 0.0
        %4305 = vmatprep.subr.mxu0 0.0
        %4306 = vmatpush1.xpose.msra.mxu0 0.0
        %4307 = vmatprep.subr.mxu0 0.0
        %4308 = vmatpush1.xpose.msra.mxu0 0.0
        %4309 = vmatprep.subr.mxu0 0.0
        %4310 = vmatpush1.xpose.msra.mxu0 0.0
        %4311 = vmatprep.subr.mxu0 0.0
        %4312 = vmatpush1.xpose.msra.mxu0 0.0
        %4313 = vmatprep.subr.mxu0 0.0
        %4314 = vmatpush1.xpose.msra.mxu0 0.0
        %4315 = vmatprep.subr.mxu0 0.0
        %4316 = vmatpush1.xpose.msra.mxu0 0.0
        %4317 = vmatprep.subr.mxu0 0.0
        %4318 = vmatpush1.xpose.msra.mxu0 0.0
        %4319 = vmatprep.subr.mxu0 0.0
        %4320 = vmatpush1.xpose.msra.mxu0 0.0
        %4321 = vmatprep.subr.mxu0 0.0
        %4322 = vmatpush1.xpose.msra.mxu0 0.0
        %4323 = vmatprep.subr.mxu0 0.0
        %4324 = vmatpush1.xpose.msra.mxu0 0.0
        %4325 = vmatprep.subr.mxu0 0.0
        %4326 = vmatpush1.xpose.msra.mxu0 0.0
        %4327 = vmatprep.subr.mxu0 0.0
        %4328 = vmatpush1.xpose.msra.mxu0 0.0
        %4329 = vmatprep.subr.mxu0 0.0
        %4330 = vmatpush1.xpose.msra.mxu0 0.0
        %4331 = vmatprep.subr.mxu0 0.0
        %4332 = vmatpush1.xpose.msra.mxu0 0.0
        %4333 = vmatprep.subr.mxu0 0.0
        %4334 = vmatpush1.xpose.msra.mxu0 0.0
        %4335 = vmatprep.subr.mxu0 0.0
        %4336 = vmatpush1.xpose.msra.mxu0 0.0
        %4337 = vmatprep.subr.mxu0 0.0
        %4338 = vmatpush1.xpose.msra.mxu0 0.0
        %4339 = vmatprep.subr.mxu0 0.0
        %4340 = vmatpush1.xpose.msra.mxu0 0.0
        %4341 = vmatprep.subr.mxu0 0.0
        %4342 = vmatpush1.xpose.msra.mxu0 0.0
        %4343 = vmatprep.subr.mxu0 0.0
        %4344 = vmatpush1.xpose.msra.mxu0 0.0
        %4345 = vmatprep.subr.mxu0 0.0
        %4346 = vmatpush1.xpose.msra.mxu0 0.0
        %4347 = vmatprep.subr.mxu0 0.0
        %4348 = vmatpush1.xpose.msra.mxu0 0.0
        %4349 = vmatprep.mubr.f32.mxu0 0.0
        %4350 = vmatmul.mubr.f32.gmra.mrb[0].mxu0 %v4277
        %v4351 = vpop.f32.mrb[0].mxu0
        %v4352 = vadd.f32 0.0, %v4351
        %v4353 = vpop.f32.mrb[0].mxu0
        %4354 = vmatprep.mubr.f32.mxu0 0.0
        %4355 = vmatmul.mubr.f32.gmra.mrb[0].mxu0 %v4279
        %v4356 = vpop.f32.mrb[0].mxu0
        %v4357 = vadd.f32 0.0, %v4356
        %v4358 = vpop.f32.mrb[0].mxu0
        %4359 = vdwg.mxu0
        %4360 = vrot.lane.b32.xlu0 %v495, 112
        %v4361 = vpop.permute.xlu0 %4360
        %4362 = vrot.lane.b32.xlu0 %v500, 112
        %v4363 = vpop.permute.xlu0 %4362
        %4364 = vrot.lane.b32.xlu0 %v495, 80
        %v4365 = vpop.permute.xlu0 %4364
        %4366 = vrot.lane.b32.xlu0 %v500, 80
        %v4367 = vpop.permute.xlu0 %4366
        %v4368 = vsel %vm529, %v4361, 0
        %v4370 = vsel %vm529, %v4363, 0
        %v4372 = vsel %vm529, %v4365, 0
        %v4374 = vsel %vm529, %v4367, 0
        %4376 = vmatprep.subr.mxu0 0.0
        %4377 = vmatpush1.xpose.msra.mxu0 %v4372
        %4378 = vmatprep.subr.mxu0 0.0
        %4379 = vmatpush1.xpose.msra.mxu0 %v4374
        %4380 = vmatprep.subr.mxu0 0.0
        %4381 = vmatpush1.xpose.msra.mxu0 0.0
        %4382 = vmatprep.subr.mxu0 0.0
        %4383 = vmatpush1.xpose.msra.mxu0 0.0
        %4384 = vmatprep.subr.mxu0 0.0
        %4385 = vmatpush1.xpose.msra.mxu0 0.0
        %4386 = vmatprep.subr.mxu0 0.0
        %4387 = vmatpush1.xpose.msra.mxu0 0.0
        %4388 = vmatprep.subr.mxu0 0.0
        %4389 = vmatpush1.xpose.msra.mxu0 0.0
        %4390 = vmatprep.subr.mxu0 0.0
        %4391 = vmatpush1.xpose.msra.mxu0 0.0
        %4392 = vmatprep.subr.mxu0 0.0
        %4393 = vmatpush1.xpose.msra.mxu0 0.0
        %4394 = vmatprep.subr.mxu0 0.0
        %4395 = vmatpush1.xpose.msra.mxu0 0.0
        %4396 = vmatprep.subr.mxu0 0.0
        %4397 = vmatpush1.xpose.msra.mxu0 0.0
        %4398 = vmatprep.subr.mxu0 0.0
        %4399 = vmatpush1.xpose.msra.mxu0 0.0
        %4400 = vmatprep.subr.mxu0 0.0
        %4401 = vmatpush1.xpose.msra.mxu0 0.0
        %4402 = vmatprep.subr.mxu0 0.0
        %4403 = vmatpush1.xpose.msra.mxu0 0.0
        %4404 = vmatprep.subr.mxu0 0.0
        %4405 = vmatpush1.xpose.msra.mxu0 0.0
        %4406 = vmatprep.subr.mxu0 0.0
        %4407 = vmatpush1.xpose.msra.mxu0 0.0
        %4408 = vmatprep.subr.mxu0 0.0
        %4409 = vmatpush1.xpose.msra.mxu0 0.0
        %4410 = vmatprep.subr.mxu0 0.0
        %4411 = vmatpush1.xpose.msra.mxu0 0.0
        %4412 = vmatprep.subr.mxu0 0.0
        %4413 = vmatpush1.xpose.msra.mxu0 0.0
        %4414 = vmatprep.subr.mxu0 0.0
        %4415 = vmatpush1.xpose.msra.mxu0 0.0
        %4416 = vmatprep.subr.mxu0 0.0
        %4417 = vmatpush1.xpose.msra.mxu0 0.0
        %4418 = vmatprep.subr.mxu0 0.0
        %4419 = vmatpush1.xpose.msra.mxu0 0.0
        %4420 = vmatprep.subr.mxu0 0.0
        %4421 = vmatpush1.xpose.msra.mxu0 0.0
        %4422 = vmatprep.subr.mxu0 0.0
        %4423 = vmatpush1.xpose.msra.mxu0 0.0
        %4424 = vmatprep.subr.mxu0 0.0
        %4425 = vmatpush1.xpose.msra.mxu0 0.0
        %4426 = vmatprep.subr.mxu0 0.0
        %4427 = vmatpush1.xpose.msra.mxu0 0.0
        %4428 = vmatprep.subr.mxu0 0.0
        %4429 = vmatpush1.xpose.msra.mxu0 0.0
        %4430 = vmatprep.subr.mxu0 0.0
        %4431 = vmatpush1.xpose.msra.mxu0 0.0
        %4432 = vmatprep.subr.mxu0 0.0
        %4433 = vmatpush1.xpose.msra.mxu0 0.0
        %4434 = vmatprep.subr.mxu0 0.0
        %4435 = vmatpush1.xpose.msra.mxu0 0.0
        %4436 = vmatprep.subr.mxu0 0.0
        %4437 = vmatpush1.xpose.msra.mxu0 0.0
        %4438 = vmatprep.subr.mxu0 0.0
        %4439 = vmatpush1.xpose.msra.mxu0 0.0
        %4440 = vmatprep.mubr.f32.mxu0 0.0
        %4441 = vmatmul.mubr.f32.gmra.mrb[0].mxu0 %v4368
        %v4442 = vpop.f32.mrb[0].mxu0
        %v4443 = vadd.f32 0.0, %v4442
        %v4444 = vpop.f32.mrb[0].mxu0
        %4445 = vmatprep.mubr.f32.mxu0 0.0
        %4446 = vmatmul.mubr.f32.gmra.mrb[0].mxu0 %v4370
        %v4447 = vpop.f32.mrb[0].mxu0
        %v4448 = vadd.f32 0.0, %v4447
        %v4449 = vpop.f32.mrb[0].mxu0
        %4450 = vdwg.mxu0
        %4451 = vrot.lane.b32.xlu0 %v505, 112
        %v4452 = vpop.permute.xlu0 %4451
        %4453 = vrot.lane.b32.xlu0 %v510, 112
        %v4454 = vpop.permute.xlu0 %4453
        %4455 = vrot.lane.b32.xlu0 %v505, 80
        %v4456 = vpop.permute.xlu0 %4455
        %4457 = vrot.lane.b32.xlu0 %v510, 80
        %v4458 = vpop.permute.xlu0 %4457
        %v4459 = vsel %vm529, %v4452, 0
        %v4461 = vsel %vm529, %v4454, 0
        %v4463 = vsel %vm529, %v4456, 0
        %v4465 = vsel %vm529, %v4458, 0
        %4467 = vmatprep.subr.mxu0 0.0
        %4468 = vmatpush1.xpose.msra.mxu0 %v4463
        %4469 = vmatprep.subr.mxu0 0.0
        %4470 = vmatpush1.xpose.msra.mxu0 %v4465
        %4471 = vmatprep.subr.mxu0 0.0
        %4472 = vmatpush1.xpose.msra.mxu0 0.0
        %4473 = vmatprep.subr.mxu0 0.0
        %4474 = vmatpush1.xpose.msra.mxu0 0.0
        %4475 = vmatprep.subr.mxu0 0.0
        %4476 = vmatpush1.xpose.msra.mxu0 0.0
        %4477 = vmatprep.subr.mxu0 0.0
        %4478 = vmatpush1.xpose.msra.mxu0 0.0
        %4479 = vmatprep.subr.mxu0 0.0
        %4480 = vmatpush1.xpose.msra.mxu0 0.0
        %4481 = vmatprep.subr.mxu0 0.0
        %4482 = vmatpush1.xpose.msra.mxu0 0.0
        %4483 = vmatprep.subr.mxu0 0.0
        %4484 = vmatpush1.xpose.msra.mxu0 0.0
        %4485 = vmatprep.subr.mxu0 0.0
        %4486 = vmatpush1.xpose.msra.mxu0 0.0
        %4487 = vmatprep.subr.mxu0 0.0
        %4488 = vmatpush1.xpose.msra.mxu0 0.0
        %4489 = vmatprep.subr.mxu0 0.0
        %4490 = vmatpush1.xpose.msra.mxu0 0.0
        %4491 = vmatprep.subr.mxu0 0.0
        %4492 = vmatpush1.xpose.msra.mxu0 0.0
        %4493 = vmatprep.subr.mxu0 0.0
        %4494 = vmatpush1.xpose.msra.mxu0 0.0
        %4495 = vmatprep.subr.mxu0 0.0
        %4496 = vmatpush1.xpose.msra.mxu0 0.0
        %4497 = vmatprep.subr.mxu0 0.0
        %4498 = vmatpush1.xpose.msra.mxu0 0.0
        %4499 = vmatprep.subr.mxu0 0.0
        %4500 = vmatpush1.xpose.msra.mxu0 0.0
        %4501 = vmatprep.subr.mxu0 0.0
        %4502 = vmatpush1.xpose.msra.mxu0 0.0
        %4503 = vmatprep.subr.mxu0 0.0
        %4504 = vmatpush1.xpose.msra.mxu0 0.0
        %4505 = vmatprep.subr.mxu0 0.0
        %4506 = vmatpush1.xpose.msra.mxu0 0.0
        %4507 = vmatprep.subr.mxu0 0.0
        %4508 = vmatpush1.xpose.msra.mxu0 0.0
        %4509 = vmatprep.subr.mxu0 0.0
        %4510 = vmatpush1.xpose.msra.mxu0 0.0
        %4511 = vmatprep.subr.mxu0 0.0
        %4512 = vmatpush1.xpose.msra.mxu0 0.0
        %4513 = vmatprep.subr.mxu0 0.0
        %4514 = vmatpush1.xpose.msra.mxu0 0.0
        %4515 = vmatprep.subr.mxu0 0.0
        %4516 = vmatpush1.xpose.msra.mxu0 0.0
        %4517 = vmatprep.subr.mxu0 0.0
        %4518 = vmatpush1.xpose.msra.mxu0 0.0
        %4519 = vmatprep.subr.mxu0 0.0
        %4520 = vmatpush1.xpose.msra.mxu0 0.0
        %4521 = vmatprep.subr.mxu0 0.0
        %4522 = vmatpush1.xpose.msra.mxu0 0.0
        %4523 = vmatprep.subr.mxu0 0.0
        %4524 = vmatpush1.xpose.msra.mxu0 0.0
        %4525 = vmatprep.subr.mxu0 0.0
        %4526 = vmatpush1.xpose.msra.mxu0 0.0
        %4527 = vmatprep.subr.mxu0 0.0
        %4528 = vmatpush1.xpose.msra.mxu0 0.0
        %4529 = vmatprep.subr.mxu0 0.0
        %4530 = vmatpush1.xpose.msra.mxu0 0.0
        %4531 = vmatprep.mubr.f32.mxu0 0.0
        %4532 = vmatmul.mubr.f32.gmra.mrb[0].mxu0 %v4459
        %v4533 = vpop.f32.mrb[0].mxu0
        %v4534 = vadd.f32 0.0, %v4533
        %v4535 = vpop.f32.mrb[0].mxu0
        %4536 = vmatprep.mubr.f32.mxu0 0.0
        %4537 = vmatmul.mubr.f32.gmra.mrb[0].mxu0 %v4461
        %v4538 = vpop.f32.mrb[0].mxu0
        %v4539 = vadd.f32 0.0, %v4538
        %v4540 = vpop.f32.mrb[0].mxu0
        %4541 = vdwg.mxu0
        %4542 = vrot.lane.b32.xlu0 %v515, 112
        %v4543 = vpop.permute.xlu0 %4542
        %4544 = vrot.lane.b32.xlu0 %v520, 112
        %v4545 = vpop.permute.xlu0 %4544
        %4546 = vrot.lane.b32.xlu0 %v515, 80
        %v4547 = vpop.permute.xlu0 %4546
        %4548 = vrot.lane.b32.xlu0 %v520, 80
        %v4549 = vpop.permute.xlu0 %4548
        %v4550 = vsel %vm529, %v4543, 0
        %v4552 = vsel %vm529, %v4545, 0
        %v4554 = vsel %vm529, %v4547, 0
        %v4556 = vsel %vm529, %v4549, 0
        %4558 = vmatprep.subr.mxu0 0.0
        %4559 = vmatpush1.xpose.msra.mxu0 %v4554
        %4560 = vmatprep.subr.mxu0 0.0
        %4561 = vmatpush1.xpose.msra.mxu0 %v4556
        %4562 = vmatprep.subr.mxu0 0.0
        %4563 = vmatpush1.xpose.msra.mxu0 0.0
        %4564 = vmatprep.subr.mxu0 0.0
        %4565 = vmatpush1.xpose.msra.mxu0 0.0
        %4566 = vmatprep.subr.mxu0 0.0
        %4567 = vmatpush1.xpose.msra.mxu0 0.0
        %4568 = vmatprep.subr.mxu0 0.0
        %4569 = vmatpush1.xpose.msra.mxu0 0.0
        %4570 = vmatprep.subr.mxu0 0.0
        %4571 = vmatpush1.xpose.msra.mxu0 0.0
        %4572 = vmatprep.subr.mxu0 0.0
        %4573 = vmatpush1.xpose.msra.mxu0 0.0
        %4574 = vmatprep.subr.mxu0 0.0
        %4575 = vmatpush1.xpose.msra.mxu0 0.0
        %4576 = vmatprep.subr.mxu0 0.0
        %4577 = vmatpush1.xpose.msra.mxu0 0.0
        %4578 = vmatprep.subr.mxu0 0.0
        %4579 = vmatpush1.xpose.msra.mxu0 0.0
        %4580 = vmatprep.subr.mxu0 0.0
        %4581 = vmatpush1.xpose.msra.mxu0 0.0
        %4582 = vmatprep.subr.mxu0 0.0
        %4583 = vmatpush1.xpose.msra.mxu0 0.0
        %4584 = vmatprep.subr.mxu0 0.0
        %4585 = vmatpush1.xpose.msra.mxu0 0.0
        %4586 = vmatprep.subr.mxu0 0.0
        %4587 = vmatpush1.xpose.msra.mxu0 0.0
        %4588 = vmatprep.subr.mxu0 0.0
        %4589 = vmatpush1.xpose.msra.mxu0 0.0
        %4590 = vmatprep.subr.mxu0 0.0
        %4591 = vmatpush1.xpose.msra.mxu0 0.0
        %4592 = vmatprep.subr.mxu0 0.0
        %4593 = vmatpush1.xpose.msra.mxu0 0.0
        %4594 = vmatprep.subr.mxu0 0.0
        %4595 = vmatpush1.xpose.msra.mxu0 0.0
        %4596 = vmatprep.subr.mxu0 0.0
        %4597 = vmatpush1.xpose.msra.mxu0 0.0
        %4598 = vmatprep.subr.mxu0 0.0
        %4599 = vmatpush1.xpose.msra.mxu0 0.0
        %4600 = vmatprep.subr.mxu0 0.0
        %4601 = vmatpush1.xpose.msra.mxu0 0.0
        %4602 = vmatprep.subr.mxu0 0.0
        %4603 = vmatpush1.xpose.msra.mxu0 0.0
        %4604 = vmatprep.subr.mxu0 0.0
        %4605 = vmatpush1.xpose.msra.mxu0 0.0
        %4606 = vmatprep.subr.mxu0 0.0
        %4607 = vmatpush1.xpose.msra.mxu0 0.0
        %4608 = vmatprep.subr.mxu0 0.0
        %4609 = vmatpush1.xpose.msra.mxu0 0.0
        %4610 = vmatprep.subr.mxu0 0.0
        %4611 = vmatpush1.xpose.msra.mxu0 0.0
        %4612 = vmatprep.subr.mxu0 0.0
        %4613 = vmatpush1.xpose.msra.mxu0 0.0
        %4614 = vmatprep.subr.mxu0 0.0
        %4615 = vmatpush1.xpose.msra.mxu0 0.0
        %4616 = vmatprep.subr.mxu0 0.0
        %4617 = vmatpush1.xpose.msra.mxu0 0.0
        %4618 = vmatprep.subr.mxu0 0.0
        %4619 = vmatpush1.xpose.msra.mxu0 0.0
        %4620 = vmatprep.subr.mxu0 0.0
        %4621 = vmatpush1.xpose.msra.mxu0 0.0
        %4622 = vmatprep.mubr.f32.mxu0 0.0
        %4623 = vmatmul.mubr.f32.gmra.mrb[0].mxu0 %v4550
        %v4624 = vpop.f32.mrb[0].mxu0
        %v4625 = vadd.f32 0.0, %v4624
        %v4626 = vpop.f32.mrb[0].mxu0
        %4627 = vmatprep.mubr.f32.mxu0 0.0
        %4628 = vmatmul.mubr.f32.gmra.mrb[0].mxu0 %v4552
        %v4629 = vpop.f32.mrb[0].mxu0
        %v4630 = vadd.f32 0.0, %v4629
        %v4631 = vpop.f32.mrb[0].mxu0
        %4632 = vdwg.mxu0
        %v4633 = vsel %vm880, %v4352, -inf
        %4634 = vmax.xlane.f32.xlu0 %v4633
        %v4635 = vpop.xlane.xlu0 %4634
        %v4636 = vsel %vm880, %v4357, -inf
        %4637 = vmax.xlane.f32.xlu0 %v4636
        %v4638 = vpop.xlane.xlu0 %4637
        %v4639 = vsel %vm880, %v4443, -inf
        %4640 = vmax.xlane.f32.xlu0 %v4639
        %v4641 = vpop.xlane.xlu0 %4640
        %v4642 = vsel %vm880, %v4448, -inf
        %4643 = vmax.xlane.f32.xlu0 %v4642
        %v4644 = vpop.xlane.xlu0 %4643
        %v4645 = vsel %vm880, %v4534, -inf
        %4646 = vmax.xlane.f32.xlu0 %v4645
        %v4647 = vpop.xlane.xlu0 %4646
        %v4648 = vsel %vm880, %v4539, -inf
        %4649 = vmax.xlane.f32.xlu0 %v4648
        %v4650 = vpop.xlane.xlu0 %4649
        %v4651 = vsel %vm880, %v4625, -inf
        %4652 = vmax.xlane.f32.xlu0 %v4651
        %v4653 = vpop.xlane.xlu0 %4652
        %v4654 = vsel %vm880, %v4630, -inf
        %4655 = vmax.xlane.f32.xlu0 %v4654
        %v4656 = vpop.xlane.xlu0 %4655
        %v4657 = vsub.f32 %v4352, %v4635
        %v4658 = vsub.f32 %v4357, %v4638
        %v4659 = vsub.f32 %v4443, %v4641
        %v4660 = vsub.f32 %v4448, %v4644
        %v4661 = vsub.f32 %v4534, %v4647
        %v4662 = vsub.f32 %v4539, %v4650
        %v4663 = vsub.f32 %v4625, %v4653
        %v4664 = vsub.f32 %v4630, %v4656
        %v4665 = vmul.f32 %v4657, 1.442695
        %v4666 = vpow.pop %v4665
        %v4667 = vmul.f32 %v4658, 1.442695
        %v4668 = vpow.pop %v4667
        %v4669 = vmul.f32 %v4659, 1.442695
        %v4670 = vpow.pop %v4669
        %v4671 = vmul.f32 %v4660, 1.442695
        %v4672 = vpow.pop %v4671
        %v4673 = vmul.f32 %v4661, 1.442695
        %v4674 = vpow.pop %v4673
        %v4675 = vmul.f32 %v4662, 1.442695
        %v4676 = vpow.pop %v4675
        %v4677 = vmul.f32 %v4663, 1.442695
        %v4678 = vpow.pop %v4677
        %v4679 = vmul.f32 %v4664, 1.442695
        %v4680 = vpow.pop %v4679
        %v4681 = vsel %vm880, %v4666, 0.0
        %4682 = vadd.xlane.f32.xlu0 %v4681
        %v4683 = vpop.xlane.xlu0 %4682
        %v4684 = vsel %vm880, %v4668, 0.0
        %4685 = vadd.xlane.f32.xlu0 %v4684
        %v4686 = vpop.xlane.xlu0 %4685
        %v4687 = vsel %vm880, %v4670, 0.0
        %4688 = vadd.xlane.f32.xlu0 %v4687
        %v4689 = vpop.xlane.xlu0 %4688
        %v4690 = vsel %vm880, %v4672, 0.0
        %4691 = vadd.xlane.f32.xlu0 %v4690
        %v4692 = vpop.xlane.xlu0 %4691
        %v4693 = vsel %vm880, %v4674, 0.0
        %4694 = vadd.xlane.f32.xlu0 %v4693
        %v4695 = vpop.xlane.xlu0 %4694
        %v4696 = vsel %vm880, %v4676, 0.0
        %4697 = vadd.xlane.f32.xlu0 %v4696
        %v4698 = vpop.xlane.xlu0 %4697
        %v4699 = vsel %vm880, %v4678, 0.0
        %4700 = vadd.xlane.f32.xlu0 %v4699
        %v4701 = vpop.xlane.xlu0 %4700
        %v4702 = vsel %vm880, %v4680, 0.0
        %4703 = vadd.xlane.f32.xlu0 %v4702
        %v4704 = vpop.xlane.xlu0 %4703
        %v4705 = vrcp.pop %v4683
        %v4706 = vrcp.pop %v4686
        %v4707 = vrcp.pop %v4689
        %v4708 = vrcp.pop %v4692
        %v4709 = vrcp.pop %v4695
        %v4710 = vrcp.pop %v4698
        %v4711 = vrcp.pop %v4701
        %v4712 = vrcp.pop %v4704
        %v4713 = vmul.f32 %v4666, %v4705
        %v4714 = vmul.f32 %v4668, %v4706
        %v4715 = vmul.f32 %v4670, %v4707
        %v4716 = vmul.f32 %v4672, %v4708
        %v4717 = vmul.f32 %v4674, %v4709
        %v4718 = vmul.f32 %v4676, %v4710
        %v4719 = vmul.f32 %v4678, %v4711
        %v4720 = vmul.f32 %v4680, %v4712
        %4721 = vrot.lane.b32.xlu0 %v485, 48
        %v4722 = vpop.permute.xlu0 %4721
        %4723 = vrot.lane.b32.xlu0 %v490, 48
        %v4724 = vpop.permute.xlu0 %4723
        %v4728 = vsel %vm880, %v4713, 0
        %v4731 = vsel %vm880, %v4714, 0
        %4733 = vmatprep.subr.mxu0 0.0
        %4734 = vmatpush1.msra.mxu0 %v4722
        %4735 = vmatprep.subr.mxu0 0.0
        %4736 = vmatpush1.msra.mxu0 %v4724
        %4737 = vmatprep.subr.mxu0 0.0
        %4738 = vmatpush1.msra.mxu0 0.0
        %4739 = vmatprep.subr.mxu0 0.0
        %4740 = vmatpush1.msra.mxu0 0.0
        %4741 = vmatprep.subr.mxu0 0.0
        %4742 = vmatpush1.msra.mxu0 0.0
        %4743 = vmatprep.subr.mxu0 0.0
        %4744 = vmatpush1.msra.mxu0 0.0
        %4745 = vmatprep.subr.mxu0 0.0
        %4746 = vmatpush1.msra.mxu0 0.0
        %4747 = vmatprep.subr.mxu0 0.0
        %4748 = vmatpush1.msra.mxu0 0.0
        %4749 = vmatprep.subr.mxu0 0.0
        %4750 = vmatpush1.msra.mxu0 0.0
        %4751 = vmatprep.subr.mxu0 0.0
        %4752 = vmatpush1.msra.mxu0 0.0
        %4753 = vmatprep.subr.mxu0 0.0
        %4754 = vmatpush1.msra.mxu0 0.0
        %4755 = vmatprep.subr.mxu0 0.0
        %4756 = vmatpush1.msra.mxu0 0.0
        %4757 = vmatprep.subr.mxu0 0.0
        %4758 = vmatpush1.msra.mxu0 0.0
        %4759 = vmatprep.subr.mxu0 0.0
        %4760 = vmatpush1.msra.mxu0 0.0
        %4761 = vmatprep.subr.mxu0 0.0
        %4762 = vmatpush1.msra.mxu0 0.0
        %4763 = vmatprep.subr.mxu0 0.0
        %4764 = vmatpush1.msra.mxu0 0.0
        %4765 = vmatprep.subr.mxu0 0.0
        %4766 = vmatpush1.msra.mxu0 0.0
        %4767 = vmatprep.subr.mxu0 0.0
        %4768 = vmatpush1.msra.mxu0 0.0
        %4769 = vmatprep.subr.mxu0 0.0
        %4770 = vmatpush1.msra.mxu0 0.0
        %4771 = vmatprep.subr.mxu0 0.0
        %4772 = vmatpush1.msra.mxu0 0.0
        %4773 = vmatprep.subr.mxu0 0.0
        %4774 = vmatpush1.msra.mxu0 0.0
        %4775 = vmatprep.subr.mxu0 0.0
        %4776 = vmatpush1.msra.mxu0 0.0
        %4777 = vmatprep.subr.mxu0 0.0
        %4778 = vmatpush1.msra.mxu0 0.0
        %4779 = vmatprep.subr.mxu0 0.0
        %4780 = vmatpush1.msra.mxu0 0.0
        %4781 = vmatprep.subr.mxu0 0.0
        %4782 = vmatpush1.msra.mxu0 0.0
        %4783 = vmatprep.subr.mxu0 0.0
        %4784 = vmatpush1.msra.mxu0 0.0
        %4785 = vmatprep.subr.mxu0 0.0
        %4786 = vmatpush1.msra.mxu0 0.0
        %4787 = vmatprep.subr.mxu0 0.0
        %4788 = vmatpush1.msra.mxu0 0.0
        %4789 = vmatprep.subr.mxu0 0.0
        %4790 = vmatpush1.msra.mxu0 0.0
        %4791 = vmatprep.subr.mxu0 0.0
        %4792 = vmatpush1.msra.mxu0 0.0
        %4793 = vmatprep.subr.mxu0 0.0
        %4794 = vmatpush1.msra.mxu0 0.0
        %4795 = vmatprep.subr.mxu0 0.0
        %4796 = vmatpush1.msra.mxu0 0.0
        %4797 = vmatprep.mubr.f32.mxu0 0.0
        %4798 = vmatmul.mubr.f32.gmra.mrb[0].mxu0 %v4728
        %v4799 = vpop.f32.mrb[0].mxu0
        %v4800 = vadd.f32 0.0, %v4799
        %v4801 = vpop.f32.mrb[0].mxu0
        %4802 = vmatprep.mubr.f32.mxu0 0.0
        %4803 = vmatmul.mubr.f32.gmra.mrb[0].mxu0 %v4731
        %v4804 = vpop.f32.mrb[0].mxu0
        %v4805 = vadd.f32 0.0, %v4804
        %v4806 = vpop.f32.mrb[0].mxu0
        %4807 = vdwg.mxu0
        %4808 = vrot.lane.b32.xlu0 %v495, 48
        %v4809 = vpop.permute.xlu0 %4808
        %4810 = vrot.lane.b32.xlu0 %v500, 48
        %v4811 = vpop.permute.xlu0 %4810
        %v4815 = vsel %vm880, %v4715, 0
        %v4818 = vsel %vm880, %v4716, 0
        %4820 = vmatprep.subr.mxu0 0.0
        %4821 = vmatpush1.msra.mxu0 %v4809
        %4822 = vmatprep.subr.mxu0 0.0
        %4823 = vmatpush1.msra.mxu0 %v4811
        %4824 = vmatprep.subr.mxu0 0.0
        %4825 = vmatpush1.msra.mxu0 0.0
        %4826 = vmatprep.subr.mxu0 0.0
        %4827 = vmatpush1.msra.mxu0 0.0
        %4828 = vmatprep.subr.mxu0 0.0
        %4829 = vmatpush1.msra.mxu0 0.0
        %4830 = vmatprep.subr.mxu0 0.0
        %4831 = vmatpush1.msra.mxu0 0.0
        %4832 = vmatprep.subr.mxu0 0.0
        %4833 = vmatpush1.msra.mxu0 0.0
        %4834 = vmatprep.subr.mxu0 0.0
        %4835 = vmatpush1.msra.mxu0 0.0
        %4836 = vmatprep.subr.mxu0 0.0
        %4837 = vmatpush1.msra.mxu0 0.0
        %4838 = vmatprep.subr.mxu0 0.0
        %4839 = vmatpush1.msra.mxu0 0.0
        %4840 = vmatprep.subr.mxu0 0.0
        %4841 = vmatpush1.msra.mxu0 0.0
        %4842 = vmatprep.subr.mxu0 0.0
        %4843 = vmatpush1.msra.mxu0 0.0
        %4844 = vmatprep.subr.mxu0 0.0
        %4845 = vmatpush1.msra.mxu0 0.0
        %4846 = vmatprep.subr.mxu0 0.0
        %4847 = vmatpush1.msra.mxu0 0.0
        %4848 = vmatprep.subr.mxu0 0.0
        %4849 = vmatpush1.msra.mxu0 0.0
        %4850 = vmatprep.subr.mxu0 0.0
        %4851 = vmatpush1.msra.mxu0 0.0
        %4852 = vmatprep.subr.mxu0 0.0
        %4853 = vmatpush1.msra.mxu0 0.0
        %4854 = vmatprep.subr.mxu0 0.0
        %4855 = vmatpush1.msra.mxu0 0.0
        %4856 = vmatprep.subr.mxu0 0.0
        %4857 = vmatpush1.msra.mxu0 0.0
        %4858 = vmatprep.subr.mxu0 0.0
        %4859 = vmatpush1.msra.mxu0 0.0
        %4860 = vmatprep.subr.mxu0 0.0
        %4861 = vmatpush1.msra.mxu0 0.0
        %4862 = vmatprep.subr.mxu0 0.0
        %4863 = vmatpush1.msra.mxu0 0.0
        %4864 = vmatprep.subr.mxu0 0.0
        %4865 = vmatpush1.msra.mxu0 0.0
        %4866 = vmatprep.subr.mxu0 0.0
        %4867 = vmatpush1.msra.mxu0 0.0
        %4868 = vmatprep.subr.mxu0 0.0
        %4869 = vmatpush1.msra.mxu0 0.0
        %4870 = vmatprep.subr.mxu0 0.0
        %4871 = vmatpush1.msra.mxu0 0.0
        %4872 = vmatprep.subr.mxu0 0.0
        %4873 = vmatpush1.msra.mxu0 0.0
        %4874 = vmatprep.subr.mxu0 0.0
        %4875 = vmatpush1.msra.mxu0 0.0
        %4876 = vmatprep.subr.mxu0 0.0
        %4877 = vmatpush1.msra.mxu0 0.0
        %4878 = vmatprep.subr.mxu0 0.0
        %4879 = vmatpush1.msra.mxu0 0.0
        %4880 = vmatprep.subr.mxu0 0.0
        %4881 = vmatpush1.msra.mxu0 0.0
        %4882 = vmatprep.subr.mxu0 0.0
        %4883 = vmatpush1.msra.mxu0 0.0
        %4884 = vmatprep.mubr.f32.mxu0 0.0
        %4885 = vmatmul.mubr.f32.gmra.mrb[0].mxu0 %v4815
        %v4886 = vpop.f32.mrb[0].mxu0
        %v4887 = vadd.f32 0.0, %v4886
        %v4888 = vpop.f32.mrb[0].mxu0
        %4889 = vmatprep.mubr.f32.mxu0 0.0
        %4890 = vmatmul.mubr.f32.gmra.mrb[0].mxu0 %v4818
        %v4891 = vpop.f32.mrb[0].mxu0
        %v4892 = vadd.f32 0.0, %v4891
        %v4893 = vpop.f32.mrb[0].mxu0
        %4894 = vdwg.mxu0
        %4895 = vrot.lane.b32.xlu0 %v505, 48
        %v4896 = vpop.permute.xlu0 %4895
        %4897 = vrot.lane.b32.xlu0 %v510, 48
        %v4898 = vpop.permute.xlu0 %4897
        %v4902 = vsel %vm880, %v4717, 0
        %v4905 = vsel %vm880, %v4718, 0
        %4907 = vmatprep.subr.mxu0 0.0
        %4908 = vmatpush1.msra.mxu0 %v4896
        %4909 = vmatprep.subr.mxu0 0.0
        %4910 = vmatpush1.msra.mxu0 %v4898
        %4911 = vmatprep.subr.mxu0 0.0
        %4912 = vmatpush1.msra.mxu0 0.0
        %4913 = vmatprep.subr.mxu0 0.0
        %4914 = vmatpush1.msra.mxu0 0.0
        %4915 = vmatprep.subr.mxu0 0.0
        %4916 = vmatpush1.msra.mxu0 0.0
        %4917 = vmatprep.subr.mxu0 0.0
        %4918 = vmatpush1.msra.mxu0 0.0
        %4919 = vmatprep.subr.mxu0 0.0
        %4920 = vmatpush1.msra.mxu0 0.0
        %4921 = vmatprep.subr.mxu0 0.0
        %4922 = vmatpush1.msra.mxu0 0.0
        %4923 = vmatprep.subr.mxu0 0.0
        %4924 = vmatpush1.msra.mxu0 0.0
        %4925 = vmatprep.subr.mxu0 0.0
        %4926 = vmatpush1.msra.mxu0 0.0
        %4927 = vmatprep.subr.mxu0 0.0
        %4928 = vmatpush1.msra.mxu0 0.0
        %4929 = vmatprep.subr.mxu0 0.0
        %4930 = vmatpush1.msra.mxu0 0.0
        %4931 = vmatprep.subr.mxu0 0.0
        %4932 = vmatpush1.msra.mxu0 0.0
        %4933 = vmatprep.subr.mxu0 0.0
        %4934 = vmatpush1.msra.mxu0 0.0
        %4935 = vmatprep.subr.mxu0 0.0
        %4936 = vmatpush1.msra.mxu0 0.0
        %4937 = vmatprep.subr.mxu0 0.0
        %4938 = vmatpush1.msra.mxu0 0.0
        %4939 = vmatprep.subr.mxu0 0.0
        %4940 = vmatpush1.msra.mxu0 0.0
        %4941 = vmatprep.subr.mxu0 0.0
        %4942 = vmatpush1.msra.mxu0 0.0
        %4943 = vmatprep.subr.mxu0 0.0
        %4944 = vmatpush1.msra.mxu0 0.0
        %4945 = vmatprep.subr.mxu0 0.0
        %4946 = vmatpush1.msra.mxu0 0.0
        %4947 = vmatprep.subr.mxu0 0.0
        %4948 = vmatpush1.msra.mxu0 0.0
        %4949 = vmatprep.subr.mxu0 0.0
        %4950 = vmatpush1.msra.mxu0 0.0
        %4951 = vmatprep.subr.mxu0 0.0
        %4952 = vmatpush1.msra.mxu0 0.0
        %4953 = vmatprep.subr.mxu0 0.0
        %4954 = vmatpush1.msra.mxu0 0.0
        %4955 = vmatprep.subr.mxu0 0.0
        %4956 = vmatpush1.msra.mxu0 0.0
        %4957 = vmatprep.subr.mxu0 0.0
        %4958 = vmatpush1.msra.mxu0 0.0
        %4959 = vmatprep.subr.mxu0 0.0
        %4960 = vmatpush1.msra.mxu0 0.0
        %4961 = vmatprep.subr.mxu0 0.0
        %4962 = vmatpush1.msra.mxu0 0.0
        %4963 = vmatprep.subr.mxu0 0.0
        %4964 = vmatpush1.msra.mxu0 0.0
        %4965 = vmatprep.subr.mxu0 0.0
        %4966 = vmatpush1.msra.mxu0 0.0
        %4967 = vmatprep.subr.mxu0 0.0
        %4968 = vmatpush1.msra.mxu0 0.0
        %4969 = vmatprep.subr.mxu0 0.0
        %4970 = vmatpush1.msra.mxu0 0.0
        %4971 = vmatprep.mubr.f32.mxu0 0.0
        %4972 = vmatmul.mubr.f32.gmra.mrb[0].mxu0 %v4902
        %v4973 = vpop.f32.mrb[0].mxu0
        %v4974 = vadd.f32 0.0, %v4973
        %v4975 = vpop.f32.mrb[0].mxu0
        %4976 = vmatprep.mubr.f32.mxu0 0.0
        %4977 = vmatmul.mubr.f32.gmra.mrb[0].mxu0 %v4905
        %v4978 = vpop.f32.mrb[0].mxu0
        %v4979 = vadd.f32 0.0, %v4978
        %v4980 = vpop.f32.mrb[0].mxu0
        %4981 = vdwg.mxu0
        %4982 = vrot.lane.b32.xlu0 %v515, 48
        %v4983 = vpop.permute.xlu0 %4982
        %4984 = vrot.lane.b32.xlu0 %v520, 48
        %v4985 = vpop.permute.xlu0 %4984
        %v4989 = vsel %vm880, %v4719, 0
        %v4992 = vsel %vm880, %v4720, 0
        %4994 = vmatprep.subr.mxu0 0.0
        %4995 = vmatpush1.msra.mxu0 %v4983
        %4996 = vmatprep.subr.mxu0 0.0
        %4997 = vmatpush1.msra.mxu0 %v4985
        %4998 = vmatprep.subr.mxu0 0.0
        %4999 = vmatpush1.msra.mxu0 0.0
        %5000 = vmatprep.subr.mxu0 0.0
        %5001 = vmatpush1.msra.mxu0 0.0
        %5002 = vmatprep.subr.mxu0 0.0
        %5003 = vmatpush1.msra.mxu0 0.0
        %5004 = vmatprep.subr.mxu0 0.0
        %5005 = vmatpush1.msra.mxu0 0.0
        %5006 = vmatprep.subr.mxu0 0.0
        %5007 = vmatpush1.msra.mxu0 0.0
        %5008 = vmatprep.subr.mxu0 0.0
        %5009 = vmatpush1.msra.mxu0 0.0
        %5010 = vmatprep.subr.mxu0 0.0
        %5011 = vmatpush1.msra.mxu0 0.0
        %5012 = vmatprep.subr.mxu0 0.0
        %5013 = vmatpush1.msra.mxu0 0.0
        %5014 = vmatprep.subr.mxu0 0.0
        %5015 = vmatpush1.msra.mxu0 0.0
        %5016 = vmatprep.subr.mxu0 0.0
        %5017 = vmatpush1.msra.mxu0 0.0
        %5018 = vmatprep.subr.mxu0 0.0
        %5019 = vmatpush1.msra.mxu0 0.0
        %5020 = vmatprep.subr.mxu0 0.0
        %5021 = vmatpush1.msra.mxu0 0.0
        %5022 = vmatprep.subr.mxu0 0.0
        %5023 = vmatpush1.msra.mxu0 0.0
        %5024 = vmatprep.subr.mxu0 0.0
        %5025 = vmatpush1.msra.mxu0 0.0
        %5026 = vmatprep.subr.mxu0 0.0
        %5027 = vmatpush1.msra.mxu0 0.0
        %5028 = vmatprep.subr.mxu0 0.0
        %5029 = vmatpush1.msra.mxu0 0.0
        %5030 = vmatprep.subr.mxu0 0.0
        %5031 = vmatpush1.msra.mxu0 0.0
        %5032 = vmatprep.subr.mxu0 0.0
        %5033 = vmatpush1.msra.mxu0 0.0
        %5034 = vmatprep.subr.mxu0 0.0
        %5035 = vmatpush1.msra.mxu0 0.0
        %5036 = vmatprep.subr.mxu0 0.0
        %5037 = vmatpush1.msra.mxu0 0.0
        %5038 = vmatprep.subr.mxu0 0.0
        %5039 = vmatpush1.msra.mxu0 0.0
        %5040 = vmatprep.subr.mxu0 0.0
        %5041 = vmatpush1.msra.mxu0 0.0
        %5042 = vmatprep.subr.mxu0 0.0
        %5043 = vmatpush1.msra.mxu0 0.0
        %5044 = vmatprep.subr.mxu0 0.0
        %5045 = vmatpush1.msra.mxu0 0.0
        %5046 = vmatprep.subr.mxu0 0.0
        %5047 = vmatpush1.msra.mxu0 0.0
        %5048 = vmatprep.subr.mxu0 0.0
        %5049 = vmatpush1.msra.mxu0 0.0
        %5050 = vmatprep.subr.mxu0 0.0
        %5051 = vmatpush1.msra.mxu0 0.0
        %5052 = vmatprep.subr.mxu0 0.0
        %5053 = vmatpush1.msra.mxu0 0.0
        %5054 = vmatprep.subr.mxu0 0.0
        %5055 = vmatpush1.msra.mxu0 0.0
        %5056 = vmatprep.subr.mxu0 0.0
        %5057 = vmatpush1.msra.mxu0 0.0
        %5058 = vmatprep.mubr.f32.mxu0 0.0
        %5059 = vmatmul.mubr.f32.gmra.mrb[0].mxu0 %v4989
        %v5060 = vpop.f32.mrb[0].mxu0
        %v5061 = vadd.f32 0.0, %v5060
        %v5062 = vpop.f32.mrb[0].mxu0
        %5063 = vmatprep.mubr.f32.mxu0 0.0
        %5064 = vmatmul.mubr.f32.gmra.mrb[0].mxu0 %v4992
        %v5065 = vpop.f32.mrb[0].mxu0
        %v5066 = vadd.f32 0.0, %v5065
        %v5067 = vpop.f32.mrb[0].mxu0
        %5068 = vdwg.mxu0
        %s5069 = scalar_lea.vmem %s3, 16
        %v5070 = vld [vmem:[%s5069] sm:$0xf]
        %v5072 = vsel %vm529, %v4800, 0
        %v5075 = vsel %vm529, %v4805, 0
        %v5078 = vsel %vm529, %v4887, 0
        %v5081 = vsel %vm529, %v4892, 0
        %v5084 = vsel %vm529, %v4974, 0
        %v5087 = vsel %vm529, %v4979, 0
        %v5090 = vsel %vm529, %v5061, 0
        %v5093 = vsel %vm529, %v5066, 0
        %v5096 = vsel %vm2144, %v5070, 0
        %5098 = vmatprep.subr.mxu0 0.0
        %5099 = vmatpush1.msra.mxu0 %v5096
        %5100 = vmatprep.subr.mxu0 0.0
        %5101 = vmatpush1.msra.mxu0 0.0
        %5102 = vmatprep.subr.mxu0 0.0
        %5103 = vmatpush1.msra.mxu0 0.0
        %5104 = vmatprep.subr.mxu0 0.0
        %5105 = vmatpush1.msra.mxu0 0.0
        %5106 = vmatprep.subr.mxu0 0.0
        %5107 = vmatpush1.msra.mxu0 0.0
        %5108 = vmatprep.subr.mxu0 0.0
        %5109 = vmatpush1.msra.mxu0 0.0
        %5110 = vmatprep.subr.mxu0 0.0
        %5111 = vmatpush1.msra.mxu0 0.0
        %5112 = vmatprep.subr.mxu0 0.0
        %5113 = vmatpush1.msra.mxu0 0.0
        %5114 = vmatprep.subr.mxu0 0.0
        %5115 = vmatpush1.msra.mxu0 0.0
        %5116 = vmatprep.subr.mxu0 0.0
        %5117 = vmatpush1.msra.mxu0 0.0
        %5118 = vmatprep.subr.mxu0 0.0
        %5119 = vmatpush1.msra.mxu0 0.0
        %5120 = vmatprep.subr.mxu0 0.0
        %5121 = vmatpush1.msra.mxu0 0.0
        %5122 = vmatprep.subr.mxu0 0.0
        %5123 = vmatpush1.msra.mxu0 0.0
        %5124 = vmatprep.subr.mxu0 0.0
        %5125 = vmatpush1.msra.mxu0 0.0
        %5126 = vmatprep.subr.mxu0 0.0
        %5127 = vmatpush1.msra.mxu0 0.0
        %5128 = vmatprep.subr.mxu0 0.0
        %5129 = vmatpush1.msra.mxu0 0.0
        %5130 = vmatprep.subr.mxu0 0.0
        %5131 = vmatpush1.msra.mxu0 0.0
        %5132 = vmatprep.subr.mxu0 0.0
        %5133 = vmatpush1.msra.mxu0 0.0
        %5134 = vmatprep.subr.mxu0 0.0
        %5135 = vmatpush1.msra.mxu0 0.0
        %5136 = vmatprep.subr.mxu0 0.0
        %5137 = vmatpush1.msra.mxu0 0.0
        %5138 = vmatprep.subr.mxu0 0.0
        %5139 = vmatpush1.msra.mxu0 0.0
        %5140 = vmatprep.subr.mxu0 0.0
        %5141 = vmatpush1.msra.mxu0 0.0
        %5142 = vmatprep.subr.mxu0 0.0
        %5143 = vmatpush1.msra.mxu0 0.0
        %5144 = vmatprep.subr.mxu0 0.0
        %5145 = vmatpush1.msra.mxu0 0.0
        %5146 = vmatprep.subr.mxu0 0.0
        %5147 = vmatpush1.msra.mxu0 0.0
        %5148 = vmatprep.subr.mxu0 0.0
        %5149 = vmatpush1.msra.mxu0 0.0
        %5150 = vmatprep.subr.mxu0 0.0
        %5151 = vmatpush1.msra.mxu0 0.0
        %5152 = vmatprep.subr.mxu0 0.0
        %5153 = vmatpush1.msra.mxu0 0.0
        %5154 = vmatprep.subr.mxu0 0.0
        %5155 = vmatpush1.msra.mxu0 0.0
        %5156 = vmatprep.subr.mxu0 0.0
        %5157 = vmatpush1.msra.mxu0 0.0
        %5158 = vmatprep.subr.mxu0 0.0
        %5159 = vmatpush1.msra.mxu0 0.0
        %5160 = vmatprep.subr.mxu0 0.0
        %5161 = vmatpush1.msra.mxu0 0.0
        %5162 = vmatprep.mubr.f32.mxu0 0.0
        %5163 = vmatmul.mubr.f32.gmra.mrb[0].mxu0 %v5072
        %v5164 = vpop.f32.mrb[0].mxu0
        %v5165 = vadd.f32 0.0, %v5164
        %v5166 = vpop.f32.mrb[0].mxu0
        %5167 = vmatprep.mubr.f32.mxu0 0.0
        %5168 = vmatmul.mubr.f32.gmra.mrb[0].mxu0 %v5075
        %v5169 = vpop.f32.mrb[0].mxu0
        %v5170 = vadd.f32 0.0, %v5169
        %v5171 = vpop.f32.mrb[0].mxu0
        %5172 = vmatprep.mubr.f32.mxu0 0.0
        %5173 = vmatmul.mubr.f32.gmra.mrb[0].mxu0 %v5078
        %v5174 = vpop.f32.mrb[0].mxu0
        %v5175 = vadd.f32 0.0, %v5174
        %v5176 = vpop.f32.mrb[0].mxu0
        %5177 = vmatprep.mubr.f32.mxu0 0.0
        %5178 = vmatmul.mubr.f32.gmra.mrb[0].mxu0 %v5081
        %v5179 = vpop.f32.mrb[0].mxu0
        %v5180 = vadd.f32 0.0, %v5179
        %v5181 = vpop.f32.mrb[0].mxu0
        %5182 = vmatprep.mubr.f32.mxu0 0.0
        %5183 = vmatmul.mubr.f32.gmra.mrb[0].mxu0 %v5084
        %v5184 = vpop.f32.mrb[0].mxu0
        %v5185 = vadd.f32 0.0, %v5184
        %v5186 = vpop.f32.mrb[0].mxu0
        %5187 = vmatprep.mubr.f32.mxu0 0.0
        %5188 = vmatmul.mubr.f32.gmra.mrb[0].mxu0 %v5087
        %v5189 = vpop.f32.mrb[0].mxu0
        %v5190 = vadd.f32 0.0, %v5189
        %v5191 = vpop.f32.mrb[0].mxu0
        %5192 = vmatprep.mubr.f32.mxu0 0.0
        %5193 = vmatmul.mubr.f32.gmra.mrb[0].mxu0 %v5090
        %v5194 = vpop.f32.mrb[0].mxu0
        %v5195 = vadd.f32 0.0, %v5194
        %v5196 = vpop.f32.mrb[0].mxu0
        %5197 = vmatprep.mubr.f32.mxu0 0.0
        %5198 = vmatmul.mubr.f32.gmra.mrb[0].mxu0 %v5093
        %v5199 = vpop.f32.mrb[0].mxu0
        %v5200 = vadd.f32 0.0, %v5199
        %v5201 = vpop.f32.mrb[0].mxu0
        %5202 = vdwg.mxu0
        %v5203 = vadd.f32 %v4261, %v5165
        %v5204 = vadd.f32 %v4262, %v5170
        %v5205 = vadd.f32 %v4263, %v5175
        %v5206 = vadd.f32 %v4264, %v5180
        %v5207 = vadd.f32 %v4265, %v5185
        %v5208 = vadd.f32 %v4266, %v5190
        %v5209 = vadd.f32 %v4267, %v5195
        %v5210 = vadd.f32 %v4268, %v5200
        %5211 = vrot.lane.b32.xlu0 %v485, 108
        %v5212 = vpop.permute.xlu0 %5211
        %5213 = vrot.lane.b32.xlu0 %v490, 108
        %v5214 = vpop.permute.xlu0 %5213
        %5215 = vrot.lane.b32.xlu0 %v485, 76
        %v5216 = vpop.permute.xlu0 %5215
        %5217 = vrot.lane.b32.xlu0 %v490, 76
        %v5218 = vpop.permute.xlu0 %5217
        %v5219 = vsel %vm529, %v5212, 0
        %v5221 = vsel %vm529, %v5214, 0
        %v5223 = vsel %vm529, %v5216, 0
        %v5225 = vsel %vm529, %v5218, 0
        %5227 = vmatprep.subr.mxu0 0.0
        %5228 = vmatpush1.xpose.msra.mxu0 %v5223
        %5229 = vmatprep.subr.mxu0 0.0
        %5230 = vmatpush1.xpose.msra.mxu0 %v5225
        %5231 = vmatprep.subr.mxu0 0.0
        %5232 = vmatpush1.xpose.msra.mxu0 0.0
        %5233 = vmatprep.subr.mxu0 0.0
        %5234 = vmatpush1.xpose.msra.mxu0 0.0
        %5235 = vmatprep.subr.mxu0 0.0
        %5236 = vmatpush1.xpose.msra.mxu0 0.0
        %5237 = vmatprep.subr.mxu0 0.0
        %5238 = vmatpush1.xpose.msra.mxu0 0.0
        %5239 = vmatprep.subr.mxu0 0.0
        %5240 = vmatpush1.xpose.msra.mxu0 0.0
        %5241 = vmatprep.subr.mxu0 0.0
        %5242 = vmatpush1.xpose.msra.mxu0 0.0
        %5243 = vmatprep.subr.mxu0 0.0
        %5244 = vmatpush1.xpose.msra.mxu0 0.0
        %5245 = vmatprep.subr.mxu0 0.0
        %5246 = vmatpush1.xpose.msra.mxu0 0.0
        %5247 = vmatprep.subr.mxu0 0.0
        %5248 = vmatpush1.xpose.msra.mxu0 0.0
        %5249 = vmatprep.subr.mxu0 0.0
        %5250 = vmatpush1.xpose.msra.mxu0 0.0
        %5251 = vmatprep.subr.mxu0 0.0
        %5252 = vmatpush1.xpose.msra.mxu0 0.0
        %5253 = vmatprep.subr.mxu0 0.0
        %5254 = vmatpush1.xpose.msra.mxu0 0.0
        %5255 = vmatprep.subr.mxu0 0.0
        %5256 = vmatpush1.xpose.msra.mxu0 0.0
        %5257 = vmatprep.subr.mxu0 0.0
        %5258 = vmatpush1.xpose.msra.mxu0 0.0
        %5259 = vmatprep.subr.mxu0 0.0
        %5260 = vmatpush1.xpose.msra.mxu0 0.0
        %5261 = vmatprep.subr.mxu0 0.0
        %5262 = vmatpush1.xpose.msra.mxu0 0.0
        %5263 = vmatprep.subr.mxu0 0.0
        %5264 = vmatpush1.xpose.msra.mxu0 0.0
        %5265 = vmatprep.subr.mxu0 0.0
        %5266 = vmatpush1.xpose.msra.mxu0 0.0
        %5267 = vmatprep.subr.mxu0 0.0
        %5268 = vmatpush1.xpose.msra.mxu0 0.0
        %5269 = vmatprep.subr.mxu0 0.0
        %5270 = vmatpush1.xpose.msra.mxu0 0.0
        %5271 = vmatprep.subr.mxu0 0.0
        %5272 = vmatpush1.xpose.msra.mxu0 0.0
        %5273 = vmatprep.subr.mxu0 0.0
        %5274 = vmatpush1.xpose.msra.mxu0 0.0
        %5275 = vmatprep.subr.mxu0 0.0
        %5276 = vmatpush1.xpose.msra.mxu0 0.0
        %5277 = vmatprep.subr.mxu0 0.0
        %5278 = vmatpush1.xpose.msra.mxu0 0.0
        %5279 = vmatprep.subr.mxu0 0.0
        %5280 = vmatpush1.xpose.msra.mxu0 0.0
        %5281 = vmatprep.subr.mxu0 0.0
        %5282 = vmatpush1.xpose.msra.mxu0 0.0
        %5283 = vmatprep.subr.mxu0 0.0
        %5284 = vmatpush1.xpose.msra.mxu0 0.0
        %5285 = vmatprep.subr.mxu0 0.0
        %5286 = vmatpush1.xpose.msra.mxu0 0.0
        %5287 = vmatprep.subr.mxu0 0.0
        %5288 = vmatpush1.xpose.msra.mxu0 0.0
        %5289 = vmatprep.subr.mxu0 0.0
        %5290 = vmatpush1.xpose.msra.mxu0 0.0
        %5291 = vmatprep.mubr.f32.mxu0 0.0
        %5292 = vmatmul.mubr.f32.gmra.mrb[0].mxu0 %v5219
        %v5293 = vpop.f32.mrb[0].mxu0
        %v5294 = vadd.f32 0.0, %v5293
        %v5295 = vpop.f32.mrb[0].mxu0
        %5296 = vmatprep.mubr.f32.mxu0 0.0
        %5297 = vmatmul.mubr.f32.gmra.mrb[0].mxu0 %v5221
        %v5298 = vpop.f32.mrb[0].mxu0
        %v5299 = vadd.f32 0.0, %v5298
        %v5300 = vpop.f32.mrb[0].mxu0
        %5301 = vdwg.mxu0
        %5302 = vrot.lane.b32.xlu0 %v495, 108
        %v5303 = vpop.permute.xlu0 %5302
        %5304 = vrot.lane.b32.xlu0 %v500, 108
        %v5305 = vpop.permute.xlu0 %5304
        %5306 = vrot.lane.b32.xlu0 %v495, 76
        %v5307 = vpop.permute.xlu0 %5306
        %5308 = vrot.lane.b32.xlu0 %v500, 76
        %v5309 = vpop.permute.xlu0 %5308
        %v5310 = vsel %vm529, %v5303, 0
        %v5312 = vsel %vm529, %v5305, 0
        %v5314 = vsel %vm529, %v5307, 0
        %v5316 = vsel %vm529, %v5309, 0
        %5318 = vmatprep.subr.mxu0 0.0
        %5319 = vmatpush1.xpose.msra.mxu0 %v5314
        %5320 = vmatprep.subr.mxu0 0.0
        %5321 = vmatpush1.xpose.msra.mxu0 %v5316
        %5322 = vmatprep.subr.mxu0 0.0
        %5323 = vmatpush1.xpose.msra.mxu0 0.0
        %5324 = vmatprep.subr.mxu0 0.0
        %5325 = vmatpush1.xpose.msra.mxu0 0.0
        %5326 = vmatprep.subr.mxu0 0.0
        %5327 = vmatpush1.xpose.msra.mxu0 0.0
        %5328 = vmatprep.subr.mxu0 0.0
        %5329 = vmatpush1.xpose.msra.mxu0 0.0
        %5330 = vmatprep.subr.mxu0 0.0
        %5331 = vmatpush1.xpose.msra.mxu0 0.0
        %5332 = vmatprep.subr.mxu0 0.0
        %5333 = vmatpush1.xpose.msra.mxu0 0.0
        %5334 = vmatprep.subr.mxu0 0.0
        %5335 = vmatpush1.xpose.msra.mxu0 0.0
        %5336 = vmatprep.subr.mxu0 0.0
        %5337 = vmatpush1.xpose.msra.mxu0 0.0
        %5338 = vmatprep.subr.mxu0 0.0
        %5339 = vmatpush1.xpose.msra.mxu0 0.0
        %5340 = vmatprep.subr.mxu0 0.0
        %5341 = vmatpush1.xpose.msra.mxu0 0.0
        %5342 = vmatprep.subr.mxu0 0.0
        %5343 = vmatpush1.xpose.msra.mxu0 0.0
        %5344 = vmatprep.subr.mxu0 0.0
        %5345 = vmatpush1.xpose.msra.mxu0 0.0
        %5346 = vmatprep.subr.mxu0 0.0
        %5347 = vmatpush1.xpose.msra.mxu0 0.0
        %5348 = vmatprep.subr.mxu0 0.0
        %5349 = vmatpush1.xpose.msra.mxu0 0.0
        %5350 = vmatprep.subr.mxu0 0.0
        %5351 = vmatpush1.xpose.msra.mxu0 0.0
        %5352 = vmatprep.subr.mxu0 0.0
        %5353 = vmatpush1.xpose.msra.mxu0 0.0
        %5354 = vmatprep.subr.mxu0 0.0
        %5355 = vmatpush1.xpose.msra.mxu0 0.0
        %5356 = vmatprep.subr.mxu0 0.0
        %5357 = vmatpush1.xpose.msra.mxu0 0.0
        %5358 = vmatprep.subr.mxu0 0.0
        %5359 = vmatpush1.xpose.msra.mxu0 0.0
        %5360 = vmatprep.subr.mxu0 0.0
        %5361 = vmatpush1.xpose.msra.mxu0 0.0
        %5362 = vmatprep.subr.mxu0 0.0
        %5363 = vmatpush1.xpose.msra.mxu0 0.0
        %5364 = vmatprep.subr.mxu0 0.0
        %5365 = vmatpush1.xpose.msra.mxu0 0.0
        %5366 = vmatprep.subr.mxu0 0.0
        %5367 = vmatpush1.xpose.msra.mxu0 0.0
        %5368 = vmatprep.subr.mxu0 0.0
        %5369 = vmatpush1.xpose.msra.mxu0 0.0
        %5370 = vmatprep.subr.mxu0 0.0
        %5371 = vmatpush1.xpose.msra.mxu0 0.0
        %5372 = vmatprep.subr.mxu0 0.0
        %5373 = vmatpush1.xpose.msra.mxu0 0.0
        %5374 = vmatprep.subr.mxu0 0.0
        %5375 = vmatpush1.xpose.msra.mxu0 0.0
        %5376 = vmatprep.subr.mxu0 0.0
        %5377 = vmatpush1.xpose.msra.mxu0 0.0
        %5378 = vmatprep.subr.mxu0 0.0
        %5379 = vmatpush1.xpose.msra.mxu0 0.0
        %5380 = vmatprep.subr.mxu0 0.0
        %5381 = vmatpush1.xpose.msra.mxu0 0.0
        %5382 = vmatprep.mubr.f32.mxu0 0.0
        %5383 = vmatmul.mubr.f32.gmra.mrb[0].mxu0 %v5310
        %v5384 = vpop.f32.mrb[0].mxu0
        %v5385 = vadd.f32 0.0, %v5384
        %v5386 = vpop.f32.mrb[0].mxu0
        %5387 = vmatprep.mubr.f32.mxu0 0.0
        %5388 = vmatmul.mubr.f32.gmra.mrb[0].mxu0 %v5312
        %v5389 = vpop.f32.mrb[0].mxu0
        %v5390 = vadd.f32 0.0, %v5389
        %v5391 = vpop.f32.mrb[0].mxu0
        %5392 = vdwg.mxu0
        %5393 = vrot.lane.b32.xlu0 %v505, 108
        %v5394 = vpop.permute.xlu0 %5393
        %5395 = vrot.lane.b32.xlu0 %v510, 108
        %v5396 = vpop.permute.xlu0 %5395
        %5397 = vrot.lane.b32.xlu0 %v505, 76
        %v5398 = vpop.permute.xlu0 %5397
        %5399 = vrot.lane.b32.xlu0 %v510, 76
        %v5400 = vpop.permute.xlu0 %5399
        %v5401 = vsel %vm529, %v5394, 0
        %v5403 = vsel %vm529, %v5396, 0
        %v5405 = vsel %vm529, %v5398, 0
        %v5407 = vsel %vm529, %v5400, 0
        %5409 = vmatprep.subr.mxu0 0.0
        %5410 = vmatpush1.xpose.msra.mxu0 %v5405
        %5411 = vmatprep.subr.mxu0 0.0
        %5412 = vmatpush1.xpose.msra.mxu0 %v5407
        %5413 = vmatprep.subr.mxu0 0.0
        %5414 = vmatpush1.xpose.msra.mxu0 0.0
        %5415 = vmatprep.subr.mxu0 0.0
        %5416 = vmatpush1.xpose.msra.mxu0 0.0
        %5417 = vmatprep.subr.mxu0 0.0
        %5418 = vmatpush1.xpose.msra.mxu0 0.0
        %5419 = vmatprep.subr.mxu0 0.0
        %5420 = vmatpush1.xpose.msra.mxu0 0.0
        %5421 = vmatprep.subr.mxu0 0.0
        %5422 = vmatpush1.xpose.msra.mxu0 0.0
        %5423 = vmatprep.subr.mxu0 0.0
        %5424 = vmatpush1.xpose.msra.mxu0 0.0
        %5425 = vmatprep.subr.mxu0 0.0
        %5426 = vmatpush1.xpose.msra.mxu0 0.0
        %5427 = vmatprep.subr.mxu0 0.0
        %5428 = vmatpush1.xpose.msra.mxu0 0.0
        %5429 = vmatprep.subr.mxu0 0.0
        %5430 = vmatpush1.xpose.msra.mxu0 0.0
        %5431 = vmatprep.subr.mxu0 0.0
        %5432 = vmatpush1.xpose.msra.mxu0 0.0
        %5433 = vmatprep.subr.mxu0 0.0
        %5434 = vmatpush1.xpose.msra.mxu0 0.0
        %5435 = vmatprep.subr.mxu0 0.0
        %5436 = vmatpush1.xpose.msra.mxu0 0.0
        %5437 = vmatprep.subr.mxu0 0.0
        %5438 = vmatpush1.xpose.msra.mxu0 0.0
        %5439 = vmatprep.subr.mxu0 0.0
        %5440 = vmatpush1.xpose.msra.mxu0 0.0
        %5441 = vmatprep.subr.mxu0 0.0
        %5442 = vmatpush1.xpose.msra.mxu0 0.0
        %5443 = vmatprep.subr.mxu0 0.0
        %5444 = vmatpush1.xpose.msra.mxu0 0.0
        %5445 = vmatprep.subr.mxu0 0.0
        %5446 = vmatpush1.xpose.msra.mxu0 0.0
        %5447 = vmatprep.subr.mxu0 0.0
        %5448 = vmatpush1.xpose.msra.mxu0 0.0
        %5449 = vmatprep.subr.mxu0 0.0
        %5450 = vmatpush1.xpose.msra.mxu0 0.0
        %5451 = vmatprep.subr.mxu0 0.0
        %5452 = vmatpush1.xpose.msra.mxu0 0.0
        %5453 = vmatprep.subr.mxu0 0.0
        %5454 = vmatpush1.xpose.msra.mxu0 0.0
        %5455 = vmatprep.subr.mxu0 0.0
        %5456 = vmatpush1.xpose.msra.mxu0 0.0
        %5457 = vmatprep.subr.mxu0 0.0
        %5458 = vmatpush1.xpose.msra.mxu0 0.0
        %5459 = vmatprep.subr.mxu0 0.0
        %5460 = vmatpush1.xpose.msra.mxu0 0.0
        %5461 = vmatprep.subr.mxu0 0.0
        %5462 = vmatpush1.xpose.msra.mxu0 0.0
        %5463 = vmatprep.subr.mxu0 0.0
        %5464 = vmatpush1.xpose.msra.mxu0 0.0
        %5465 = vmatprep.subr.mxu0 0.0
        %5466 = vmatpush1.xpose.msra.mxu0 0.0
        %5467 = vmatprep.subr.mxu0 0.0
        %5468 = vmatpush1.xpose.msra.mxu0 0.0
        %5469 = vmatprep.subr.mxu0 0.0
        %5470 = vmatpush1.xpose.msra.mxu0 0.0
        %5471 = vmatprep.subr.mxu0 0.0
        %5472 = vmatpush1.xpose.msra.mxu0 0.0
        %5473 = vmatprep.mubr.f32.mxu0 0.0
        %5474 = vmatmul.mubr.f32.gmra.mrb[0].mxu0 %v5401
        %v5475 = vpop.f32.mrb[0].mxu0
        %v5476 = vadd.f32 0.0, %v5475
        %v5477 = vpop.f32.mrb[0].mxu0
        %5478 = vmatprep.mubr.f32.mxu0 0.0
        %5479 = vmatmul.mubr.f32.gmra.mrb[0].mxu0 %v5403
        %v5480 = vpop.f32.mrb[0].mxu0
        %v5481 = vadd.f32 0.0, %v5480
        %v5482 = vpop.f32.mrb[0].mxu0
        %5483 = vdwg.mxu0
        %5484 = vrot.lane.b32.xlu0 %v515, 108
        %v5485 = vpop.permute.xlu0 %5484
        %5486 = vrot.lane.b32.xlu0 %v520, 108
        %v5487 = vpop.permute.xlu0 %5486
        %5488 = vrot.lane.b32.xlu0 %v515, 76
        %v5489 = vpop.permute.xlu0 %5488
        %5490 = vrot.lane.b32.xlu0 %v520, 76
        %v5491 = vpop.permute.xlu0 %5490
        %v5492 = vsel %vm529, %v5485, 0
        %v5494 = vsel %vm529, %v5487, 0
        %v5496 = vsel %vm529, %v5489, 0
        %v5498 = vsel %vm529, %v5491, 0
        %5500 = vmatprep.subr.mxu0 0.0
        %5501 = vmatpush1.xpose.msra.mxu0 %v5496
        %5502 = vmatprep.subr.mxu0 0.0
        %5503 = vmatpush1.xpose.msra.mxu0 %v5498
        %5504 = vmatprep.subr.mxu0 0.0
        %5505 = vmatpush1.xpose.msra.mxu0 0.0
        %5506 = vmatprep.subr.mxu0 0.0
        %5507 = vmatpush1.xpose.msra.mxu0 0.0
        %5508 = vmatprep.subr.mxu0 0.0
        %5509 = vmatpush1.xpose.msra.mxu0 0.0
        %5510 = vmatprep.subr.mxu0 0.0
        %5511 = vmatpush1.xpose.msra.mxu0 0.0
        %5512 = vmatprep.subr.mxu0 0.0
        %5513 = vmatpush1.xpose.msra.mxu0 0.0
        %5514 = vmatprep.subr.mxu0 0.0
        %5515 = vmatpush1.xpose.msra.mxu0 0.0
        %5516 = vmatprep.subr.mxu0 0.0
        %5517 = vmatpush1.xpose.msra.mxu0 0.0
        %5518 = vmatprep.subr.mxu0 0.0
        %5519 = vmatpush1.xpose.msra.mxu0 0.0
        %5520 = vmatprep.subr.mxu0 0.0
        %5521 = vmatpush1.xpose.msra.mxu0 0.0
        %5522 = vmatprep.subr.mxu0 0.0
        %5523 = vmatpush1.xpose.msra.mxu0 0.0
        %5524 = vmatprep.subr.mxu0 0.0
        %5525 = vmatpush1.xpose.msra.mxu0 0.0
        %5526 = vmatprep.subr.mxu0 0.0
        %5527 = vmatpush1.xpose.msra.mxu0 0.0
        %5528 = vmatprep.subr.mxu0 0.0
        %5529 = vmatpush1.xpose.msra.mxu0 0.0
        %5530 = vmatprep.subr.mxu0 0.0
        %5531 = vmatpush1.xpose.msra.mxu0 0.0
        %5532 = vmatprep.subr.mxu0 0.0
        %5533 = vmatpush1.xpose.msra.mxu0 0.0
        %5534 = vmatprep.subr.mxu0 0.0
        %5535 = vmatpush1.xpose.msra.mxu0 0.0
        %5536 = vmatprep.subr.mxu0 0.0
        %5537 = vmatpush1.xpose.msra.mxu0 0.0
        %5538 = vmatprep.subr.mxu0 0.0
        %5539 = vmatpush1.xpose.msra.mxu0 0.0
        %5540 = vmatprep.subr.mxu0 0.0
        %5541 = vmatpush1.xpose.msra.mxu0 0.0
        %5542 = vmatprep.subr.mxu0 0.0
        %5543 = vmatpush1.xpose.msra.mxu0 0.0
        %5544 = vmatprep.subr.mxu0 0.0
        %5545 = vmatpush1.xpose.msra.mxu0 0.0
        %5546 = vmatprep.subr.mxu0 0.0
        %5547 = vmatpush1.xpose.msra.mxu0 0.0
        %5548 = vmatprep.subr.mxu0 0.0
        %5549 = vmatpush1.xpose.msra.mxu0 0.0
        %5550 = vmatprep.subr.mxu0 0.0
        %5551 = vmatpush1.xpose.msra.mxu0 0.0
        %5552 = vmatprep.subr.mxu0 0.0
        %5553 = vmatpush1.xpose.msra.mxu0 0.0
        %5554 = vmatprep.subr.mxu0 0.0
        %5555 = vmatpush1.xpose.msra.mxu0 0.0
        %5556 = vmatprep.subr.mxu0 0.0
        %5557 = vmatpush1.xpose.msra.mxu0 0.0
        %5558 = vmatprep.subr.mxu0 0.0
        %5559 = vmatpush1.xpose.msra.mxu0 0.0
        %5560 = vmatprep.subr.mxu0 0.0
        %5561 = vmatpush1.xpose.msra.mxu0 0.0
        %5562 = vmatprep.subr.mxu0 0.0
        %5563 = vmatpush1.xpose.msra.mxu0 0.0
        %5564 = vmatprep.mubr.f32.mxu0 0.0
        %5565 = vmatmul.mubr.f32.gmra.mrb[0].mxu0 %v5492
        %v5566 = vpop.f32.mrb[0].mxu0
        %v5567 = vadd.f32 0.0, %v5566
        %v5568 = vpop.f32.mrb[0].mxu0
        %5569 = vmatprep.mubr.f32.mxu0 0.0
        %5570 = vmatmul.mubr.f32.gmra.mrb[0].mxu0 %v5494
        %v5571 = vpop.f32.mrb[0].mxu0
        %v5572 = vadd.f32 0.0, %v5571
        %v5573 = vpop.f32.mrb[0].mxu0
        %5574 = vdwg.mxu0
        %v5575 = vsel %vm880, %v5294, -inf
        %5576 = vmax.xlane.f32.xlu0 %v5575
        %v5577 = vpop.xlane.xlu0 %5576
        %v5578 = vsel %vm880, %v5299, -inf
        %5579 = vmax.xlane.f32.xlu0 %v5578
        %v5580 = vpop.xlane.xlu0 %5579
        %v5581 = vsel %vm880, %v5385, -inf
        %5582 = vmax.xlane.f32.xlu0 %v5581
        %v5583 = vpop.xlane.xlu0 %5582
        %v5584 = vsel %vm880, %v5390, -inf
        %5585 = vmax.xlane.f32.xlu0 %v5584
        %v5586 = vpop.xlane.xlu0 %5585
        %v5587 = vsel %vm880, %v5476, -inf
        %5588 = vmax.xlane.f32.xlu0 %v5587
        %v5589 = vpop.xlane.xlu0 %5588
        %v5590 = vsel %vm880, %v5481, -inf
        %5591 = vmax.xlane.f32.xlu0 %v5590
        %v5592 = vpop.xlane.xlu0 %5591
        %v5593 = vsel %vm880, %v5567, -inf
        %5594 = vmax.xlane.f32.xlu0 %v5593
        %v5595 = vpop.xlane.xlu0 %5594
        %v5596 = vsel %vm880, %v5572, -inf
        %5597 = vmax.xlane.f32.xlu0 %v5596
        %v5598 = vpop.xlane.xlu0 %5597
        %v5599 = vsub.f32 %v5294, %v5577
        %v5600 = vsub.f32 %v5299, %v5580
        %v5601 = vsub.f32 %v5385, %v5583
        %v5602 = vsub.f32 %v5390, %v5586
        %v5603 = vsub.f32 %v5476, %v5589
        %v5604 = vsub.f32 %v5481, %v5592
        %v5605 = vsub.f32 %v5567, %v5595
        %v5606 = vsub.f32 %v5572, %v5598
        %v5607 = vmul.f32 %v5599, 1.442695
        %v5608 = vpow.pop %v5607
        %v5609 = vmul.f32 %v5600, 1.442695
        %v5610 = vpow.pop %v5609
        %v5611 = vmul.f32 %v5601, 1.442695
        %v5612 = vpow.pop %v5611
        %v5613 = vmul.f32 %v5602, 1.442695
        %v5614 = vpow.pop %v5613
        %v5615 = vmul.f32 %v5603, 1.442695
        %v5616 = vpow.pop %v5615
        %v5617 = vmul.f32 %v5604, 1.442695
        %v5618 = vpow.pop %v5617
        %v5619 = vmul.f32 %v5605, 1.442695
        %v5620 = vpow.pop %v5619
        %v5621 = vmul.f32 %v5606, 1.442695
        %v5622 = vpow.pop %v5621
        %v5623 = vsel %vm880, %v5608, 0.0
        %5624 = vadd.xlane.f32.xlu0 %v5623
        %v5625 = vpop.xlane.xlu0 %5624
        %v5626 = vsel %vm880, %v5610, 0.0
        %5627 = vadd.xlane.f32.xlu0 %v5626
        %v5628 = vpop.xlane.xlu0 %5627
        %v5629 = vsel %vm880, %v5612, 0.0
        %5630 = vadd.xlane.f32.xlu0 %v5629
        %v5631 = vpop.xlane.xlu0 %5630
        %v5632 = vsel %vm880, %v5614, 0.0
        %5633 = vadd.xlane.f32.xlu0 %v5632
        %v5634 = vpop.xlane.xlu0 %5633
        %v5635 = vsel %vm880, %v5616, 0.0
        %5636 = vadd.xlane.f32.xlu0 %v5635
        %v5637 = vpop.xlane.xlu0 %5636
        %v5638 = vsel %vm880, %v5618, 0.0
        %5639 = vadd.xlane.f32.xlu0 %v5638
        %v5640 = vpop.xlane.xlu0 %5639
        %v5641 = vsel %vm880, %v5620, 0.0
        %5642 = vadd.xlane.f32.xlu0 %v5641
        %v5643 = vpop.xlane.xlu0 %5642
        %v5644 = vsel %vm880, %v5622, 0.0
        %5645 = vadd.xlane.f32.xlu0 %v5644
        %v5646 = vpop.xlane.xlu0 %5645
        %v5647 = vrcp.pop %v5625
        %v5648 = vrcp.pop %v5628
        %v5649 = vrcp.pop %v5631
        %v5650 = vrcp.pop %v5634
        %v5651 = vrcp.pop %v5637
        %v5652 = vrcp.pop %v5640
        %v5653 = vrcp.pop %v5643
        %v5654 = vrcp.pop %v5646
        %v5655 = vmul.f32 %v5608, %v5647
        %v5656 = vmul.f32 %v5610, %v5648
        %v5657 = vmul.f32 %v5612, %v5649
        %v5658 = vmul.f32 %v5614, %v5650
        %v5659 = vmul.f32 %v5616, %v5651
        %v5660 = vmul.f32 %v5618, %v5652
        %v5661 = vmul.f32 %v5620, %v5653
        %v5662 = vmul.f32 %v5622, %v5654
        %5663 = vrot.lane.b32.xlu0 %v485, 44
        %v5664 = vpop.permute.xlu0 %5663
        %5665 = vrot.lane.b32.xlu0 %v490, 44
        %v5666 = vpop.permute.xlu0 %5665
        %v5670 = vsel %vm880, %v5655, 0
        %v5673 = vsel %vm880, %v5656, 0
        %5675 = vmatprep.subr.mxu0 0.0
        %5676 = vmatpush1.msra.mxu0 %v5664
        %5677 = vmatprep.subr.mxu0 0.0
        %5678 = vmatpush1.msra.mxu0 %v5666
        %5679 = vmatprep.subr.mxu0 0.0
        %5680 = vmatpush1.msra.mxu0 0.0
        %5681 = vmatprep.subr.mxu0 0.0
        %5682 = vmatpush1.msra.mxu0 0.0
        %5683 = vmatprep.subr.mxu0 0.0
        %5684 = vmatpush1.msra.mxu0 0.0
        %5685 = vmatprep.subr.mxu0 0.0
        %5686 = vmatpush1.msra.mxu0 0.0
        %5687 = vmatprep.subr.mxu0 0.0
        %5688 = vmatpush1.msra.mxu0 0.0
        %5689 = vmatprep.subr.mxu0 0.0
        %5690 = vmatpush1.msra.mxu0 0.0
        %5691 = vmatprep.subr.mxu0 0.0
        %5692 = vmatpush1.msra.mxu0 0.0
        %5693 = vmatprep.subr.mxu0 0.0
        %5694 = vmatpush1.msra.mxu0 0.0
        %5695 = vmatprep.subr.mxu0 0.0
        %5696 = vmatpush1.msra.mxu0 0.0
        %5697 = vmatprep.subr.mxu0 0.0
        %5698 = vmatpush1.msra.mxu0 0.0
        %5699 = vmatprep.subr.mxu0 0.0
        %5700 = vmatpush1.msra.mxu0 0.0
        %5701 = vmatprep.subr.mxu0 0.0
        %5702 = vmatpush1.msra.mxu0 0.0
        %5703 = vmatprep.subr.mxu0 0.0
        %5704 = vmatpush1.msra.mxu0 0.0
        %5705 = vmatprep.subr.mxu0 0.0
        %5706 = vmatpush1.msra.mxu0 0.0
        %5707 = vmatprep.subr.mxu0 0.0
        %5708 = vmatpush1.msra.mxu0 0.0
        %5709 = vmatprep.subr.mxu0 0.0
        %5710 = vmatpush1.msra.mxu0 0.0
        %5711 = vmatprep.subr.mxu0 0.0
        %5712 = vmatpush1.msra.mxu0 0.0
        %5713 = vmatprep.subr.mxu0 0.0
        %5714 = vmatpush1.msra.mxu0 0.0
        %5715 = vmatprep.subr.mxu0 0.0
        %5716 = vmatpush1.msra.mxu0 0.0
        %5717 = vmatprep.subr.mxu0 0.0
        %5718 = vmatpush1.msra.mxu0 0.0
        %5719 = vmatprep.subr.mxu0 0.0
        %5720 = vmatpush1.msra.mxu0 0.0
        %5721 = vmatprep.subr.mxu0 0.0
        %5722 = vmatpush1.msra.mxu0 0.0
        %5723 = vmatprep.subr.mxu0 0.0
        %5724 = vmatpush1.msra.mxu0 0.0
        %5725 = vmatprep.subr.mxu0 0.0
        %5726 = vmatpush1.msra.mxu0 0.0
        %5727 = vmatprep.subr.mxu0 0.0
        %5728 = vmatpush1.msra.mxu0 0.0
        %5729 = vmatprep.subr.mxu0 0.0
        %5730 = vmatpush1.msra.mxu0 0.0
        %5731 = vmatprep.subr.mxu0 0.0
        %5732 = vmatpush1.msra.mxu0 0.0
        %5733 = vmatprep.subr.mxu0 0.0
        %5734 = vmatpush1.msra.mxu0 0.0
        %5735 = vmatprep.subr.mxu0 0.0
        %5736 = vmatpush1.msra.mxu0 0.0
        %5737 = vmatprep.subr.mxu0 0.0
        %5738 = vmatpush1.msra.mxu0 0.0
        %5739 = vmatprep.mubr.f32.mxu0 0.0
        %5740 = vmatmul.mubr.f32.gmra.mrb[0].mxu0 %v5670
        %v5741 = vpop.f32.mrb[0].mxu0
        %v5742 = vadd.f32 0.0, %v5741
        %v5743 = vpop.f32.mrb[0].mxu0
        %5744 = vmatprep.mubr.f32.mxu0 0.0
        %5745 = vmatmul.mubr.f32.gmra.mrb[0].mxu0 %v5673
        %v5746 = vpop.f32.mrb[0].mxu0
        %v5747 = vadd.f32 0.0, %v5746
        %v5748 = vpop.f32.mrb[0].mxu0
        %5749 = vdwg.mxu0
        %5750 = vrot.lane.b32.xlu0 %v495, 44
        %v5751 = vpop.permute.xlu0 %5750
        %5752 = vrot.lane.b32.xlu0 %v500, 44
        %v5753 = vpop.permute.xlu0 %5752
        %v5757 = vsel %vm880, %v5657, 0
        %v5760 = vsel %vm880, %v5658, 0
        %5762 = vmatprep.subr.mxu0 0.0
        %5763 = vmatpush1.msra.mxu0 %v5751
        %5764 = vmatprep.subr.mxu0 0.0
        %5765 = vmatpush1.msra.mxu0 %v5753
        %5766 = vmatprep.subr.mxu0 0.0
        %5767 = vmatpush1.msra.mxu0 0.0
        %5768 = vmatprep.subr.mxu0 0.0
        %5769 = vmatpush1.msra.mxu0 0.0
        %5770 = vmatprep.subr.mxu0 0.0
        %5771 = vmatpush1.msra.mxu0 0.0
        %5772 = vmatprep.subr.mxu0 0.0
        %5773 = vmatpush1.msra.mxu0 0.0
        %5774 = vmatprep.subr.mxu0 0.0
        %5775 = vmatpush1.msra.mxu0 0.0
        %5776 = vmatprep.subr.mxu0 0.0
        %5777 = vmatpush1.msra.mxu0 0.0
        %5778 = vmatprep.subr.mxu0 0.0
        %5779 = vmatpush1.msra.mxu0 0.0
        %5780 = vmatprep.subr.mxu0 0.0
        %5781 = vmatpush1.msra.mxu0 0.0
        %5782 = vmatprep.subr.mxu0 0.0
        %5783 = vmatpush1.msra.mxu0 0.0
        %5784 = vmatprep.subr.mxu0 0.0
        %5785 = vmatpush1.msra.mxu0 0.0
        %5786 = vmatprep.subr.mxu0 0.0
        %5787 = vmatpush1.msra.mxu0 0.0
        %5788 = vmatprep.subr.mxu0 0.0
        %5789 = vmatpush1.msra.mxu0 0.0
        %5790 = vmatprep.subr.mxu0 0.0
        %5791 = vmatpush1.msra.mxu0 0.0
        %5792 = vmatprep.subr.mxu0 0.0
        %5793 = vmatpush1.msra.mxu0 0.0
        %5794 = vmatprep.subr.mxu0 0.0
        %5795 = vmatpush1.msra.mxu0 0.0
        %5796 = vmatprep.subr.mxu0 0.0
        %5797 = vmatpush1.msra.mxu0 0.0
        %5798 = vmatprep.subr.mxu0 0.0
        %5799 = vmatpush1.msra.mxu0 0.0
        %5800 = vmatprep.subr.mxu0 0.0
        %5801 = vmatpush1.msra.mxu0 0.0
        %5802 = vmatprep.subr.mxu0 0.0
        %5803 = vmatpush1.msra.mxu0 0.0
        %5804 = vmatprep.subr.mxu0 0.0
        %5805 = vmatpush1.msra.mxu0 0.0
        %5806 = vmatprep.subr.mxu0 0.0
        %5807 = vmatpush1.msra.mxu0 0.0
        %5808 = vmatprep.subr.mxu0 0.0
        %5809 = vmatpush1.msra.mxu0 0.0
        %5810 = vmatprep.subr.mxu0 0.0
        %5811 = vmatpush1.msra.mxu0 0.0
        %5812 = vmatprep.subr.mxu0 0.0
        %5813 = vmatpush1.msra.mxu0 0.0
        %5814 = vmatprep.subr.mxu0 0.0
        %5815 = vmatpush1.msra.mxu0 0.0
        %5816 = vmatprep.subr.mxu0 0.0
        %5817 = vmatpush1.msra.mxu0 0.0
        %5818 = vmatprep.subr.mxu0 0.0
        %5819 = vmatpush1.msra.mxu0 0.0
        %5820 = vmatprep.subr.mxu0 0.0
        %5821 = vmatpush1.msra.mxu0 0.0
        %5822 = vmatprep.subr.mxu0 0.0
        %5823 = vmatpush1.msra.mxu0 0.0
        %5824 = vmatprep.subr.mxu0 0.0
        %5825 = vmatpush1.msra.mxu0 0.0
        %5826 = vmatprep.mubr.f32.mxu0 0.0
        %5827 = vmatmul.mubr.f32.gmra.mrb[0].mxu0 %v5757
        %v5828 = vpop.f32.mrb[0].mxu0
        %v5829 = vadd.f32 0.0, %v5828
        %v5830 = vpop.f32.mrb[0].mxu0
        %5831 = vmatprep.mubr.f32.mxu0 0.0
        %5832 = vmatmul.mubr.f32.gmra.mrb[0].mxu0 %v5760
        %v5833 = vpop.f32.mrb[0].mxu0
        %v5834 = vadd.f32 0.0, %v5833
        %v5835 = vpop.f32.mrb[0].mxu0
        %5836 = vdwg.mxu0
        %5837 = vrot.lane.b32.xlu0 %v505, 44
        %v5838 = vpop.permute.xlu0 %5837
        %5839 = vrot.lane.b32.xlu0 %v510, 44
        %v5840 = vpop.permute.xlu0 %5839
        %v5844 = vsel %vm880, %v5659, 0
        %v5847 = vsel %vm880, %v5660, 0
        %5849 = vmatprep.subr.mxu0 0.0
        %5850 = vmatpush1.msra.mxu0 %v5838
        %5851 = vmatprep.subr.mxu0 0.0
        %5852 = vmatpush1.msra.mxu0 %v5840
        %5853 = vmatprep.subr.mxu0 0.0
        %5854 = vmatpush1.msra.mxu0 0.0
        %5855 = vmatprep.subr.mxu0 0.0
        %5856 = vmatpush1.msra.mxu0 0.0
        %5857 = vmatprep.subr.mxu0 0.0
        %5858 = vmatpush1.msra.mxu0 0.0
        %5859 = vmatprep.subr.mxu0 0.0
        %5860 = vmatpush1.msra.mxu0 0.0
        %5861 = vmatprep.subr.mxu0 0.0
        %5862 = vmatpush1.msra.mxu0 0.0
        %5863 = vmatprep.subr.mxu0 0.0
        %5864 = vmatpush1.msra.mxu0 0.0
        %5865 = vmatprep.subr.mxu0 0.0
        %5866 = vmatpush1.msra.mxu0 0.0
        %5867 = vmatprep.subr.mxu0 0.0
        %5868 = vmatpush1.msra.mxu0 0.0
        %5869 = vmatprep.subr.mxu0 0.0
        %5870 = vmatpush1.msra.mxu0 0.0
        %5871 = vmatprep.subr.mxu0 0.0
        %5872 = vmatpush1.msra.mxu0 0.0
        %5873 = vmatprep.subr.mxu0 0.0
        %5874 = vmatpush1.msra.mxu0 0.0
        %5875 = vmatprep.subr.mxu0 0.0
        %5876 = vmatpush1.msra.mxu0 0.0
        %5877 = vmatprep.subr.mxu0 0.0
        %5878 = vmatpush1.msra.mxu0 0.0
        %5879 = vmatprep.subr.mxu0 0.0
        %5880 = vmatpush1.msra.mxu0 0.0
        %5881 = vmatprep.subr.mxu0 0.0
        %5882 = vmatpush1.msra.mxu0 0.0
        %5883 = vmatprep.subr.mxu0 0.0
        %5884 = vmatpush1.msra.mxu0 0.0
        %5885 = vmatprep.subr.mxu0 0.0
        %5886 = vmatpush1.msra.mxu0 0.0
        %5887 = vmatprep.subr.mxu0 0.0
        %5888 = vmatpush1.msra.mxu0 0.0
        %5889 = vmatprep.subr.mxu0 0.0
        %5890 = vmatpush1.msra.mxu0 0.0
        %5891 = vmatprep.subr.mxu0 0.0
        %5892 = vmatpush1.msra.mxu0 0.0
        %5893 = vmatprep.subr.mxu0 0.0
        %5894 = vmatpush1.msra.mxu0 0.0
        %5895 = vmatprep.subr.mxu0 0.0
        %5896 = vmatpush1.msra.mxu0 0.0
        %5897 = vmatprep.subr.mxu0 0.0
        %5898 = vmatpush1.msra.mxu0 0.0
        %5899 = vmatprep.subr.mxu0 0.0
        %5900 = vmatpush1.msra.mxu0 0.0
        %5901 = vmatprep.subr.mxu0 0.0
        %5902 = vmatpush1.msra.mxu0 0.0
        %5903 = vmatprep.subr.mxu0 0.0
        %5904 = vmatpush1.msra.mxu0 0.0
        %5905 = vmatprep.subr.mxu0 0.0
        %5906 = vmatpush1.msra.mxu0 0.0
        %5907 = vmatprep.subr.mxu0 0.0
        %5908 = vmatpush1.msra.mxu0 0.0
        %5909 = vmatprep.subr.mxu0 0.0
        %5910 = vmatpush1.msra.mxu0 0.0
        %5911 = vmatprep.subr.mxu0 0.0
        %5912 = vmatpush1.msra.mxu0 0.0
        %5913 = vmatprep.mubr.f32.mxu0 0.0
        %5914 = vmatmul.mubr.f32.gmra.mrb[0].mxu0 %v5844
        %v5915 = vpop.f32.mrb[0].mxu0
        %v5916 = vadd.f32 0.0, %v5915
        %v5917 = vpop.f32.mrb[0].mxu0
        %5918 = vmatprep.mubr.f32.mxu0 0.0
        %5919 = vmatmul.mubr.f32.gmra.mrb[0].mxu0 %v5847
        %v5920 = vpop.f32.mrb[0].mxu0
        %v5921 = vadd.f32 0.0, %v5920
        %v5922 = vpop.f32.mrb[0].mxu0
        %5923 = vdwg.mxu0
        %5924 = vrot.lane.b32.xlu0 %v515, 44
        %v5925 = vpop.permute.xlu0 %5924
        %5926 = vrot.lane.b32.xlu0 %v520, 44
        %v5927 = vpop.permute.xlu0 %5926
        %v5931 = vsel %vm880, %v5661, 0
        %v5934 = vsel %vm880, %v5662, 0
        %5936 = vmatprep.subr.mxu0 0.0
        %5937 = vmatpush1.msra.mxu0 %v5925
        %5938 = vmatprep.subr.mxu0 0.0
        %5939 = vmatpush1.msra.mxu0 %v5927
        %5940 = vmatprep.subr.mxu0 0.0
        %5941 = vmatpush1.msra.mxu0 0.0
        %5942 = vmatprep.subr.mxu0 0.0
        %5943 = vmatpush1.msra.mxu0 0.0
        %5944 = vmatprep.subr.mxu0 0.0
        %5945 = vmatpush1.msra.mxu0 0.0
        %5946 = vmatprep.subr.mxu0 0.0
        %5947 = vmatpush1.msra.mxu0 0.0
        %5948 = vmatprep.subr.mxu0 0.0
        %5949 = vmatpush1.msra.mxu0 0.0
        %5950 = vmatprep.subr.mxu0 0.0
        %5951 = vmatpush1.msra.mxu0 0.0
        %5952 = vmatprep.subr.mxu0 0.0
        %5953 = vmatpush1.msra.mxu0 0.0
        %5954 = vmatprep.subr.mxu0 0.0
        %5955 = vmatpush1.msra.mxu0 0.0
        %5956 = vmatprep.subr.mxu0 0.0
        %5957 = vmatpush1.msra.mxu0 0.0
        %5958 = vmatprep.subr.mxu0 0.0
        %5959 = vmatpush1.msra.mxu0 0.0
        %5960 = vmatprep.subr.mxu0 0.0
        %5961 = vmatpush1.msra.mxu0 0.0
        %5962 = vmatprep.subr.mxu0 0.0
        %5963 = vmatpush1.msra.mxu0 0.0
        %5964 = vmatprep.subr.mxu0 0.0
        %5965 = vmatpush1.msra.mxu0 0.0
        %5966 = vmatprep.subr.mxu0 0.0
        %5967 = vmatpush1.msra.mxu0 0.0
        %5968 = vmatprep.subr.mxu0 0.0
        %5969 = vmatpush1.msra.mxu0 0.0
        %5970 = vmatprep.subr.mxu0 0.0
        %5971 = vmatpush1.msra.mxu0 0.0
        %5972 = vmatprep.subr.mxu0 0.0
        %5973 = vmatpush1.msra.mxu0 0.0
        %5974 = vmatprep.subr.mxu0 0.0
        %5975 = vmatpush1.msra.mxu0 0.0
        %5976 = vmatprep.subr.mxu0 0.0
        %5977 = vmatpush1.msra.mxu0 0.0
        %5978 = vmatprep.subr.mxu0 0.0
        %5979 = vmatpush1.msra.mxu0 0.0
        %5980 = vmatprep.subr.mxu0 0.0
        %5981 = vmatpush1.msra.mxu0 0.0
        %5982 = vmatprep.subr.mxu0 0.0
        %5983 = vmatpush1.msra.mxu0 0.0
        %5984 = vmatprep.subr.mxu0 0.0
        %5985 = vmatpush1.msra.mxu0 0.0
        %5986 = vmatprep.subr.mxu0 0.0
        %5987 = vmatpush1.msra.mxu0 0.0
        %5988 = vmatprep.subr.mxu0 0.0
        %5989 = vmatpush1.msra.mxu0 0.0
        %5990 = vmatprep.subr.mxu0 0.0
        %5991 = vmatpush1.msra.mxu0 0.0
        %5992 = vmatprep.subr.mxu0 0.0
        %5993 = vmatpush1.msra.mxu0 0.0
        %5994 = vmatprep.subr.mxu0 0.0
        %5995 = vmatpush1.msra.mxu0 0.0
        %5996 = vmatprep.subr.mxu0 0.0
        %5997 = vmatpush1.msra.mxu0 0.0
        %5998 = vmatprep.subr.mxu0 0.0
        %5999 = vmatpush1.msra.mxu0 0.0
        %6000 = vmatprep.mubr.f32.mxu0 0.0
        %6001 = vmatmul.mubr.f32.gmra.mrb[0].mxu0 %v5931
        %v6002 = vpop.f32.mrb[0].mxu0
        %v6003 = vadd.f32 0.0, %v6002
        %v6004 = vpop.f32.mrb[0].mxu0
        %6005 = vmatprep.mubr.f32.mxu0 0.0
        %6006 = vmatmul.mubr.f32.gmra.mrb[0].mxu0 %v5934
        %v6007 = vpop.f32.mrb[0].mxu0
        %v6008 = vadd.f32 0.0, %v6007
        %v6009 = vpop.f32.mrb[0].mxu0
        %6010 = vdwg.mxu0
        %s6011 = scalar_lea.vmem %s3, 20
        %v6012 = vld [vmem:[%s6011] sm:$0xf]
        %v6014 = vsel %vm529, %v5742, 0
        %v6017 = vsel %vm529, %v5747, 0
        %v6020 = vsel %vm529, %v5829, 0
        %v6023 = vsel %vm529, %v5834, 0
        %v6026 = vsel %vm529, %v5916, 0
        %v6029 = vsel %vm529, %v5921, 0
        %v6032 = vsel %vm529, %v6003, 0
        %v6035 = vsel %vm529, %v6008, 0
        %v6038 = vsel %vm2144, %v6012, 0
        %6040 = vmatprep.subr.mxu0 0.0
        %6041 = vmatpush1.msra.mxu0 %v6038
        %6042 = vmatprep.subr.mxu0 0.0
        %6043 = vmatpush1.msra.mxu0 0.0
        %6044 = vmatprep.subr.mxu0 0.0
        %6045 = vmatpush1.msra.mxu0 0.0
        %6046 = vmatprep.subr.mxu0 0.0
        %6047 = vmatpush1.msra.mxu0 0.0
        %6048 = vmatprep.subr.mxu0 0.0
        %6049 = vmatpush1.msra.mxu0 0.0
        %6050 = vmatprep.subr.mxu0 0.0
        %6051 = vmatpush1.msra.mxu0 0.0
        %6052 = vmatprep.subr.mxu0 0.0
        %6053 = vmatpush1.msra.mxu0 0.0
        %6054 = vmatprep.subr.mxu0 0.0
        %6055 = vmatpush1.msra.mxu0 0.0
        %6056 = vmatprep.subr.mxu0 0.0
        %6057 = vmatpush1.msra.mxu0 0.0
        %6058 = vmatprep.subr.mxu0 0.0
        %6059 = vmatpush1.msra.mxu0 0.0
        %6060 = vmatprep.subr.mxu0 0.0
        %6061 = vmatpush1.msra.mxu0 0.0
        %6062 = vmatprep.subr.mxu0 0.0
        %6063 = vmatpush1.msra.mxu0 0.0
        %6064 = vmatprep.subr.mxu0 0.0
        %6065 = vmatpush1.msra.mxu0 0.0
        %6066 = vmatprep.subr.mxu0 0.0
        %6067 = vmatpush1.msra.mxu0 0.0
        %6068 = vmatprep.subr.mxu0 0.0
        %6069 = vmatpush1.msra.mxu0 0.0
        %6070 = vmatprep.subr.mxu0 0.0
        %6071 = vmatpush1.msra.mxu0 0.0
        %6072 = vmatprep.subr.mxu0 0.0
        %6073 = vmatpush1.msra.mxu0 0.0
        %6074 = vmatprep.subr.mxu0 0.0
        %6075 = vmatpush1.msra.mxu0 0.0
        %6076 = vmatprep.subr.mxu0 0.0
        %6077 = vmatpush1.msra.mxu0 0.0
        %6078 = vmatprep.subr.mxu0 0.0
        %6079 = vmatpush1.msra.mxu0 0.0
        %6080 = vmatprep.subr.mxu0 0.0
        %6081 = vmatpush1.msra.mxu0 0.0
        %6082 = vmatprep.subr.mxu0 0.0
        %6083 = vmatpush1.msra.mxu0 0.0
        %6084 = vmatprep.subr.mxu0 0.0
        %6085 = vmatpush1.msra.mxu0 0.0
        %6086 = vmatprep.subr.mxu0 0.0
        %6087 = vmatpush1.msra.mxu0 0.0
        %6088 = vmatprep.subr.mxu0 0.0
        %6089 = vmatpush1.msra.mxu0 0.0
        %6090 = vmatprep.subr.mxu0 0.0
        %6091 = vmatpush1.msra.mxu0 0.0
        %6092 = vmatprep.subr.mxu0 0.0
        %6093 = vmatpush1.msra.mxu0 0.0
        %6094 = vmatprep.subr.mxu0 0.0
        %6095 = vmatpush1.msra.mxu0 0.0
        %6096 = vmatprep.subr.mxu0 0.0
        %6097 = vmatpush1.msra.mxu0 0.0
        %6098 = vmatprep.subr.mxu0 0.0
        %6099 = vmatpush1.msra.mxu0 0.0
        %6100 = vmatprep.subr.mxu0 0.0
        %6101 = vmatpush1.msra.mxu0 0.0
        %6102 = vmatprep.subr.mxu0 0.0
        %6103 = vmatpush1.msra.mxu0 0.0
        %6104 = vmatprep.mubr.f32.mxu0 0.0
        %6105 = vmatmul.mubr.f32.gmra.mrb[0].mxu0 %v6014
        %v6106 = vpop.f32.mrb[0].mxu0
        %v6107 = vadd.f32 0.0, %v6106
        %v6108 = vpop.f32.mrb[0].mxu0
        %6109 = vmatprep.mubr.f32.mxu0 0.0
        %6110 = vmatmul.mubr.f32.gmra.mrb[0].mxu0 %v6017
        %v6111 = vpop.f32.mrb[0].mxu0
        %v6112 = vadd.f32 0.0, %v6111
        %v6113 = vpop.f32.mrb[0].mxu0
        %6114 = vmatprep.mubr.f32.mxu0 0.0
        %6115 = vmatmul.mubr.f32.gmra.mrb[0].mxu0 %v6020
        %v6116 = vpop.f32.mrb[0].mxu0
        %v6117 = vadd.f32 0.0, %v6116
        %v6118 = vpop.f32.mrb[0].mxu0
        %6119 = vmatprep.mubr.f32.mxu0 0.0
        %6120 = vmatmul.mubr.f32.gmra.mrb[0].mxu0 %v6023
        %v6121 = vpop.f32.mrb[0].mxu0
        %v6122 = vadd.f32 0.0, %v6121
        %v6123 = vpop.f32.mrb[0].mxu0
        %6124 = vmatprep.mubr.f32.mxu0 0.0
        %6125 = vmatmul.mubr.f32.gmra.mrb[0].mxu0 %v6026
        %v6126 = vpop.f32.mrb[0].mxu0
        %v6127 = vadd.f32 0.0, %v6126
        %v6128 = vpop.f32.mrb[0].mxu0
        %6129 = vmatprep.mubr.f32.mxu0 0.0
        %6130 = vmatmul.mubr.f32.gmra.mrb[0].mxu0 %v6029
        %v6131 = vpop.f32.mrb[0].mxu0
        %v6132 = vadd.f32 0.0, %v6131
        %v6133 = vpop.f32.mrb[0].mxu0
        %6134 = vmatprep.mubr.f32.mxu0 0.0
        %6135 = vmatmul.mubr.f32.gmra.mrb[0].mxu0 %v6032
        %v6136 = vpop.f32.mrb[0].mxu0
        %v6137 = vadd.f32 0.0, %v6136
        %v6138 = vpop.f32.mrb[0].mxu0
        %6139 = vmatprep.mubr.f32.mxu0 0.0
        %6140 = vmatmul.mubr.f32.gmra.mrb[0].mxu0 %v6035
        %v6141 = vpop.f32.mrb[0].mxu0
        %v6142 = vadd.f32 0.0, %v6141
        %v6143 = vpop.f32.mrb[0].mxu0
        %6144 = vdwg.mxu0
        %v6145 = vadd.f32 %v5203, %v6107
        %v6146 = vadd.f32 %v5204, %v6112
        %v6147 = vadd.f32 %v5205, %v6117
        %v6148 = vadd.f32 %v5206, %v6122
        %v6149 = vadd.f32 %v5207, %v6127
        %v6150 = vadd.f32 %v5208, %v6132
        %v6151 = vadd.f32 %v5209, %v6137
        %v6152 = vadd.f32 %v5210, %v6142
        %6153 = vrot.lane.b32.xlu0 %v485, 104
        %v6154 = vpop.permute.xlu0 %6153
        %6155 = vrot.lane.b32.xlu0 %v490, 104
        %v6156 = vpop.permute.xlu0 %6155
        %6157 = vrot.lane.b32.xlu0 %v485, 72
        %v6158 = vpop.permute.xlu0 %6157
        %6159 = vrot.lane.b32.xlu0 %v490, 72
        %v6160 = vpop.permute.xlu0 %6159
        %v6161 = vsel %vm529, %v6154, 0
        %v6163 = vsel %vm529, %v6156, 0
        %v6165 = vsel %vm529, %v6158, 0
        %v6167 = vsel %vm529, %v6160, 0
        %6169 = vmatprep.subr.mxu0 0.0
        %6170 = vmatpush1.xpose.msra.mxu0 %v6165
        %6171 = vmatprep.subr.mxu0 0.0
        %6172 = vmatpush1.xpose.msra.mxu0 %v6167
        %6173 = vmatprep.subr.mxu0 0.0
        %6174 = vmatpush1.xpose.msra.mxu0 0.0
        %6175 = vmatprep.subr.mxu0 0.0
        %6176 = vmatpush1.xpose.msra.mxu0 0.0
        %6177 = vmatprep.subr.mxu0 0.0
        %6178 = vmatpush1.xpose.msra.mxu0 0.0
        %6179 = vmatprep.subr.mxu0 0.0
        %6180 = vmatpush1.xpose.msra.mxu0 0.0
        %6181 = vmatprep.subr.mxu0 0.0
        %6182 = vmatpush1.xpose.msra.mxu0 0.0
        %6183 = vmatprep.subr.mxu0 0.0
        %6184 = vmatpush1.xpose.msra.mxu0 0.0
        %6185 = vmatprep.subr.mxu0 0.0
        %6186 = vmatpush1.xpose.msra.mxu0 0.0
        %6187 = vmatprep.subr.mxu0 0.0
        %6188 = vmatpush1.xpose.msra.mxu0 0.0
        %6189 = vmatprep.subr.mxu0 0.0
        %6190 = vmatpush1.xpose.msra.mxu0 0.0
        %6191 = vmatprep.subr.mxu0 0.0
        %6192 = vmatpush1.xpose.msra.mxu0 0.0
        %6193 = vmatprep.subr.mxu0 0.0
        %6194 = vmatpush1.xpose.msra.mxu0 0.0
        %6195 = vmatprep.subr.mxu0 0.0
        %6196 = vmatpush1.xpose.msra.mxu0 0.0
        %6197 = vmatprep.subr.mxu0 0.0
        %6198 = vmatpush1.xpose.msra.mxu0 0.0
        %6199 = vmatprep.subr.mxu0 0.0
        %6200 = vmatpush1.xpose.msra.mxu0 0.0
        %6201 = vmatprep.subr.mxu0 0.0
        %6202 = vmatpush1.xpose.msra.mxu0 0.0
        %6203 = vmatprep.subr.mxu0 0.0
        %6204 = vmatpush1.xpose.msra.mxu0 0.0
        %6205 = vmatprep.subr.mxu0 0.0
        %6206 = vmatpush1.xpose.msra.mxu0 0.0
        %6207 = vmatprep.subr.mxu0 0.0
        %6208 = vmatpush1.xpose.msra.mxu0 0.0
        %6209 = vmatprep.subr.mxu0 0.0
        %6210 = vmatpush1.xpose.msra.mxu0 0.0
        %6211 = vmatprep.subr.mxu0 0.0
        %6212 = vmatpush1.xpose.msra.mxu0 0.0
        %6213 = vmatprep.subr.mxu0 0.0
        %6214 = vmatpush1.xpose.msra.mxu0 0.0
        %6215 = vmatprep.subr.mxu0 0.0
        %6216 = vmatpush1.xpose.msra.mxu0 0.0
        %6217 = vmatprep.subr.mxu0 0.0
        %6218 = vmatpush1.xpose.msra.mxu0 0.0
        %6219 = vmatprep.subr.mxu0 0.0
        %6220 = vmatpush1.xpose.msra.mxu0 0.0
        %6221 = vmatprep.subr.mxu0 0.0
        %6222 = vmatpush1.xpose.msra.mxu0 0.0
        %6223 = vmatprep.subr.mxu0 0.0
        %6224 = vmatpush1.xpose.msra.mxu0 0.0
        %6225 = vmatprep.subr.mxu0 0.0
        %6226 = vmatpush1.xpose.msra.mxu0 0.0
        %6227 = vmatprep.subr.mxu0 0.0
        %6228 = vmatpush1.xpose.msra.mxu0 0.0
        %6229 = vmatprep.subr.mxu0 0.0
        %6230 = vmatpush1.xpose.msra.mxu0 0.0
        %6231 = vmatprep.subr.mxu0 0.0
        %6232 = vmatpush1.xpose.msra.mxu0 0.0
        %6233 = vmatprep.mubr.f32.mxu0 0.0
        %6234 = vmatmul.mubr.f32.gmra.mrb[0].mxu0 %v6161
        %v6235 = vpop.f32.mrb[0].mxu0
        %v6236 = vadd.f32 0.0, %v6235
        %v6237 = vpop.f32.mrb[0].mxu0
        %6238 = vmatprep.mubr.f32.mxu0 0.0
        %6239 = vmatmul.mubr.f32.gmra.mrb[0].mxu0 %v6163
        %v6240 = vpop.f32.mrb[0].mxu0
        %v6241 = vadd.f32 0.0, %v6240
        %v6242 = vpop.f32.mrb[0].mxu0
        %6243 = vdwg.mxu0
        %6244 = vrot.lane.b32.xlu0 %v495, 104
        %v6245 = vpop.permute.xlu0 %6244
        %6246 = vrot.lane.b32.xlu0 %v500, 104
        %v6247 = vpop.permute.xlu0 %6246
        %6248 = vrot.lane.b32.xlu0 %v495, 72
        %v6249 = vpop.permute.xlu0 %6248
        %6250 = vrot.lane.b32.xlu0 %v500, 72
        %v6251 = vpop.permute.xlu0 %6250
        %v6252 = vsel %vm529, %v6245, 0
        %v6254 = vsel %vm529, %v6247, 0
        %v6256 = vsel %vm529, %v6249, 0
        %v6258 = vsel %vm529, %v6251, 0
        %6260 = vmatprep.subr.mxu0 0.0
        %6261 = vmatpush1.xpose.msra.mxu0 %v6256
        %6262 = vmatprep.subr.mxu0 0.0
        %6263 = vmatpush1.xpose.msra.mxu0 %v6258
        %6264 = vmatprep.subr.mxu0 0.0
        %6265 = vmatpush1.xpose.msra.mxu0 0.0
        %6266 = vmatprep.subr.mxu0 0.0
        %6267 = vmatpush1.xpose.msra.mxu0 0.0
        %6268 = vmatprep.subr.mxu0 0.0
        %6269 = vmatpush1.xpose.msra.mxu0 0.0
        %6270 = vmatprep.subr.mxu0 0.0
        %6271 = vmatpush1.xpose.msra.mxu0 0.0
        %6272 = vmatprep.subr.mxu0 0.0
        %6273 = vmatpush1.xpose.msra.mxu0 0.0
        %6274 = vmatprep.subr.mxu0 0.0
        %6275 = vmatpush1.xpose.msra.mxu0 0.0
        %6276 = vmatprep.subr.mxu0 0.0
        %6277 = vmatpush1.xpose.msra.mxu0 0.0
        %6278 = vmatprep.subr.mxu0 0.0
        %6279 = vmatpush1.xpose.msra.mxu0 0.0
        %6280 = vmatprep.subr.mxu0 0.0
        %6281 = vmatpush1.xpose.msra.mxu0 0.0
        %6282 = vmatprep.subr.mxu0 0.0
        %6283 = vmatpush1.xpose.msra.mxu0 0.0
        %6284 = vmatprep.subr.mxu0 0.0
        %6285 = vmatpush1.xpose.msra.mxu0 0.0
        %6286 = vmatprep.subr.mxu0 0.0
        %6287 = vmatpush1.xpose.msra.mxu0 0.0
        %6288 = vmatprep.subr.mxu0 0.0
        %6289 = vmatpush1.xpose.msra.mxu0 0.0
        %6290 = vmatprep.subr.mxu0 0.0
        %6291 = vmatpush1.xpose.msra.mxu0 0.0
        %6292 = vmatprep.subr.mxu0 0.0
        %6293 = vmatpush1.xpose.msra.mxu0 0.0
        %6294 = vmatprep.subr.mxu0 0.0
        %6295 = vmatpush1.xpose.msra.mxu0 0.0
        %6296 = vmatprep.subr.mxu0 0.0
        %6297 = vmatpush1.xpose.msra.mxu0 0.0
        %6298 = vmatprep.subr.mxu0 0.0
        %6299 = vmatpush1.xpose.msra.mxu0 0.0
        %6300 = vmatprep.subr.mxu0 0.0
        %6301 = vmatpush1.xpose.msra.mxu0 0.0
        %6302 = vmatprep.subr.mxu0 0.0
        %6303 = vmatpush1.xpose.msra.mxu0 0.0
        %6304 = vmatprep.subr.mxu0 0.0
        %6305 = vmatpush1.xpose.msra.mxu0 0.0
        %6306 = vmatprep.subr.mxu0 0.0
        %6307 = vmatpush1.xpose.msra.mxu0 0.0
        %6308 = vmatprep.subr.mxu0 0.0
        %6309 = vmatpush1.xpose.msra.mxu0 0.0
        %6310 = vmatprep.subr.mxu0 0.0
        %6311 = vmatpush1.xpose.msra.mxu0 0.0
        %6312 = vmatprep.subr.mxu0 0.0
        %6313 = vmatpush1.xpose.msra.mxu0 0.0
        %6314 = vmatprep.subr.mxu0 0.0
        %6315 = vmatpush1.xpose.msra.mxu0 0.0
        %6316 = vmatprep.subr.mxu0 0.0
        %6317 = vmatpush1.xpose.msra.mxu0 0.0
        %6318 = vmatprep.subr.mxu0 0.0
        %6319 = vmatpush1.xpose.msra.mxu0 0.0
        %6320 = vmatprep.subr.mxu0 0.0
        %6321 = vmatpush1.xpose.msra.mxu0 0.0
        %6322 = vmatprep.subr.mxu0 0.0
        %6323 = vmatpush1.xpose.msra.mxu0 0.0
        %6324 = vmatprep.mubr.f32.mxu0 0.0
        %6325 = vmatmul.mubr.f32.gmra.mrb[0].mxu0 %v6252
        %v6326 = vpop.f32.mrb[0].mxu0
        %v6327 = vadd.f32 0.0, %v6326
        %v6328 = vpop.f32.mrb[0].mxu0
        %6329 = vmatprep.mubr.f32.mxu0 0.0
        %6330 = vmatmul.mubr.f32.gmra.mrb[0].mxu0 %v6254
        %v6331 = vpop.f32.mrb[0].mxu0
        %v6332 = vadd.f32 0.0, %v6331
        %v6333 = vpop.f32.mrb[0].mxu0
        %6334 = vdwg.mxu0
        %6335 = vrot.lane.b32.xlu0 %v505, 104
        %v6336 = vpop.permute.xlu0 %6335
        %6337 = vrot.lane.b32.xlu0 %v510, 104
        %v6338 = vpop.permute.xlu0 %6337
        %6339 = vrot.lane.b32.xlu0 %v505, 72
        %v6340 = vpop.permute.xlu0 %6339
        %6341 = vrot.lane.b32.xlu0 %v510, 72
        %v6342 = vpop.permute.xlu0 %6341
        %v6343 = vsel %vm529, %v6336, 0
        %v6345 = vsel %vm529, %v6338, 0
        %v6347 = vsel %vm529, %v6340, 0
        %v6349 = vsel %vm529, %v6342, 0
        %6351 = vmatprep.subr.mxu0 0.0
        %6352 = vmatpush1.xpose.msra.mxu0 %v6347
        %6353 = vmatprep.subr.mxu0 0.0
        %6354 = vmatpush1.xpose.msra.mxu0 %v6349
        %6355 = vmatprep.subr.mxu0 0.0
        %6356 = vmatpush1.xpose.msra.mxu0 0.0
        %6357 = vmatprep.subr.mxu0 0.0
        %6358 = vmatpush1.xpose.msra.mxu0 0.0
        %6359 = vmatprep.subr.mxu0 0.0
        %6360 = vmatpush1.xpose.msra.mxu0 0.0
        %6361 = vmatprep.subr.mxu0 0.0
        %6362 = vmatpush1.xpose.msra.mxu0 0.0
        %6363 = vmatprep.subr.mxu0 0.0
        %6364 = vmatpush1.xpose.msra.mxu0 0.0
        %6365 = vmatprep.subr.mxu0 0.0
        %6366 = vmatpush1.xpose.msra.mxu0 0.0
        %6367 = vmatprep.subr.mxu0 0.0
        %6368 = vmatpush1.xpose.msra.mxu0 0.0
        %6369 = vmatprep.subr.mxu0 0.0
        %6370 = vmatpush1.xpose.msra.mxu0 0.0
        %6371 = vmatprep.subr.mxu0 0.0
        %6372 = vmatpush1.xpose.msra.mxu0 0.0
        %6373 = vmatprep.subr.mxu0 0.0
        %6374 = vmatpush1.xpose.msra.mxu0 0.0
        %6375 = vmatprep.subr.mxu0 0.0
        %6376 = vmatpush1.xpose.msra.mxu0 0.0
        %6377 = vmatprep.subr.mxu0 0.0
        %6378 = vmatpush1.xpose.msra.mxu0 0.0
        %6379 = vmatprep.subr.mxu0 0.0
        %6380 = vmatpush1.xpose.msra.mxu0 0.0
        %6381 = vmatprep.subr.mxu0 0.0
        %6382 = vmatpush1.xpose.msra.mxu0 0.0
        %6383 = vmatprep.subr.mxu0 0.0
        %6384 = vmatpush1.xpose.msra.mxu0 0.0
        %6385 = vmatprep.subr.mxu0 0.0
        %6386 = vmatpush1.xpose.msra.mxu0 0.0
        %6387 = vmatprep.subr.mxu0 0.0
        %6388 = vmatpush1.xpose.msra.mxu0 0.0
        %6389 = vmatprep.subr.mxu0 0.0
        %6390 = vmatpush1.xpose.msra.mxu0 0.0
        %6391 = vmatprep.subr.mxu0 0.0
        %6392 = vmatpush1.xpose.msra.mxu0 0.0
        %6393 = vmatprep.subr.mxu0 0.0
        %6394 = vmatpush1.xpose.msra.mxu0 0.0
        %6395 = vmatprep.subr.mxu0 0.0
        %6396 = vmatpush1.xpose.msra.mxu0 0.0
        %6397 = vmatprep.subr.mxu0 0.0
        %6398 = vmatpush1.xpose.msra.mxu0 0.0
        %6399 = vmatprep.subr.mxu0 0.0
        %6400 = vmatpush1.xpose.msra.mxu0 0.0
        %6401 = vmatprep.subr.mxu0 0.0
        %6402 = vmatpush1.xpose.msra.mxu0 0.0
        %6403 = vmatprep.subr.mxu0 0.0
        %6404 = vmatpush1.xpose.msra.mxu0 0.0
        %6405 = vmatprep.subr.mxu0 0.0
        %6406 = vmatpush1.xpose.msra.mxu0 0.0
        %6407 = vmatprep.subr.mxu0 0.0
        %6408 = vmatpush1.xpose.msra.mxu0 0.0
        %6409 = vmatprep.subr.mxu0 0.0
        %6410 = vmatpush1.xpose.msra.mxu0 0.0
        %6411 = vmatprep.subr.mxu0 0.0
        %6412 = vmatpush1.xpose.msra.mxu0 0.0
        %6413 = vmatprep.subr.mxu0 0.0
        %6414 = vmatpush1.xpose.msra.mxu0 0.0
        %6415 = vmatprep.mubr.f32.mxu0 0.0
        %6416 = vmatmul.mubr.f32.gmra.mrb[0].mxu0 %v6343
        %v6417 = vpop.f32.mrb[0].mxu0
        %v6418 = vadd.f32 0.0, %v6417
        %v6419 = vpop.f32.mrb[0].mxu0
        %6420 = vmatprep.mubr.f32.mxu0 0.0
        %6421 = vmatmul.mubr.f32.gmra.mrb[0].mxu0 %v6345
        %v6422 = vpop.f32.mrb[0].mxu0
        %v6423 = vadd.f32 0.0, %v6422
        %v6424 = vpop.f32.mrb[0].mxu0
        %6425 = vdwg.mxu0
        %6426 = vrot.lane.b32.xlu0 %v515, 104
        %v6427 = vpop.permute.xlu0 %6426
        %6428 = vrot.lane.b32.xlu0 %v520, 104
        %v6429 = vpop.permute.xlu0 %6428
        %6430 = vrot.lane.b32.xlu0 %v515, 72
        %v6431 = vpop.permute.xlu0 %6430
        %6432 = vrot.lane.b32.xlu0 %v520, 72
        %v6433 = vpop.permute.xlu0 %6432
        %v6434 = vsel %vm529, %v6427, 0
        %v6436 = vsel %vm529, %v6429, 0
        %v6438 = vsel %vm529, %v6431, 0
        %v6440 = vsel %vm529, %v6433, 0
        %6442 = vmatprep.subr.mxu0 0.0
        %6443 = vmatpush1.xpose.msra.mxu0 %v6438
        %6444 = vmatprep.subr.mxu0 0.0
        %6445 = vmatpush1.xpose.msra.mxu0 %v6440
        %6446 = vmatprep.subr.mxu0 0.0
        %6447 = vmatpush1.xpose.msra.mxu0 0.0
        %6448 = vmatprep.subr.mxu0 0.0
        %6449 = vmatpush1.xpose.msra.mxu0 0.0
        %6450 = vmatprep.subr.mxu0 0.0
        %6451 = vmatpush1.xpose.msra.mxu0 0.0
        %6452 = vmatprep.subr.mxu0 0.0
        %6453 = vmatpush1.xpose.msra.mxu0 0.0
        %6454 = vmatprep.subr.mxu0 0.0
        %6455 = vmatpush1.xpose.msra.mxu0 0.0
        %6456 = vmatprep.subr.mxu0 0.0
        %6457 = vmatpush1.xpose.msra.mxu0 0.0
        %6458 = vmatprep.subr.mxu0 0.0
        %6459 = vmatpush1.xpose.msra.mxu0 0.0
        %6460 = vmatprep.subr.mxu0 0.0
        %6461 = vmatpush1.xpose.msra.mxu0 0.0
        %6462 = vmatprep.subr.mxu0 0.0
        %6463 = vmatpush1.xpose.msra.mxu0 0.0
        %6464 = vmatprep.subr.mxu0 0.0
        %6465 = vmatpush1.xpose.msra.mxu0 0.0
        %6466 = vmatprep.subr.mxu0 0.0
        %6467 = vmatpush1.xpose.msra.mxu0 0.0
        %6468 = vmatprep.subr.mxu0 0.0
        %6469 = vmatpush1.xpose.msra.mxu0 0.0
        %6470 = vmatprep.subr.mxu0 0.0
        %6471 = vmatpush1.xpose.msra.mxu0 0.0
        %6472 = vmatprep.subr.mxu0 0.0
        %6473 = vmatpush1.xpose.msra.mxu0 0.0
        %6474 = vmatprep.subr.mxu0 0.0
        %6475 = vmatpush1.xpose.msra.mxu0 0.0
        %6476 = vmatprep.subr.mxu0 0.0
        %6477 = vmatpush1.xpose.msra.mxu0 0.0
        %6478 = vmatprep.subr.mxu0 0.0
        %6479 = vmatpush1.xpose.msra.mxu0 0.0
        %6480 = vmatprep.subr.mxu0 0.0
        %6481 = vmatpush1.xpose.msra.mxu0 0.0
        %6482 = vmatprep.subr.mxu0 0.0
        %6483 = vmatpush1.xpose.msra.mxu0 0.0
        %6484 = vmatprep.subr.mxu0 0.0
        %6485 = vmatpush1.xpose.msra.mxu0 0.0
        %6486 = vmatprep.subr.mxu0 0.0
        %6487 = vmatpush1.xpose.msra.mxu0 0.0
        %6488 = vmatprep.subr.mxu0 0.0
        %6489 = vmatpush1.xpose.msra.mxu0 0.0
        %6490 = vmatprep.subr.mxu0 0.0
        %6491 = vmatpush1.xpose.msra.mxu0 0.0
        %6492 = vmatprep.subr.mxu0 0.0
        %6493 = vmatpush1.xpose.msra.mxu0 0.0
        %6494 = vmatprep.subr.mxu0 0.0
        %6495 = vmatpush1.xpose.msra.mxu0 0.0
        %6496 = vmatprep.subr.mxu0 0.0
        %6497 = vmatpush1.xpose.msra.mxu0 0.0
        %6498 = vmatprep.subr.mxu0 0.0
        %6499 = vmatpush1.xpose.msra.mxu0 0.0
        %6500 = vmatprep.subr.mxu0 0.0
        %6501 = vmatpush1.xpose.msra.mxu0 0.0
        %6502 = vmatprep.subr.mxu0 0.0
        %6503 = vmatpush1.xpose.msra.mxu0 0.0
        %6504 = vmatprep.subr.mxu0 0.0
        %6505 = vmatpush1.xpose.msra.mxu0 0.0
        %6506 = vmatprep.mubr.f32.mxu0 0.0
        %6507 = vmatmul.mubr.f32.gmra.mrb[0].mxu0 %v6434
        %v6508 = vpop.f32.mrb[0].mxu0
        %v6509 = vadd.f32 0.0, %v6508
        %v6510 = vpop.f32.mrb[0].mxu0
        %6511 = vmatprep.mubr.f32.mxu0 0.0
        %6512 = vmatmul.mubr.f32.gmra.mrb[0].mxu0 %v6436
        %v6513 = vpop.f32.mrb[0].mxu0
        %v6514 = vadd.f32 0.0, %v6513
        %v6515 = vpop.f32.mrb[0].mxu0
        %6516 = vdwg.mxu0
        %v6517 = vsel %vm880, %v6236, -inf
        %6518 = vmax.xlane.f32.xlu0 %v6517
        %v6519 = vpop.xlane.xlu0 %6518
        %v6520 = vsel %vm880, %v6241, -inf
        %6521 = vmax.xlane.f32.xlu0 %v6520
        %v6522 = vpop.xlane.xlu0 %6521
        %v6523 = vsel %vm880, %v6327, -inf
        %6524 = vmax.xlane.f32.xlu0 %v6523
        %v6525 = vpop.xlane.xlu0 %6524
        %v6526 = vsel %vm880, %v6332, -inf
        %6527 = vmax.xlane.f32.xlu0 %v6526
        %v6528 = vpop.xlane.xlu0 %6527
        %v6529 = vsel %vm880, %v6418, -inf
        %6530 = vmax.xlane.f32.xlu0 %v6529
        %v6531 = vpop.xlane.xlu0 %6530
        %v6532 = vsel %vm880, %v6423, -inf
        %6533 = vmax.xlane.f32.xlu0 %v6532
        %v6534 = vpop.xlane.xlu0 %6533
        %v6535 = vsel %vm880, %v6509, -inf
        %6536 = vmax.xlane.f32.xlu0 %v6535
        %v6537 = vpop.xlane.xlu0 %6536
        %v6538 = vsel %vm880, %v6514, -inf
        %6539 = vmax.xlane.f32.xlu0 %v6538
        %v6540 = vpop.xlane.xlu0 %6539
        %v6541 = vsub.f32 %v6236, %v6519
        %v6542 = vsub.f32 %v6241, %v6522
        %v6543 = vsub.f32 %v6327, %v6525
        %v6544 = vsub.f32 %v6332, %v6528
        %v6545 = vsub.f32 %v6418, %v6531
        %v6546 = vsub.f32 %v6423, %v6534
        %v6547 = vsub.f32 %v6509, %v6537
        %v6548 = vsub.f32 %v6514, %v6540
        %v6549 = vmul.f32 %v6541, 1.442695
        %v6550 = vpow.pop %v6549
        %v6551 = vmul.f32 %v6542, 1.442695
        %v6552 = vpow.pop %v6551
        %v6553 = vmul.f32 %v6543, 1.442695
        %v6554 = vpow.pop %v6553
        %v6555 = vmul.f32 %v6544, 1.442695
        %v6556 = vpow.pop %v6555
        %v6557 = vmul.f32 %v6545, 1.442695
        %v6558 = vpow.pop %v6557
        %v6559 = vmul.f32 %v6546, 1.442695
        %v6560 = vpow.pop %v6559
        %v6561 = vmul.f32 %v6547, 1.442695
        %v6562 = vpow.pop %v6561
        %v6563 = vmul.f32 %v6548, 1.442695
        %v6564 = vpow.pop %v6563
        %v6565 = vsel %vm880, %v6550, 0.0
        %6566 = vadd.xlane.f32.xlu0 %v6565
        %v6567 = vpop.xlane.xlu0 %6566
        %v6568 = vsel %vm880, %v6552, 0.0
        %6569 = vadd.xlane.f32.xlu0 %v6568
        %v6570 = vpop.xlane.xlu0 %6569
        %v6571 = vsel %vm880, %v6554, 0.0
        %6572 = vadd.xlane.f32.xlu0 %v6571
        %v6573 = vpop.xlane.xlu0 %6572
        %v6574 = vsel %vm880, %v6556, 0.0
        %6575 = vadd.xlane.f32.xlu0 %v6574
        %v6576 = vpop.xlane.xlu0 %6575
        %v6577 = vsel %vm880, %v6558, 0.0
        %6578 = vadd.xlane.f32.xlu0 %v6577
        %v6579 = vpop.xlane.xlu0 %6578
        %v6580 = vsel %vm880, %v6560, 0.0
        %6581 = vadd.xlane.f32.xlu0 %v6580
        %v6582 = vpop.xlane.xlu0 %6581
        %v6583 = vsel %vm880, %v6562, 0.0
        %6584 = vadd.xlane.f32.xlu0 %v6583
        %v6585 = vpop.xlane.xlu0 %6584
        %v6586 = vsel %vm880, %v6564, 0.0
        %6587 = vadd.xlane.f32.xlu0 %v6586
        %v6588 = vpop.xlane.xlu0 %6587
        %v6589 = vrcp.pop %v6567
        %v6590 = vrcp.pop %v6570
        %v6591 = vrcp.pop %v6573
        %v6592 = vrcp.pop %v6576
        %v6593 = vrcp.pop %v6579
        %v6594 = vrcp.pop %v6582
        %v6595 = vrcp.pop %v6585
        %v6596 = vrcp.pop %v6588
        %v6597 = vmul.f32 %v6550, %v6589
        %v6598 = vmul.f32 %v6552, %v6590
        %v6599 = vmul.f32 %v6554, %v6591
        %v6600 = vmul.f32 %v6556, %v6592
        %v6601 = vmul.f32 %v6558, %v6593
        %v6602 = vmul.f32 %v6560, %v6594
        %v6603 = vmul.f32 %v6562, %v6595
        %v6604 = vmul.f32 %v6564, %v6596
        %6605 = vrot.lane.b32.xlu0 %v485, 40
        %v6606 = vpop.permute.xlu0 %6605
        %6607 = vrot.lane.b32.xlu0 %v490, 40
        %v6608 = vpop.permute.xlu0 %6607
        %v6612 = vsel %vm880, %v6597, 0
        %v6615 = vsel %vm880, %v6598, 0
        %6617 = vmatprep.subr.mxu0 0.0
        %6618 = vmatpush1.msra.mxu0 %v6606
        %6619 = vmatprep.subr.mxu0 0.0
        %6620 = vmatpush1.msra.mxu0 %v6608
        %6621 = vmatprep.subr.mxu0 0.0
        %6622 = vmatpush1.msra.mxu0 0.0
        %6623 = vmatprep.subr.mxu0 0.0
        %6624 = vmatpush1.msra.mxu0 0.0
        %6625 = vmatprep.subr.mxu0 0.0
        %6626 = vmatpush1.msra.mxu0 0.0
        %6627 = vmatprep.subr.mxu0 0.0
        %6628 = vmatpush1.msra.mxu0 0.0
        %6629 = vmatprep.subr.mxu0 0.0
        %6630 = vmatpush1.msra.mxu0 0.0
        %6631 = vmatprep.subr.mxu0 0.0
        %6632 = vmatpush1.msra.mxu0 0.0
        %6633 = vmatprep.subr.mxu0 0.0
        %6634 = vmatpush1.msra.mxu0 0.0
        %6635 = vmatprep.subr.mxu0 0.0
        %6636 = vmatpush1.msra.mxu0 0.0
        %6637 = vmatprep.subr.mxu0 0.0
        %6638 = vmatpush1.msra.mxu0 0.0
        %6639 = vmatprep.subr.mxu0 0.0
        %6640 = vmatpush1.msra.mxu0 0.0
        %6641 = vmatprep.subr.mxu0 0.0
        %6642 = vmatpush1.msra.mxu0 0.0
        %6643 = vmatprep.subr.mxu0 0.0
        %6644 = vmatpush1.msra.mxu0 0.0
        %6645 = vmatprep.subr.mxu0 0.0
        %6646 = vmatpush1.msra.mxu0 0.0
        %6647 = vmatprep.subr.mxu0 0.0
        %6648 = vmatpush1.msra.mxu0 0.0
        %6649 = vmatprep.subr.mxu0 0.0
        %6650 = vmatpush1.msra.mxu0 0.0
        %6651 = vmatprep.subr.mxu0 0.0
        %6652 = vmatpush1.msra.mxu0 0.0
        %6653 = vmatprep.subr.mxu0 0.0
        %6654 = vmatpush1.msra.mxu0 0.0
        %6655 = vmatprep.subr.mxu0 0.0
        %6656 = vmatpush1.msra.mxu0 0.0
        %6657 = vmatprep.subr.mxu0 0.0
        %6658 = vmatpush1.msra.mxu0 0.0
        %6659 = vmatprep.subr.mxu0 0.0
        %6660 = vmatpush1.msra.mxu0 0.0
        %6661 = vmatprep.subr.mxu0 0.0
        %6662 = vmatpush1.msra.mxu0 0.0
        %6663 = vmatprep.subr.mxu0 0.0
        %6664 = vmatpush1.msra.mxu0 0.0
        %6665 = vmatprep.subr.mxu0 0.0
        %6666 = vmatpush1.msra.mxu0 0.0
        %6667 = vmatprep.subr.mxu0 0.0
        %6668 = vmatpush1.msra.mxu0 0.0
        %6669 = vmatprep.subr.mxu0 0.0
        %6670 = vmatpush1.msra.mxu0 0.0
        %6671 = vmatprep.subr.mxu0 0.0
        %6672 = vmatpush1.msra.mxu0 0.0
        %6673 = vmatprep.subr.mxu0 0.0
        %6674 = vmatpush1.msra.mxu0 0.0
        %6675 = vmatprep.subr.mxu0 0.0
        %6676 = vmatpush1.msra.mxu0 0.0
        %6677 = vmatprep.subr.mxu0 0.0
        %6678 = vmatpush1.msra.mxu0 0.0
        %6679 = vmatprep.subr.mxu0 0.0
        %6680 = vmatpush1.msra.mxu0 0.0
        %6681 = vmatprep.mubr.f32.mxu0 0.0
        %6682 = vmatmul.mubr.f32.gmra.mrb[0].mxu0 %v6612
        %v6683 = vpop.f32.mrb[0].mxu0
        %v6684 = vadd.f32 0.0, %v6683
        %v6685 = vpop.f32.mrb[0].mxu0
        %6686 = vmatprep.mubr.f32.mxu0 0.0
        %6687 = vmatmul.mubr.f32.gmra.mrb[0].mxu0 %v6615
        %v6688 = vpop.f32.mrb[0].mxu0
        %v6689 = vadd.f32 0.0, %v6688
        %v6690 = vpop.f32.mrb[0].mxu0
        %6691 = vdwg.mxu0
        %6692 = vrot.lane.b32.xlu0 %v495, 40
        %v6693 = vpop.permute.xlu0 %6692
        %6694 = vrot.lane.b32.xlu0 %v500, 40
        %v6695 = vpop.permute.xlu0 %6694
        %v6699 = vsel %vm880, %v6599, 0
        %v6702 = vsel %vm880, %v6600, 0
        %6704 = vmatprep.subr.mxu0 0.0
        %6705 = vmatpush1.msra.mxu0 %v6693
        %6706 = vmatprep.subr.mxu0 0.0
        %6707 = vmatpush1.msra.mxu0 %v6695
        %6708 = vmatprep.subr.mxu0 0.0
        %6709 = vmatpush1.msra.mxu0 0.0
        %6710 = vmatprep.subr.mxu0 0.0
        %6711 = vmatpush1.msra.mxu0 0.0
        %6712 = vmatprep.subr.mxu0 0.0
        %6713 = vmatpush1.msra.mxu0 0.0
        %6714 = vmatprep.subr.mxu0 0.0
        %6715 = vmatpush1.msra.mxu0 0.0
        %6716 = vmatprep.subr.mxu0 0.0
        %6717 = vmatpush1.msra.mxu0 0.0
        %6718 = vmatprep.subr.mxu0 0.0
        %6719 = vmatpush1.msra.mxu0 0.0
        %6720 = vmatprep.subr.mxu0 0.0
        %6721 = vmatpush1.msra.mxu0 0.0
        %6722 = vmatprep.subr.mxu0 0.0
        %6723 = vmatpush1.msra.mxu0 0.0
        %6724 = vmatprep.subr.mxu0 0.0
        %6725 = vmatpush1.msra.mxu0 0.0
        %6726 = vmatprep.subr.mxu0 0.0
        %6727 = vmatpush1.msra.mxu0 0.0
        %6728 = vmatprep.subr.mxu0 0.0
        %6729 = vmatpush1.msra.mxu0 0.0
        %6730 = vmatprep.subr.mxu0 0.0
        %6731 = vmatpush1.msra.mxu0 0.0
        %6732 = vmatprep.subr.mxu0 0.0
        %6733 = vmatpush1.msra.mxu0 0.0
        %6734 = vmatprep.subr.mxu0 0.0
        %6735 = vmatpush1.msra.mxu0 0.0
        %6736 = vmatprep.subr.mxu0 0.0
        %6737 = vmatpush1.msra.mxu0 0.0
        %6738 = vmatprep.subr.mxu0 0.0
        %6739 = vmatpush1.msra.mxu0 0.0
        %6740 = vmatprep.subr.mxu0 0.0
        %6741 = vmatpush1.msra.mxu0 0.0
        %6742 = vmatprep.subr.mxu0 0.0
        %6743 = vmatpush1.msra.mxu0 0.0
        %6744 = vmatprep.subr.mxu0 0.0
        %6745 = vmatpush1.msra.mxu0 0.0
        %6746 = vmatprep.subr.mxu0 0.0
        %6747 = vmatpush1.msra.mxu0 0.0
        %6748 = vmatprep.subr.mxu0 0.0
        %6749 = vmatpush1.msra.mxu0 0.0
        %6750 = vmatprep.subr.mxu0 0.0
        %6751 = vmatpush1.msra.mxu0 0.0
        %6752 = vmatprep.subr.mxu0 0.0
        %6753 = vmatpush1.msra.mxu0 0.0
        %6754 = vmatprep.subr.mxu0 0.0
        %6755 = vmatpush1.msra.mxu0 0.0
        %6756 = vmatprep.subr.mxu0 0.0
        %6757 = vmatpush1.msra.mxu0 0.0
        %6758 = vmatprep.subr.mxu0 0.0
        %6759 = vmatpush1.msra.mxu0 0.0
        %6760 = vmatprep.subr.mxu0 0.0
        %6761 = vmatpush1.msra.mxu0 0.0
        %6762 = vmatprep.subr.mxu0 0.0
        %6763 = vmatpush1.msra.mxu0 0.0
        %6764 = vmatprep.subr.mxu0 0.0
        %6765 = vmatpush1.msra.mxu0 0.0
        %6766 = vmatprep.subr.mxu0 0.0
        %6767 = vmatpush1.msra.mxu0 0.0
        %6768 = vmatprep.mubr.f32.mxu0 0.0
        %6769 = vmatmul.mubr.f32.gmra.mrb[0].mxu0 %v6699
        %v6770 = vpop.f32.mrb[0].mxu0
        %v6771 = vadd.f32 0.0, %v6770
        %v6772 = vpop.f32.mrb[0].mxu0
        %6773 = vmatprep.mubr.f32.mxu0 0.0
        %6774 = vmatmul.mubr.f32.gmra.mrb[0].mxu0 %v6702
        %v6775 = vpop.f32.mrb[0].mxu0
        %v6776 = vadd.f32 0.0, %v6775
        %v6777 = vpop.f32.mrb[0].mxu0
        %6778 = vdwg.mxu0
        %6779 = vrot.lane.b32.xlu0 %v505, 40
        %v6780 = vpop.permute.xlu0 %6779
        %6781 = vrot.lane.b32.xlu0 %v510, 40
        %v6782 = vpop.permute.xlu0 %6781
        %v6786 = vsel %vm880, %v6601, 0
        %v6789 = vsel %vm880, %v6602, 0
        %6791 = vmatprep.subr.mxu0 0.0
        %6792 = vmatpush1.msra.mxu0 %v6780
        %6793 = vmatprep.subr.mxu0 0.0
        %6794 = vmatpush1.msra.mxu0 %v6782
        %6795 = vmatprep.subr.mxu0 0.0
        %6796 = vmatpush1.msra.mxu0 0.0
        %6797 = vmatprep.subr.mxu0 0.0
        %6798 = vmatpush1.msra.mxu0 0.0
        %6799 = vmatprep.subr.mxu0 0.0
        %6800 = vmatpush1.msra.mxu0 0.0
        %6801 = vmatprep.subr.mxu0 0.0
        %6802 = vmatpush1.msra.mxu0 0.0
        %6803 = vmatprep.subr.mxu0 0.0
        %6804 = vmatpush1.msra.mxu0 0.0
        %6805 = vmatprep.subr.mxu0 0.0
        %6806 = vmatpush1.msra.mxu0 0.0
        %6807 = vmatprep.subr.mxu0 0.0
        %6808 = vmatpush1.msra.mxu0 0.0
        %6809 = vmatprep.subr.mxu0 0.0
        %6810 = vmatpush1.msra.mxu0 0.0
        %6811 = vmatprep.subr.mxu0 0.0
        %6812 = vmatpush1.msra.mxu0 0.0
        %6813 = vmatprep.subr.mxu0 0.0
        %6814 = vmatpush1.msra.mxu0 0.0
        %6815 = vmatprep.subr.mxu0 0.0
        %6816 = vmatpush1.msra.mxu0 0.0
        %6817 = vmatprep.subr.mxu0 0.0
        %6818 = vmatpush1.msra.mxu0 0.0
        %6819 = vmatprep.subr.mxu0 0.0
        %6820 = vmatpush1.msra.mxu0 0.0
        %6821 = vmatprep.subr.mxu0 0.0
        %6822 = vmatpush1.msra.mxu0 0.0
        %6823 = vmatprep.subr.mxu0 0.0
        %6824 = vmatpush1.msra.mxu0 0.0
        %6825 = vmatprep.subr.mxu0 0.0
        %6826 = vmatpush1.msra.mxu0 0.0
        %6827 = vmatprep.subr.mxu0 0.0
        %6828 = vmatpush1.msra.mxu0 0.0
        %6829 = vmatprep.subr.mxu0 0.0
        %6830 = vmatpush1.msra.mxu0 0.0
        %6831 = vmatprep.subr.mxu0 0.0
        %6832 = vmatpush1.msra.mxu0 0.0
        %6833 = vmatprep.subr.mxu0 0.0
        %6834 = vmatpush1.msra.mxu0 0.0
        %6835 = vmatprep.subr.mxu0 0.0
        %6836 = vmatpush1.msra.mxu0 0.0
        %6837 = vmatprep.subr.mxu0 0.0
        %6838 = vmatpush1.msra.mxu0 0.0
        %6839 = vmatprep.subr.mxu0 0.0
        %6840 = vmatpush1.msra.mxu0 0.0
        %6841 = vmatprep.subr.mxu0 0.0
        %6842 = vmatpush1.msra.mxu0 0.0
        %6843 = vmatprep.subr.mxu0 0.0
        %6844 = vmatpush1.msra.mxu0 0.0
        %6845 = vmatprep.subr.mxu0 0.0
        %6846 = vmatpush1.msra.mxu0 0.0
        %6847 = vmatprep.subr.mxu0 0.0
        %6848 = vmatpush1.msra.mxu0 0.0
        %6849 = vmatprep.subr.mxu0 0.0
        %6850 = vmatpush1.msra.mxu0 0.0
        %6851 = vmatprep.subr.mxu0 0.0
        %6852 = vmatpush1.msra.mxu0 0.0
        %6853 = vmatprep.subr.mxu0 0.0
        %6854 = vmatpush1.msra.mxu0 0.0
        %6855 = vmatprep.mubr.f32.mxu0 0.0
        %6856 = vmatmul.mubr.f32.gmra.mrb[0].mxu0 %v6786
        %v6857 = vpop.f32.mrb[0].mxu0
        %v6858 = vadd.f32 0.0, %v6857
        %v6859 = vpop.f32.mrb[0].mxu0
        %6860 = vmatprep.mubr.f32.mxu0 0.0
        %6861 = vmatmul.mubr.f32.gmra.mrb[0].mxu0 %v6789
        %v6862 = vpop.f32.mrb[0].mxu0
        %v6863 = vadd.f32 0.0, %v6862
        %v6864 = vpop.f32.mrb[0].mxu0
        %6865 = vdwg.mxu0
        %6866 = vrot.lane.b32.xlu0 %v515, 40
        %v6867 = vpop.permute.xlu0 %6866
        %6868 = vrot.lane.b32.xlu0 %v520, 40
        %v6869 = vpop.permute.xlu0 %6868
        %v6873 = vsel %vm880, %v6603, 0
        %v6876 = vsel %vm880, %v6604, 0
        %6878 = vmatprep.subr.mxu0 0.0
        %6879 = vmatpush1.msra.mxu0 %v6867
        %6880 = vmatprep.subr.mxu0 0.0
        %6881 = vmatpush1.msra.mxu0 %v6869
        %6882 = vmatprep.subr.mxu0 0.0
        %6883 = vmatpush1.msra.mxu0 0.0
        %6884 = vmatprep.subr.mxu0 0.0
        %6885 = vmatpush1.msra.mxu0 0.0
        %6886 = vmatprep.subr.mxu0 0.0
        %6887 = vmatpush1.msra.mxu0 0.0
        %6888 = vmatprep.subr.mxu0 0.0
        %6889 = vmatpush1.msra.mxu0 0.0
        %6890 = vmatprep.subr.mxu0 0.0
        %6891 = vmatpush1.msra.mxu0 0.0
        %6892 = vmatprep.subr.mxu0 0.0
        %6893 = vmatpush1.msra.mxu0 0.0
        %6894 = vmatprep.subr.mxu0 0.0
        %6895 = vmatpush1.msra.mxu0 0.0
        %6896 = vmatprep.subr.mxu0 0.0
        %6897 = vmatpush1.msra.mxu0 0.0
        %6898 = vmatprep.subr.mxu0 0.0
        %6899 = vmatpush1.msra.mxu0 0.0
        %6900 = vmatprep.subr.mxu0 0.0
        %6901 = vmatpush1.msra.mxu0 0.0
        %6902 = vmatprep.subr.mxu0 0.0
        %6903 = vmatpush1.msra.mxu0 0.0
        %6904 = vmatprep.subr.mxu0 0.0
        %6905 = vmatpush1.msra.mxu0 0.0
        %6906 = vmatprep.subr.mxu0 0.0
        %6907 = vmatpush1.msra.mxu0 0.0
        %6908 = vmatprep.subr.mxu0 0.0
        %6909 = vmatpush1.msra.mxu0 0.0
        %6910 = vmatprep.subr.mxu0 0.0
        %6911 = vmatpush1.msra.mxu0 0.0
        %6912 = vmatprep.subr.mxu0 0.0
        %6913 = vmatpush1.msra.mxu0 0.0
        %6914 = vmatprep.subr.mxu0 0.0
        %6915 = vmatpush1.msra.mxu0 0.0
        %6916 = vmatprep.subr.mxu0 0.0
        %6917 = vmatpush1.msra.mxu0 0.0
        %6918 = vmatprep.subr.mxu0 0.0
        %6919 = vmatpush1.msra.mxu0 0.0
        %6920 = vmatprep.subr.mxu0 0.0
        %6921 = vmatpush1.msra.mxu0 0.0
        %6922 = vmatprep.subr.mxu0 0.0
        %6923 = vmatpush1.msra.mxu0 0.0
        %6924 = vmatprep.subr.mxu0 0.0
        %6925 = vmatpush1.msra.mxu0 0.0
        %6926 = vmatprep.subr.mxu0 0.0
        %6927 = vmatpush1.msra.mxu0 0.0
        %6928 = vmatprep.subr.mxu0 0.0
        %6929 = vmatpush1.msra.mxu0 0.0
        %6930 = vmatprep.subr.mxu0 0.0
        %6931 = vmatpush1.msra.mxu0 0.0
        %6932 = vmatprep.subr.mxu0 0.0
        %6933 = vmatpush1.msra.mxu0 0.0
        %6934 = vmatprep.subr.mxu0 0.0
        %6935 = vmatpush1.msra.mxu0 0.0
        %6936 = vmatprep.subr.mxu0 0.0
        %6937 = vmatpush1.msra.mxu0 0.0
        %6938 = vmatprep.subr.mxu0 0.0
        %6939 = vmatpush1.msra.mxu0 0.0
        %6940 = vmatprep.subr.mxu0 0.0
        %6941 = vmatpush1.msra.mxu0 0.0
        %6942 = vmatprep.mubr.f32.mxu0 0.0
        %6943 = vmatmul.mubr.f32.gmra.mrb[0].mxu0 %v6873
        %v6944 = vpop.f32.mrb[0].mxu0
        %v6945 = vadd.f32 0.0, %v6944
        %v6946 = vpop.f32.mrb[0].mxu0
        %6947 = vmatprep.mubr.f32.mxu0 0.0
        %6948 = vmatmul.mubr.f32.gmra.mrb[0].mxu0 %v6876
        %v6949 = vpop.f32.mrb[0].mxu0
        %v6950 = vadd.f32 0.0, %v6949
        %v6951 = vpop.f32.mrb[0].mxu0
        %6952 = vdwg.mxu0
        %s6953 = scalar_lea.vmem %s3, 24
        %v6954 = vld [vmem:[%s6953] sm:$0xf]
        %v6956 = vsel %vm529, %v6684, 0
        %v6959 = vsel %vm529, %v6689, 0
        %v6962 = vsel %vm529, %v6771, 0
        %v6965 = vsel %vm529, %v6776, 0
        %v6968 = vsel %vm529, %v6858, 0
        %v6971 = vsel %vm529, %v6863, 0
        %v6974 = vsel %vm529, %v6945, 0
        %v6977 = vsel %vm529, %v6950, 0
        %v6980 = vsel %vm2144, %v6954, 0
        %6982 = vmatprep.subr.mxu0 0.0
        %6983 = vmatpush1.msra.mxu0 %v6980
        %6984 = vmatprep.subr.mxu0 0.0
        %6985 = vmatpush1.msra.mxu0 0.0
        %6986 = vmatprep.subr.mxu0 0.0
        %6987 = vmatpush1.msra.mxu0 0.0
        %6988 = vmatprep.subr.mxu0 0.0
        %6989 = vmatpush1.msra.mxu0 0.0
        %6990 = vmatprep.subr.mxu0 0.0
        %6991 = vmatpush1.msra.mxu0 0.0
        %6992 = vmatprep.subr.mxu0 0.0
        %6993 = vmatpush1.msra.mxu0 0.0
        %6994 = vmatprep.subr.mxu0 0.0
        %6995 = vmatpush1.msra.mxu0 0.0
        %6996 = vmatprep.subr.mxu0 0.0
        %6997 = vmatpush1.msra.mxu0 0.0
        %6998 = vmatprep.subr.mxu0 0.0
        %6999 = vmatpush1.msra.mxu0 0.0
        %7000 = vmatprep.subr.mxu0 0.0
        %7001 = vmatpush1.msra.mxu0 0.0
        %7002 = vmatprep.subr.mxu0 0.0
        %7003 = vmatpush1.msra.mxu0 0.0
        %7004 = vmatprep.subr.mxu0 0.0
        %7005 = vmatpush1.msra.mxu0 0.0
        %7006 = vmatprep.subr.mxu0 0.0
        %7007 = vmatpush1.msra.mxu0 0.0
        %7008 = vmatprep.subr.mxu0 0.0
        %7009 = vmatpush1.msra.mxu0 0.0
        %7010 = vmatprep.subr.mxu0 0.0
        %7011 = vmatpush1.msra.mxu0 0.0
        %7012 = vmatprep.subr.mxu0 0.0
        %7013 = vmatpush1.msra.mxu0 0.0
        %7014 = vmatprep.subr.mxu0 0.0
        %7015 = vmatpush1.msra.mxu0 0.0
        %7016 = vmatprep.subr.mxu0 0.0
        %7017 = vmatpush1.msra.mxu0 0.0
        %7018 = vmatprep.subr.mxu0 0.0
        %7019 = vmatpush1.msra.mxu0 0.0
        %7020 = vmatprep.subr.mxu0 0.0
        %7021 = vmatpush1.msra.mxu0 0.0
        %7022 = vmatprep.subr.mxu0 0.0
        %7023 = vmatpush1.msra.mxu0 0.0
        %7024 = vmatprep.subr.mxu0 0.0
        %7025 = vmatpush1.msra.mxu0 0.0
        %7026 = vmatprep.subr.mxu0 0.0
        %7027 = vmatpush1.msra.mxu0 0.0
        %7028 = vmatprep.subr.mxu0 0.0
        %7029 = vmatpush1.msra.mxu0 0.0
        %7030 = vmatprep.subr.mxu0 0.0
        %7031 = vmatpush1.msra.mxu0 0.0
        %7032 = vmatprep.subr.mxu0 0.0
        %7033 = vmatpush1.msra.mxu0 0.0
        %7034 = vmatprep.subr.mxu0 0.0
        %7035 = vmatpush1.msra.mxu0 0.0
        %7036 = vmatprep.subr.mxu0 0.0
        %7037 = vmatpush1.msra.mxu0 0.0
        %7038 = vmatprep.subr.mxu0 0.0
        %7039 = vmatpush1.msra.mxu0 0.0
        %7040 = vmatprep.subr.mxu0 0.0
        %7041 = vmatpush1.msra.mxu0 0.0
        %7042 = vmatprep.subr.mxu0 0.0
        %7043 = vmatpush1.msra.mxu0 0.0
        %7044 = vmatprep.subr.mxu0 0.0
        %7045 = vmatpush1.msra.mxu0 0.0
        %7046 = vmatprep.mubr.f32.mxu0 0.0
        %7047 = vmatmul.mubr.f32.gmra.mrb[0].mxu0 %v6956
        %v7048 = vpop.f32.mrb[0].mxu0
        %v7049 = vadd.f32 0.0, %v7048
        %v7050 = vpop.f32.mrb[0].mxu0
        %7051 = vmatprep.mubr.f32.mxu0 0.0
        %7052 = vmatmul.mubr.f32.gmra.mrb[0].mxu0 %v6959
        %v7053 = vpop.f32.mrb[0].mxu0
        %v7054 = vadd.f32 0.0, %v7053
        %v7055 = vpop.f32.mrb[0].mxu0
        %7056 = vmatprep.mubr.f32.mxu0 0.0
        %7057 = vmatmul.mubr.f32.gmra.mrb[0].mxu0 %v6962
        %v7058 = vpop.f32.mrb[0].mxu0
        %v7059 = vadd.f32 0.0, %v7058
        %v7060 = vpop.f32.mrb[0].mxu0
        %7061 = vmatprep.mubr.f32.mxu0 0.0
        %7062 = vmatmul.mubr.f32.gmra.mrb[0].mxu0 %v6965
        %v7063 = vpop.f32.mrb[0].mxu0
        %v7064 = vadd.f32 0.0, %v7063
        %v7065 = vpop.f32.mrb[0].mxu0
        %7066 = vmatprep.mubr.f32.mxu0 0.0
        %7067 = vmatmul.mubr.f32.gmra.mrb[0].mxu0 %v6968
        %v7068 = vpop.f32.mrb[0].mxu0
        %v7069 = vadd.f32 0.0, %v7068
        %v7070 = vpop.f32.mrb[0].mxu0
        %7071 = vmatprep.mubr.f32.mxu0 0.0
        %7072 = vmatmul.mubr.f32.gmra.mrb[0].mxu0 %v6971
        %v7073 = vpop.f32.mrb[0].mxu0
        %v7074 = vadd.f32 0.0, %v7073
        %v7075 = vpop.f32.mrb[0].mxu0
        %7076 = vmatprep.mubr.f32.mxu0 0.0
        %7077 = vmatmul.mubr.f32.gmra.mrb[0].mxu0 %v6974
        %v7078 = vpop.f32.mrb[0].mxu0
        %v7079 = vadd.f32 0.0, %v7078
        %v7080 = vpop.f32.mrb[0].mxu0
        %7081 = vmatprep.mubr.f32.mxu0 0.0
        %7082 = vmatmul.mubr.f32.gmra.mrb[0].mxu0 %v6977
        %v7083 = vpop.f32.mrb[0].mxu0
        %v7084 = vadd.f32 0.0, %v7083
        %v7085 = vpop.f32.mrb[0].mxu0
        %7086 = vdwg.mxu0
        %v7087 = vadd.f32 %v6145, %v7049
        %v7088 = vadd.f32 %v6146, %v7054
        %v7089 = vadd.f32 %v6147, %v7059
        %v7090 = vadd.f32 %v6148, %v7064
        %v7091 = vadd.f32 %v6149, %v7069
        %v7092 = vadd.f32 %v6150, %v7074
        %v7093 = vadd.f32 %v6151, %v7079
        %v7094 = vadd.f32 %v6152, %v7084
        %7095 = vrot.lane.b32.xlu0 %v485, 100
        %v7096 = vpop.permute.xlu0 %7095
        %7097 = vrot.lane.b32.xlu0 %v490, 100
        %v7098 = vpop.permute.xlu0 %7097
        %7099 = vrot.lane.b32.xlu0 %v485, 68
        %v7100 = vpop.permute.xlu0 %7099
        %7101 = vrot.lane.b32.xlu0 %v490, 68
        %v7102 = vpop.permute.xlu0 %7101
        %v7103 = vsel %vm529, %v7096, 0
        %v7105 = vsel %vm529, %v7098, 0
        %v7107 = vsel %vm529, %v7100, 0
        %v7109 = vsel %vm529, %v7102, 0
        %7111 = vmatprep.subr.mxu0 0.0
        %7112 = vmatpush1.xpose.msra.mxu0 %v7107
        %7113 = vmatprep.subr.mxu0 0.0
        %7114 = vmatpush1.xpose.msra.mxu0 %v7109
        %7115 = vmatprep.subr.mxu0 0.0
        %7116 = vmatpush1.xpose.msra.mxu0 0.0
        %7117 = vmatprep.subr.mxu0 0.0
        %7118 = vmatpush1.xpose.msra.mxu0 0.0
        %7119 = vmatprep.subr.mxu0 0.0
        %7120 = vmatpush1.xpose.msra.mxu0 0.0
        %7121 = vmatprep.subr.mxu0 0.0
        %7122 = vmatpush1.xpose.msra.mxu0 0.0
        %7123 = vmatprep.subr.mxu0 0.0
        %7124 = vmatpush1.xpose.msra.mxu0 0.0
        %7125 = vmatprep.subr.mxu0 0.0
        %7126 = vmatpush1.xpose.msra.mxu0 0.0
        %7127 = vmatprep.subr.mxu0 0.0
        %7128 = vmatpush1.xpose.msra.mxu0 0.0
        %7129 = vmatprep.subr.mxu0 0.0
        %7130 = vmatpush1.xpose.msra.mxu0 0.0
        %7131 = vmatprep.subr.mxu0 0.0
        %7132 = vmatpush1.xpose.msra.mxu0 0.0
        %7133 = vmatprep.subr.mxu0 0.0
        %7134 = vmatpush1.xpose.msra.mxu0 0.0
        %7135 = vmatprep.subr.mxu0 0.0
        %7136 = vmatpush1.xpose.msra.mxu0 0.0
        %7137 = vmatprep.subr.mxu0 0.0
        %7138 = vmatpush1.xpose.msra.mxu0 0.0
        %7139 = vmatprep.subr.mxu0 0.0
        %7140 = vmatpush1.xpose.msra.mxu0 0.0
        %7141 = vmatprep.subr.mxu0 0.0
        %7142 = vmatpush1.xpose.msra.mxu0 0.0
        %7143 = vmatprep.subr.mxu0 0.0
        %7144 = vmatpush1.xpose.msra.mxu0 0.0
        %7145 = vmatprep.subr.mxu0 0.0
        %7146 = vmatpush1.xpose.msra.mxu0 0.0
        %7147 = vmatprep.subr.mxu0 0.0
        %7148 = vmatpush1.xpose.msra.mxu0 0.0
        %7149 = vmatprep.subr.mxu0 0.0
        %7150 = vmatpush1.xpose.msra.mxu0 0.0
        %7151 = vmatprep.subr.mxu0 0.0
        %7152 = vmatpush1.xpose.msra.mxu0 0.0
        %7153 = vmatprep.subr.mxu0 0.0
        %7154 = vmatpush1.xpose.msra.mxu0 0.0
        %7155 = vmatprep.subr.mxu0 0.0
        %7156 = vmatpush1.xpose.msra.mxu0 0.0
        %7157 = vmatprep.subr.mxu0 0.0
        %7158 = vmatpush1.xpose.msra.mxu0 0.0
        %7159 = vmatprep.subr.mxu0 0.0
        %7160 = vmatpush1.xpose.msra.mxu0 0.0
        %7161 = vmatprep.subr.mxu0 0.0
        %7162 = vmatpush1.xpose.msra.mxu0 0.0
        %7163 = vmatprep.subr.mxu0 0.0
        %7164 = vmatpush1.xpose.msra.mxu0 0.0
        %7165 = vmatprep.subr.mxu0 0.0
        %7166 = vmatpush1.xpose.msra.mxu0 0.0
        %7167 = vmatprep.subr.mxu0 0.0
        %7168 = vmatpush1.xpose.msra.mxu0 0.0
        %7169 = vmatprep.subr.mxu0 0.0
        %7170 = vmatpush1.xpose.msra.mxu0 0.0
        %7171 = vmatprep.subr.mxu0 0.0
        %7172 = vmatpush1.xpose.msra.mxu0 0.0
        %7173 = vmatprep.subr.mxu0 0.0
        %7174 = vmatpush1.xpose.msra.mxu0 0.0
        %7175 = vmatprep.mubr.f32.mxu0 0.0
        %7176 = vmatmul.mubr.f32.gmra.mrb[0].mxu0 %v7103
        %v7177 = vpop.f32.mrb[0].mxu0
        %v7178 = vadd.f32 0.0, %v7177
        %v7179 = vpop.f32.mrb[0].mxu0
        %7180 = vmatprep.mubr.f32.mxu0 0.0
        %7181 = vmatmul.mubr.f32.gmra.mrb[0].mxu0 %v7105
        %v7182 = vpop.f32.mrb[0].mxu0
        %v7183 = vadd.f32 0.0, %v7182
        %v7184 = vpop.f32.mrb[0].mxu0
        %7185 = vdwg.mxu0
        %7186 = vrot.lane.b32.xlu0 %v495, 100
        %v7187 = vpop.permute.xlu0 %7186
        %7188 = vrot.lane.b32.xlu0 %v500, 100
        %v7189 = vpop.permute.xlu0 %7188
        %7190 = vrot.lane.b32.xlu0 %v495, 68
        %v7191 = vpop.permute.xlu0 %7190
        %7192 = vrot.lane.b32.xlu0 %v500, 68
        %v7193 = vpop.permute.xlu0 %7192
        %v7194 = vsel %vm529, %v7187, 0
        %v7196 = vsel %vm529, %v7189, 0
        %v7198 = vsel %vm529, %v7191, 0
        %v7200 = vsel %vm529, %v7193, 0
        %7202 = vmatprep.subr.mxu0 0.0
        %7203 = vmatpush1.xpose.msra.mxu0 %v7198
        %7204 = vmatprep.subr.mxu0 0.0
        %7205 = vmatpush1.xpose.msra.mxu0 %v7200
        %7206 = vmatprep.subr.mxu0 0.0
        %7207 = vmatpush1.xpose.msra.mxu0 0.0
        %7208 = vmatprep.subr.mxu0 0.0
        %7209 = vmatpush1.xpose.msra.mxu0 0.0
        %7210 = vmatprep.subr.mxu0 0.0
        %7211 = vmatpush1.xpose.msra.mxu0 0.0
        %7212 = vmatprep.subr.mxu0 0.0
        %7213 = vmatpush1.xpose.msra.mxu0 0.0
        %7214 = vmatprep.subr.mxu0 0.0
        %7215 = vmatpush1.xpose.msra.mxu0 0.0
        %7216 = vmatprep.subr.mxu0 0.0
        %7217 = vmatpush1.xpose.msra.mxu0 0.0
        %7218 = vmatprep.subr.mxu0 0.0
        %7219 = vmatpush1.xpose.msra.mxu0 0.0
        %7220 = vmatprep.subr.mxu0 0.0
        %7221 = vmatpush1.xpose.msra.mxu0 0.0
        %7222 = vmatprep.subr.mxu0 0.0
        %7223 = vmatpush1.xpose.msra.mxu0 0.0
        %7224 = vmatprep.subr.mxu0 0.0
        %7225 = vmatpush1.xpose.msra.mxu0 0.0
        %7226 = vmatprep.subr.mxu0 0.0
        %7227 = vmatpush1.xpose.msra.mxu0 0.0
        %7228 = vmatprep.subr.mxu0 0.0
        %7229 = vmatpush1.xpose.msra.mxu0 0.0
        %7230 = vmatprep.subr.mxu0 0.0
        %7231 = vmatpush1.xpose.msra.mxu0 0.0
        %7232 = vmatprep.subr.mxu0 0.0
        %7233 = vmatpush1.xpose.msra.mxu0 0.0
        %7234 = vmatprep.subr.mxu0 0.0
        %7235 = vmatpush1.xpose.msra.mxu0 0.0
        %7236 = vmatprep.subr.mxu0 0.0
        %7237 = vmatpush1.xpose.msra.mxu0 0.0
        %7238 = vmatprep.subr.mxu0 0.0
        %7239 = vmatpush1.xpose.msra.mxu0 0.0
        %7240 = vmatprep.subr.mxu0 0.0
        %7241 = vmatpush1.xpose.msra.mxu0 0.0
        %7242 = vmatprep.subr.mxu0 0.0
        %7243 = vmatpush1.xpose.msra.mxu0 0.0
        %7244 = vmatprep.subr.mxu0 0.0
        %7245 = vmatpush1.xpose.msra.mxu0 0.0
        %7246 = vmatprep.subr.mxu0 0.0
        %7247 = vmatpush1.xpose.msra.mxu0 0.0
        %7248 = vmatprep.subr.mxu0 0.0
        %7249 = vmatpush1.xpose.msra.mxu0 0.0
        %7250 = vmatprep.subr.mxu0 0.0
        %7251 = vmatpush1.xpose.msra.mxu0 0.0
        %7252 = vmatprep.subr.mxu0 0.0
        %7253 = vmatpush1.xpose.msra.mxu0 0.0
        %7254 = vmatprep.subr.mxu0 0.0
        %7255 = vmatpush1.xpose.msra.mxu0 0.0
        %7256 = vmatprep.subr.mxu0 0.0
        %7257 = vmatpush1.xpose.msra.mxu0 0.0
        %7258 = vmatprep.subr.mxu0 0.0
        %7259 = vmatpush1.xpose.msra.mxu0 0.0
        %7260 = vmatprep.subr.mxu0 0.0
        %7261 = vmatpush1.xpose.msra.mxu0 0.0
        %7262 = vmatprep.subr.mxu0 0.0
        %7263 = vmatpush1.xpose.msra.mxu0 0.0
        %7264 = vmatprep.subr.mxu0 0.0
        %7265 = vmatpush1.xpose.msra.mxu0 0.0
        %7266 = vmatprep.mubr.f32.mxu0 0.0
        %7267 = vmatmul.mubr.f32.gmra.mrb[0].mxu0 %v7194
        %v7268 = vpop.f32.mrb[0].mxu0
        %v7269 = vadd.f32 0.0, %v7268
        %v7270 = vpop.f32.mrb[0].mxu0
        %7271 = vmatprep.mubr.f32.mxu0 0.0
        %7272 = vmatmul.mubr.f32.gmra.mrb[0].mxu0 %v7196
        %v7273 = vpop.f32.mrb[0].mxu0
        %v7274 = vadd.f32 0.0, %v7273
        %v7275 = vpop.f32.mrb[0].mxu0
        %7276 = vdwg.mxu0
        %7277 = vrot.lane.b32.xlu0 %v505, 100
        %v7278 = vpop.permute.xlu0 %7277
        %7279 = vrot.lane.b32.xlu0 %v510, 100
        %v7280 = vpop.permute.xlu0 %7279
        %7281 = vrot.lane.b32.xlu0 %v505, 68
        %v7282 = vpop.permute.xlu0 %7281
        %7283 = vrot.lane.b32.xlu0 %v510, 68
        %v7284 = vpop.permute.xlu0 %7283
        %v7285 = vsel %vm529, %v7278, 0
        %v7287 = vsel %vm529, %v7280, 0
        %v7289 = vsel %vm529, %v7282, 0
        %v7291 = vsel %vm529, %v7284, 0
        %7293 = vmatprep.subr.mxu0 0.0
        %7294 = vmatpush1.xpose.msra.mxu0 %v7289
        %7295 = vmatprep.subr.mxu0 0.0
        %7296 = vmatpush1.xpose.msra.mxu0 %v7291
        %7297 = vmatprep.subr.mxu0 0.0
        %7298 = vmatpush1.xpose.msra.mxu0 0.0
        %7299 = vmatprep.subr.mxu0 0.0
        %7300 = vmatpush1.xpose.msra.mxu0 0.0
        %7301 = vmatprep.subr.mxu0 0.0
        %7302 = vmatpush1.xpose.msra.mxu0 0.0
        %7303 = vmatprep.subr.mxu0 0.0
        %7304 = vmatpush1.xpose.msra.mxu0 0.0
        %7305 = vmatprep.subr.mxu0 0.0
        %7306 = vmatpush1.xpose.msra.mxu0 0.0
        %7307 = vmatprep.subr.mxu0 0.0
        %7308 = vmatpush1.xpose.msra.mxu0 0.0
        %7309 = vmatprep.subr.mxu0 0.0
        %7310 = vmatpush1.xpose.msra.mxu0 0.0
        %7311 = vmatprep.subr.mxu0 0.0
        %7312 = vmatpush1.xpose.msra.mxu0 0.0
        %7313 = vmatprep.subr.mxu0 0.0
        %7314 = vmatpush1.xpose.msra.mxu0 0.0
        %7315 = vmatprep.subr.mxu0 0.0
        %7316 = vmatpush1.xpose.msra.mxu0 0.0
        %7317 = vmatprep.subr.mxu0 0.0
        %7318 = vmatpush1.xpose.msra.mxu0 0.0
        %7319 = vmatprep.subr.mxu0 0.0
        %7320 = vmatpush1.xpose.msra.mxu0 0.0
        %7321 = vmatprep.subr.mxu0 0.0
        %7322 = vmatpush1.xpose.msra.mxu0 0.0
        %7323 = vmatprep.subr.mxu0 0.0
        %7324 = vmatpush1.xpose.msra.mxu0 0.0
        %7325 = vmatprep.subr.mxu0 0.0
        %7326 = vmatpush1.xpose.msra.mxu0 0.0
        %7327 = vmatprep.subr.mxu0 0.0
        %7328 = vmatpush1.xpose.msra.mxu0 0.0
        %7329 = vmatprep.subr.mxu0 0.0
        %7330 = vmatpush1.xpose.msra.mxu0 0.0
        %7331 = vmatprep.subr.mxu0 0.0
        %7332 = vmatpush1.xpose.msra.mxu0 0.0
        %7333 = vmatprep.subr.mxu0 0.0
        %7334 = vmatpush1.xpose.msra.mxu0 0.0
        %7335 = vmatprep.subr.mxu0 0.0
        %7336 = vmatpush1.xpose.msra.mxu0 0.0
        %7337 = vmatprep.subr.mxu0 0.0
        %7338 = vmatpush1.xpose.msra.mxu0 0.0
        %7339 = vmatprep.subr.mxu0 0.0
        %7340 = vmatpush1.xpose.msra.mxu0 0.0
        %7341 = vmatprep.subr.mxu0 0.0
        %7342 = vmatpush1.xpose.msra.mxu0 0.0
        %7343 = vmatprep.subr.mxu0 0.0
        %7344 = vmatpush1.xpose.msra.mxu0 0.0
        %7345 = vmatprep.subr.mxu0 0.0
        %7346 = vmatpush1.xpose.msra.mxu0 0.0
        %7347 = vmatprep.subr.mxu0 0.0
        %7348 = vmatpush1.xpose.msra.mxu0 0.0
        %7349 = vmatprep.subr.mxu0 0.0
        %7350 = vmatpush1.xpose.msra.mxu0 0.0
        %7351 = vmatprep.subr.mxu0 0.0
        %7352 = vmatpush1.xpose.msra.mxu0 0.0
        %7353 = vmatprep.subr.mxu0 0.0
        %7354 = vmatpush1.xpose.msra.mxu0 0.0
        %7355 = vmatprep.subr.mxu0 0.0
        %7356 = vmatpush1.xpose.msra.mxu0 0.0
        %7357 = vmatprep.mubr.f32.mxu0 0.0
        %7358 = vmatmul.mubr.f32.gmra.mrb[0].mxu0 %v7285
        %v7359 = vpop.f32.mrb[0].mxu0
        %v7360 = vadd.f32 0.0, %v7359
        %v7361 = vpop.f32.mrb[0].mxu0
        %7362 = vmatprep.mubr.f32.mxu0 0.0
        %7363 = vmatmul.mubr.f32.gmra.mrb[0].mxu0 %v7287
        %v7364 = vpop.f32.mrb[0].mxu0
        %v7365 = vadd.f32 0.0, %v7364
        %v7366 = vpop.f32.mrb[0].mxu0
        %7367 = vdwg.mxu0
        %7368 = vrot.lane.b32.xlu0 %v515, 100
        %v7369 = vpop.permute.xlu0 %7368
        %7370 = vrot.lane.b32.xlu0 %v520, 100
        %v7371 = vpop.permute.xlu0 %7370
        %7372 = vrot.lane.b32.xlu0 %v515, 68
        %v7373 = vpop.permute.xlu0 %7372
        %7374 = vrot.lane.b32.xlu0 %v520, 68
        %v7375 = vpop.permute.xlu0 %7374
        %v7376 = vsel %vm529, %v7369, 0
        %v7378 = vsel %vm529, %v7371, 0
        %v7380 = vsel %vm529, %v7373, 0
        %v7382 = vsel %vm529, %v7375, 0
        %7384 = vmatprep.subr.mxu0 0.0
        %7385 = vmatpush1.xpose.msra.mxu0 %v7380
        %7386 = vmatprep.subr.mxu0 0.0
        %7387 = vmatpush1.xpose.msra.mxu0 %v7382
        %7388 = vmatprep.subr.mxu0 0.0
        %7389 = vmatpush1.xpose.msra.mxu0 0.0
        %7390 = vmatprep.subr.mxu0 0.0
        %7391 = vmatpush1.xpose.msra.mxu0 0.0
        %7392 = vmatprep.subr.mxu0 0.0
        %7393 = vmatpush1.xpose.msra.mxu0 0.0
        %7394 = vmatprep.subr.mxu0 0.0
        %7395 = vmatpush1.xpose.msra.mxu0 0.0
        %7396 = vmatprep.subr.mxu0 0.0
        %7397 = vmatpush1.xpose.msra.mxu0 0.0
        %7398 = vmatprep.subr.mxu0 0.0
        %7399 = vmatpush1.xpose.msra.mxu0 0.0
        %7400 = vmatprep.subr.mxu0 0.0
        %7401 = vmatpush1.xpose.msra.mxu0 0.0
        %7402 = vmatprep.subr.mxu0 0.0
        %7403 = vmatpush1.xpose.msra.mxu0 0.0
        %7404 = vmatprep.subr.mxu0 0.0
        %7405 = vmatpush1.xpose.msra.mxu0 0.0
        %7406 = vmatprep.subr.mxu0 0.0
        %7407 = vmatpush1.xpose.msra.mxu0 0.0
        %7408 = vmatprep.subr.mxu0 0.0
        %7409 = vmatpush1.xpose.msra.mxu0 0.0
        %7410 = vmatprep.subr.mxu0 0.0
        %7411 = vmatpush1.xpose.msra.mxu0 0.0
        %7412 = vmatprep.subr.mxu0 0.0
        %7413 = vmatpush1.xpose.msra.mxu0 0.0
        %7414 = vmatprep.subr.mxu0 0.0
        %7415 = vmatpush1.xpose.msra.mxu0 0.0
        %7416 = vmatprep.subr.mxu0 0.0
        %7417 = vmatpush1.xpose.msra.mxu0 0.0
        %7418 = vmatprep.subr.mxu0 0.0
        %7419 = vmatpush1.xpose.msra.mxu0 0.0
        %7420 = vmatprep.subr.mxu0 0.0
        %7421 = vmatpush1.xpose.msra.mxu0 0.0
        %7422 = vmatprep.subr.mxu0 0.0
        %7423 = vmatpush1.xpose.msra.mxu0 0.0
        %7424 = vmatprep.subr.mxu0 0.0
        %7425 = vmatpush1.xpose.msra.mxu0 0.0
        %7426 = vmatprep.subr.mxu0 0.0
        %7427 = vmatpush1.xpose.msra.mxu0 0.0
        %7428 = vmatprep.subr.mxu0 0.0
        %7429 = vmatpush1.xpose.msra.mxu0 0.0
        %7430 = vmatprep.subr.mxu0 0.0
        %7431 = vmatpush1.xpose.msra.mxu0 0.0
        %7432 = vmatprep.subr.mxu0 0.0
        %7433 = vmatpush1.xpose.msra.mxu0 0.0
        %7434 = vmatprep.subr.mxu0 0.0
        %7435 = vmatpush1.xpose.msra.mxu0 0.0
        %7436 = vmatprep.subr.mxu0 0.0
        %7437 = vmatpush1.xpose.msra.mxu0 0.0
        %7438 = vmatprep.subr.mxu0 0.0
        %7439 = vmatpush1.xpose.msra.mxu0 0.0
        %7440 = vmatprep.subr.mxu0 0.0
        %7441 = vmatpush1.xpose.msra.mxu0 0.0
        %7442 = vmatprep.subr.mxu0 0.0
        %7443 = vmatpush1.xpose.msra.mxu0 0.0
        %7444 = vmatprep.subr.mxu0 0.0
        %7445 = vmatpush1.xpose.msra.mxu0 0.0
        %7446 = vmatprep.subr.mxu0 0.0
        %7447 = vmatpush1.xpose.msra.mxu0 0.0
        %7448 = vmatprep.mubr.f32.mxu0 0.0
        %7449 = vmatmul.mubr.f32.gmra.mrb[0].mxu0 %v7376
        %v7450 = vpop.f32.mrb[0].mxu0
        %v7451 = vadd.f32 0.0, %v7450
        %v7452 = vpop.f32.mrb[0].mxu0
        %7453 = vmatprep.mubr.f32.mxu0 0.0
        %7454 = vmatmul.mubr.f32.gmra.mrb[0].mxu0 %v7378
        %v7455 = vpop.f32.mrb[0].mxu0
        %v7456 = vadd.f32 0.0, %v7455
        %v7457 = vpop.f32.mrb[0].mxu0
        %7458 = vdwg.mxu0
        %v7459 = vsel %vm880, %v7178, -inf
        %7460 = vmax.xlane.f32.xlu0 %v7459
        %v7461 = vpop.xlane.xlu0 %7460
        %v7462 = vsel %vm880, %v7183, -inf
        %7463 = vmax.xlane.f32.xlu0 %v7462
        %v7464 = vpop.xlane.xlu0 %7463
        %v7465 = vsel %vm880, %v7269, -inf
        %7466 = vmax.xlane.f32.xlu0 %v7465
        %v7467 = vpop.xlane.xlu0 %7466
        %v7468 = vsel %vm880, %v7274, -inf
        %7469 = vmax.xlane.f32.xlu0 %v7468
        %v7470 = vpop.xlane.xlu0 %7469
        %v7471 = vsel %vm880, %v7360, -inf
        %7472 = vmax.xlane.f32.xlu0 %v7471
        %v7473 = vpop.xlane.xlu0 %7472
        %v7474 = vsel %vm880, %v7365, -inf
        %7475 = vmax.xlane.f32.xlu0 %v7474
        %v7476 = vpop.xlane.xlu0 %7475
        %v7477 = vsel %vm880, %v7451, -inf
        %7478 = vmax.xlane.f32.xlu0 %v7477
        %v7479 = vpop.xlane.xlu0 %7478
        %v7480 = vsel %vm880, %v7456, -inf
        %7481 = vmax.xlane.f32.xlu0 %v7480
        %v7482 = vpop.xlane.xlu0 %7481
        %v7483 = vsub.f32 %v7178, %v7461
        %v7484 = vsub.f32 %v7183, %v7464
        %v7485 = vsub.f32 %v7269, %v7467
        %v7486 = vsub.f32 %v7274, %v7470
        %v7487 = vsub.f32 %v7360, %v7473
        %v7488 = vsub.f32 %v7365, %v7476
        %v7489 = vsub.f32 %v7451, %v7479
        %v7490 = vsub.f32 %v7456, %v7482
        %v7491 = vmul.f32 %v7483, 1.442695
        %v7492 = vpow.pop %v7491
        %v7493 = vmul.f32 %v7484, 1.442695
        %v7494 = vpow.pop %v7493
        %v7495 = vmul.f32 %v7485, 1.442695
        %v7496 = vpow.pop %v7495
        %v7497 = vmul.f32 %v7486, 1.442695
        %v7498 = vpow.pop %v7497
        %v7499 = vmul.f32 %v7487, 1.442695
        %v7500 = vpow.pop %v7499
        %v7501 = vmul.f32 %v7488, 1.442695
        %v7502 = vpow.pop %v7501
        %v7503 = vmul.f32 %v7489, 1.442695
        %v7504 = vpow.pop %v7503
        %v7505 = vmul.f32 %v7490, 1.442695
        %v7506 = vpow.pop %v7505
        %v7507 = vsel %vm880, %v7492, 0.0
        %7508 = vadd.xlane.f32.xlu0 %v7507
        %v7509 = vpop.xlane.xlu0 %7508
        %v7510 = vsel %vm880, %v7494, 0.0
        %7511 = vadd.xlane.f32.xlu0 %v7510
        %v7512 = vpop.xlane.xlu0 %7511
        %v7513 = vsel %vm880, %v7496, 0.0
        %7514 = vadd.xlane.f32.xlu0 %v7513
        %v7515 = vpop.xlane.xlu0 %7514
        %v7516 = vsel %vm880, %v7498, 0.0
        %7517 = vadd.xlane.f32.xlu0 %v7516
        %v7518 = vpop.xlane.xlu0 %7517
        %v7519 = vsel %vm880, %v7500, 0.0
        %7520 = vadd.xlane.f32.xlu0 %v7519
        %v7521 = vpop.xlane.xlu0 %7520
        %v7522 = vsel %vm880, %v7502, 0.0
        %7523 = vadd.xlane.f32.xlu0 %v7522
        %v7524 = vpop.xlane.xlu0 %7523
        %v7525 = vsel %vm880, %v7504, 0.0
        %7526 = vadd.xlane.f32.xlu0 %v7525
        %v7527 = vpop.xlane.xlu0 %7526
        %v7528 = vsel %vm880, %v7506, 0.0
        %7529 = vadd.xlane.f32.xlu0 %v7528
        %v7530 = vpop.xlane.xlu0 %7529
        %v7531 = vrcp.pop %v7509
        %v7532 = vrcp.pop %v7512
        %v7533 = vrcp.pop %v7515
        %v7534 = vrcp.pop %v7518
        %v7535 = vrcp.pop %v7521
        %v7536 = vrcp.pop %v7524
        %v7537 = vrcp.pop %v7527
        %v7538 = vrcp.pop %v7530
        %v7539 = vmul.f32 %v7492, %v7531
        %v7540 = vmul.f32 %v7494, %v7532
        %v7541 = vmul.f32 %v7496, %v7533
        %v7542 = vmul.f32 %v7498, %v7534
        %v7543 = vmul.f32 %v7500, %v7535
        %v7544 = vmul.f32 %v7502, %v7536
        %v7545 = vmul.f32 %v7504, %v7537
        %v7546 = vmul.f32 %v7506, %v7538
        %7547 = vrot.lane.b32.xlu0 %v485, 36
        %v7548 = vpop.permute.xlu0 %7547
        %7549 = vrot.lane.b32.xlu0 %v490, 36
        %v7550 = vpop.permute.xlu0 %7549
        %v7554 = vsel %vm880, %v7539, 0
        %v7557 = vsel %vm880, %v7540, 0
        %7559 = vmatprep.subr.mxu0 0.0
        %7560 = vmatpush1.msra.mxu0 %v7548
        %7561 = vmatprep.subr.mxu0 0.0
        %7562 = vmatpush1.msra.mxu0 %v7550
        %7563 = vmatprep.subr.mxu0 0.0
        %7564 = vmatpush1.msra.mxu0 0.0
        %7565 = vmatprep.subr.mxu0 0.0
        %7566 = vmatpush1.msra.mxu0 0.0
        %7567 = vmatprep.subr.mxu0 0.0
        %7568 = vmatpush1.msra.mxu0 0.0
        %7569 = vmatprep.subr.mxu0 0.0
        %7570 = vmatpush1.msra.mxu0 0.0
        %7571 = vmatprep.subr.mxu0 0.0
        %7572 = vmatpush1.msra.mxu0 0.0
        %7573 = vmatprep.subr.mxu0 0.0
        %7574 = vmatpush1.msra.mxu0 0.0
        %7575 = vmatprep.subr.mxu0 0.0
        %7576 = vmatpush1.msra.mxu0 0.0
        %7577 = vmatprep.subr.mxu0 0.0
        %7578 = vmatpush1.msra.mxu0 0.0
        %7579 = vmatprep.subr.mxu0 0.0
        %7580 = vmatpush1.msra.mxu0 0.0
        %7581 = vmatprep.subr.mxu0 0.0
        %7582 = vmatpush1.msra.mxu0 0.0
        %7583 = vmatprep.subr.mxu0 0.0
        %7584 = vmatpush1.msra.mxu0 0.0
        %7585 = vmatprep.subr.mxu0 0.0
        %7586 = vmatpush1.msra.mxu0 0.0
        %7587 = vmatprep.subr.mxu0 0.0
        %7588 = vmatpush1.msra.mxu0 0.0
        %7589 = vmatprep.subr.mxu0 0.0
        %7590 = vmatpush1.msra.mxu0 0.0
        %7591 = vmatprep.subr.mxu0 0.0
        %7592 = vmatpush1.msra.mxu0 0.0
        %7593 = vmatprep.subr.mxu0 0.0
        %7594 = vmatpush1.msra.mxu0 0.0
        %7595 = vmatprep.subr.mxu0 0.0
        %7596 = vmatpush1.msra.mxu0 0.0
        %7597 = vmatprep.subr.mxu0 0.0
        %7598 = vmatpush1.msra.mxu0 0.0
        %7599 = vmatprep.subr.mxu0 0.0
        %7600 = vmatpush1.msra.mxu0 0.0
        %7601 = vmatprep.subr.mxu0 0.0
        %7602 = vmatpush1.msra.mxu0 0.0
        %7603 = vmatprep.subr.mxu0 0.0
        %7604 = vmatpush1.msra.mxu0 0.0
        %7605 = vmatprep.subr.mxu0 0.0
        %7606 = vmatpush1.msra.mxu0 0.0
        %7607 = vmatprep.subr.mxu0 0.0
        %7608 = vmatpush1.msra.mxu0 0.0
        %7609 = vmatprep.subr.mxu0 0.0
        %7610 = vmatpush1.msra.mxu0 0.0
        %7611 = vmatprep.subr.mxu0 0.0
        %7612 = vmatpush1.msra.mxu0 0.0
        %7613 = vmatprep.subr.mxu0 0.0
        %7614 = vmatpush1.msra.mxu0 0.0
        %7615 = vmatprep.subr.mxu0 0.0
        %7616 = vmatpush1.msra.mxu0 0.0
        %7617 = vmatprep.subr.mxu0 0.0
        %7618 = vmatpush1.msra.mxu0 0.0
        %7619 = vmatprep.subr.mxu0 0.0
        %7620 = vmatpush1.msra.mxu0 0.0
        %7621 = vmatprep.subr.mxu0 0.0
        %7622 = vmatpush1.msra.mxu0 0.0
        %7623 = vmatprep.mubr.f32.mxu0 0.0
        %7624 = vmatmul.mubr.f32.gmra.mrb[0].mxu0 %v7554
        %v7625 = vpop.f32.mrb[0].mxu0
        %v7626 = vadd.f32 0.0, %v7625
        %v7627 = vpop.f32.mrb[0].mxu0
        %7628 = vmatprep.mubr.f32.mxu0 0.0
        %7629 = vmatmul.mubr.f32.gmra.mrb[0].mxu0 %v7557
        %v7630 = vpop.f32.mrb[0].mxu0
        %v7631 = vadd.f32 0.0, %v7630
        %v7632 = vpop.f32.mrb[0].mxu0
        %7633 = vdwg.mxu0
        %7634 = vrot.lane.b32.xlu0 %v495, 36
        %v7635 = vpop.permute.xlu0 %7634
        %7636 = vrot.lane.b32.xlu0 %v500, 36
        %v7637 = vpop.permute.xlu0 %7636
        %v7641 = vsel %vm880, %v7541, 0
        %v7644 = vsel %vm880, %v7542, 0
        %7646 = vmatprep.subr.mxu0 0.0
        %7647 = vmatpush1.msra.mxu0 %v7635
        %7648 = vmatprep.subr.mxu0 0.0
        %7649 = vmatpush1.msra.mxu0 %v7637
        %7650 = vmatprep.subr.mxu0 0.0
        %7651 = vmatpush1.msra.mxu0 0.0
        %7652 = vmatprep.subr.mxu0 0.0
        %7653 = vmatpush1.msra.mxu0 0.0
        %7654 = vmatprep.subr.mxu0 0.0
        %7655 = vmatpush1.msra.mxu0 0.0
        %7656 = vmatprep.subr.mxu0 0.0
        %7657 = vmatpush1.msra.mxu0 0.0
        %7658 = vmatprep.subr.mxu0 0.0
        %7659 = vmatpush1.msra.mxu0 0.0
        %7660 = vmatprep.subr.mxu0 0.0
        %7661 = vmatpush1.msra.mxu0 0.0
        %7662 = vmatprep.subr.mxu0 0.0
        %7663 = vmatpush1.msra.mxu0 0.0
        %7664 = vmatprep.subr.mxu0 0.0
        %7665 = vmatpush1.msra.mxu0 0.0
        %7666 = vmatprep.subr.mxu0 0.0
        %7667 = vmatpush1.msra.mxu0 0.0
        %7668 = vmatprep.subr.mxu0 0.0
        %7669 = vmatpush1.msra.mxu0 0.0
        %7670 = vmatprep.subr.mxu0 0.0
        %7671 = vmatpush1.msra.mxu0 0.0
        %7672 = vmatprep.subr.mxu0 0.0
        %7673 = vmatpush1.msra.mxu0 0.0
        %7674 = vmatprep.subr.mxu0 0.0
        %7675 = vmatpush1.msra.mxu0 0.0
        %7676 = vmatprep.subr.mxu0 0.0
        %7677 = vmatpush1.msra.mxu0 0.0
        %7678 = vmatprep.subr.mxu0 0.0
        %7679 = vmatpush1.msra.mxu0 0.0
        %7680 = vmatprep.subr.mxu0 0.0
        %7681 = vmatpush1.msra.mxu0 0.0
        %7682 = vmatprep.subr.mxu0 0.0
        %7683 = vmatpush1.msra.mxu0 0.0
        %7684 = vmatprep.subr.mxu0 0.0
        %7685 = vmatpush1.msra.mxu0 0.0
        %7686 = vmatprep.subr.mxu0 0.0
        %7687 = vmatpush1.msra.mxu0 0.0
        %7688 = vmatprep.subr.mxu0 0.0
        %7689 = vmatpush1.msra.mxu0 0.0
        %7690 = vmatprep.subr.mxu0 0.0
        %7691 = vmatpush1.msra.mxu0 0.0
        %7692 = vmatprep.subr.mxu0 0.0
        %7693 = vmatpush1.msra.mxu0 0.0
        %7694 = vmatprep.subr.mxu0 0.0
        %7695 = vmatpush1.msra.mxu0 0.0
        %7696 = vmatprep.subr.mxu0 0.0
        %7697 = vmatpush1.msra.mxu0 0.0
        %7698 = vmatprep.subr.mxu0 0.0
        %7699 = vmatpush1.msra.mxu0 0.0
        %7700 = vmatprep.subr.mxu0 0.0
        %7701 = vmatpush1.msra.mxu0 0.0
        %7702 = vmatprep.subr.mxu0 0.0
        %7703 = vmatpush1.msra.mxu0 0.0
        %7704 = vmatprep.subr.mxu0 0.0
        %7705 = vmatpush1.msra.mxu0 0.0
        %7706 = vmatprep.subr.mxu0 0.0
        %7707 = vmatpush1.msra.mxu0 0.0
        %7708 = vmatprep.subr.mxu0 0.0
        %7709 = vmatpush1.msra.mxu0 0.0
        %7710 = vmatprep.mubr.f32.mxu0 0.0
        %7711 = vmatmul.mubr.f32.gmra.mrb[0].mxu0 %v7641
        %v7712 = vpop.f32.mrb[0].mxu0
        %v7713 = vadd.f32 0.0, %v7712
        %v7714 = vpop.f32.mrb[0].mxu0
        %7715 = vmatprep.mubr.f32.mxu0 0.0
        %7716 = vmatmul.mubr.f32.gmra.mrb[0].mxu0 %v7644
        %v7717 = vpop.f32.mrb[0].mxu0
        %v7718 = vadd.f32 0.0, %v7717
        %v7719 = vpop.f32.mrb[0].mxu0
        %7720 = vdwg.mxu0
        %7721 = vrot.lane.b32.xlu0 %v505, 36
        %v7722 = vpop.permute.xlu0 %7721
        %7723 = vrot.lane.b32.xlu0 %v510, 36
        %v7724 = vpop.permute.xlu0 %7723
        %v7728 = vsel %vm880, %v7543, 0
        %v7731 = vsel %vm880, %v7544, 0
        %7733 = vmatprep.subr.mxu0 0.0
        %7734 = vmatpush1.msra.mxu0 %v7722
        %7735 = vmatprep.subr.mxu0 0.0
        %7736 = vmatpush1.msra.mxu0 %v7724
        %7737 = vmatprep.subr.mxu0 0.0
        %7738 = vmatpush1.msra.mxu0 0.0
        %7739 = vmatprep.subr.mxu0 0.0
        %7740 = vmatpush1.msra.mxu0 0.0
        %7741 = vmatprep.subr.mxu0 0.0
        %7742 = vmatpush1.msra.mxu0 0.0
        %7743 = vmatprep.subr.mxu0 0.0
        %7744 = vmatpush1.msra.mxu0 0.0
        %7745 = vmatprep.subr.mxu0 0.0
        %7746 = vmatpush1.msra.mxu0 0.0
        %7747 = vmatprep.subr.mxu0 0.0
        %7748 = vmatpush1.msra.mxu0 0.0
        %7749 = vmatprep.subr.mxu0 0.0
        %7750 = vmatpush1.msra.mxu0 0.0
        %7751 = vmatprep.subr.mxu0 0.0
        %7752 = vmatpush1.msra.mxu0 0.0
        %7753 = vmatprep.subr.mxu0 0.0
        %7754 = vmatpush1.msra.mxu0 0.0
        %7755 = vmatprep.subr.mxu0 0.0
        %7756 = vmatpush1.msra.mxu0 0.0
        %7757 = vmatprep.subr.mxu0 0.0
        %7758 = vmatpush1.msra.mxu0 0.0
        %7759 = vmatprep.subr.mxu0 0.0
        %7760 = vmatpush1.msra.mxu0 0.0
        %7761 = vmatprep.subr.mxu0 0.0
        %7762 = vmatpush1.msra.mxu0 0.0
        %7763 = vmatprep.subr.mxu0 0.0
        %7764 = vmatpush1.msra.mxu0 0.0
        %7765 = vmatprep.subr.mxu0 0.0
        %7766 = vmatpush1.msra.mxu0 0.0
        %7767 = vmatprep.subr.mxu0 0.0
        %7768 = vmatpush1.msra.mxu0 0.0
        %7769 = vmatprep.subr.mxu0 0.0
        %7770 = vmatpush1.msra.mxu0 0.0
        %7771 = vmatprep.subr.mxu0 0.0
        %7772 = vmatpush1.msra.mxu0 0.0
        %7773 = vmatprep.subr.mxu0 0.0
        %7774 = vmatpush1.msra.mxu0 0.0
        %7775 = vmatprep.subr.mxu0 0.0
        %7776 = vmatpush1.msra.mxu0 0.0
        %7777 = vmatprep.subr.mxu0 0.0
        %7778 = vmatpush1.msra.mxu0 0.0
        %7779 = vmatprep.subr.mxu0 0.0
        %7780 = vmatpush1.msra.mxu0 0.0
        %7781 = vmatprep.subr.mxu0 0.0
        %7782 = vmatpush1.msra.mxu0 0.0
        %7783 = vmatprep.subr.mxu0 0.0
        %7784 = vmatpush1.msra.mxu0 0.0
        %7785 = vmatprep.subr.mxu0 0.0
        %7786 = vmatpush1.msra.mxu0 0.0
        %7787 = vmatprep.subr.mxu0 0.0
        %7788 = vmatpush1.msra.mxu0 0.0
        %7789 = vmatprep.subr.mxu0 0.0
        %7790 = vmatpush1.msra.mxu0 0.0
        %7791 = vmatprep.subr.mxu0 0.0
        %7792 = vmatpush1.msra.mxu0 0.0
        %7793 = vmatprep.subr.mxu0 0.0
        %7794 = vmatpush1.msra.mxu0 0.0
        %7795 = vmatprep.subr.mxu0 0.0
        %7796 = vmatpush1.msra.mxu0 0.0
        %7797 = vmatprep.mubr.f32.mxu0 0.0
        %7798 = vmatmul.mubr.f32.gmra.mrb[0].mxu0 %v7728
        %v7799 = vpop.f32.mrb[0].mxu0
        %v7800 = vadd.f32 0.0, %v7799
        %v7801 = vpop.f32.mrb[0].mxu0
        %7802 = vmatprep.mubr.f32.mxu0 0.0
        %7803 = vmatmul.mubr.f32.gmra.mrb[0].mxu0 %v7731
        %v7804 = vpop.f32.mrb[0].mxu0
        %v7805 = vadd.f32 0.0, %v7804
        %v7806 = vpop.f32.mrb[0].mxu0
        %7807 = vdwg.mxu0
        %7808 = vrot.lane.b32.xlu0 %v515, 36
        %v7809 = vpop.permute.xlu0 %7808
        %7810 = vrot.lane.b32.xlu0 %v520, 36
        %v7811 = vpop.permute.xlu0 %7810
        %v7815 = vsel %vm880, %v7545, 0
        %v7818 = vsel %vm880, %v7546, 0
        %7820 = vmatprep.subr.mxu0 0.0
        %7821 = vmatpush1.msra.mxu0 %v7809
        %7822 = vmatprep.subr.mxu0 0.0
        %7823 = vmatpush1.msra.mxu0 %v7811
        %7824 = vmatprep.subr.mxu0 0.0
        %7825 = vmatpush1.msra.mxu0 0.0
        %7826 = vmatprep.subr.mxu0 0.0
        %7827 = vmatpush1.msra.mxu0 0.0
        %7828 = vmatprep.subr.mxu0 0.0
        %7829 = vmatpush1.msra.mxu0 0.0
        %7830 = vmatprep.subr.mxu0 0.0
        %7831 = vmatpush1.msra.mxu0 0.0
        %7832 = vmatprep.subr.mxu0 0.0
        %7833 = vmatpush1.msra.mxu0 0.0
        %7834 = vmatprep.subr.mxu0 0.0
        %7835 = vmatpush1.msra.mxu0 0.0
        %7836 = vmatprep.subr.mxu0 0.0
        %7837 = vmatpush1.msra.mxu0 0.0
        %7838 = vmatprep.subr.mxu0 0.0
        %7839 = vmatpush1.msra.mxu0 0.0
        %7840 = vmatprep.subr.mxu0 0.0
        %7841 = vmatpush1.msra.mxu0 0.0
        %7842 = vmatprep.subr.mxu0 0.0
        %7843 = vmatpush1.msra.mxu0 0.0
        %7844 = vmatprep.subr.mxu0 0.0
        %7845 = vmatpush1.msra.mxu0 0.0
        %7846 = vmatprep.subr.mxu0 0.0
        %7847 = vmatpush1.msra.mxu0 0.0
        %7848 = vmatprep.subr.mxu0 0.0
        %7849 = vmatpush1.msra.mxu0 0.0
        %7850 = vmatprep.subr.mxu0 0.0
        %7851 = vmatpush1.msra.mxu0 0.0
        %7852 = vmatprep.subr.mxu0 0.0
        %7853 = vmatpush1.msra.mxu0 0.0
        %7854 = vmatprep.subr.mxu0 0.0
        %7855 = vmatpush1.msra.mxu0 0.0
        %7856 = vmatprep.subr.mxu0 0.0
        %7857 = vmatpush1.msra.mxu0 0.0
        %7858 = vmatprep.subr.mxu0 0.0
        %7859 = vmatpush1.msra.mxu0 0.0
        %7860 = vmatprep.subr.mxu0 0.0
        %7861 = vmatpush1.msra.mxu0 0.0
        %7862 = vmatprep.subr.mxu0 0.0
        %7863 = vmatpush1.msra.mxu0 0.0
        %7864 = vmatprep.subr.mxu0 0.0
        %7865 = vmatpush1.msra.mxu0 0.0
        %7866 = vmatprep.subr.mxu0 0.0
        %7867 = vmatpush1.msra.mxu0 0.0
        %7868 = vmatprep.subr.mxu0 0.0
        %7869 = vmatpush1.msra.mxu0 0.0
        %7870 = vmatprep.subr.mxu0 0.0
        %7871 = vmatpush1.msra.mxu0 0.0
        %7872 = vmatprep.subr.mxu0 0.0
        %7873 = vmatpush1.msra.mxu0 0.0
        %7874 = vmatprep.subr.mxu0 0.0
        %7875 = vmatpush1.msra.mxu0 0.0
        %7876 = vmatprep.subr.mxu0 0.0
        %7877 = vmatpush1.msra.mxu0 0.0
        %7878 = vmatprep.subr.mxu0 0.0
        %7879 = vmatpush1.msra.mxu0 0.0
        %7880 = vmatprep.subr.mxu0 0.0
        %7881 = vmatpush1.msra.mxu0 0.0
        %7882 = vmatprep.subr.mxu0 0.0
        %7883 = vmatpush1.msra.mxu0 0.0
        %7884 = vmatprep.mubr.f32.mxu0 0.0
        %7885 = vmatmul.mubr.f32.gmra.mrb[0].mxu0 %v7815
        %v7886 = vpop.f32.mrb[0].mxu0
        %v7887 = vadd.f32 0.0, %v7886
        %v7888 = vpop.f32.mrb[0].mxu0
        %7889 = vmatprep.mubr.f32.mxu0 0.0
        %7890 = vmatmul.mubr.f32.gmra.mrb[0].mxu0 %v7818
        %v7891 = vpop.f32.mrb[0].mxu0
        %v7892 = vadd.f32 0.0, %v7891
        %v7893 = vpop.f32.mrb[0].mxu0
        %7894 = vdwg.mxu0
        %s7895 = scalar_lea.vmem %s3, 28
        %v7896 = vld [vmem:[%s7895] sm:$0xf]
        %v7898 = vsel %vm529, %v7626, 0
        %v7901 = vsel %vm529, %v7631, 0
        %v7904 = vsel %vm529, %v7713, 0
        %v7907 = vsel %vm529, %v7718, 0
        %v7910 = vsel %vm529, %v7800, 0
        %v7913 = vsel %vm529, %v7805, 0
        %v7916 = vsel %vm529, %v7887, 0
        %v7919 = vsel %vm529, %v7892, 0
        %v7922 = vsel %vm2144, %v7896, 0
        %7924 = vmatprep.subr.mxu0 0.0
        %7925 = vmatpush1.msra.mxu0 %v7922
        %7926 = vmatprep.subr.mxu0 0.0
        %7927 = vmatpush1.msra.mxu0 0.0
        %7928 = vmatprep.subr.mxu0 0.0
        %7929 = vmatpush1.msra.mxu0 0.0
        %7930 = vmatprep.subr.mxu0 0.0
        %7931 = vmatpush1.msra.mxu0 0.0
        %7932 = vmatprep.subr.mxu0 0.0
        %7933 = vmatpush1.msra.mxu0 0.0
        %7934 = vmatprep.subr.mxu0 0.0
        %7935 = vmatpush1.msra.mxu0 0.0
        %7936 = vmatprep.subr.mxu0 0.0
        %7937 = vmatpush1.msra.mxu0 0.0
        %7938 = vmatprep.subr.mxu0 0.0
        %7939 = vmatpush1.msra.mxu0 0.0
        %7940 = vmatprep.subr.mxu0 0.0
        %7941 = vmatpush1.msra.mxu0 0.0
        %7942 = vmatprep.subr.mxu0 0.0
        %7943 = vmatpush1.msra.mxu0 0.0
        %7944 = vmatprep.subr.mxu0 0.0
        %7945 = vmatpush1.msra.mxu0 0.0
        %7946 = vmatprep.subr.mxu0 0.0
        %7947 = vmatpush1.msra.mxu0 0.0
        %7948 = vmatprep.subr.mxu0 0.0
        %7949 = vmatpush1.msra.mxu0 0.0
        %7950 = vmatprep.subr.mxu0 0.0
        %7951 = vmatpush1.msra.mxu0 0.0
        %7952 = vmatprep.subr.mxu0 0.0
        %7953 = vmatpush1.msra.mxu0 0.0
        %7954 = vmatprep.subr.mxu0 0.0
        %7955 = vmatpush1.msra.mxu0 0.0
        %7956 = vmatprep.subr.mxu0 0.0
        %7957 = vmatpush1.msra.mxu0 0.0
        %7958 = vmatprep.subr.mxu0 0.0
        %7959 = vmatpush1.msra.mxu0 0.0
        %7960 = vmatprep.subr.mxu0 0.0
        %7961 = vmatpush1.msra.mxu0 0.0
        %7962 = vmatprep.subr.mxu0 0.0
        %7963 = vmatpush1.msra.mxu0 0.0
        %7964 = vmatprep.subr.mxu0 0.0
        %7965 = vmatpush1.msra.mxu0 0.0
        %7966 = vmatprep.subr.mxu0 0.0
        %7967 = vmatpush1.msra.mxu0 0.0
        %7968 = vmatprep.subr.mxu0 0.0
        %7969 = vmatpush1.msra.mxu0 0.0
        %7970 = vmatprep.subr.mxu0 0.0
        %7971 = vmatpush1.msra.mxu0 0.0
        %7972 = vmatprep.subr.mxu0 0.0
        %7973 = vmatpush1.msra.mxu0 0.0
        %7974 = vmatprep.subr.mxu0 0.0
        %7975 = vmatpush1.msra.mxu0 0.0
        %7976 = vmatprep.subr.mxu0 0.0
        %7977 = vmatpush1.msra.mxu0 0.0
        %7978 = vmatprep.subr.mxu0 0.0
        %7979 = vmatpush1.msra.mxu0 0.0
        %7980 = vmatprep.subr.mxu0 0.0
        %7981 = vmatpush1.msra.mxu0 0.0
        %7982 = vmatprep.subr.mxu0 0.0
        %7983 = vmatpush1.msra.mxu0 0.0
        %7984 = vmatprep.subr.mxu0 0.0
        %7985 = vmatpush1.msra.mxu0 0.0
        %7986 = vmatprep.subr.mxu0 0.0
        %7987 = vmatpush1.msra.mxu0 0.0
        %7988 = vmatprep.mubr.f32.mxu0 0.0
        %7989 = vmatmul.mubr.f32.gmra.mrb[0].mxu0 %v7898
        %v7990 = vpop.f32.mrb[0].mxu0
        %v7991 = vadd.f32 0.0, %v7990
        %v7992 = vpop.f32.mrb[0].mxu0
        %7993 = vmatprep.mubr.f32.mxu0 0.0
        %7994 = vmatmul.mubr.f32.gmra.mrb[0].mxu0 %v7901
        %v7995 = vpop.f32.mrb[0].mxu0
        %v7996 = vadd.f32 0.0, %v7995
        %v7997 = vpop.f32.mrb[0].mxu0
        %7998 = vmatprep.mubr.f32.mxu0 0.0
        %7999 = vmatmul.mubr.f32.gmra.mrb[0].mxu0 %v7904
        %v8000 = vpop.f32.mrb[0].mxu0
        %v8001 = vadd.f32 0.0, %v8000
        %v8002 = vpop.f32.mrb[0].mxu0
        %8003 = vmatprep.mubr.f32.mxu0 0.0
        %8004 = vmatmul.mubr.f32.gmra.mrb[0].mxu0 %v7907
        %v8005 = vpop.f32.mrb[0].mxu0
        %v8006 = vadd.f32 0.0, %v8005
        %v8007 = vpop.f32.mrb[0].mxu0
        %8008 = vmatprep.mubr.f32.mxu0 0.0
        %8009 = vmatmul.mubr.f32.gmra.mrb[0].mxu0 %v7910
        %v8010 = vpop.f32.mrb[0].mxu0
        %v8011 = vadd.f32 0.0, %v8010
        %v8012 = vpop.f32.mrb[0].mxu0
        %8013 = vmatprep.mubr.f32.mxu0 0.0
        %8014 = vmatmul.mubr.f32.gmra.mrb[0].mxu0 %v7913
        %v8015 = vpop.f32.mrb[0].mxu0
        %v8016 = vadd.f32 0.0, %v8015
        %v8017 = vpop.f32.mrb[0].mxu0
        %8018 = vmatprep.mubr.f32.mxu0 0.0
        %8019 = vmatmul.mubr.f32.gmra.mrb[0].mxu0 %v7916
        %v8020 = vpop.f32.mrb[0].mxu0
        %v8021 = vadd.f32 0.0, %v8020
        %v8022 = vpop.f32.mrb[0].mxu0
        %8023 = vmatprep.mubr.f32.mxu0 0.0
        %8024 = vmatmul.mubr.f32.gmra.mrb[0].mxu0 %v7919
        %v8025 = vpop.f32.mrb[0].mxu0
        %v8026 = vadd.f32 0.0, %v8025
        %v8027 = vpop.f32.mrb[0].mxu0
        %8028 = vdwg.mxu0
        %v8029 = vadd.f32 %v7087, %v7991
        %v8030 = vadd.f32 %v7088, %v7996
        %v8031 = vadd.f32 %v7089, %v8001
        %v8032 = vadd.f32 %v7090, %v8006
        %v8033 = vadd.f32 %v7091, %v8011
        %v8034 = vadd.f32 %v7092, %v8016
        %v8035 = vadd.f32 %v7093, %v8021
        %v8036 = vadd.f32 %v7094, %v8026
        %v8037 = vld [vmem:[%s4] sm:$0x1]
        %v8039 = vlaneseq
        %v8040 = vshrl.u32 %v8039, 7
        %v8041 = vsub.s32 0, %v8040
        %v8042 = vrot.slane %v8037, %v8041
        %v8044 = vadd.f32 %v8029, %v8042
        %v8045 = vadd.f32 %v8030, %v8042
        %v8046 = vadd.f32 %v8031, %v8042
        %v8047 = vadd.f32 %v8032, %v8042
        %v8048 = vadd.f32 %v8033, %v8042
        %v8049 = vadd.f32 %v8034, %v8042
        %v8050 = vadd.f32 %v8035, %v8042
        %v8051 = vadd.f32 %v8036, %v8042
        %8052 = vst.msk [vmem:[%s242] sm:$0xff] %vm259, %v8044
        %8053 = vst.msk [vmem:[%s242 + $0x8] sm:$0xff] %vm259, %v8045
        %8054 = vst.msk [vmem:[%s242 + $0x10] sm:$0xff] %vm259, %v8046
        %8055 = vst.msk [vmem:[%s242 + $0x18] sm:$0xff] %vm259, %v8047
        %8056 = vst.msk [vmem:[%s242 + $0x20] sm:$0xff] %vm259, %v8048
        %8057 = vst.msk [vmem:[%s242 + $0x28] sm:$0xff] %vm259, %v8049
        %8058 = vst.msk [vmem:[%s242 + $0x30] sm:$0xff] %vm259, %v8050
        %8059 = vst.msk [vmem:[%s242 + $0x38] sm:$0xff] %vm259, %v8051
        %s8060 = sand.u32 %s140, 1
        %s8061 = scalar_lea.sflag [#allocation4], %s8060
        %s8062 = sand.u32 %s140, 1
        %s8063 = smul.addr %s8062, 64
        %s8064 = scalar_lea.vmem [#allocation5], %s8063
        // Predicated region
        $region45: #{tpu_custom_call.1} parent=39 // pred_check
          %p8065 = pneg %p150
        $region46: #{tpu_custom_call.1} parent=39 // pred_check_branch
          %8067 = sbr.rel (%p8065) target = $region48
        $region47: #{tpu_custom_call.1} parent=39 // pred_region
          %s8069 = ssub.s32 1024, 1024
          %8070 = vsyncadd %s8061, %s8069
          %s8071 = smul.addr %s22, 8
          %s8072 = smul.addr %s8071, 128
          %s8073 = scalar_lea.hbm %s5, %s8072
          %s8074 = sshll.u32 %s8064, 4
          %s8075 = int_to_ptr.vmem [resolvable:$true] %s8074
          %8080 = dma.vmem_to_hbm [thread:$0]  %s8075, 1024, %s8073, %s8061, 128, 128, 8
        $region48: #{tpu_custom_call.1} parent=39 // pred_fallthru
          _
      $region40: #{tpu_custom_call.1} parent=5 // pred_fallthru
        _
      %p8081 = scmp.le.s32.totalorder 2, %s17
      // Predicated region
      $region49: #{tpu_custom_call.1} parent=5 // pred_check
        %p8082 = pneg %p8081
      $region50: #{tpu_custom_call.1} parent=5 // pred_check_branch
        %8084 = sbr.rel (%p8082) target = $region52
      $region51: #{tpu_custom_call.1} parent=5 // pred_region
        %s8085 = ssub.s32 %s17, 2
        // Predicated region
        $region53: #{tpu_custom_call.1} parent=51 // pred_check
          %p8086 = pneg %p156
        $region54: #{tpu_custom_call.1} parent=51 // pred_check_branch
          %8088 = sbr.rel (%p8086) target = $region56
        $region55: #{tpu_custom_call.1} parent=51 // pred_region
          %s8089 = sand.u32 %s141, 1
          %s8090 = scalar_lea.sflag [#allocation4], %s8089
          %s8091 = sand.u32 %s141, 1
          %s8092 = smul.addr %s8091, 64
          %s8093 = scalar_lea.vmem [#allocation5], %s8092
          %8094 = dma.done %s8090, 1024
        $region56: #{tpu_custom_call.1} parent=51 // pred_fallthru
          _
      $region52: #{tpu_custom_call.1} parent=5 // pred_fallthru
        _
    $region6: #{tpu_custom_call.1} parent=1 // loop_footer
      %s21 = sadd.s32 1, %s17
    $region7: #{tpu_custom_call.1} parent=1 // loop_footer_branch
      %16 = sbr.rel target = $region3
    $region8: #{tpu_custom_call.1} parent=1 // loop_exit
      _
    %8095 = vsyncpa [#allocation3], 1
    %s8096 = scalar_lea.sflag [#allocation3], 1
    %8097 = vsyncpa %s8096, 1
    %8098 = vsyncpa [#allocation4], 1
    %s8099 = scalar_lea.sflag [#allocation4], 1
    %8100 = vsyncpa %s8099, 1

</llo_original>
